<compile_context>
chip_gen: v5e
topology: v5e:2x2
jax: 0.10.0
libtpu: 0.0.40
codegen_flags: <defaults>
</compile_context>

<pallas_src>
import functools
import numpy as np
import jax
import jax.numpy as jnp
from jax.experimental import pallas as pl
from jax.experimental.pallas import tpu as pltpu


# ----------------------------- helpers --------------------------------------

def _row_tile(R, pref=256):
    # Row tile for LN / MLP kernels: full array if small, else 256 (multiple of 8).
    return R if R <= pref else pref


def _pick_window_batch(N, L, n_bias, target_rows=256):
    """Largest WB that divides N, keeps WB*L <= target_rows and is compatible
    with the per-window bias layout (WB % n_bias == 0 or n_bias % WB == 0)."""
    target = max(1, target_rows // L)
    best = 1
    for wb in range(1, N + 1):
        if wb > target:
            break
        if N % wb == 0 and (wb % n_bias == 0 or n_bias % wb == 0):
            best = wb
    return best


# ----------------------------- Pallas kernels ------------------------------

def _layernorm_kernel(x_ref, g_ref, b_ref, o_ref, *, eps):
    x = x_ref[...].astype(jnp.float32)
    mean = jnp.mean(x, axis=-1, keepdims=True)
    var = jnp.mean(jnp.square(x - mean), axis=-1, keepdims=True)
    y = (x - mean) * jax.lax.rsqrt(var + eps)
    o_ref[...] = (y * g_ref[...] + b_ref[...]).astype(o_ref.dtype)


def layernorm(x, gamma, beta, eps=1e-5):
    # Standalone LN (only used on the padded fallback path), tiled over rows.
    R, C = x.shape
    TR = _row_tile(R)
    return pl.pallas_call(
        functools.partial(_layernorm_kernel, eps=eps),
        out_shape=jax.ShapeDtypeStruct((R, C), x.dtype),
        grid=(pl.cdiv(R, TR),),
        in_specs=[pl.BlockSpec((TR, C), lambda i: (i, 0)),
                  pl.BlockSpec((1, C), lambda i: (0, 0)),
                  pl.BlockSpec((1, C), lambda i: (0, 0))],
        out_specs=pl.BlockSpec((TR, C), lambda i: (i, 0)),
        compiler_params=pltpu.CompilerParams(dimension_semantics=("parallel",)),
    )(x, gamma.reshape(1, C), beta.reshape(1, C))


def _ln_mlp_kernel(x_ref, g_ref, b_ref, w1_ref, b1_ref, w2_ref, b2_ref, o_ref, *, eps):
    # out = x + fc2(gelu(fc1(LayerNorm(x))))  -- LN2 + MLP + residual fused.
    x = x_ref[...].astype(jnp.float32)
    mean = jnp.mean(x, axis=-1, keepdims=True)
    var = jnp.mean(jnp.square(x - mean), axis=-1, keepdims=True)
    xn = (x - mean) * jax.lax.rsqrt(var + eps) * g_ref[...] + b_ref[...]
    h = jnp.dot(xn.astype(jnp.bfloat16), w1_ref[...],
                preferred_element_type=jnp.float32) + b1_ref[...]
    # TODO(synk): PyTorch nn.GELU uses the exact erf form; tanh approximation
    # used here for Mosaic lowering compatibility (difference ~1e-3).
    h = jax.nn.gelu(h, approximate=True)
    y = jnp.dot(h.astype(jnp.bfloat16), w2_ref[...],
                preferred_element_type=jnp.float32) + b2_ref[...]
    o_ref[...] = (x + y).astype(o_ref.dtype)


def ln_mlp(x, gamma, beta, w1, b1, w2, b2, eps=1e-5):
    R, C = x.shape
    Hd = w1.shape[1]
    TR = _row_tile(R)
    return pl.pallas_call(
        functools.partial(_ln_mlp_kernel, eps=eps),
        out_shape=jax.ShapeDtypeStruct((R, C), x.dtype),
        grid=(pl.cdiv(R, TR),),
        in_specs=[pl.BlockSpec((TR, C), lambda i: (i, 0)),
                  pl.BlockSpec((1, C), lambda i: (0, 0)),
                  pl.BlockSpec((1, C), lambda i: (0, 0)),
                  pl.BlockSpec((C, Hd), lambda i: (0, 0)),
                  pl.BlockSpec((1, Hd), lambda i: (0, 0)),
                  pl.BlockSpec((Hd, C), lambda i: (0, 0)),
                  pl.BlockSpec((1, C), lambda i: (0, 0))],
        out_specs=pl.BlockSpec((TR, C), lambda i: (i, 0)),
        compiler_params=pltpu.CompilerParams(dimension_semantics=("parallel",)),
    )(x, gamma.reshape(1, C), beta.reshape(1, C),
      w1.astype(jnp.bfloat16), b1.reshape(1, Hd),
      w2.astype(jnp.bfloat16), b2.reshape(1, C))


def _window_attn_kernel(x_ref, illu_ref, bias_ref, g_ref, b_ref,
                        wqkv_ref, bqkv_ref, wproj_ref, bproj_ref, o_ref,
                        *, num_heads, dim_head, scale, apply_ln, eps):
    # x_ref / illu_ref: (WB, L, C); bias_ref: (1 | WB, heads, L, L)
    WB, L, C = x_ref.shape
    HD = num_heads * dim_head
    M = WB * L

    x = x_ref[...].astype(jnp.float32).reshape(M, C)
    if apply_ln:        # fused LayerNorm1 (valid when no spatial padding)
        mean = jnp.mean(x, axis=-1, keepdims=True)
        var = jnp.mean(jnp.square(x - mean), axis=-1, keepdims=True)
        x = (x - mean) * jax.lax.rsqrt(var + eps) * g_ref[...] + b_ref[...]
    illu = illu_ref[...].astype(jnp.float32).reshape(M, C)

    # Fused QKV projection: one MXU matmul with bf16 operands, f32 accumulate.
    qkv = jnp.dot(x.astype(jnp.bfloat16), wqkv_ref[...],
                  preferred_element_type=jnp.float32) + bqkv_ref[...]
    q = (qkv[:, :HD] * scale).reshape(WB, L, HD).astype(jnp.bfloat16)
    k = qkv[:, HD:2 * HD].reshape(WB, L, HD).astype(jnp.bfloat16)
    v = (qkv[:, 2 * HD:] * illu).reshape(WB, L, HD).astype(jnp.bfloat16)

    bias = bias_ref[...].astype(jnp.float32)          # rel-pos bias (+ shift mask)

    outs = []
    for h in range(num_heads):
        lo = h * dim_head
        hi = lo + dim_head
        s = jnp.einsum('wld,wmd->wlm', q[..., lo:hi], k[..., lo:hi],
                       preferred_element_type=jnp.float32)          # (WB, L, L)
        s = s + bias[:, h]
        s = s - jnp.max(s, axis=-1, keepdims=True)
        p = jnp.exp(s)
        p = p * pl.reciprocal(jnp.sum(p, axis=-1, keepdims=True), approx=True)
        outs.append(jnp.einsum('wlm,wmd->wld', p.astype(jnp.bfloat16),
                               v[..., lo:hi], preferred_element_type=jnp.float32))

    # Concat over heads (channel = head*dim_head + d) then one output projection.
    o = jnp.concatenate(outs, axis=-1).reshape(M, HD)
    y = jnp.dot(o.astype(jnp.bfloat16), wproj_ref[...],
                preferred_element_type=jnp.float32) + bproj_ref[...]
    o_ref[...] = y.reshape(WB, L, C).astype(o_ref.dtype)


def window_attention(x_win, illu_win, bias, p, heads, dim_head, scale, *,
                     apply_ln, eps=1e-5):
    N, L, C = x_win.shape
    HD = heads * dim_head
    nB = bias.shape[0]                       # 1 (no shift) or nW (shifted)
    WB = _pick_window_batch(N, L, nB)

    if nB == 1:
        bias_block = (1, heads, L, L)
        bias_map = lambda n: (0, 0, 0, 0)
    elif WB % nB == 0:
        bias = jnp.tile(bias, (WB // nB, 1, 1, 1))
        bias_block = (WB, heads, L, L)
        bias_map = lambda n: (0, 0, 0, 0)
    else:  # nB % WB == 0
        rep = nB // WB
        bias_block = (WB, heads, L, L)
        bias_map = lambda n, rep=rep: (n % rep, 0, 0, 0)

    kernel = functools.partial(_window_attn_kernel, num_heads=heads,
                               dim_head=dim_head, scale=scale,
                               apply_ln=apply_ln, eps=eps)
    return pl.pallas_call(
        kernel,
        out_shape=jax.ShapeDtypeStruct((N, L, C), x_win.dtype),
        grid=(N // WB,),
        in_specs=[
            pl.BlockSpec((WB, L, C), lambda n: (n, 0, 0)),
            pl.BlockSpec((WB, L, C), lambda n: (n, 0, 0)),
            pl.BlockSpec(bias_block, bias_map),
            pl.BlockSpec((1, C), lambda n: (0, 0)),
            pl.BlockSpec((1, C), lambda n: (0, 0)),
            pl.BlockSpec((C, 3 * HD), lambda n: (0, 0)),
            pl.BlockSpec((1, 3 * HD), lambda n: (0, 0)),
            pl.BlockSpec((HD, C), lambda n: (0, 0)),
            pl.BlockSpec((1, C), lambda n: (0, 0)),
        ],
        out_specs=pl.BlockSpec((WB, L, C), lambda n: (n, 0, 0)),
        compiler_params=pltpu.CompilerParams(dimension_semantics=("parallel",)),
    )(x_win, illu_win, bias,
      p['g1'].reshape(1, C), p['be1'].reshape(1, C),
      p['wqkv'].astype(jnp.bfloat16), p['bqkv'].reshape(1, 3 * HD),
      p['wproj'].astype(jnp.bfloat16), p['bproj'].reshape(1, C))


# ------------------------------ JAX glue ------------------------------------

def window_partition(x, ws):
    B, H, W, C = x.shape
    x = x.reshape(B, H // ws, ws, W // ws, ws, C)
    return x.transpose(0, 1, 3, 2, 4, 5).reshape(-1, ws, ws, C)


def window_reverse(windows, ws, H, W):
    B = windows.shape[0] // (H * W // ws // ws)
    x = windows.reshape(B, H // ws, W // ws, ws, ws, -1)
    return x.transpose(0, 1, 3, 2, 4, 5).reshape(B, H, W, -1)


def create_mask_np(h, w, ws, shift):
    hp = int(np.ceil(h / ws)) * ws
    wp = int(np.ceil(w / ws)) * ws
    img_mask = np.zeros((1, hp, wp, 1), np.float32)
    h_slices = (slice(0, -ws), slice(-ws, -shift), slice(-shift, None))
    w_slices = (slice(0, -ws), slice(-ws, -shift), slice(-shift, None))
    cnt = 0
    for hs in h_slices:
        for wsl in w_slices:
            img_mask[:, hs, wsl, :] = cnt
            cnt += 1
    mw = img_mask.reshape(1, hp // ws, ws, wp // ws, ws, 1)
    mw = mw.transpose(0, 1, 3, 2, 4, 5).reshape(-1, ws * ws)
    am = mw[:, None, :] - mw[:, :, None]
    return np.where(am != 0, -1e9, 0.0).astype(np.float32)   # (nW, L, L)


def relative_position_index_np(ws):
    coords = np.stack(np.meshgrid(np.arange(ws), np.arange(ws), indexing='ij'))
    flat = coords.reshape(2, -1)
    rel = flat[:, :, None] - flat[:, None, :]
    rel = rel.transpose(1, 2, 0).astype(np.int64)
    rel[:, :, 0] += ws - 1
    rel[:, :, 1] += ws - 1
    rel[:, :, 0] *= 2 * ws - 1
    return rel.sum(-1)                                        # (L, L)


def init_swin_params(key, dim, dim_head, heads, num_blocks, window_size, mlp_ratio):
    L = window_size * window_size
    hid = int(dim * mlp_ratio)
    rel_idx = relative_position_index_np(window_size)
    std = 0.02
    blocks = []
    for _ in range(num_blocks):
        pair = []
        for _ in range(2):
            key, *ks = jax.random.split(key, 10)
            wqkv = std * jax.random.normal(ks[0], (dim, 3 * heads * dim_head), jnp.float32)
            bqkv = std * jax.random.normal(ks[1], (3 * heads * dim_head,), jnp.float32)
            table = std * jax.random.normal(ks[2], ((2 * window_size - 1) ** 2, heads), jnp.float32)
            rel_bias = table[rel_idx.reshape(-1)].reshape(L, L, heads).transpose(2, 0, 1)
            p = dict(
                g1=jnp.ones((dim,), jnp.float32), be1=jnp.zeros((dim,), jnp.float32),
                g2=jnp.ones((dim,), jnp.float32), be2=jnp.zeros((dim,), jnp.float32),
                wqkv=wqkv, bqkv=bqkv,                       # fused QKV projection
                rel_bias=rel_bias,
                wproj=std * jax.random.normal(ks[3], (heads * dim_head, dim), jnp.float32),
                bproj=std * jax.random.normal(ks[4], (dim,), jnp.float32),
                w1=std * jax.random.normal(ks[5], (dim, hid), jnp.float32),
                b1=std * jax.random.normal(ks[6], (hid,), jnp.float32),
                w2=std * jax.random.normal(ks[7], (hid, dim), jnp.float32),
                b2=std * jax.random.normal(ks[8], (dim,), jnp.float32),
            )
            pair.append(p)
        blocks.append(pair)
    return {'blocks': blocks}


def swin_block_forward(x_nchw, illu_nchw, p, ws, shift, attn_mask, heads, dim_head):
    b, c, h, w = x_nchw.shape
    x = jnp.transpose(x_nchw, (0, 2, 3, 1))                    # (b, h, w, c)
    short_cut = x.reshape(b, h * w, c)
    illu = jnp.transpose(illu_nchw, (0, 2, 3, 1))

    pad_r = (ws - w % ws) % ws
    pad_b = (ws - h % ws) % ws
    fuse_ln = (pad_r == 0 and pad_b == 0)   # LN commutes with roll / window partition
    if fuse_ln:
        xn = x
    else:
        # Reference pads zeros AFTER LayerNorm, so LN cannot be fused into the
        # attention kernel in the padded case.
        xn = layernorm(x.reshape(-1, c), p['g1'], p['be1']).reshape(b, h, w, c)
        xn = jnp.pad(xn, ((0, 0), (0, pad_b), (0, pad_r), (0, 0)))
        illu = jnp.pad(illu, ((0, 0), (0, pad_b), (0, pad_r), (0, 0)))
    hp, wp = h + pad_b, w + pad_r

    if shift > 0:
        xs = jnp.roll(xn, (-shift, -shift), axis=(1, 2))
        illus = jnp.roll(illu, (-shift, -shift), axis=(1, 2))
        bias = p['rel_bias'][None] + attn_mask[:, None]        # (nW, heads, L, L)
    else:
        xs, illus = xn, illu
        bias = p['rel_bias'][None]                             # (1, heads, L, L)

    L = ws * ws
    x_win = window_partition(xs, ws).reshape(-1, L, c)
    illu_win = window_partition(illus, ws).reshape(-1, L, c)
    scale = float(dim_head) ** -0.5
    attn_out = window_attention(x_win, illu_win, bias, p, heads, dim_head, scale,
                                apply_ln=fuse_ln)

    xs = window_reverse(attn_out.reshape(-1, ws, ws, c), ws, hp, wp)
    if shift > 0:
        xs = jnp.roll(xs, (shift, shift), axis=(1, 2))
    xs = xs[:, :h, :w, :]
    x = short_cut + xs.reshape(b, h * w, c)

    # LayerNorm2 + MLP + residual fused in one kernel.
    x = ln_mlp(x.reshape(-1, c), p['g2'], p['be2'], p['w1'], p['b1'], p['w2'], p['b2'])
    return x.reshape(b, h, w, c).transpose(0, 3, 1, 2)


def swin_transformer_forward(x, illu_fea, params, *, window_size, heads, dim_head):
    b, c, h, w = x.shape
    shift = window_size // 2
    attn_mask = jnp.asarray(create_mask_np(h, w, window_size, shift))
    for wmsa_p, swmsa_p in params['blocks']:
        x = swin_block_forward(x, illu_fea, wmsa_p, window_size, 0, None, heads, dim_head)
        x = swin_block_forward(x, illu_fea, swmsa_p, window_size, shift, attn_mask, heads, dim_head)
    return x


if __name__ == "__main__":
    key = jax.random.PRNGKey(0)
    B, C, H, W = 2, 32, 8, 8
    heads, dim_head = 4, 8            # dim == heads * dim_head (required by module)
    window_size = 4                   # small window for small spatial size
    num_blocks = 1
    mlp_ratio = 4

    k1, k2, k3 = jax.random.split(key, 3)
    x = jax.random.normal(k1, (B, C, H, W), jnp.float32)
    illu_fea = jax.random.normal(k2, (B, C, H, W), jnp.float32)
    params = init_swin_params(k3, C, dim_head, heads, num_blocks, window_size, mlp_ratio)

    fwd = jax.jit(functools.partial(swin_transformer_forward,
                                    window_size=window_size, heads=heads,
                                    dim_head=dim_head))
    out = jax.block_until_ready(fwd(x, illu_fea, params))
    assert out.shape == (B, C, H, W) and out.dtype == jnp.float32
    print("KERNEL_OK")
</pallas_src>

<mosaic_0001>
module attributes {stable_mosaic.version = 11 : i64} {
  func.func @_window_attn_kernel(%arg0: i32, %arg1: memref<8x16x32xf32, #tpu.memory_space<vmem>>, %arg2: memref<8x16x32xf32, #tpu.memory_space<vmem>>, %arg3: memref<1x4x16x16xf32, #tpu.memory_space<vmem>>, %arg4: memref<1x32xf32, #tpu.memory_space<vmem>>, %arg5: memref<1x32xf32, #tpu.memory_space<vmem>>, %arg6: memref<32x96xbf16, #tpu.memory_space<vmem>>, %arg7: memref<1x96xf32, #tpu.memory_space<vmem>>, %arg8: memref<32x32xbf16, #tpu.memory_space<vmem>>, %arg9: memref<1x32xf32, #tpu.memory_space<vmem>>, %arg10: memref<8x16x32xf32, #tpu.memory_space<vmem>>) attributes {dimension_semantics = [#tpu.dimension_semantics<parallel>], iteration_bounds = array<i64: 1>, scalar_prefetch = 0 : i64, scratch_operands = 0 : i64, tpu.core_type = #tpu.core_type<tc>, window_params = [{transform_indices = @transform_0, window_bounds = array<i64: 8, 16, 32>}, {transform_indices = @transform_1, window_bounds = array<i64: 8, 16, 32>}, {pipeline_mode = #tpu.pipeline_mode<synchronous>, transform_indices = @transform_2, window_bounds = array<i64: 1, 4, 16, 16>}, {pipeline_mode = #tpu.pipeline_mode<synchronous>, transform_indices = @transform_3, window_bounds = array<i64: 1, 32>}, {pipeline_mode = #tpu.pipeline_mode<synchronous>, transform_indices = @transform_4, window_bounds = array<i64: 1, 32>}, {pipeline_mode = #tpu.pipeline_mode<synchronous>, transform_indices = @transform_5, window_bounds = array<i64: 32, 96>}, {pipeline_mode = #tpu.pipeline_mode<synchronous>, transform_indices = @transform_6, window_bounds = array<i64: 1, 96>}, {pipeline_mode = #tpu.pipeline_mode<synchronous>, transform_indices = @transform_7, window_bounds = array<i64: 32, 32>}, {pipeline_mode = #tpu.pipeline_mode<synchronous>, transform_indices = @transform_8, window_bounds = array<i64: 1, 32>}, {transform_indices = @transform_9, window_bounds = array<i64: 8, 16, 32>}]} {
    %c0 = arith.constant 0 : index
    %c0_0 = arith.constant 0 : index
    %c0_1 = arith.constant 0 : index
    %0 = vector.load %arg1[%c0, %c0_0, %c0_1] : memref<8x16x32xf32, #tpu.memory_space<vmem>>, vector<8x16x32xf32>
    %1 = vector.shape_cast %0 : vector<8x16x32xf32> to vector<128x32xf32>
    %cst = arith.constant dense<0.000000e+00> : vector<128xf32>
    %2 = vector.multi_reduction <add>, %1, %cst [1] : vector<128x32xf32> to vector<128xf32>
    %3 = vector.shape_cast %2 : vector<128xf32> to vector<128x1xf32>
    %cst_2 = arith.constant 3.200000e+01 : f32
    %4 = vector.broadcast %cst_2 : f32 to vector<128x1xf32>
    %5 = arith.divf %3, %4 : vector<128x1xf32>
    %6 = vector.broadcast %5 : vector<128x1xf32> to vector<128x32xf32>
    %7 = arith.subf %1, %6 : vector<128x32xf32>
    %8 = arith.mulf %7, %7 : vector<128x32xf32>
    %cst_3 = arith.constant dense<0.000000e+00> : vector<128xf32>
    %9 = vector.multi_reduction <add>, %8, %cst_3 [1] : vector<128x32xf32> to vector<128xf32>
    %10 = vector.shape_cast %9 : vector<128xf32> to vector<128x1xf32>
    %cst_4 = arith.constant 3.200000e+01 : f32
    %11 = vector.broadcast %cst_4 : f32 to vector<128x1xf32>
    %12 = arith.divf %10, %11 : vector<128x1xf32>
    %13 = vector.broadcast %5 : vector<128x1xf32> to vector<128x32xf32>
    %14 = arith.subf %1, %13 : vector<128x32xf32>
    %cst_5 = arith.constant 9.99999974E-6 : f32
    %15 = vector.broadcast %cst_5 : f32 to vector<128x1xf32>
    %16 = arith.addf %12, %15 : vector<128x1xf32>
    %17 = math.rsqrt %16 : vector<128x1xf32>
    %18 = vector.broadcast %17 : vector<128x1xf32> to vector<128x32xf32>
    %19 = arith.mulf %14, %18 : vector<128x32xf32>
    %c0_6 = arith.constant 0 : index
    %c0_7 = arith.constant 0 : index
    %20 = vector.load %arg4[%c0_6, %c0_7] : memref<1x32xf32, #tpu.memory_space<vmem>>, vector<1x32xf32>
    %21 = vector.broadcast %20 : vector<1x32xf32> to vector<128x32xf32>
    %22 = arith.mulf %19, %21 : vector<128x32xf32>
    %c0_8 = arith.constant 0 : index
    %c0_9 = arith.constant 0 : index
    %23 = vector.load %arg5[%c0_8, %c0_9] : memref<1x32xf32, #tpu.memory_space<vmem>>, vector<1x32xf32>
    %24 = vector.broadcast %23 : vector<1x32xf32> to vector<128x32xf32>
    %25 = arith.addf %22, %24 : vector<128x32xf32>
    %c0_10 = arith.constant 0 : index
    %c0_11 = arith.constant 0 : index
    %c0_12 = arith.constant 0 : index
    %26 = vector.load %arg2[%c0_10, %c0_11, %c0_12] : memref<8x16x32xf32, #tpu.memory_space<vmem>>, vector<8x16x32xf32>
    %27 = vector.shape_cast %26 : vector<8x16x32xf32> to vector<128x32xf32>
    %28 = arith.truncf %25 : vector<128x32xf32> to vector<128x32xbf16>
    %c0_13 = arith.constant 0 : index
    %c0_14 = arith.constant 0 : index
    %29 = vector.load %arg6[%c0_13, %c0_14] : memref<32x96xbf16, #tpu.memory_space<vmem>>, vector<32x96xbf16>
    %cst_15 = arith.constant dense<0.000000e+00> : vector<128x96xf32>
    %30 = tpu.matmul %28, %29, %cst_15 {dimension_numbers = #tpu.dot_dimension_numbers<[1], [0], [0], [1], [0, 0, 1, 1], [], []>} : vector<128x32xbf16>, vector<32x96xbf16>, vector<128x96xf32> -> vector<128x96xf32>
    %c0_16 = arith.constant 0 : index
    %c0_17 = arith.constant 0 : index
    %31 = vector.load %arg7[%c0_16, %c0_17] : memref<1x96xf32, #tpu.memory_space<vmem>>, vector<1x96xf32>
    %32 = vector.broadcast %31 : vector<1x96xf32> to vector<128x96xf32>
    %33 = arith.addf %30, %32 : vector<128x96xf32>
    %34 = vector.extract_strided_slice %33 {offsets = [0, 0], sizes = [128, 32], strides = [1, 1]} : vector<128x96xf32> to vector<128x32xf32>
    %cst_18 = arith.constant 0.353553385 : f32
    %35 = vector.broadcast %cst_18 : f32 to vector<128x32xf32>
    %36 = arith.mulf %34, %35 : vector<128x32xf32>
    %37 = vector.shape_cast %36 : vector<128x32xf32> to vector<8x16x32xf32>
    %38 = arith.truncf %37 : vector<8x16x32xf32> to vector<8x16x32xbf16>
    %39 = vector.extract_strided_slice %33 {offsets = [0, 32], sizes = [128, 32], strides = [1, 1]} : vector<128x96xf32> to vector<128x32xf32>
    %40 = vector.shape_cast %39 : vector<128x32xf32> to vector<8x16x32xf32>
    %41 = arith.truncf %40 : vector<8x16x32xf32> to vector<8x16x32xbf16>
    %42 = vector.extract_strided_slice %33 {offsets = [0, 64], sizes = [128, 32], strides = [1, 1]} : vector<128x96xf32> to vector<128x32xf32>
    %43 = arith.mulf %42, %27 : vector<128x32xf32>
    %44 = vector.shape_cast %43 : vector<128x32xf32> to vector<8x16x32xf32>
    %45 = arith.truncf %44 : vector<8x16x32xf32> to vector<8x16x32xbf16>
    %c0_19 = arith.constant 0 : index
    %c0_20 = arith.constant 0 : index
    %c0_21 = arith.constant 0 : index
    %c0_22 = arith.constant 0 : index
    %46 = vector.load %arg3[%c0_19, %c0_20, %c0_21, %c0_22] : memref<1x4x16x16xf32, #tpu.memory_space<vmem>>, vector<1x4x16x16xf32>
    %47 = vector.extract_strided_slice %38 {offsets = [0, 0, 0], sizes = [8, 16, 8], strides = [1, 1, 1]} : vector<8x16x32xbf16> to vector<8x16x8xbf16>
    %48 = vector.extract_strided_slice %41 {offsets = [0, 0, 0], sizes = [8, 16, 8], strides = [1, 1, 1]} : vector<8x16x32xbf16> to vector<8x16x8xbf16>
    "tpu.trace_start"() <{level = 10 : i32, message = "wld,wmd->wlm"}> : () -> ()
    %cst_23 = arith.constant dense<0.000000e+00> : vector<8x16x16xf32>
    %49 = tpu.matmul %47, %48, %cst_23 {dimension_numbers = #tpu.dot_dimension_numbers<[2], [2], [1], [1], [0, 0, 0, 1, 1, 1], [0], [0]>} : vector<8x16x8xbf16>, vector<8x16x8xbf16>, vector<8x16x16xf32> -> vector<8x16x16xf32>
    "tpu.trace_stop"() : () -> ()
    %50 = vector.extract_strided_slice %46 {offsets = [0, 0, 0, 0], sizes = [1, 1, 16, 16], strides = [1, 1, 1, 1]} : vector<1x4x16x16xf32> to vector<1x1x16x16xf32>
    %51 = vector.shape_cast %50 : vector<1x1x16x16xf32> to vector<1x16x16xf32>
    %52 = vector.broadcast %51 : vector<1x16x16xf32> to vector<8x16x16xf32>
    %53 = arith.addf %49, %52 : vector<8x16x16xf32>
    %cst_24 = arith.constant dense<0xFF800000> : vector<8x16xf32>
    %54 = vector.multi_reduction <maximumf>, %53, %cst_24 [2] : vector<8x16x16xf32> to vector<8x16xf32>
    %55 = vector.shape_cast %54 : vector<8x16xf32> to vector<8x16x1xf32>
    %56 = vector.broadcast %55 : vector<8x16x1xf32> to vector<8x16x16xf32>
    %57 = arith.subf %53, %56 : vector<8x16x16xf32>
    %58 = math.exp %57 : vector<8x16x16xf32>
    %cst_25 = arith.constant dense<0.000000e+00> : vector<8x16xf32>
    %59 = vector.multi_reduction <add>, %58, %cst_25 [2] : vector<8x16x16xf32> to vector<8x16xf32>
    %60 = vector.shape_cast %59 : vector<8x16xf32> to vector<8x16x1xf32>
    %61 = tpu.reciprocal %60 {approx = true} : vector<8x16x1xf32> -> vector<8x16x1xf32>
    %62 = vector.broadcast %61 : vector<8x16x1xf32> to vector<8x16x16xf32>
    %63 = arith.mulf %58, %62 : vector<8x16x16xf32>
    %64 = arith.truncf %63 : vector<8x16x16xf32> to vector<8x16x16xbf16>
    %65 = vector.extract_strided_slice %45 {offsets = [0, 0, 0], sizes = [8, 16, 8], strides = [1, 1, 1]} : vector<8x16x32xbf16> to vector<8x16x8xbf16>
    "tpu.trace_start"() <{level = 10 : i32, message = "wlm,wmd->wld"}> : () -> ()
    %cst_26 = arith.constant dense<0.000000e+00> : vector<8x16x8xf32>
    %66 = tpu.matmul %64, %65, %cst_26 {dimension_numbers = #tpu.dot_dimension_numbers<[2], [1], [1], [2], [0, 0, 0, 1, 1, 2], [0], [0]>} : vector<8x16x16xbf16>, vector<8x16x8xbf16>, vector<8x16x8xf32> -> vector<8x16x8xf32>
    "tpu.trace_stop"() : () -> ()
    %67 = vector.extract_strided_slice %38 {offsets = [0, 0, 8], sizes = [8, 16, 8], strides = [1, 1, 1]} : vector<8x16x32xbf16> to vector<8x16x8xbf16>
    %68 = vector.extract_strided_slice %41 {offsets = [0, 0, 8], sizes = [8, 16, 8], strides = [1, 1, 1]} : vector<8x16x32xbf16> to vector<8x16x8xbf16>
    "tpu.trace_start"() <{level = 10 : i32, message = "wld,wmd->wlm"}> : () -> ()
    %cst_27 = arith.constant dense<0.000000e+00> : vector<8x16x16xf32>
    %69 = tpu.matmul %67, %68, %cst_27 {dimension_numbers = #tpu.dot_dimension_numbers<[2], [2], [1], [1], [0, 0, 0, 1, 1, 1], [0], [0]>} : vector<8x16x8xbf16>, vector<8x16x8xbf16>, vector<8x16x16xf32> -> vector<8x16x16xf32>
    "tpu.trace_stop"() : () -> ()
    %70 = vector.extract_strided_slice %46 {offsets = [0, 1, 0, 0], sizes = [1, 1, 16, 16], strides = [1, 1, 1, 1]} : vector<1x4x16x16xf32> to vector<1x1x16x16xf32>
    %71 = vector.shape_cast %70 : vector<1x1x16x16xf32> to vector<1x16x16xf32>
    %72 = vector.broadcast %71 : vector<1x16x16xf32> to vector<8x16x16xf32>
    %73 = arith.addf %69, %72 : vector<8x16x16xf32>
    %cst_28 = arith.constant dense<0xFF800000> : vector<8x16xf32>
    %74 = vector.multi_reduction <maximumf>, %73, %cst_28 [2] : vector<8x16x16xf32> to vector<8x16xf32>
    %75 = vector.shape_cast %74 : vector<8x16xf32> to vector<8x16x1xf32>
    %76 = vector.broadcast %75 : vector<8x16x1xf32> to vector<8x16x16xf32>
    %77 = arith.subf %73, %76 : vector<8x16x16xf32>
    %78 = math.exp %77 : vector<8x16x16xf32>
    %cst_29 = arith.constant dense<0.000000e+00> : vector<8x16xf32>
    %79 = vector.multi_reduction <add>, %78, %cst_29 [2] : vector<8x16x16xf32> to vector<8x16xf32>
    %80 = vector.shape_cast %79 : vector<8x16xf32> to vector<8x16x1xf32>
    %81 = tpu.reciprocal %80 {approx = true} : vector<8x16x1xf32> -> vector<8x16x1xf32>
    %82 = vector.broadcast %81 : vector<8x16x1xf32> to vector<8x16x16xf32>
    %83 = arith.mulf %78, %82 : vector<8x16x16xf32>
    %84 = arith.truncf %83 : vector<8x16x16xf32> to vector<8x16x16xbf16>
    %85 = vector.extract_strided_slice %45 {offsets = [0, 0, 8], sizes = [8, 16, 8], strides = [1, 1, 1]} : vector<8x16x32xbf16> to vector<8x16x8xbf16>
    "tpu.trace_start"() <{level = 10 : i32, message = "wlm,wmd->wld"}> : () -> ()
    %cst_30 = arith.constant dense<0.000000e+00> : vector<8x16x8xf32>
    %86 = tpu.matmul %84, %85, %cst_30 {dimension_numbers = #tpu.dot_dimension_numbers<[2], [1], [1], [2], [0, 0, 0, 1, 1, 2], [0], [0]>} : vector<8x16x16xbf16>, vector<8x16x8xbf16>, vector<8x16x8xf32> -> vector<8x16x8xf32>
    "tpu.trace_stop"() : () -> ()
    %87 = vector.extract_strided_slice %38 {offsets = [0, 0, 16], sizes = [8, 16, 8], strides = [1, 1, 1]} : vector<8x16x32xbf16> to vector<8x16x8xbf16>
    %88 = vector.extract_strided_slice %41 {offsets = [0, 0, 16], sizes = [8, 16, 8], strides = [1, 1, 1]} : vector<8x16x32xbf16> to vector<8x16x8xbf16>
    "tpu.trace_start"() <{level = 10 : i32, message = "wld,wmd->wlm"}> : () -> ()
    %cst_31 = arith.constant dense<0.000000e+00> : vector<8x16x16xf32>
    %89 = tpu.matmul %87, %88, %cst_31 {dimension_numbers = #tpu.dot_dimension_numbers<[2], [2], [1], [1], [0, 0, 0, 1, 1, 1], [0], [0]>} : vector<8x16x8xbf16>, vector<8x16x8xbf16>, vector<8x16x16xf32> -> vector<8x16x16xf32>
    "tpu.trace_stop"() : () -> ()
    %90 = vector.extract_strided_slice %46 {offsets = [0, 2, 0, 0], sizes = [1, 1, 16, 16], strides = [1, 1, 1, 1]} : vector<1x4x16x16xf32> to vector<1x1x16x16xf32>
    %91 = vector.shape_cast %90 : vector<1x1x16x16xf32> to vector<1x16x16xf32>
    %92 = vector.broadcast %91 : vector<1x16x16xf32> to vector<8x16x16xf32>
    %93 = arith.addf %89, %92 : vector<8x16x16xf32>
    %cst_32 = arith.constant dense<0xFF800000> : vector<8x16xf32>
    %94 = vector.multi_reduction <maximumf>, %93, %cst_32 [2] : vector<8x16x16xf32> to vector<8x16xf32>
    %95 = vector.shape_cast %94 : vector<8x16xf32> to vector<8x16x1xf32>
    %96 = vector.broadcast %95 : vector<8x16x1xf32> to vector<8x16x16xf32>
    %97 = arith.subf %93, %96 : vector<8x16x16xf32>
    %98 = math.exp %97 : vector<8x16x16xf32>
    %cst_33 = arith.constant dense<0.000000e+00> : vector<8x16xf32>
    %99 = vector.multi_reduction <add>, %98, %cst_33 [2] : vector<8x16x16xf32> to vector<8x16xf32>
    %100 = vector.shape_cast %99 : vector<8x16xf32> to vector<8x16x1xf32>
    %101 = tpu.reciprocal %100 {approx = true} : vector<8x16x1xf32> -> vector<8x16x1xf32>
    %102 = vector.broadcast %101 : vector<8x16x1xf32> to vector<8x16x16xf32>
    %103 = arith.mulf %98, %102 : vector<8x16x16xf32>
    %104 = arith.truncf %103 : vector<8x16x16xf32> to vector<8x16x16xbf16>
    %105 = vector.extract_strided_slice %45 {offsets = [0, 0, 16], sizes = [8, 16, 8], strides = [1, 1, 1]} : vector<8x16x32xbf16> to vector<8x16x8xbf16>
    "tpu.trace_start"() <{level = 10 : i32, message = "wlm,wmd->wld"}> : () -> ()
    %cst_34 = arith.constant dense<0.000000e+00> : vector<8x16x8xf32>
    %106 = tpu.matmul %104, %105, %cst_34 {dimension_numbers = #tpu.dot_dimension_numbers<[2], [1], [1], [2], [0, 0, 0, 1, 1, 2], [0], [0]>} : vector<8x16x16xbf16>, vector<8x16x8xbf16>, vector<8x16x8xf32> -> vector<8x16x8xf32>
    "tpu.trace_stop"() : () -> ()
    %107 = vector.extract_strided_slice %38 {offsets = [0, 0, 24], sizes = [8, 16, 8], strides = [1, 1, 1]} : vector<8x16x32xbf16> to vector<8x16x8xbf16>
    %108 = vector.extract_strided_slice %41 {offsets = [0, 0, 24], sizes = [8, 16, 8], strides = [1, 1, 1]} : vector<8x16x32xbf16> to vector<8x16x8xbf16>
    "tpu.trace_start"() <{level = 10 : i32, message = "wld,wmd->wlm"}> : () -> ()
    %cst_35 = arith.constant dense<0.000000e+00> : vector<8x16x16xf32>
    %109 = tpu.matmul %107, %108, %cst_35 {dimension_numbers = #tpu.dot_dimension_numbers<[2], [2], [1], [1], [0, 0, 0, 1, 1, 1], [0], [0]>} : vector<8x16x8xbf16>, vector<8x16x8xbf16>, vector<8x16x16xf32> -> vector<8x16x16xf32>
    "tpu.trace_stop"() : () -> ()
    %110 = vector.extract_strided_slice %46 {offsets = [0, 3, 0, 0], sizes = [1, 1, 16, 16], strides = [1, 1, 1, 1]} : vector<1x4x16x16xf32> to vector<1x1x16x16xf32>
    %111 = vector.shape_cast %110 : vector<1x1x16x16xf32> to vector<1x16x16xf32>
    %112 = vector.broadcast %111 : vector<1x16x16xf32> to vector<8x16x16xf32>
    %113 = arith.addf %109, %112 : vector<8x16x16xf32>
    %cst_36 = arith.constant dense<0xFF800000> : vector<8x16xf32>
    %114 = vector.multi_reduction <maximumf>, %113, %cst_36 [2] : vector<8x16x16xf32> to vector<8x16xf32>
    %115 = vector.shape_cast %114 : vector<8x16xf32> to vector<8x16x1xf32>
    %116 = vector.broadcast %115 : vector<8x16x1xf32> to vector<8x16x16xf32>
    %117 = arith.subf %113, %116 : vector<8x16x16xf32>
    %118 = math.exp %117 : vector<8x16x16xf32>
    %cst_37 = arith.constant dense<0.000000e+00> : vector<8x16xf32>
    %119 = vector.multi_reduction <add>, %118, %cst_37 [2] : vector<8x16x16xf32> to vector<8x16xf32>
    %120 = vector.shape_cast %119 : vector<8x16xf32> to vector<8x16x1xf32>
    %121 = tpu.reciprocal %120 {approx = true} : vector<8x16x1xf32> -> vector<8x16x1xf32>
    %122 = vector.broadcast %121 : vector<8x16x1xf32> to vector<8x16x16xf32>
    %123 = arith.mulf %118, %122 : vector<8x16x16xf32>
    %124 = arith.truncf %123 : vector<8x16x16xf32> to vector<8x16x16xbf16>
    %125 = vector.extract_strided_slice %45 {offsets = [0, 0, 24], sizes = [8, 16, 8], strides = [1, 1, 1]} : vector<8x16x32xbf16> to vector<8x16x8xbf16>
    "tpu.trace_start"() <{level = 10 : i32, message = "wlm,wmd->wld"}> : () -> ()
    %cst_38 = arith.constant dense<0.000000e+00> : vector<8x16x8xf32>
    %126 = tpu.matmul %124, %125, %cst_38 {dimension_numbers = #tpu.dot_dimension_numbers<[2], [1], [1], [2], [0, 0, 0, 1, 1, 2], [0], [0]>} : vector<8x16x16xbf16>, vector<8x16x8xbf16>, vector<8x16x8xf32> -> vector<8x16x8xf32>
    "tpu.trace_stop"() : () -> ()
    %127 = tpu.concatenate %66, %86, %106, %126 in 2 : vector<8x16x8xf32>, vector<8x16x8xf32>, vector<8x16x8xf32>, vector<8x16x8xf32> -> vector<8x16x32xf32>
    %128 = vector.shape_cast %127 : vector<8x16x32xf32> to vector<128x32xf32>
    %129 = arith.truncf %128 : vector<128x32xf32> to vector<128x32xbf16>
    %c0_39 = arith.constant 0 : index
    %c0_40 = arith.constant 0 : index
    %130 = vector.load %arg8[%c0_39, %c0_40] : memref<32x32xbf16, #tpu.memory_space<vmem>>, vector<32x32xbf16>
    %cst_41 = arith.constant dense<0.000000e+00> : vector<128x32xf32>
    %131 = tpu.matmul %129, %130, %cst_41 {dimension_numbers = #tpu.dot_dimension_numbers<[1], [0], [0], [1], [0, 0, 1, 1], [], []>} : vector<128x32xbf16>, vector<32x32xbf16>, vector<128x32xf32> -> vector<128x32xf32>
    %c0_42 = arith.constant 0 : index
    %c0_43 = arith.constant 0 : index
    %132 = vector.load %arg9[%c0_42, %c0_43] : memref<1x32xf32, #tpu.memory_space<vmem>>, vector<1x32xf32>
    %133 = vector.broadcast %132 : vector<1x32xf32> to vector<128x32xf32>
    %134 = arith.addf %131, %133 : vector<128x32xf32>
    %135 = vector.shape_cast %134 : vector<128x32xf32> to vector<8x16x32xf32>
    %c0_44 = arith.constant 0 : index
    %c0_45 = arith.constant 0 : index
    %c0_46 = arith.constant 0 : index
    %136 = vector.load %arg10[%c0_44, %c0_45, %c0_46] : memref<8x16x32xf32, #tpu.memory_space<vmem>>, vector<8x16x32xf32>
    tpu.vector_store %arg10[%c0_44, %c0_45, %c0_46], %135 {strides = array<i32>} : memref<8x16x32xf32, #tpu.memory_space<vmem>>, vector<8x16x32xf32>,
    return
  }
  func.func @transform_0(%arg0: i32) -> (i32, i32, i32) {
    %c0_i32 = arith.constant 0 : i32
    %c0_i32_0 = arith.constant 0 : i32
    %c0_i32_1 = arith.constant 0 : i32
    return %arg0, %c0_i32, %c0_i32_0 : i32, i32, i32
  }
  func.func @transform_1(%arg0: i32) -> (i32, i32, i32) {
    %c0_i32 = arith.constant 0 : i32
    %c0_i32_0 = arith.constant 0 : i32
    %c0_i32_1 = arith.constant 0 : i32
    return %arg0, %c0_i32, %c0_i32_0 : i32, i32, i32
  }
  func.func @transform_2(%arg0: i32) -> (i32, i32, i32, i32) {
    %c0_i32 = arith.constant 0 : i32
    %c0_i32_0 = arith.constant 0 : i32
    %c0_i32_1 = arith.constant 0 : i32
    %c0_i32_2 = arith.constant 0 : i32
    %c0_i32_3 = arith.constant 0 : i32
    return %c0_i32, %c0_i32_0, %c0_i32_1, %c0_i32_2 : i32, i32, i32, i32
  }
  func.func @transform_3(%arg0: i32) -> (i32, i32) {
    %c0_i32 = arith.constant 0 : i32
    %c0_i32_0 = arith.constant 0 : i32
    %c0_i32_1 = arith.constant 0 : i32
    return %c0_i32, %c0_i32_0 : i32, i32
  }
  func.func @transform_4(%arg0: i32) -> (i32, i32) {
    %c0_i32 = arith.constant 0 : i32
    %c0_i32_0 = arith.constant 0 : i32
    %c0_i32_1 = arith.constant 0 : i32
    return %c0_i32, %c0_i32_0 : i32, i32
  }
  func.func @transform_5(%arg0: i32) -> (i32, i32) {
    %c0_i32 = arith.constant 0 : i32
    %c0_i32_0 = arith.constant 0 : i32
    %c0_i32_1 = arith.constant 0 : i32
    return %c0_i32, %c0_i32_0 : i32, i32
  }
  func.func @transform_6(%arg0: i32) -> (i32, i32) {
    %c0_i32 = arith.constant 0 : i32
    %c0_i32_0 = arith.constant 0 : i32
    %c0_i32_1 = arith.constant 0 : i32
    return %c0_i32, %c0_i32_0 : i32, i32
  }
  func.func @transform_7(%arg0: i32) -> (i32, i32) {
    %c0_i32 = arith.constant 0 : i32
    %c0_i32_0 = arith.constant 0 : i32
    %c0_i32_1 = arith.constant 0 : i32
    return %c0_i32, %c0_i32_0 : i32, i32
  }
  func.func @transform_8(%arg0: i32) -> (i32, i32) {
    %c0_i32 = arith.constant 0 : i32
    %c0_i32_0 = arith.constant 0 : i32
    %c0_i32_1 = arith.constant 0 : i32
    return %c0_i32, %c0_i32_0 : i32, i32
  }
  func.func @transform_9(%arg0: i32) -> (i32, i32, i32) {
    %c0_i32 = arith.constant 0 : i32
    %c0_i32_0 = arith.constant 0 : i32
    %c0_i32_1 = arith.constant 0 : i32
    return %arg0, %c0_i32, %c0_i32_0 : i32, i32, i32
  }
}

module attributes {stable_mosaic.version = 11 : i64} {
  func.func @_ln_mlp_kernel(%arg0: i32, %arg1: memref<128x32xf32, #tpu.memory_space<vmem>>, %arg2: memref<1x32xf32, #tpu.memory_space<vmem>>, %arg3: memref<1x32xf32, #tpu.memory_space<vmem>>, %arg4: memref<32x128xbf16, #tpu.memory_space<vmem>>, %arg5: memref<1x128xf32, #tpu.memory_space<vmem>>, %arg6: memref<128x32xbf16, #tpu.memory_space<vmem>>, %arg7: memref<1x32xf32, #tpu.memory_space<vmem>>, %arg8: memref<128x32xf32, #tpu.memory_space<vmem>>) attributes {dimension_semantics = [#tpu.dimension_semantics<parallel>], iteration_bounds = array<i64: 1>, scalar_prefetch = 0 : i64, scratch_operands = 0 : i64, tpu.core_type = #tpu.core_type<tc>, window_params = [{transform_indices = @transform_0, window_bounds = array<i64: 128, 32>}, {pipeline_mode = #tpu.pipeline_mode<synchronous>, transform_indices = @transform_1, window_bounds = array<i64: 1, 32>}, {pipeline_mode = #tpu.pipeline_mode<synchronous>, transform_indices = @transform_2, window_bounds = array<i64: 1, 32>}, {pipeline_mode = #tpu.pipeline_mode<synchronous>, transform_indices = @transform_3, window_bounds = array<i64: 32, 128>}, {pipeline_mode = #tpu.pipeline_mode<synchronous>, transform_indices = @transform_4, window_bounds = array<i64: 1, 128>}, {pipeline_mode = #tpu.pipeline_mode<synchronous>, transform_indices = @transform_5, window_bounds = array<i64: 128, 32>}, {pipeline_mode = #tpu.pipeline_mode<synchronous>, transform_indices = @transform_6, window_bounds = array<i64: 1, 32>}, {transform_indices = @transform_7, window_bounds = array<i64: 128, 32>}]} {
    %c0 = arith.constant 0 : index
    %c0_0 = arith.constant 0 : index
    %0 = vector.load %arg1[%c0, %c0_0] : memref<128x32xf32, #tpu.memory_space<vmem>>, vector<128x32xf32>
    %cst = arith.constant dense<0.000000e+00> : vector<128xf32>
    %1 = vector.multi_reduction <add>, %0, %cst [1] : vector<128x32xf32> to vector<128xf32>
    %2 = vector.shape_cast %1 : vector<128xf32> to vector<128x1xf32>
    %cst_1 = arith.constant 3.200000e+01 : f32
    %3 = vector.broadcast %cst_1 : f32 to vector<128x1xf32>
    %4 = arith.divf %2, %3 : vector<128x1xf32>
    %5 = vector.broadcast %4 : vector<128x1xf32> to vector<128x32xf32>
    %6 = arith.subf %0, %5 : vector<128x32xf32>
    %7 = arith.mulf %6, %6 : vector<128x32xf32>
    %cst_2 = arith.constant dense<0.000000e+00> : vector<128xf32>
    %8 = vector.multi_reduction <add>, %7, %cst_2 [1] : vector<128x32xf32> to vector<128xf32>
    %9 = vector.shape_cast %8 : vector<128xf32> to vector<128x1xf32>
    %cst_3 = arith.constant 3.200000e+01 : f32
    %10 = vector.broadcast %cst_3 : f32 to vector<128x1xf32>
    %11 = arith.divf %9, %10 : vector<128x1xf32>
    %12 = vector.broadcast %4 : vector<128x1xf32> to vector<128x32xf32>
    %13 = arith.subf %0, %12 : vector<128x32xf32>
    %cst_4 = arith.constant 9.99999974E-6 : f32
    %14 = vector.broadcast %cst_4 : f32 to vector<128x1xf32>
    %15 = arith.addf %11, %14 : vector<128x1xf32>
    %16 = math.rsqrt %15 : vector<128x1xf32>
    %17 = vector.broadcast %16 : vector<128x1xf32> to vector<128x32xf32>
    %18 = arith.mulf %13, %17 : vector<128x32xf32>
    %c0_5 = arith.constant 0 : index
    %c0_6 = arith.constant 0 : index
    %19 = vector.load %arg2[%c0_5, %c0_6] : memref<1x32xf32, #tpu.memory_space<vmem>>, vector<1x32xf32>
    %20 = vector.broadcast %19 : vector<1x32xf32> to vector<128x32xf32>
    %21 = arith.mulf %18, %20 : vector<128x32xf32>
    %c0_7 = arith.constant 0 : index
    %c0_8 = arith.constant 0 : index
    %22 = vector.load %arg3[%c0_7, %c0_8] : memref<1x32xf32, #tpu.memory_space<vmem>>, vector<1x32xf32>
    %23 = vector.broadcast %22 : vector<1x32xf32> to vector<128x32xf32>
    %24 = arith.addf %21, %23 : vector<128x32xf32>
    %25 = arith.truncf %24 : vector<128x32xf32> to vector<128x32xbf16>
    %c0_9 = arith.constant 0 : index
    %c0_10 = arith.constant 0 : index
    %26 = vector.load %arg4[%c0_9, %c0_10] : memref<32x128xbf16, #tpu.memory_space<vmem>>, vector<32x128xbf16>
    %cst_11 = arith.constant dense<0.000000e+00> : vector<128x128xf32>
    %27 = tpu.matmul %25, %26, %cst_11 {dimension_numbers = #tpu.dot_dimension_numbers<[1], [0], [0], [1], [0, 0, 1, 1], [], []>} : vector<128x32xbf16>, vector<32x128xbf16>, vector<128x128xf32> -> vector<128x128xf32>
    %c0_12 = arith.constant 0 : index
    %c0_13 = arith.constant 0 : index
    %28 = vector.load %arg5[%c0_12, %c0_13] : memref<1x128xf32, #tpu.memory_space<vmem>>, vector<1x128xf32>
    %29 = vector.broadcast %28 : vector<1x128xf32> to vector<128x128xf32>
    %30 = arith.addf %27, %29 : vector<128x128xf32>
    %31 = arith.mulf %30, %30 : vector<128x128xf32>
    %32 = arith.mulf %30, %31 : vector<128x128xf32>
    %cst_14 = arith.constant 4.471500e-02 : f32
    %33 = vector.broadcast %cst_14 : f32 to vector<128x128xf32>
    %34 = arith.mulf %33, %32 : vector<128x128xf32>
    %35 = arith.addf %30, %34 : vector<128x128xf32>
    %cst_15 = arith.constant 0.797884583 : f32
    %36 = vector.broadcast %cst_15 : f32 to vector<128x128xf32>
    %37 = arith.mulf %36, %35 : vector<128x128xf32>
    %38 = math.tanh %37 : vector<128x128xf32>
    %cst_16 = arith.constant 1.000000e+00 : f32
    %39 = vector.broadcast %cst_16 : f32 to vector<128x128xf32>
    %40 = arith.addf %39, %38 : vector<128x128xf32>
    %cst_17 = arith.constant 5.000000e-01 : f32
    %41 = vector.broadcast %cst_17 : f32 to vector<128x128xf32>
    %42 = arith.mulf %41, %40 : vector<128x128xf32>
    %43 = arith.mulf %30, %42 : vector<128x128xf32>
    %44 = arith.truncf %43 : vector<128x128xf32> to vector<128x128xbf16>
    %c0_18 = arith.constant 0 : index
    %c0_19 = arith.constant 0 : index
    %45 = vector.load %arg6[%c0_18, %c0_19] : memref<128x32xbf16, #tpu.memory_space<vmem>>, vector<128x32xbf16>
    %cst_20 = arith.constant dense<0.000000e+00> : vector<128x32xf32>
    %46 = tpu.matmul %44, %45, %cst_20 {dimension_numbers = #tpu.dot_dimension_numbers<[1], [0], [0], [1], [0, 0, 1, 1], [], []>} : vector<128x128xbf16>, vector<128x32xbf16>, vector<128x32xf32> -> vector<128x32xf32>
    %c0_21 = arith.constant 0 : index
    %c0_22 = arith.constant 0 : index
    %47 = vector.load %arg7[%c0_21, %c0_22] : memref<1x32xf32, #tpu.memory_space<vmem>>, vector<1x32xf32>
    %48 = vector.broadcast %47 : vector<1x32xf32> to vector<128x32xf32>
    %49 = arith.addf %46, %48 : vector<128x32xf32>
    %50 = arith.addf %0, %49 : vector<128x32xf32>
    %c0_23 = arith.constant 0 : index
    %c0_24 = arith.constant 0 : index
    %51 = vector.load %arg8[%c0_23, %c0_24] : memref<128x32xf32, #tpu.memory_space<vmem>>, vector<128x32xf32>
    tpu.vector_store %arg8[%c0_23, %c0_24], %50 {strides = array<i32>} : memref<128x32xf32, #tpu.memory_space<vmem>>, vector<128x32xf32>,
    return
  }
  func.func @transform_0(%arg0: i32) -> (i32, i32) {
    %c0_i32 = arith.constant 0 : i32
    %c0_i32_0 = arith.constant 0 : i32
    return %arg0, %c0_i32 : i32, i32
  }
  func.func @transform_1(%arg0: i32) -> (i32, i32) {
    %c0_i32 = arith.constant 0 : i32
    %c0_i32_0 = arith.constant 0 : i32
    %c0_i32_1 = arith.constant 0 : i32
    return %c0_i32, %c0_i32_0 : i32, i32
  }
  func.func @transform_2(%arg0: i32) -> (i32, i32) {
    %c0_i32 = arith.constant 0 : i32
    %c0_i32_0 = arith.constant 0 : i32
    %c0_i32_1 = arith.constant 0 : i32
    return %c0_i32, %c0_i32_0 : i32, i32
  }
  func.func @transform_3(%arg0: i32) -> (i32, i32) {
    %c0_i32 = arith.constant 0 : i32
    %c0_i32_0 = arith.constant 0 : i32
    %c0_i32_1 = arith.constant 0 : i32
    return %c0_i32, %c0_i32_0 : i32, i32
  }
  func.func @transform_4(%arg0: i32) -> (i32, i32) {
    %c0_i32 = arith.constant 0 : i32
    %c0_i32_0 = arith.constant 0 : i32
    %c0_i32_1 = arith.constant 0 : i32
    return %c0_i32, %c0_i32_0 : i32, i32
  }
  func.func @transform_5(%arg0: i32) -> (i32, i32) {
    %c0_i32 = arith.constant 0 : i32
    %c0_i32_0 = arith.constant 0 : i32
    %c0_i32_1 = arith.constant 0 : i32
    return %c0_i32, %c0_i32_0 : i32, i32
  }
  func.func @transform_6(%arg0: i32) -> (i32, i32) {
    %c0_i32 = arith.constant 0 : i32
    %c0_i32_0 = arith.constant 0 : i32
    %c0_i32_1 = arith.constant 0 : i32
    return %c0_i32, %c0_i32_0 : i32, i32
  }
  func.func @transform_7(%arg0: i32) -> (i32, i32) {
    %c0_i32 = arith.constant 0 : i32
    %c0_i32_0 = arith.constant 0 : i32
    return %arg0, %c0_i32 : i32, i32
  }
}

module attributes {stable_mosaic.version = 11 : i64} {
  func.func @_window_attn_kernel(%arg0: i32, %arg1: memref<8x16x32xf32, #tpu.memory_space<vmem>>, %arg2: memref<8x16x32xf32, #tpu.memory_space<vmem>>, %arg3: memref<8x4x16x16xf32, #tpu.memory_space<vmem>>, %arg4: memref<1x32xf32, #tpu.memory_space<vmem>>, %arg5: memref<1x32xf32, #tpu.memory_space<vmem>>, %arg6: memref<32x96xbf16, #tpu.memory_space<vmem>>, %arg7: memref<1x96xf32, #tpu.memory_space<vmem>>, %arg8: memref<32x32xbf16, #tpu.memory_space<vmem>>, %arg9: memref<1x32xf32, #tpu.memory_space<vmem>>, %arg10: memref<8x16x32xf32, #tpu.memory_space<vmem>>) attributes {dimension_semantics = [#tpu.dimension_semantics<parallel>], iteration_bounds = array<i64: 1>, scalar_prefetch = 0 : i64, scratch_operands = 0 : i64, tpu.core_type = #tpu.core_type<tc>, window_params = [{transform_indices = @transform_0, window_bounds = array<i64: 8, 16, 32>}, {transform_indices = @transform_1, window_bounds = array<i64: 8, 16, 32>}, {pipeline_mode = #tpu.pipeline_mode<synchronous>, transform_indices = @transform_2, window_bounds = array<i64: 8, 4, 16, 16>}, {pipeline_mode = #tpu.pipeline_mode<synchronous>, transform_indices = @transform_3, window_bounds = array<i64: 1, 32>}, {pipeline_mode = #tpu.pipeline_mode<synchronous>, transform_indices = @transform_4, window_bounds = array<i64: 1, 32>}, {pipeline_mode = #tpu.pipeline_mode<synchronous>, transform_indices = @transform_5, window_bounds = array<i64: 32, 96>}, {pipeline_mode = #tpu.pipeline_mode<synchronous>, transform_indices = @transform_6, window_bounds = array<i64: 1, 96>}, {pipeline_mode = #tpu.pipeline_mode<synchronous>, transform_indices = @transform_7, window_bounds = array<i64: 32, 32>}, {pipeline_mode = #tpu.pipeline_mode<synchronous>, transform_indices = @transform_8, window_bounds = array<i64: 1, 32>}, {transform_indices = @transform_9, window_bounds = array<i64: 8, 16, 32>}]} {
    %c0 = arith.constant 0 : index
    %c0_0 = arith.constant 0 : index
    %c0_1 = arith.constant 0 : index
    %0 = vector.load %arg1[%c0, %c0_0, %c0_1] : memref<8x16x32xf32, #tpu.memory_space<vmem>>, vector<8x16x32xf32>
    %1 = vector.shape_cast %0 : vector<8x16x32xf32> to vector<128x32xf32>
    %cst = arith.constant dense<0.000000e+00> : vector<128xf32>
    %2 = vector.multi_reduction <add>, %1, %cst [1] : vector<128x32xf32> to vector<128xf32>
    %3 = vector.shape_cast %2 : vector<128xf32> to vector<128x1xf32>
    %cst_2 = arith.constant 3.200000e+01 : f32
    %4 = vector.broadcast %cst_2 : f32 to vector<128x1xf32>
    %5 = arith.divf %3, %4 : vector<128x1xf32>
    %6 = vector.broadcast %5 : vector<128x1xf32> to vector<128x32xf32>
    %7 = arith.subf %1, %6 : vector<128x32xf32>
    %8 = arith.mulf %7, %7 : vector<128x32xf32>
    %cst_3 = arith.constant dense<0.000000e+00> : vector<128xf32>
    %9 = vector.multi_reduction <add>, %8, %cst_3 [1] : vector<128x32xf32> to vector<128xf32>
    %10 = vector.shape_cast %9 : vector<128xf32> to vector<128x1xf32>
    %cst_4 = arith.constant 3.200000e+01 : f32
    %11 = vector.broadcast %cst_4 : f32 to vector<128x1xf32>
    %12 = arith.divf %10, %11 : vector<128x1xf32>
    %13 = vector.broadcast %5 : vector<128x1xf32> to vector<128x32xf32>
    %14 = arith.subf %1, %13 : vector<128x32xf32>
    %cst_5 = arith.constant 9.99999974E-6 : f32
    %15 = vector.broadcast %cst_5 : f32 to vector<128x1xf32>
    %16 = arith.addf %12, %15 : vector<128x1xf32>
    %17 = math.rsqrt %16 : vector<128x1xf32>
    %18 = vector.broadcast %17 : vector<128x1xf32> to vector<128x32xf32>
    %19 = arith.mulf %14, %18 : vector<128x32xf32>
    %c0_6 = arith.constant 0 : index
    %c0_7 = arith.constant 0 : index
    %20 = vector.load %arg4[%c0_6, %c0_7] : memref<1x32xf32, #tpu.memory_space<vmem>>, vector<1x32xf32>
    %21 = vector.broadcast %20 : vector<1x32xf32> to vector<128x32xf32>
    %22 = arith.mulf %19, %21 : vector<128x32xf32>
    %c0_8 = arith.constant 0 : index
    %c0_9 = arith.constant 0 : index
    %23 = vector.load %arg5[%c0_8, %c0_9] : memref<1x32xf32, #tpu.memory_space<vmem>>, vector<1x32xf32>
    %24 = vector.broadcast %23 : vector<1x32xf32> to vector<128x32xf32>
    %25 = arith.addf %22, %24 : vector<128x32xf32>
    %c0_10 = arith.constant 0 : index
    %c0_11 = arith.constant 0 : index
    %c0_12 = arith.constant 0 : index
    %26 = vector.load %arg2[%c0_10, %c0_11, %c0_12] : memref<8x16x32xf32, #tpu.memory_space<vmem>>, vector<8x16x32xf32>
    %27 = vector.shape_cast %26 : vector<8x16x32xf32> to vector<128x32xf32>
    %28 = arith.truncf %25 : vector<128x32xf32> to vector<128x32xbf16>
    %c0_13 = arith.constant 0 : index
    %c0_14 = arith.constant 0 : index
    %29 = vector.load %arg6[%c0_13, %c0_14] : memref<32x96xbf16, #tpu.memory_space<vmem>>, vector<32x96xbf16>
    %cst_15 = arith.constant dense<0.000000e+00> : vector<128x96xf32>
    %30 = tpu.matmul %28, %29, %cst_15 {dimension_numbers = #tpu.dot_dimension_numbers<[1], [0], [0], [1], [0, 0, 1, 1], [], []>} : vector<128x32xbf16>, vector<32x96xbf16>, vector<128x96xf32> -> vector<128x96xf32>
    %c0_16 = arith.constant 0 : index
    %c0_17 = arith.constant 0 : index
    %31 = vector.load %arg7[%c0_16, %c0_17] : memref<1x96xf32, #tpu.memory_space<vmem>>, vector<1x96xf32>
    %32 = vector.broadcast %31 : vector<1x96xf32> to vector<128x96xf32>
    %33 = arith.addf %30, %32 : vector<128x96xf32>
    %34 = vector.extract_strided_slice %33 {offsets = [0, 0], sizes = [128, 32], strides = [1, 1]} : vector<128x96xf32> to vector<128x32xf32>
    %cst_18 = arith.constant 0.353553385 : f32
    %35 = vector.broadcast %cst_18 : f32 to vector<128x32xf32>
    %36 = arith.mulf %34, %35 : vector<128x32xf32>
    %37 = vector.shape_cast %36 : vector<128x32xf32> to vector<8x16x32xf32>
    %38 = arith.truncf %37 : vector<8x16x32xf32> to vector<8x16x32xbf16>
    %39 = vector.extract_strided_slice %33 {offsets = [0, 32], sizes = [128, 32], strides = [1, 1]} : vector<128x96xf32> to vector<128x32xf32>
    %40 = vector.shape_cast %39 : vector<128x32xf32> to vector<8x16x32xf32>
    %41 = arith.truncf %40 : vector<8x16x32xf32> to vector<8x16x32xbf16>
    %42 = vector.extract_strided_slice %33 {offsets = [0, 64], sizes = [128, 32], strides = [1, 1]} : vector<128x96xf32> to vector<128x32xf32>
    %43 = arith.mulf %42, %27 : vector<128x32xf32>
    %44 = vector.shape_cast %43 : vector<128x32xf32> to vector<8x16x32xf32>
    %45 = arith.truncf %44 : vector<8x16x32xf32> to vector<8x16x32xbf16>
    %c0_19 = arith.constant 0 : index
    %c0_20 = arith.constant 0 : index
    %c0_21 = arith.constant 0 : index
    %c0_22 = arith.constant 0 : index
    %46 = vector.load %arg3[%c0_19, %c0_20, %c0_21, %c0_22] : memref<8x4x16x16xf32, #tpu.memory_space<vmem>>, vector<8x4x16x16xf32>
    %47 = vector.extract_strided_slice %38 {offsets = [0, 0, 0], sizes = [8, 16, 8], strides = [1, 1, 1]} : vector<8x16x32xbf16> to vector<8x16x8xbf16>
    %48 = vector.extract_strided_slice %41 {offsets = [0, 0, 0], sizes = [8, 16, 8], strides = [1, 1, 1]} : vector<8x16x32xbf16> to vector<8x16x8xbf16>
    "tpu.trace_start"() <{level = 10 : i32, message = "wld,wmd->wlm"}> : () -> ()
    %cst_23 = arith.constant dense<0.000000e+00> : vector<8x16x16xf32>
    %49 = tpu.matmul %47, %48, %cst_23 {dimension_numbers = #tpu.dot_dimension_numbers<[2], [2], [1], [1], [0, 0, 0, 1, 1, 1], [0], [0]>} : vector<8x16x8xbf16>, vector<8x16x8xbf16>, vector<8x16x16xf32> -> vector<8x16x16xf32>
    "tpu.trace_stop"() : () -> ()
    %50 = vector.extract_strided_slice %46 {offsets = [0, 0, 0, 0], sizes = [8, 1, 16, 16], strides = [1, 1, 1, 1]} : vector<8x4x16x16xf32> to vector<8x1x16x16xf32>
    %51 = vector.shape_cast %50 : vector<8x1x16x16xf32> to vector<8x16x16xf32>
    %52 = arith.addf %49, %51 : vector<8x16x16xf32>
    %cst_24 = arith.constant dense<0xFF800000> : vector<8x16xf32>
    %53 = vector.multi_reduction <maximumf>, %52, %cst_24 [2] : vector<8x16x16xf32> to vector<8x16xf32>
    %54 = vector.shape_cast %53 : vector<8x16xf32> to vector<8x16x1xf32>
    %55 = vector.broadcast %54 : vector<8x16x1xf32> to vector<8x16x16xf32>
    %56 = arith.subf %52, %55 : vector<8x16x16xf32>
    %57 = math.exp %56 : vector<8x16x16xf32>
    %cst_25 = arith.constant dense<0.000000e+00> : vector<8x16xf32>
    %58 = vector.multi_reduction <add>, %57, %cst_25 [2] : vector<8x16x16xf32> to vector<8x16xf32>
    %59 = vector.shape_cast %58 : vector<8x16xf32> to vector<8x16x1xf32>
    %60 = tpu.reciprocal %59 {approx = true} : vector<8x16x1xf32> -> vector<8x16x1xf32>
    %61 = vector.broadcast %60 : vector<8x16x1xf32> to vector<8x16x16xf32>
    %62 = arith.mulf %57, %61 : vector<8x16x16xf32>
    %63 = arith.truncf %62 : vector<8x16x16xf32> to vector<8x16x16xbf16>
    %64 = vector.extract_strided_slice %45 {offsets = [0, 0, 0], sizes = [8, 16, 8], strides = [1, 1, 1]} : vector<8x16x32xbf16> to vector<8x16x8xbf16>
    "tpu.trace_start"() <{level = 10 : i32, message = "wlm,wmd->wld"}> : () -> ()
    %cst_26 = arith.constant dense<0.000000e+00> : vector<8x16x8xf32>
    %65 = tpu.matmul %63, %64, %cst_26 {dimension_numbers = #tpu.dot_dimension_numbers<[2], [1], [1], [2], [0, 0, 0, 1, 1, 2], [0], [0]>} : vector<8x16x16xbf16>, vector<8x16x8xbf16>, vector<8x16x8xf32> -> vector<8x16x8xf32>
    "tpu.trace_stop"() : () -> ()
    %66 = vector.extract_strided_slice %38 {offsets = [0, 0, 8], sizes = [8, 16, 8], strides = [1, 1, 1]} : vector<8x16x32xbf16> to vector<8x16x8xbf16>
    %67 = vector.extract_strided_slice %41 {offsets = [0, 0, 8], sizes = [8, 16, 8], strides = [1, 1, 1]} : vector<8x16x32xbf16> to vector<8x16x8xbf16>
    "tpu.trace_start"() <{level = 10 : i32, message = "wld,wmd->wlm"}> : () -> ()
    %cst_27 = arith.constant dense<0.000000e+00> : vector<8x16x16xf32>
    %68 = tpu.matmul %66, %67, %cst_27 {dimension_numbers = #tpu.dot_dimension_numbers<[2], [2], [1], [1], [0, 0, 0, 1, 1, 1], [0], [0]>} : vector<8x16x8xbf16>, vector<8x16x8xbf16>, vector<8x16x16xf32> -> vector<8x16x16xf32>
    "tpu.trace_stop"() : () -> ()
    %69 = vector.extract_strided_slice %46 {offsets = [0, 1, 0, 0], sizes = [8, 1, 16, 16], strides = [1, 1, 1, 1]} : vector<8x4x16x16xf32> to vector<8x1x16x16xf32>
    %70 = vector.shape_cast %69 : vector<8x1x16x16xf32> to vector<8x16x16xf32>
    %71 = arith.addf %68, %70 : vector<8x16x16xf32>
    %cst_28 = arith.constant dense<0xFF800000> : vector<8x16xf32>
    %72 = vector.multi_reduction <maximumf>, %71, %cst_28 [2] : vector<8x16x16xf32> to vector<8x16xf32>
    %73 = vector.shape_cast %72 : vector<8x16xf32> to vector<8x16x1xf32>
    %74 = vector.broadcast %73 : vector<8x16x1xf32> to vector<8x16x16xf32>
    %75 = arith.subf %71, %74 : vector<8x16x16xf32>
    %76 = math.exp %75 : vector<8x16x16xf32>
    %cst_29 = arith.constant dense<0.000000e+00> : vector<8x16xf32>
    %77 = vector.multi_reduction <add>, %76, %cst_29 [2] : vector<8x16x16xf32> to vector<8x16xf32>
    %78 = vector.shape_cast %77 : vector<8x16xf32> to vector<8x16x1xf32>
    %79 = tpu.reciprocal %78 {approx = true} : vector<8x16x1xf32> -> vector<8x16x1xf32>
    %80 = vector.broadcast %79 : vector<8x16x1xf32> to vector<8x16x16xf32>
    %81 = arith.mulf %76, %80 : vector<8x16x16xf32>
    %82 = arith.truncf %81 : vector<8x16x16xf32> to vector<8x16x16xbf16>
    %83 = vector.extract_strided_slice %45 {offsets = [0, 0, 8], sizes = [8, 16, 8], strides = [1, 1, 1]} : vector<8x16x32xbf16> to vector<8x16x8xbf16>
    "tpu.trace_start"() <{level = 10 : i32, message = "wlm,wmd->wld"}> : () -> ()
    %cst_30 = arith.constant dense<0.000000e+00> : vector<8x16x8xf32>
    %84 = tpu.matmul %82, %83, %cst_30 {dimension_numbers = #tpu.dot_dimension_numbers<[2], [1], [1], [2], [0, 0, 0, 1, 1, 2], [0], [0]>} : vector<8x16x16xbf16>, vector<8x16x8xbf16>, vector<8x16x8xf32> -> vector<8x16x8xf32>
    "tpu.trace_stop"() : () -> ()
    %85 = vector.extract_strided_slice %38 {offsets = [0, 0, 16], sizes = [8, 16, 8], strides = [1, 1, 1]} : vector<8x16x32xbf16> to vector<8x16x8xbf16>
    %86 = vector.extract_strided_slice %41 {offsets = [0, 0, 16], sizes = [8, 16, 8], strides = [1, 1, 1]} : vector<8x16x32xbf16> to vector<8x16x8xbf16>
    "tpu.trace_start"() <{level = 10 : i32, message = "wld,wmd->wlm"}> : () -> ()
    %cst_31 = arith.constant dense<0.000000e+00> : vector<8x16x16xf32>
    %87 = tpu.matmul %85, %86, %cst_31 {dimension_numbers = #tpu.dot_dimension_numbers<[2], [2], [1], [1], [0, 0, 0, 1, 1, 1], [0], [0]>} : vector<8x16x8xbf16>, vector<8x16x8xbf16>, vector<8x16x16xf32> -> vector<8x16x16xf32>
    "tpu.trace_stop"() : () -> ()
    %88 = vector.extract_strided_slice %46 {offsets = [0, 2, 0, 0], sizes = [8, 1, 16, 16], strides = [1, 1, 1, 1]} : vector<8x4x16x16xf32> to vector<8x1x16x16xf32>
    %89 = vector.shape_cast %88 : vector<8x1x16x16xf32> to vector<8x16x16xf32>
    %90 = arith.addf %87, %89 : vector<8x16x16xf32>
    %cst_32 = arith.constant dense<0xFF800000> : vector<8x16xf32>
    %91 = vector.multi_reduction <maximumf>, %90, %cst_32 [2] : vector<8x16x16xf32> to vector<8x16xf32>
    %92 = vector.shape_cast %91 : vector<8x16xf32> to vector<8x16x1xf32>
    %93 = vector.broadcast %92 : vector<8x16x1xf32> to vector<8x16x16xf32>
    %94 = arith.subf %90, %93 : vector<8x16x16xf32>
    %95 = math.exp %94 : vector<8x16x16xf32>
    %cst_33 = arith.constant dense<0.000000e+00> : vector<8x16xf32>
    %96 = vector.multi_reduction <add>, %95, %cst_33 [2] : vector<8x16x16xf32> to vector<8x16xf32>
    %97 = vector.shape_cast %96 : vector<8x16xf32> to vector<8x16x1xf32>
    %98 = tpu.reciprocal %97 {approx = true} : vector<8x16x1xf32> -> vector<8x16x1xf32>
    %99 = vector.broadcast %98 : vector<8x16x1xf32> to vector<8x16x16xf32>
    %100 = arith.mulf %95, %99 : vector<8x16x16xf32>
    %101 = arith.truncf %100 : vector<8x16x16xf32> to vector<8x16x16xbf16>
    %102 = vector.extract_strided_slice %45 {offsets = [0, 0, 16], sizes = [8, 16, 8], strides = [1, 1, 1]} : vector<8x16x32xbf16> to vector<8x16x8xbf16>
    "tpu.trace_start"() <{level = 10 : i32, message = "wlm,wmd->wld"}> : () -> ()
    %cst_34 = arith.constant dense<0.000000e+00> : vector<8x16x8xf32>
    %103 = tpu.matmul %101, %102, %cst_34 {dimension_numbers = #tpu.dot_dimension_numbers<[2], [1], [1], [2], [0, 0, 0, 1, 1, 2], [0], [0]>} : vector<8x16x16xbf16>, vector<8x16x8xbf16>, vector<8x16x8xf32> -> vector<8x16x8xf32>
    "tpu.trace_stop"() : () -> ()
    %104 = vector.extract_strided_slice %38 {offsets = [0, 0, 24], sizes = [8, 16, 8], strides = [1, 1, 1]} : vector<8x16x32xbf16> to vector<8x16x8xbf16>
    %105 = vector.extract_strided_slice %41 {offsets = [0, 0, 24], sizes = [8, 16, 8], strides = [1, 1, 1]} : vector<8x16x32xbf16> to vector<8x16x8xbf16>
    "tpu.trace_start"() <{level = 10 : i32, message = "wld,wmd->wlm"}> : () -> ()
    %cst_35 = arith.constant dense<0.000000e+00> : vector<8x16x16xf32>
    %106 = tpu.matmul %104, %105, %cst_35 {dimension_numbers = #tpu.dot_dimension_numbers<[2], [2], [1], [1], [0, 0, 0, 1, 1, 1], [0], [0]>} : vector<8x16x8xbf16>, vector<8x16x8xbf16>, vector<8x16x16xf32> -> vector<8x16x16xf32>
    "tpu.trace_stop"() : () -> ()
    %107 = vector.extract_strided_slice %46 {offsets = [0, 3, 0, 0], sizes = [8, 1, 16, 16], strides = [1, 1, 1, 1]} : vector<8x4x16x16xf32> to vector<8x1x16x16xf32>
    %108 = vector.shape_cast %107 : vector<8x1x16x16xf32> to vector<8x16x16xf32>
    %109 = arith.addf %106, %108 : vector<8x16x16xf32>
    %cst_36 = arith.constant dense<0xFF800000> : vector<8x16xf32>
    %110 = vector.multi_reduction <maximumf>, %109, %cst_36 [2] : vector<8x16x16xf32> to vector<8x16xf32>
    %111 = vector.shape_cast %110 : vector<8x16xf32> to vector<8x16x1xf32>
    %112 = vector.broadcast %111 : vector<8x16x1xf32> to vector<8x16x16xf32>
    %113 = arith.subf %109, %112 : vector<8x16x16xf32>
    %114 = math.exp %113 : vector<8x16x16xf32>
    %cst_37 = arith.constant dense<0.000000e+00> : vector<8x16xf32>
    %115 = vector.multi_reduction <add>, %114, %cst_37 [2] : vector<8x16x16xf32> to vector<8x16xf32>
    %116 = vector.shape_cast %115 : vector<8x16xf32> to vector<8x16x1xf32>
    %117 = tpu.reciprocal %116 {approx = true} : vector<8x16x1xf32> -> vector<8x16x1xf32>
    %118 = vector.broadcast %117 : vector<8x16x1xf32> to vector<8x16x16xf32>
    %119 = arith.mulf %114, %118 : vector<8x16x16xf32>
    %120 = arith.truncf %119 : vector<8x16x16xf32> to vector<8x16x16xbf16>
    %121 = vector.extract_strided_slice %45 {offsets = [0, 0, 24], sizes = [8, 16, 8], strides = [1, 1, 1]} : vector<8x16x32xbf16> to vector<8x16x8xbf16>
    "tpu.trace_start"() <{level = 10 : i32, message = "wlm,wmd->wld"}> : () -> ()
    %cst_38 = arith.constant dense<0.000000e+00> : vector<8x16x8xf32>
    %122 = tpu.matmul %120, %121, %cst_38 {dimension_numbers = #tpu.dot_dimension_numbers<[2], [1], [1], [2], [0, 0, 0, 1, 1, 2], [0], [0]>} : vector<8x16x16xbf16>, vector<8x16x8xbf16>, vector<8x16x8xf32> -> vector<8x16x8xf32>
    "tpu.trace_stop"() : () -> ()
    %123 = tpu.concatenate %65, %84, %103, %122 in 2 : vector<8x16x8xf32>, vector<8x16x8xf32>, vector<8x16x8xf32>, vector<8x16x8xf32> -> vector<8x16x32xf32>
    %124 = vector.shape_cast %123 : vector<8x16x32xf32> to vector<128x32xf32>
    %125 = arith.truncf %124 : vector<128x32xf32> to vector<128x32xbf16>
    %c0_39 = arith.constant 0 : index
    %c0_40 = arith.constant 0 : index
    %126 = vector.load %arg8[%c0_39, %c0_40] : memref<32x32xbf16, #tpu.memory_space<vmem>>, vector<32x32xbf16>
    %cst_41 = arith.constant dense<0.000000e+00> : vector<128x32xf32>
    %127 = tpu.matmul %125, %126, %cst_41 {dimension_numbers = #tpu.dot_dimension_numbers<[1], [0], [0], [1], [0, 0, 1, 1], [], []>} : vector<128x32xbf16>, vector<32x32xbf16>, vector<128x32xf32> -> vector<128x32xf32>
    %c0_42 = arith.constant 0 : index
    %c0_43 = arith.constant 0 : index
    %128 = vector.load %arg9[%c0_42, %c0_43] : memref<1x32xf32, #tpu.memory_space<vmem>>, vector<1x32xf32>
    %129 = vector.broadcast %128 : vector<1x32xf32> to vector<128x32xf32>
    %130 = arith.addf %127, %129 : vector<128x32xf32>
    %131 = vector.shape_cast %130 : vector<128x32xf32> to vector<8x16x32xf32>
    %c0_44 = arith.constant 0 : index
    %c0_45 = arith.constant 0 : index
    %c0_46 = arith.constant 0 : index
    %132 = vector.load %arg10[%c0_44, %c0_45, %c0_46] : memref<8x16x32xf32, #tpu.memory_space<vmem>>, vector<8x16x32xf32>
    tpu.vector_store %arg10[%c0_44, %c0_45, %c0_46], %131 {strides = array<i32>} : memref<8x16x32xf32, #tpu.memory_space<vmem>>, vector<8x16x32xf32>,
    return
  }
  func.func @transform_0(%arg0: i32) -> (i32, i32, i32) {
    %c0_i32 = arith.constant 0 : i32
    %c0_i32_0 = arith.constant 0 : i32
    %c0_i32_1 = arith.constant 0 : i32
    return %arg0, %c0_i32, %c0_i32_0 : i32, i32, i32
  }
  func.func @transform_1(%arg0: i32) -> (i32, i32, i32) {
    %c0_i32 = arith.constant 0 : i32
    %c0_i32_0 = arith.constant 0 : i32
    %c0_i32_1 = arith.constant 0 : i32
    return %arg0, %c0_i32, %c0_i32_0 : i32, i32, i32
  }
  func.func @transform_2(%arg0: i32) -> (i32, i32, i32, i32) {
    %c0_i32 = arith.constant 0 : i32
    %c0_i32_0 = arith.constant 0 : i32
    %c0_i32_1 = arith.constant 0 : i32
    %c0_i32_2 = arith.constant 0 : i32
    %c0_i32_3 = arith.constant 0 : i32
    return %c0_i32, %c0_i32_0, %c0_i32_1, %c0_i32_2 : i32, i32, i32, i32
  }
  func.func @transform_3(%arg0: i32) -> (i32, i32) {
    %c0_i32 = arith.constant 0 : i32
    %c0_i32_0 = arith.constant 0 : i32
    %c0_i32_1 = arith.constant 0 : i32
    return %c0_i32, %c0_i32_0 : i32, i32
  }
  func.func @transform_4(%arg0: i32) -> (i32, i32) {
    %c0_i32 = arith.constant 0 : i32
    %c0_i32_0 = arith.constant 0 : i32
    %c0_i32_1 = arith.constant 0 : i32
    return %c0_i32, %c0_i32_0 : i32, i32
  }
  func.func @transform_5(%arg0: i32) -> (i32, i32) {
    %c0_i32 = arith.constant 0 : i32
    %c0_i32_0 = arith.constant 0 : i32
    %c0_i32_1 = arith.constant 0 : i32
    return %c0_i32, %c0_i32_0 : i32, i32
  }
  func.func @transform_6(%arg0: i32) -> (i32, i32) {
    %c0_i32 = arith.constant 0 : i32
    %c0_i32_0 = arith.constant 0 : i32
    %c0_i32_1 = arith.constant 0 : i32
    return %c0_i32, %c0_i32_0 : i32, i32
  }
  func.func @transform_7(%arg0: i32) -> (i32, i32) {
    %c0_i32 = arith.constant 0 : i32
    %c0_i32_0 = arith.constant 0 : i32
    %c0_i32_1 = arith.constant 0 : i32
    return %c0_i32, %c0_i32_0 : i32, i32
  }
  func.func @transform_8(%arg0: i32) -> (i32, i32) {
    %c0_i32 = arith.constant 0 : i32
    %c0_i32_0 = arith.constant 0 : i32
    %c0_i32_1 = arith.constant 0 : i32
    return %c0_i32, %c0_i32_0 : i32, i32
  }
  func.func @transform_9(%arg0: i32) -> (i32, i32, i32) {
    %c0_i32 = arith.constant 0 : i32
    %c0_i32_0 = arith.constant 0 : i32
    %c0_i32_1 = arith.constant 0 : i32
    return %arg0, %c0_i32, %c0_i32_0 : i32, i32, i32
  }
}

module attributes {stable_mosaic.version = 11 : i64} {
  func.func @_ln_mlp_kernel(%arg0: i32, %arg1: memref<128x32xf32, #tpu.memory_space<vmem>>, %arg2: memref<1x32xf32, #tpu.memory_space<vmem>>, %arg3: memref<1x32xf32, #tpu.memory_space<vmem>>, %arg4: memref<32x128xbf16, #tpu.memory_space<vmem>>, %arg5: memref<1x128xf32, #tpu.memory_space<vmem>>, %arg6: memref<128x32xbf16, #tpu.memory_space<vmem>>, %arg7: memref<1x32xf32, #tpu.memory_space<vmem>>, %arg8: memref<128x32xf32, #tpu.memory_space<vmem>>) attributes {dimension_semantics = [#tpu.dimension_semantics<parallel>], iteration_bounds = array<i64: 1>, scalar_prefetch = 0 : i64, scratch_operands = 0 : i64, tpu.core_type = #tpu.core_type<tc>, window_params = [{transform_indices = @transform_0, window_bounds = array<i64: 128, 32>}, {pipeline_mode = #tpu.pipeline_mode<synchronous>, transform_indices = @transform_1, window_bounds = array<i64: 1, 32>}, {pipeline_mode = #tpu.pipeline_mode<synchronous>, transform_indices = @transform_2, window_bounds = array<i64: 1, 32>}, {pipeline_mode = #tpu.pipeline_mode<synchronous>, transform_indices = @transform_3, window_bounds = array<i64: 32, 128>}, {pipeline_mode = #tpu.pipeline_mode<synchronous>, transform_indices = @transform_4, window_bounds = array<i64: 1, 128>}, {pipeline_mode = #tpu.pipeline_mode<synchronous>, transform_indices = @transform_5, window_bounds = array<i64: 128, 32>}, {pipeline_mode = #tpu.pipeline_mode<synchronous>, transform_indices = @transform_6, window_bounds = array<i64: 1, 32>}, {transform_indices = @transform_7, window_bounds = array<i64: 128, 32>}]} {
    %c0 = arith.constant 0 : index
    %c0_0 = arith.constant 0 : index
    %0 = vector.load %arg1[%c0, %c0_0] : memref<128x32xf32, #tpu.memory_space<vmem>>, vector<128x32xf32>
    %cst = arith.constant dense<0.000000e+00> : vector<128xf32>
    %1 = vector.multi_reduction <add>, %0, %cst [1] : vector<128x32xf32> to vector<128xf32>
    %2 = vector.shape_cast %1 : vector<128xf32> to vector<128x1xf32>
    %cst_1 = arith.constant 3.200000e+01 : f32
    %3 = vector.broadcast %cst_1 : f32 to vector<128x1xf32>
    %4 = arith.divf %2, %3 : vector<128x1xf32>
    %5 = vector.broadcast %4 : vector<128x1xf32> to vector<128x32xf32>
    %6 = arith.subf %0, %5 : vector<128x32xf32>
    %7 = arith.mulf %6, %6 : vector<128x32xf32>
    %cst_2 = arith.constant dense<0.000000e+00> : vector<128xf32>
    %8 = vector.multi_reduction <add>, %7, %cst_2 [1] : vector<128x32xf32> to vector<128xf32>
    %9 = vector.shape_cast %8 : vector<128xf32> to vector<128x1xf32>
    %cst_3 = arith.constant 3.200000e+01 : f32
    %10 = vector.broadcast %cst_3 : f32 to vector<128x1xf32>
    %11 = arith.divf %9, %10 : vector<128x1xf32>
    %12 = vector.broadcast %4 : vector<128x1xf32> to vector<128x32xf32>
    %13 = arith.subf %0, %12 : vector<128x32xf32>
    %cst_4 = arith.constant 9.99999974E-6 : f32
    %14 = vector.broadcast %cst_4 : f32 to vector<128x1xf32>
    %15 = arith.addf %11, %14 : vector<128x1xf32>
    %16 = math.rsqrt %15 : vector<128x1xf32>
    %17 = vector.broadcast %16 : vector<128x1xf32> to vector<128x32xf32>
    %18 = arith.mulf %13, %17 : vector<128x32xf32>
    %c0_5 = arith.constant 0 : index
    %c0_6 = arith.constant 0 : index
    %19 = vector.load %arg2[%c0_5, %c0_6] : memref<1x32xf32, #tpu.memory_space<vmem>>, vector<1x32xf32>
    %20 = vector.broadcast %19 : vector<1x32xf32> to vector<128x32xf32>
    %21 = arith.mulf %18, %20 : vector<128x32xf32>
    %c0_7 = arith.constant 0 : index
    %c0_8 = arith.constant 0 : index
    %22 = vector.load %arg3[%c0_7, %c0_8] : memref<1x32xf32, #tpu.memory_space<vmem>>, vector<1x32xf32>
    %23 = vector.broadcast %22 : vector<1x32xf32> to vector<128x32xf32>
    %24 = arith.addf %21, %23 : vector<128x32xf32>
    %25 = arith.truncf %24 : vector<128x32xf32> to vector<128x32xbf16>
    %c0_9 = arith.constant 0 : index
    %c0_10 = arith.constant 0 : index
    %26 = vector.load %arg4[%c0_9, %c0_10] : memref<32x128xbf16, #tpu.memory_space<vmem>>, vector<32x128xbf16>
    %cst_11 = arith.constant dense<0.000000e+00> : vector<128x128xf32>
    %27 = tpu.matmul %25, %26, %cst_11 {dimension_numbers = #tpu.dot_dimension_numbers<[1], [0], [0], [1], [0, 0, 1, 1], [], []>} : vector<128x32xbf16>, vector<32x128xbf16>, vector<128x128xf32> -> vector<128x128xf32>
    %c0_12 = arith.constant 0 : index
    %c0_13 = arith.constant 0 : index
    %28 = vector.load %arg5[%c0_12, %c0_13] : memref<1x128xf32, #tpu.memory_space<vmem>>, vector<1x128xf32>
    %29 = vector.broadcast %28 : vector<1x128xf32> to vector<128x128xf32>
    %30 = arith.addf %27, %29 : vector<128x128xf32>
    %31 = arith.mulf %30, %30 : vector<128x128xf32>
    %32 = arith.mulf %30, %31 : vector<128x128xf32>
    %cst_14 = arith.constant 4.471500e-02 : f32
    %33 = vector.broadcast %cst_14 : f32 to vector<128x128xf32>
    %34 = arith.mulf %33, %32 : vector<128x128xf32>
    %35 = arith.addf %30, %34 : vector<128x128xf32>
    %cst_15 = arith.constant 0.797884583 : f32
    %36 = vector.broadcast %cst_15 : f32 to vector<128x128xf32>
    %37 = arith.mulf %36, %35 : vector<128x128xf32>
    %38 = math.tanh %37 : vector<128x128xf32>
    %cst_16 = arith.constant 1.000000e+00 : f32
    %39 = vector.broadcast %cst_16 : f32 to vector<128x128xf32>
    %40 = arith.addf %39, %38 : vector<128x128xf32>
    %cst_17 = arith.constant 5.000000e-01 : f32
    %41 = vector.broadcast %cst_17 : f32 to vector<128x128xf32>
    %42 = arith.mulf %41, %40 : vector<128x128xf32>
    %43 = arith.mulf %30, %42 : vector<128x128xf32>
    %44 = arith.truncf %43 : vector<128x128xf32> to vector<128x128xbf16>
    %c0_18 = arith.constant 0 : index
    %c0_19 = arith.constant 0 : index
    %45 = vector.load %arg6[%c0_18, %c0_19] : memref<128x32xbf16, #tpu.memory_space<vmem>>, vector<128x32xbf16>
    %cst_20 = arith.constant dense<0.000000e+00> : vector<128x32xf32>
    %46 = tpu.matmul %44, %45, %cst_20 {dimension_numbers = #tpu.dot_dimension_numbers<[1], [0], [0], [1], [0, 0, 1, 1], [], []>} : vector<128x128xbf16>, vector<128x32xbf16>, vector<128x32xf32> -> vector<128x32xf32>
    %c0_21 = arith.constant 0 : index
    %c0_22 = arith.constant 0 : index
    %47 = vector.load %arg7[%c0_21, %c0_22] : memref<1x32xf32, #tpu.memory_space<vmem>>, vector<1x32xf32>
    %48 = vector.broadcast %47 : vector<1x32xf32> to vector<128x32xf32>
    %49 = arith.addf %46, %48 : vector<128x32xf32>
    %50 = arith.addf %0, %49 : vector<128x32xf32>
    %c0_23 = arith.constant 0 : index
    %c0_24 = arith.constant 0 : index
    %51 = vector.load %arg8[%c0_23, %c0_24] : memref<128x32xf32, #tpu.memory_space<vmem>>, vector<128x32xf32>
    tpu.vector_store %arg8[%c0_23, %c0_24], %50 {strides = array<i32>} : memref<128x32xf32, #tpu.memory_space<vmem>>, vector<128x32xf32>,
    return
  }
  func.func @transform_0(%arg0: i32) -> (i32, i32) {
    %c0_i32 = arith.constant 0 : i32
    %c0_i32_0 = arith.constant 0 : i32
    return %arg0, %c0_i32 : i32, i32
  }
  func.func @transform_1(%arg0: i32) -> (i32, i32) {
    %c0_i32 = arith.constant 0 : i32
    %c0_i32_0 = arith.constant 0 : i32
    %c0_i32_1 = arith.constant 0 : i32
    return %c0_i32, %c0_i32_0 : i32, i32
  }
  func.func @transform_2(%arg0: i32) -> (i32, i32) {
    %c0_i32 = arith.constant 0 : i32
    %c0_i32_0 = arith.constant 0 : i32
    %c0_i32_1 = arith.constant 0 : i32
    return %c0_i32, %c0_i32_0 : i32, i32
  }
  func.func @transform_3(%arg0: i32) -> (i32, i32) {
    %c0_i32 = arith.constant 0 : i32
    %c0_i32_0 = arith.constant 0 : i32
    %c0_i32_1 = arith.constant 0 : i32
    return %c0_i32, %c0_i32_0 : i32, i32
  }
  func.func @transform_4(%arg0: i32) -> (i32, i32) {
    %c0_i32 = arith.constant 0 : i32
    %c0_i32_0 = arith.constant 0 : i32
    %c0_i32_1 = arith.constant 0 : i32
    return %c0_i32, %c0_i32_0 : i32, i32
  }
  func.func @transform_5(%arg0: i32) -> (i32, i32) {
    %c0_i32 = arith.constant 0 : i32
    %c0_i32_0 = arith.constant 0 : i32
    %c0_i32_1 = arith.constant 0 : i32
    return %c0_i32, %c0_i32_0 : i32, i32
  }
  func.func @transform_6(%arg0: i32) -> (i32, i32) {
    %c0_i32 = arith.constant 0 : i32
    %c0_i32_0 = arith.constant 0 : i32
    %c0_i32_1 = arith.constant 0 : i32
    return %c0_i32, %c0_i32_0 : i32, i32
  }
  func.func @transform_7(%arg0: i32) -> (i32, i32) {
    %c0_i32 = arith.constant 0 : i32
    %c0_i32_0 = arith.constant 0 : i32
    return %arg0, %c0_i32 : i32, i32
  }
}

</mosaic_0001>

<llo_original>
// kernel: swin_transformer_forward.5
$region0: #{swin_transformer_forward.5}
  #allocation0 [shape = 'u32[]', space=smem, size = 0x4, offset = 0x4, fixed_abs, tag = 'smem constant byte address 0x4 - core index']
  #allocation1 [shape = 'u32[72,128]{1,0:T(1,128)}', space=vmem, size = 0x9000, scoped, tag = 'internal scratch']
  %s0 = inlined_call_operand.vmem [shape: f32[128,32], index: 0, kind: input, shape index: {}]
  %s1 = inlined_call_operand.vmem [shape: f32[1,32], index: 1, kind: input, shape index: {}]
  %s2 = inlined_call_operand.vmem [shape: f32[1,32], index: 2, kind: input, shape index: {}]
  %s3 = inlined_call_operand.vmem [shape: bf16[32,128], index: 3, kind: input, shape index: {}]
  %s4 = inlined_call_operand.vmem [shape: f32[1,128], index: 4, kind: input, shape index: {}]
  %s5 = inlined_call_operand.vmem [shape: bf16[128,32], index: 5, kind: input, shape index: {}]
  %s6 = inlined_call_operand.vmem [shape: f32[1,32], index: 6, kind: input, shape index: {}]
  %s7 = inlined_call_operand.vmem [shape: f32[128,32], index: 7, kind: output, shape index: {}]
  %s8 = sld [smem:[#allocation0]]
  $region38: #{swin_transformer_forward.5} parent=0
    _
  %s10 = ssub.s32 1, %s8
  %s11 = scalar_select 0, %s10, %s8
  // Predicated region
  $region2: #{swin_transformer_forward.5} parent=0 // pred_check
    _
  $region3: #{swin_transformer_forward.5} parent=0 // pred_check_branch
    %13 = sbr.rel (0) target = $region5
  $region4: #{swin_transformer_forward.5} parent=0 // pred_region
    _
  $region5: #{swin_transformer_forward.5} parent=0 // pred_fallthru
    _
  // Predicated region
  $region6: #{swin_transformer_forward.5} parent=0 // pred_check
    _
  $region7: #{swin_transformer_forward.5} parent=0 // pred_check_branch
    %15 = sbr.rel (0) target = $region9
  $region8: #{swin_transformer_forward.5} parent=0 // pred_region
    _
  $region9: #{swin_transformer_forward.5} parent=0 // pred_fallthru
    _
  // Predicated region
  $region10: #{swin_transformer_forward.5} parent=0 // pred_check
    _
  $region11: #{swin_transformer_forward.5} parent=0 // pred_check_branch
    %17 = sbr.rel (0) target = $region13
  $region12: #{swin_transformer_forward.5} parent=0 // pred_region
    _
  $region13: #{swin_transformer_forward.5} parent=0 // pred_fallthru
    _
  // Predicated region
  $region14: #{swin_transformer_forward.5} parent=0 // pred_check
    _
  $region15: #{swin_transformer_forward.5} parent=0 // pred_check_branch
    %19 = sbr.rel (0) target = $region17
  $region16: #{swin_transformer_forward.5} parent=0 // pred_region
    _
  $region17: #{swin_transformer_forward.5} parent=0 // pred_fallthru
    _
  // Predicated region
  $region18: #{swin_transformer_forward.5} parent=0 // pred_check
    _
  $region19: #{swin_transformer_forward.5} parent=0 // pred_check_branch
    %21 = sbr.rel (0) target = $region21
  $region20: #{swin_transformer_forward.5} parent=0 // pred_region
    _
  $region21: #{swin_transformer_forward.5} parent=0 // pred_fallthru
    _
  // Predicated region
  $region22: #{swin_transformer_forward.5} parent=0 // pred_check
    _
  $region23: #{swin_transformer_forward.5} parent=0 // pred_check_branch
    %23 = sbr.rel (0) target = $region25
  $region24: #{swin_transformer_forward.5} parent=0 // pred_region
    _
  $region25: #{swin_transformer_forward.5} parent=0 // pred_fallthru
    _
  // Predicated region
  $region26: #{swin_transformer_forward.5} parent=0 // pred_check
    _
  $region27: #{swin_transformer_forward.5} parent=0 // pred_check_branch
    %25 = sbr.rel (0) target = $region29
  $region28: #{swin_transformer_forward.5} parent=0 // pred_region
    _
  $region29: #{swin_transformer_forward.5} parent=0 // pred_fallthru
    _
  %v27 = vld [vmem:[%s0] sm:$0xff]
  %v28 = vld [vmem:[%s0 + $0x8] sm:$0xff]
  %v29 = vld [vmem:[%s0 + $0x10] sm:$0xff]
  %v30 = vld [vmem:[%s0 + $0x18] sm:$0xff]
  %v31 = vld [vmem:[%s0 + $0x20] sm:$0xff]
  %v32 = vld [vmem:[%s0 + $0x28] sm:$0xff]
  %v33 = vld [vmem:[%s0 + $0x30] sm:$0xff]
  %v34 = vld [vmem:[%s0 + $0x38] sm:$0xff]
  %v35 = vld [vmem:[%s0 + $0x40] sm:$0xff]
  %v36 = vld [vmem:[%s0 + $0x48] sm:$0xff]
  %v37 = vld [vmem:[%s0 + $0x50] sm:$0xff]
  %v38 = vld [vmem:[%s0 + $0x58] sm:$0xff]
  %v39 = vld [vmem:[%s0 + $0x60] sm:$0xff]
  %v40 = vld [vmem:[%s0 + $0x68] sm:$0xff]
  %v41 = vld [vmem:[%s0 + $0x70] sm:$0xff]
  %v42 = vld [vmem:[%s0 + $0x78] sm:$0xff]
  %vm43 = vcmask 261120
  %v44 = vsel %vm43, %v27, 0.0
  %45 = vadd.xlane.f32.xlu0 %v44
  %v46 = vpop.xlane.xlu0 %45
  %v47 = vsel %vm43, %v28, 0.0
  %48 = vadd.xlane.f32.xlu0 %v47
  %v49 = vpop.xlane.xlu0 %48
  %v50 = vsel %vm43, %v29, 0.0
  %51 = vadd.xlane.f32.xlu0 %v50
  %v52 = vpop.xlane.xlu0 %51
  %v53 = vsel %vm43, %v30, 0.0
  %54 = vadd.xlane.f32.xlu0 %v53
  %v55 = vpop.xlane.xlu0 %54
  %v56 = vsel %vm43, %v31, 0.0
  %57 = vadd.xlane.f32.xlu0 %v56
  %v58 = vpop.xlane.xlu0 %57
  %v59 = vsel %vm43, %v32, 0.0
  %60 = vadd.xlane.f32.xlu0 %v59
  %v61 = vpop.xlane.xlu0 %60
  %v62 = vsel %vm43, %v33, 0.0
  %63 = vadd.xlane.f32.xlu0 %v62
  %v64 = vpop.xlane.xlu0 %63
  %v65 = vsel %vm43, %v34, 0.0
  %66 = vadd.xlane.f32.xlu0 %v65
  %v67 = vpop.xlane.xlu0 %66
  %v68 = vsel %vm43, %v35, 0.0
  %69 = vadd.xlane.f32.xlu0 %v68
  %v70 = vpop.xlane.xlu0 %69
  %v71 = vsel %vm43, %v36, 0.0
  %72 = vadd.xlane.f32.xlu0 %v71
  %v73 = vpop.xlane.xlu0 %72
  %v74 = vsel %vm43, %v37, 0.0
  %75 = vadd.xlane.f32.xlu0 %v74
  %v76 = vpop.xlane.xlu0 %75
  %v77 = vsel %vm43, %v38, 0.0
  %78 = vadd.xlane.f32.xlu0 %v77
  %v79 = vpop.xlane.xlu0 %78
  %v80 = vsel %vm43, %v39, 0.0
  %81 = vadd.xlane.f32.xlu0 %v80
  %v82 = vpop.xlane.xlu0 %81
  %v83 = vsel %vm43, %v40, 0.0
  %84 = vadd.xlane.f32.xlu0 %v83
  %v85 = vpop.xlane.xlu0 %84
  %v86 = vsel %vm43, %v41, 0.0
  %87 = vadd.xlane.f32.xlu0 %v86
  %v88 = vpop.xlane.xlu0 %87
  %v89 = vsel %vm43, %v42, 0.0
  %90 = vadd.xlane.f32.xlu0 %v89
  %v91 = vpop.xlane.xlu0 %90
  %v92 = vrcp.pop 32.0
  %v93 = vmul.f32 32.0, %v92
  %v94 = vsub.f32 1.0, %v93
  %v95 = vmul.f32 %v92, %v94
  %v96 = vadd.f32 %v92, %v95
  %vm97 = vweird.f32 %v92
  %v98 = vsel %vm97, %v92, %v96
  %v99 = vmul.f32 %v46, %v98
  %v100 = vmul.f32 %v49, %v98
  %v101 = vmul.f32 %v52, %v98
  %v102 = vmul.f32 %v55, %v98
  %v103 = vmul.f32 %v58, %v98
  %v104 = vmul.f32 %v61, %v98
  %v105 = vmul.f32 %v64, %v98
  %v106 = vmul.f32 %v67, %v98
  %v107 = vmul.f32 %v70, %v98
  %v108 = vmul.f32 %v73, %v98
  %v109 = vmul.f32 %v76, %v98
  %v110 = vmul.f32 %v79, %v98
  %v111 = vmul.f32 %v82, %v98
  %v112 = vmul.f32 %v85, %v98
  %v113 = vmul.f32 %v88, %v98
  %v114 = vmul.f32 %v91, %v98
  %v115 = vsub.f32 %v27, %v99
  %v116 = vsub.f32 %v28, %v100
  %v117 = vsub.f32 %v29, %v101
  %v118 = vsub.f32 %v30, %v102
  %v119 = vsub.f32 %v31, %v103
  %v120 = vsub.f32 %v32, %v104
  %v121 = vsub.f32 %v33, %v105
  %v122 = vsub.f32 %v34, %v106
  %v123 = vsub.f32 %v35, %v107
  %v124 = vsub.f32 %v36, %v108
  %v125 = vsub.f32 %v37, %v109
  %v126 = vsub.f32 %v38, %v110
  %v127 = vsub.f32 %v39, %v111
  %v128 = vsub.f32 %v40, %v112
  %v129 = vsub.f32 %v41, %v113
  %v130 = vsub.f32 %v42, %v114
  %v131 = vmul.f32 %v115, %v115
  %v132 = vmul.f32 %v116, %v116
  %v133 = vmul.f32 %v117, %v117
  %v134 = vmul.f32 %v118, %v118
  %v135 = vmul.f32 %v119, %v119
  %v136 = vmul.f32 %v120, %v120
  %v137 = vmul.f32 %v121, %v121
  %v138 = vmul.f32 %v122, %v122
  %v139 = vmul.f32 %v123, %v123
  %v140 = vmul.f32 %v124, %v124
  %v141 = vmul.f32 %v125, %v125
  %v142 = vmul.f32 %v126, %v126
  %v143 = vmul.f32 %v127, %v127
  %v144 = vmul.f32 %v128, %v128
  %v145 = vmul.f32 %v129, %v129
  %v146 = vmul.f32 %v130, %v130
  %v147 = vsel %vm43, %v131, 0.0
  %148 = vadd.xlane.f32.xlu0 %v147
  %v149 = vpop.xlane.xlu0 %148
  %v150 = vsel %vm43, %v132, 0.0
  %151 = vadd.xlane.f32.xlu0 %v150
  %v152 = vpop.xlane.xlu0 %151
  %v153 = vsel %vm43, %v133, 0.0
  %154 = vadd.xlane.f32.xlu0 %v153
  %v155 = vpop.xlane.xlu0 %154
  %v156 = vsel %vm43, %v134, 0.0
  %157 = vadd.xlane.f32.xlu0 %v156
  %v158 = vpop.xlane.xlu0 %157
  %v159 = vsel %vm43, %v135, 0.0
  %160 = vadd.xlane.f32.xlu0 %v159
  %v161 = vpop.xlane.xlu0 %160
  %v162 = vsel %vm43, %v136, 0.0
  %163 = vadd.xlane.f32.xlu0 %v162
  %v164 = vpop.xlane.xlu0 %163
  %v165 = vsel %vm43, %v137, 0.0
  %166 = vadd.xlane.f32.xlu0 %v165
  %v167 = vpop.xlane.xlu0 %166
  %v168 = vsel %vm43, %v138, 0.0
  %169 = vadd.xlane.f32.xlu0 %v168
  %v170 = vpop.xlane.xlu0 %169
  %v171 = vsel %vm43, %v139, 0.0
  %172 = vadd.xlane.f32.xlu0 %v171
  %v173 = vpop.xlane.xlu0 %172
  %v174 = vsel %vm43, %v140, 0.0
  %175 = vadd.xlane.f32.xlu0 %v174
  %v176 = vpop.xlane.xlu0 %175
  %v177 = vsel %vm43, %v141, 0.0
  %178 = vadd.xlane.f32.xlu0 %v177
  %v179 = vpop.xlane.xlu0 %178
  %v180 = vsel %vm43, %v142, 0.0
  %181 = vadd.xlane.f32.xlu0 %v180
  %v182 = vpop.xlane.xlu0 %181
  %v183 = vsel %vm43, %v143, 0.0
  %184 = vadd.xlane.f32.xlu0 %v183
  %v185 = vpop.xlane.xlu0 %184
  %v186 = vsel %vm43, %v144, 0.0
  %187 = vadd.xlane.f32.xlu0 %v186
  %v188 = vpop.xlane.xlu0 %187
  %v189 = vsel %vm43, %v145, 0.0
  %190 = vadd.xlane.f32.xlu0 %v189
  %v191 = vpop.xlane.xlu0 %190
  %v192 = vsel %vm43, %v146, 0.0
  %193 = vadd.xlane.f32.xlu0 %v192
  %v194 = vpop.xlane.xlu0 %193
  %v195 = vmul.f32 %v149, %v98
  %v196 = vmul.f32 %v152, %v98
  %v197 = vmul.f32 %v155, %v98
  %v198 = vmul.f32 %v158, %v98
  %v199 = vmul.f32 %v161, %v98
  %v200 = vmul.f32 %v164, %v98
  %v201 = vmul.f32 %v167, %v98
  %v202 = vmul.f32 %v170, %v98
  %v203 = vmul.f32 %v173, %v98
  %v204 = vmul.f32 %v176, %v98
  %v205 = vmul.f32 %v179, %v98
  %v206 = vmul.f32 %v182, %v98
  %v207 = vmul.f32 %v185, %v98
  %v208 = vmul.f32 %v188, %v98
  %v209 = vmul.f32 %v191, %v98
  %v210 = vmul.f32 %v194, %v98
  %v211 = vadd.f32 %v195, 1e-05
  %v212 = vadd.f32 %v196, 1e-05
  %v213 = vadd.f32 %v197, 1e-05
  %v214 = vadd.f32 %v198, 1e-05
  %v215 = vadd.f32 %v199, 1e-05
  %v216 = vadd.f32 %v200, 1e-05
  %v217 = vadd.f32 %v201, 1e-05
  %v218 = vadd.f32 %v202, 1e-05
  %v219 = vadd.f32 %v203, 1e-05
  %v220 = vadd.f32 %v204, 1e-05
  %v221 = vadd.f32 %v205, 1e-05
  %v222 = vadd.f32 %v206, 1e-05
  %v223 = vadd.f32 %v207, 1e-05
  %v224 = vadd.f32 %v208, 1e-05
  %v225 = vadd.f32 %v209, 1e-05
  %v226 = vadd.f32 %v210, 1e-05
  %v227 = vrsqrt.pop %v211
  %v228 = vmul.f32 %v227, %v211
  %v229 = vmul.f32 %v228, %v227
  %v230 = vmul.f32 0.5, %v229
  %v231 = vsub.f32 1.5, %v230
  %v232 = vmul.f32 %v227, %v231
  %vm233 = vweird.f32 %v211
  %vm234 = vweird.f32 %v227
  %vm235 = vmor %vm233, %vm234
  %v236 = vsel %vm235, %v227, %v232
  %v237 = vrsqrt.pop %v212
  %v238 = vmul.f32 %v237, %v212
  %v239 = vmul.f32 %v238, %v237
  %v240 = vmul.f32 0.5, %v239
  %v241 = vsub.f32 1.5, %v240
  %v242 = vmul.f32 %v237, %v241
  %vm243 = vweird.f32 %v212
  %vm244 = vweird.f32 %v237
  %vm245 = vmor %vm243, %vm244
  %v246 = vsel %vm245, %v237, %v242
  %v247 = vrsqrt.pop %v213
  %v248 = vmul.f32 %v247, %v213
  %v249 = vmul.f32 %v248, %v247
  %v250 = vmul.f32 0.5, %v249
  %v251 = vsub.f32 1.5, %v250
  %v252 = vmul.f32 %v247, %v251
  %vm253 = vweird.f32 %v213
  %vm254 = vweird.f32 %v247
  %vm255 = vmor %vm253, %vm254
  %v256 = vsel %vm255, %v247, %v252
  %v257 = vrsqrt.pop %v214
  %v258 = vmul.f32 %v257, %v214
  %v259 = vmul.f32 %v258, %v257
  %v260 = vmul.f32 0.5, %v259
  %v261 = vsub.f32 1.5, %v260
  %v262 = vmul.f32 %v257, %v261
  %vm263 = vweird.f32 %v214
  %vm264 = vweird.f32 %v257
  %vm265 = vmor %vm263, %vm264
  %v266 = vsel %vm265, %v257, %v262
  %v267 = vrsqrt.pop %v215
  %v268 = vmul.f32 %v267, %v215
  %v269 = vmul.f32 %v268, %v267
  %v270 = vmul.f32 0.5, %v269
  %v271 = vsub.f32 1.5, %v270
  %v272 = vmul.f32 %v267, %v271
  %vm273 = vweird.f32 %v215
  %vm274 = vweird.f32 %v267
  %vm275 = vmor %vm273, %vm274
  %v276 = vsel %vm275, %v267, %v272
  %v277 = vrsqrt.pop %v216
  %v278 = vmul.f32 %v277, %v216
  %v279 = vmul.f32 %v278, %v277
  %v280 = vmul.f32 0.5, %v279
  %v281 = vsub.f32 1.5, %v280
  %v282 = vmul.f32 %v277, %v281
  %vm283 = vweird.f32 %v216
  %vm284 = vweird.f32 %v277
  %vm285 = vmor %vm283, %vm284
  %v286 = vsel %vm285, %v277, %v282
  %v287 = vrsqrt.pop %v217
  %v288 = vmul.f32 %v287, %v217
  %v289 = vmul.f32 %v288, %v287
  %v290 = vmul.f32 0.5, %v289
  %v291 = vsub.f32 1.5, %v290
  %v292 = vmul.f32 %v287, %v291
  %vm293 = vweird.f32 %v217
  %vm294 = vweird.f32 %v287
  %vm295 = vmor %vm293, %vm294
  %v296 = vsel %vm295, %v287, %v292
  %v297 = vrsqrt.pop %v218
  %v298 = vmul.f32 %v297, %v218
  %v299 = vmul.f32 %v298, %v297
  %v300 = vmul.f32 0.5, %v299
  %v301 = vsub.f32 1.5, %v300
  %v302 = vmul.f32 %v297, %v301
  %vm303 = vweird.f32 %v218
  %vm304 = vweird.f32 %v297
  %vm305 = vmor %vm303, %vm304
  %v306 = vsel %vm305, %v297, %v302
  %v307 = vrsqrt.pop %v219
  %v308 = vmul.f32 %v307, %v219
  %v309 = vmul.f32 %v308, %v307
  %v310 = vmul.f32 0.5, %v309
  %v311 = vsub.f32 1.5, %v310
  %v312 = vmul.f32 %v307, %v311
  %vm313 = vweird.f32 %v219
  %vm314 = vweird.f32 %v307
  %vm315 = vmor %vm313, %vm314
  %v316 = vsel %vm315, %v307, %v312
  %v317 = vrsqrt.pop %v220
  %v318 = vmul.f32 %v317, %v220
  %v319 = vmul.f32 %v318, %v317
  %v320 = vmul.f32 0.5, %v319
  %v321 = vsub.f32 1.5, %v320
  %v322 = vmul.f32 %v317, %v321
  %vm323 = vweird.f32 %v220
  %vm324 = vweird.f32 %v317
  %vm325 = vmor %vm323, %vm324
  %v326 = vsel %vm325, %v317, %v322
  %v327 = vrsqrt.pop %v221
  %v328 = vmul.f32 %v327, %v221
  %v329 = vmul.f32 %v328, %v327
  %v330 = vmul.f32 0.5, %v329
  %v331 = vsub.f32 1.5, %v330
  %v332 = vmul.f32 %v327, %v331
  %vm333 = vweird.f32 %v221
  %vm334 = vweird.f32 %v327
  %vm335 = vmor %vm333, %vm334
  %v336 = vsel %vm335, %v327, %v332
  %v337 = vrsqrt.pop %v222
  %v338 = vmul.f32 %v337, %v222
  %v339 = vmul.f32 %v338, %v337
  %v340 = vmul.f32 0.5, %v339
  %v341 = vsub.f32 1.5, %v340
  %v342 = vmul.f32 %v337, %v341
  %vm343 = vweird.f32 %v222
  %vm344 = vweird.f32 %v337
  %vm345 = vmor %vm343, %vm344
  %v346 = vsel %vm345, %v337, %v342
  %v347 = vrsqrt.pop %v223
  %v348 = vmul.f32 %v347, %v223
  %v349 = vmul.f32 %v348, %v347
  %v350 = vmul.f32 0.5, %v349
  %v351 = vsub.f32 1.5, %v350
  %v352 = vmul.f32 %v347, %v351
  %vm353 = vweird.f32 %v223
  %vm354 = vweird.f32 %v347
  %vm355 = vmor %vm353, %vm354
  %v356 = vsel %vm355, %v347, %v352
  %v357 = vrsqrt.pop %v224
  %v358 = vmul.f32 %v357, %v224
  %v359 = vmul.f32 %v358, %v357
  %v360 = vmul.f32 0.5, %v359
  %v361 = vsub.f32 1.5, %v360
  %v362 = vmul.f32 %v357, %v361
  %vm363 = vweird.f32 %v224
  %vm364 = vweird.f32 %v357
  %vm365 = vmor %vm363, %vm364
  %v366 = vsel %vm365, %v357, %v362
  %v367 = vrsqrt.pop %v225
  %v368 = vmul.f32 %v367, %v225
  %v369 = vmul.f32 %v368, %v367
  %v370 = vmul.f32 0.5, %v369
  %v371 = vsub.f32 1.5, %v370
  %v372 = vmul.f32 %v367, %v371
  %vm373 = vweird.f32 %v225
  %vm374 = vweird.f32 %v367
  %vm375 = vmor %vm373, %vm374
  %v376 = vsel %vm375, %v367, %v372
  %v377 = vrsqrt.pop %v226
  %v378 = vmul.f32 %v377, %v226
  %v379 = vmul.f32 %v378, %v377
  %v380 = vmul.f32 0.5, %v379
  %v381 = vsub.f32 1.5, %v380
  %v382 = vmul.f32 %v377, %v381
  %vm383 = vweird.f32 %v226
  %vm384 = vweird.f32 %v377
  %vm385 = vmor %vm383, %vm384
  %v386 = vsel %vm385, %v377, %v382
  %v387 = vmul.f32 %v115, %v236
  %v388 = vmul.f32 %v116, %v246
  %v389 = vmul.f32 %v117, %v256
  %v390 = vmul.f32 %v118, %v266
  %v391 = vmul.f32 %v119, %v276
  %v392 = vmul.f32 %v120, %v286
  %v393 = vmul.f32 %v121, %v296
  %v394 = vmul.f32 %v122, %v306
  %v395 = vmul.f32 %v123, %v316
  %v396 = vmul.f32 %v124, %v326
  %v397 = vmul.f32 %v125, %v336
  %v398 = vmul.f32 %v126, %v346
  %v399 = vmul.f32 %v127, %v356
  %v400 = vmul.f32 %v128, %v366
  %v401 = vmul.f32 %v129, %v376
  %v402 = vmul.f32 %v130, %v386
  %v403 = vld [vmem:[%s1] sm:$0x1]
  %v405 = vperm.slane %v403, 0
  %v407 = vmul.f32 %v387, %v405
  %v408 = vmul.f32 %v388, %v405
  %v409 = vmul.f32 %v389, %v405
  %v410 = vmul.f32 %v390, %v405
  %v411 = vmul.f32 %v391, %v405
  %v412 = vmul.f32 %v392, %v405
  %v413 = vmul.f32 %v393, %v405
  %v414 = vmul.f32 %v394, %v405
  %v415 = vmul.f32 %v395, %v405
  %v416 = vmul.f32 %v396, %v405
  %v417 = vmul.f32 %v397, %v405
  %v418 = vmul.f32 %v398, %v405
  %v419 = vmul.f32 %v399, %v405
  %v420 = vmul.f32 %v400, %v405
  %v421 = vmul.f32 %v401, %v405
  %v422 = vmul.f32 %v402, %v405
  %v423 = vld [vmem:[%s2] sm:$0x1]
  %v425 = vperm.slane %v423, 0
  %v427 = vadd.f32 %v407, %v425
  %v428 = vadd.f32 %v408, %v425
  %v429 = vadd.f32 %v409, %v425
  %v430 = vadd.f32 %v410, %v425
  %v431 = vadd.f32 %v411, %v425
  %v432 = vadd.f32 %v412, %v425
  %v433 = vadd.f32 %v413, %v425
  %v434 = vadd.f32 %v414, %v425
  %v435 = vadd.f32 %v415, %v425
  %v436 = vadd.f32 %v416, %v425
  %v437 = vadd.f32 %v417, %v425
  %v438 = vadd.f32 %v418, %v425
  %v439 = vadd.f32 %v419, %v425
  %v440 = vadd.f32 %v420, %v425
  %v441 = vadd.f32 %v421, %v425
  %v442 = vadd.f32 %v422, %v425
  %v443 = vpack.c.bf16 %v428, %v427
  %v444 = vpack.c.bf16 %v430, %v429
  %v445 = vpack.c.bf16 %v432, %v431
  %v446 = vpack.c.bf16 %v434, %v433
  %v447 = vpack.c.bf16 %v436, %v435
  %v448 = vpack.c.bf16 %v438, %v437
  %v449 = vpack.c.bf16 %v440, %v439
  %v450 = vpack.c.bf16 %v442, %v441
  %v451 = vld [vmem:[%s3] sm:$0xf]
  %v452 = vld [vmem:[%s3 + $0x4] sm:$0xf]
  %v453 = vld [vmem:[%s3 + $0x8] sm:$0xf]
  %v454 = vld [vmem:[%s3 + $0xc] sm:$0xf]
  %v455 = vld [vmem:[%s4] sm:$0x1]
  %v457 = vperm.slane %v455, 0
  %v463 = vunpack.c.l.b16 %v451
  %v464 = vunpack.c.l.b16 %v452
  %v465 = vunpack.c.l.b16 %v453
  %v466 = vunpack.c.l.b16 %v454
  %v467 = vpack.c.b16 %v464, %v463
  %v468 = vpack.c.b16 %v466, %v465
  %v472 = vsel %vm43, %v443, 0
  %v475 = vsel %vm43, %v444, 0
  %v478 = vsel %vm43, %v445, 0
  %v481 = vsel %vm43, %v446, 0
  %v484 = vsel %vm43, %v447, 0
  %v487 = vsel %vm43, %v448, 0
  %v490 = vsel %vm43, %v449, 0
  %v493 = vsel %vm43, %v450, 0
  %495 = vmatpush.bf16.msra.mxu0 0
  %496 = vmatpush.bf16.msra.mxu0 0
  %497 = vmatpush.bf16.msra.mxu0 0
  %498 = vmatpush.bf16.msra.mxu0 0
  %499 = vmatpush.bf16.msra.mxu0 0
  %500 = vmatpush.bf16.msra.mxu0 0
  %501 = vmatpush.bf16.msra.mxu0 %v468
  %502 = vmatpush.bf16.msra.mxu0 %v467
  %503 = vmatmul.bf16.gmra.mxu0 %v472
  %v504 = vpop.f32.mrf.mxu0
  %v505 = vadd.f32 %v457, %v504
  %v506 = vpop.f32.mrf.mxu0
  %v507 = vadd.f32 %v457, %v506
  %508 = vmatmul.bf16.gmra.mxu0 %v475
  %v509 = vpop.f32.mrf.mxu0
  %v510 = vadd.f32 %v457, %v509
  %v511 = vpop.f32.mrf.mxu0
  %v512 = vadd.f32 %v457, %v511
  %513 = vmatmul.bf16.gmra.mxu0 %v478
  %v514 = vpop.f32.mrf.mxu0
  %v515 = vadd.f32 %v457, %v514
  %v516 = vpop.f32.mrf.mxu0
  %v517 = vadd.f32 %v457, %v516
  %518 = vmatmul.bf16.gmra.mxu0 %v481
  %v519 = vpop.f32.mrf.mxu0
  %v520 = vadd.f32 %v457, %v519
  %v521 = vpop.f32.mrf.mxu0
  %v522 = vadd.f32 %v457, %v521
  %523 = vmatmul.bf16.gmra.mxu0 %v484
  %v524 = vpop.f32.mrf.mxu0
  %v525 = vadd.f32 %v457, %v524
  %v526 = vpop.f32.mrf.mxu0
  %v527 = vadd.f32 %v457, %v526
  %528 = vmatmul.bf16.gmra.mxu0 %v487
  %v529 = vpop.f32.mrf.mxu0
  %v530 = vadd.f32 %v457, %v529
  %v531 = vpop.f32.mrf.mxu0
  %v532 = vadd.f32 %v457, %v531
  %533 = vmatmul.bf16.gmra.mxu0 %v490
  %v534 = vpop.f32.mrf.mxu0
  %v535 = vadd.f32 %v457, %v534
  %v536 = vpop.f32.mrf.mxu0
  %v537 = vadd.f32 %v457, %v536
  %538 = vmatmul.bf16.gmra.mxu0 %v493
  %v539 = vpop.f32.mrf.mxu0
  %v540 = vadd.f32 %v457, %v539
  %v541 = vpop.f32.mrf.mxu0
  %v542 = vadd.f32 %v457, %v541
  %543 = vdwg.mxu0
  %v544 = vmul.f32 %v505, %v505
  %v545 = vmul.f32 %v507, %v507
  %v546 = vmul.f32 %v510, %v510
  %v547 = vmul.f32 %v512, %v512
  %v548 = vmul.f32 %v515, %v515
  %v549 = vmul.f32 %v517, %v517
  %v550 = vmul.f32 %v520, %v520
  %v551 = vmul.f32 %v522, %v522
  %v552 = vmul.f32 %v525, %v525
  %v553 = vmul.f32 %v527, %v527
  %v554 = vmul.f32 %v530, %v530
  %v555 = vmul.f32 %v532, %v532
  %v556 = vmul.f32 %v535, %v535
  %v557 = vmul.f32 %v537, %v537
  %v558 = vmul.f32 %v540, %v540
  %v559 = vmul.f32 %v542, %v542
  %v560 = vmul.f32 %v505, %v544
  %v561 = vmul.f32 %v507, %v545
  %v562 = vmul.f32 %v510, %v546
  %v563 = vmul.f32 %v512, %v547
  %v564 = vmul.f32 %v515, %v548
  %v565 = vmul.f32 %v517, %v549
  %v566 = vmul.f32 %v520, %v550
  %v567 = vmul.f32 %v522, %v551
  %v568 = vmul.f32 %v525, %v552
  %v569 = vmul.f32 %v527, %v553
  %v570 = vmul.f32 %v530, %v554
  %v571 = vmul.f32 %v532, %v555
  %v572 = vmul.f32 %v535, %v556
  %v573 = vmul.f32 %v537, %v557
  %v574 = vmul.f32 %v540, %v558
  %v575 = vmul.f32 %v542, %v559
  %v576 = vmul.f32 %v560, 0.044715
  %v577 = vmul.f32 %v561, 0.044715
  %v578 = vmul.f32 %v562, 0.044715
  %v579 = vmul.f32 %v563, 0.044715
  %v580 = vmul.f32 %v564, 0.044715
  %v581 = vmul.f32 %v565, 0.044715
  %v582 = vmul.f32 %v566, 0.044715
  %v583 = vmul.f32 %v567, 0.044715
  %v584 = vmul.f32 %v568, 0.044715
  %v585 = vmul.f32 %v569, 0.044715
  %v586 = vmul.f32 %v570, 0.044715
  %v587 = vmul.f32 %v571, 0.044715
  %v588 = vmul.f32 %v572, 0.044715
  %v589 = vmul.f32 %v573, 0.044715
  %v590 = vmul.f32 %v574, 0.044715
  %v591 = vmul.f32 %v575, 0.044715
  %v592 = vadd.f32 %v505, %v576
  %v593 = vadd.f32 %v507, %v577
  %v594 = vadd.f32 %v510, %v578
  %v595 = vadd.f32 %v512, %v579
  %v596 = vadd.f32 %v515, %v580
  %v597 = vadd.f32 %v517, %v581
  %v598 = vadd.f32 %v520, %v582
  %v599 = vadd.f32 %v522, %v583
  %v600 = vadd.f32 %v525, %v584
  %v601 = vadd.f32 %v527, %v585
  %v602 = vadd.f32 %v530, %v586
  %v603 = vadd.f32 %v532, %v587
  %v604 = vadd.f32 %v535, %v588
  %v605 = vadd.f32 %v537, %v589
  %v606 = vadd.f32 %v540, %v590
  %v607 = vadd.f32 %v542, %v591
  %v608 = vmul.f32 %v592, 0.7978846
  %v609 = vmul.f32 %v593, 0.7978846
  %v610 = vmul.f32 %v594, 0.7978846
  %v611 = vmul.f32 %v595, 0.7978846
  %v612 = vmul.f32 %v596, 0.7978846
  %v613 = vmul.f32 %v597, 0.7978846
  %v614 = vmul.f32 %v598, 0.7978846
  %v615 = vmul.f32 %v599, 0.7978846
  %v616 = vmul.f32 %v600, 0.7978846
  %v617 = vmul.f32 %v601, 0.7978846
  %v618 = vmul.f32 %v602, 0.7978846
  %v619 = vmul.f32 %v603, 0.7978846
  %v620 = vmul.f32 %v604, 0.7978846
  %v621 = vmul.f32 %v605, 0.7978846
  %v622 = vmul.f32 %v606, 0.7978846
  %v623 = vmul.f32 %v607, 0.7978846
  %v624 = vtanh.pop %v608
  %v625 = vtanh.pop %v609
  %v626 = vtanh.pop %v610
  %v627 = vtanh.pop %v611
  %v628 = vtanh.pop %v612
  %v629 = vtanh.pop %v613
  %v630 = vtanh.pop %v614
  %v631 = vtanh.pop %v615
  %v632 = vtanh.pop %v616
  %v633 = vtanh.pop %v617
  %v634 = vtanh.pop %v618
  %v635 = vtanh.pop %v619
  %v636 = vtanh.pop %v620
  %v637 = vtanh.pop %v621
  %v638 = vtanh.pop %v622
  %v639 = vtanh.pop %v623
  %v640 = vadd.f32 %v624, 1.0
  %v641 = vadd.f32 %v625, 1.0
  %v642 = vadd.f32 %v626, 1.0
  %v643 = vadd.f32 %v627, 1.0
  %v644 = vadd.f32 %v628, 1.0
  %v645 = vadd.f32 %v629, 1.0
  %v646 = vadd.f32 %v630, 1.0
  %v647 = vadd.f32 %v631, 1.0
  %v648 = vadd.f32 %v632, 1.0
  %v649 = vadd.f32 %v633, 1.0
  %v650 = vadd.f32 %v634, 1.0
  %v651 = vadd.f32 %v635, 1.0
  %v652 = vadd.f32 %v636, 1.0
  %v653 = vadd.f32 %v637, 1.0
  %v654 = vadd.f32 %v638, 1.0
  %v655 = vadd.f32 %v639, 1.0
  %v656 = vmul.f32 %v640, 0.5
  %v657 = vmul.f32 %v641, 0.5
  %v658 = vmul.f32 %v642, 0.5
  %v659 = vmul.f32 %v643, 0.5
  %v660 = vmul.f32 %v644, 0.5
  %v661 = vmul.f32 %v645, 0.5
  %v662 = vmul.f32 %v646, 0.5
  %v663 = vmul.f32 %v647, 0.5
  %v664 = vmul.f32 %v648, 0.5
  %v665 = vmul.f32 %v649, 0.5
  %v666 = vmul.f32 %v650, 0.5
  %v667 = vmul.f32 %v651, 0.5
  %v668 = vmul.f32 %v652, 0.5
  %v669 = vmul.f32 %v653, 0.5
  %v670 = vmul.f32 %v654, 0.5
  %v671 = vmul.f32 %v655, 0.5
  %v672 = vmul.f32 %v505, %v656
  %v673 = vmul.f32 %v507, %v657
  %v674 = vmul.f32 %v510, %v658
  %v675 = vmul.f32 %v512, %v659
  %v676 = vmul.f32 %v515, %v660
  %v677 = vmul.f32 %v517, %v661
  %v678 = vmul.f32 %v520, %v662
  %v679 = vmul.f32 %v522, %v663
  %v680 = vmul.f32 %v525, %v664
  %v681 = vmul.f32 %v527, %v665
  %v682 = vmul.f32 %v530, %v666
  %v683 = vmul.f32 %v532, %v667
  %v684 = vmul.f32 %v535, %v668
  %v685 = vmul.f32 %v537, %v669
  %v686 = vmul.f32 %v540, %v670
  %v687 = vmul.f32 %v542, %v671
  %v688 = vpack.c.bf16 %v673, %v672
  %v689 = vpack.c.bf16 %v675, %v674
  %v690 = vpack.c.bf16 %v677, %v676
  %v691 = vpack.c.bf16 %v679, %v678
  %v692 = vpack.c.bf16 %v681, %v680
  %v693 = vpack.c.bf16 %v683, %v682
  %v694 = vpack.c.bf16 %v685, %v684
  %v695 = vpack.c.bf16 %v687, %v686
  %v696 = vld [vmem:[%s5] sm:$0xf]
  %v697 = vld [vmem:[%s5 + $0x4] sm:$0xf]
  %v698 = vld [vmem:[%s5 + $0x8] sm:$0xf]
  %v699 = vld [vmem:[%s5 + $0xc] sm:$0xf]
  %v700 = vld [vmem:[%s5 + $0x10] sm:$0xf]
  %v701 = vld [vmem:[%s5 + $0x14] sm:$0xf]
  %v702 = vld [vmem:[%s5 + $0x18] sm:$0xf]
  %v703 = vld [vmem:[%s5 + $0x1c] sm:$0xf]
  %v704 = vld [vmem:[%s5 + $0x20] sm:$0xf]
  %v705 = vld [vmem:[%s5 + $0x24] sm:$0xf]
  %v706 = vld [vmem:[%s5 + $0x28] sm:$0xf]
  %v707 = vld [vmem:[%s5 + $0x2c] sm:$0xf]
  %v708 = vld [vmem:[%s5 + $0x30] sm:$0xf]
  %v709 = vld [vmem:[%s5 + $0x34] sm:$0xf]
  %v710 = vld [vmem:[%s5 + $0x38] sm:$0xf]
  %v711 = vld [vmem:[%s5 + $0x3c] sm:$0xf]
  %v712 = vld [vmem:[%s6] sm:$0x1]
  %v714 = vperm.slane %v712, 0
  %v732 = vunpack.c.l.b16 %v696
  %v733 = vunpack.c.l.b16 %v697
  %v734 = vunpack.c.l.b16 %v698
  %v735 = vunpack.c.l.b16 %v699
  %v736 = vunpack.c.l.b16 %v700
  %v737 = vunpack.c.l.b16 %v701
  %v738 = vunpack.c.l.b16 %v702
  %v739 = vunpack.c.l.b16 %v703
  %v740 = vunpack.c.l.b16 %v704
  %v741 = vunpack.c.l.b16 %v705
  %v742 = vunpack.c.l.b16 %v706
  %v743 = vunpack.c.l.b16 %v707
  %v744 = vunpack.c.l.b16 %v708
  %v745 = vunpack.c.l.b16 %v709
  %v746 = vunpack.c.l.b16 %v710
  %v747 = vunpack.c.l.b16 %v711
  %v748 = vpack.c.b16 %v733, %v732
  %v749 = vpack.c.b16 %v735, %v734
  %v750 = vpack.c.b16 %v737, %v736
  %v751 = vpack.c.b16 %v739, %v738
  %v752 = vpack.c.b16 %v741, %v740
  %v753 = vpack.c.b16 %v743, %v742
  %v754 = vpack.c.b16 %v745, %v744
  %v755 = vpack.c.b16 %v747, %v746
  %764 = vmatpush.bf16.msra.mxu0 %v755
  %765 = vmatpush.bf16.msra.mxu0 %v754
  %766 = vmatpush.bf16.msra.mxu0 %v753
  %767 = vmatpush.bf16.msra.mxu0 %v752
  %768 = vmatpush.bf16.msra.mxu0 %v751
  %769 = vmatpush.bf16.msra.mxu0 %v750
  %770 = vmatpush.bf16.msra.mxu0 %v749
  %771 = vmatpush.bf16.msra.mxu0 %v748
  %772 = vmatmul.bf16.gmra.mxu0 %v688
  %v773 = vpop.f32.mrf.mxu0
  %v774 = vadd.f32 %v714, %v773
  %v775 = vpop.f32.mrf.mxu0
  %v776 = vadd.f32 %v714, %v775
  %777 = vmatmul.bf16.gmra.mxu0 %v689
  %v778 = vpop.f32.mrf.mxu0
  %v779 = vadd.f32 %v714, %v778
  %v780 = vpop.f32.mrf.mxu0
  %v781 = vadd.f32 %v714, %v780
  %782 = vmatmul.bf16.gmra.mxu0 %v690
  %v783 = vpop.f32.mrf.mxu0
  %v784 = vadd.f32 %v714, %v783
  %v785 = vpop.f32.mrf.mxu0
  %v786 = vadd.f32 %v714, %v785
  %787 = vmatmul.bf16.gmra.mxu0 %v691
  %v788 = vpop.f32.mrf.mxu0
  %v789 = vadd.f32 %v714, %v788
  %v790 = vpop.f32.mrf.mxu0
  %v791 = vadd.f32 %v714, %v790
  %792 = vmatmul.bf16.gmra.mxu0 %v692
  %v793 = vpop.f32.mrf.mxu0
  %v794 = vadd.f32 %v714, %v793
  %v795 = vpop.f32.mrf.mxu0
  %v796 = vadd.f32 %v714, %v795
  %797 = vmatmul.bf16.gmra.mxu0 %v693
  %v798 = vpop.f32.mrf.mxu0
  %v799 = vadd.f32 %v714, %v798
  %v800 = vpop.f32.mrf.mxu0
  %v801 = vadd.f32 %v714, %v800
  %802 = vmatmul.bf16.gmra.mxu0 %v694
  %v803 = vpop.f32.mrf.mxu0
  %v804 = vadd.f32 %v714, %v803
  %v805 = vpop.f32.mrf.mxu0
  %v806 = vadd.f32 %v714, %v805
  %807 = vmatmul.bf16.gmra.mxu0 %v695
  %v808 = vpop.f32.mrf.mxu0
  %v809 = vadd.f32 %v714, %v808
  %v810 = vpop.f32.mrf.mxu0
  %v811 = vadd.f32 %v714, %v810
  %812 = vdwg.mxu0
  %v813 = vadd.f32 %v27, %v774
  %v814 = vadd.f32 %v28, %v776
  %v815 = vadd.f32 %v29, %v779
  %v816 = vadd.f32 %v30, %v781
  %v817 = vadd.f32 %v31, %v784
  %v818 = vadd.f32 %v32, %v786
  %v819 = vadd.f32 %v33, %v789
  %v820 = vadd.f32 %v34, %v791
  %v821 = vadd.f32 %v35, %v794
  %v822 = vadd.f32 %v36, %v796
  %v823 = vadd.f32 %v37, %v799
  %v824 = vadd.f32 %v38, %v801
  %v825 = vadd.f32 %v39, %v804
  %v826 = vadd.f32 %v40, %v806
  %v827 = vadd.f32 %v41, %v809
  %v828 = vadd.f32 %v42, %v811
  %829 = vst.msk [vmem:[%s7] sm:$0xff] %vm43, %v813
  %830 = vst.msk [vmem:[%s7 + $0x8] sm:$0xff] %vm43, %v814
  %831 = vst.msk [vmem:[%s7 + $0x10] sm:$0xff] %vm43, %v815
  %832 = vst.msk [vmem:[%s7 + $0x18] sm:$0xff] %vm43, %v816
  %833 = vst.msk [vmem:[%s7 + $0x20] sm:$0xff] %vm43, %v817
  %834 = vst.msk [vmem:[%s7 + $0x28] sm:$0xff] %vm43, %v818
  %835 = vst.msk [vmem:[%s7 + $0x30] sm:$0xff] %vm43, %v819
  %836 = vst.msk [vmem:[%s7 + $0x38] sm:$0xff] %vm43, %v820
  %837 = vst.msk [vmem:[%s7 + $0x40] sm:$0xff] %vm43, %v821
  %838 = vst.msk [vmem:[%s7 + $0x48] sm:$0xff] %vm43, %v822
  %839 = vst.msk [vmem:[%s7 + $0x50] sm:$0xff] %vm43, %v823
  %840 = vst.msk [vmem:[%s7 + $0x58] sm:$0xff] %vm43, %v824
  %841 = vst.msk [vmem:[%s7 + $0x60] sm:$0xff] %vm43, %v825
  %842 = vst.msk [vmem:[%s7 + $0x68] sm:$0xff] %vm43, %v826
  %843 = vst.msk [vmem:[%s7 + $0x70] sm:$0xff] %vm43, %v827
  %844 = vst.msk [vmem:[%s7 + $0x78] sm:$0xff] %vm43, %v828
  // Predicated region
  $region30: #{swin_transformer_forward.5} parent=0 // pred_check
    _
  $region31: #{swin_transformer_forward.5} parent=0 // pred_check_branch
    %846 = sbr.rel (0) target = $region33
  $region32: #{swin_transformer_forward.5} parent=0 // pred_region
    _
  $region33: #{swin_transformer_forward.5} parent=0 // pred_fallthru
    _
  // Predicated region
  $region34: #{swin_transformer_forward.5} parent=0 // pred_check
    _
  $region35: #{swin_transformer_forward.5} parent=0 // pred_check_branch
    %848 = sbr.rel (0) target = $region37
  $region36: #{swin_transformer_forward.5} parent=0 // pred_region
    _
  $region37: #{swin_transformer_forward.5} parent=0 // pred_fallthru
    _

// kernel: swin_transformer_forward.7
$region0: #{swin_transformer_forward.7}
  #allocation0 [shape = 'u32[]', space=smem, size = 0x4, offset = 0x4, fixed_abs, tag = 'smem constant byte address 0x4 - core index']
  #allocation1 [shape = 'u32[72,128]{1,0:T(1,128)}', space=vmem, size = 0x9000, scoped, tag = 'internal scratch']
  %s0 = inlined_call_operand.vmem [shape: f32[128,32], index: 0, kind: input, shape index: {}]
  %s1 = inlined_call_operand.vmem [shape: f32[1,32], index: 1, kind: input, shape index: {}]
  %s2 = inlined_call_operand.vmem [shape: f32[1,32], index: 2, kind: input, shape index: {}]
  %s3 = inlined_call_operand.vmem [shape: bf16[32,128], index: 3, kind: input, shape index: {}]
  %s4 = inlined_call_operand.vmem [shape: f32[1,128], index: 4, kind: input, shape index: {}]
  %s5 = inlined_call_operand.vmem [shape: bf16[128,32], index: 5, kind: input, shape index: {}]
  %s6 = inlined_call_operand.vmem [shape: f32[1,32], index: 6, kind: input, shape index: {}]
  %s7 = inlined_call_operand.hbm [shape: f32[128,32], index: 7, kind: output, shape index: {}]
  %s8 = sld [smem:[#allocation0]]
  $region38: #{swin_transformer_forward.7} parent=0
    _
  %s10 = ssub.s32 1, %s8
  %s11 = scalar_select 0, %s10, %s8
  $region1: #{swin_transformer_forward.7} parent=0
    #allocation2 [shape = 'u8[65536]{0}', space=vmem, size = 0x10000, scoped, tag = 'output window, operand 0, single buffered']
    #allocation3 [shape = 's32[1]{0}', space=sflag, size = 0x4, scoped, tag = 'scoped memory for swin_transformer_forward.7']
    %12 = vsyncpa [#allocation3], 0
    // Predicated region
    $region2: #{swin_transformer_forward.7} parent=1 // pred_check
      _
    $region3: #{swin_transformer_forward.7} parent=1 // pred_check_branch
      %14 = sbr.rel (0) target = $region5
    $region4: #{swin_transformer_forward.7} parent=1 // pred_region
      _
    $region5: #{swin_transformer_forward.7} parent=1 // pred_fallthru
      _
    // Predicated region
    $region6: #{swin_transformer_forward.7} parent=1 // pred_check
      _
    $region7: #{swin_transformer_forward.7} parent=1 // pred_check_branch
      %16 = sbr.rel (0) target = $region9
    $region8: #{swin_transformer_forward.7} parent=1 // pred_region
      _
    $region9: #{swin_transformer_forward.7} parent=1 // pred_fallthru
      _
    // Predicated region
    $region10: #{swin_transformer_forward.7} parent=1 // pred_check
      _
    $region11: #{swin_transformer_forward.7} parent=1 // pred_check_branch
      %18 = sbr.rel (0) target = $region13
    $region12: #{swin_transformer_forward.7} parent=1 // pred_region
      _
    $region13: #{swin_transformer_forward.7} parent=1 // pred_fallthru
      _
    // Predicated region
    $region14: #{swin_transformer_forward.7} parent=1 // pred_check
      _
    $region15: #{swin_transformer_forward.7} parent=1 // pred_check_branch
      %20 = sbr.rel (0) target = $region17
    $region16: #{swin_transformer_forward.7} parent=1 // pred_region
      _
    $region17: #{swin_transformer_forward.7} parent=1 // pred_fallthru
      _
    // Predicated region
    $region18: #{swin_transformer_forward.7} parent=1 // pred_check
      _
    $region19: #{swin_transformer_forward.7} parent=1 // pred_check_branch
      %22 = sbr.rel (0) target = $region21
    $region20: #{swin_transformer_forward.7} parent=1 // pred_region
      _
    $region21: #{swin_transformer_forward.7} parent=1 // pred_fallthru
      _
    // Predicated region
    $region22: #{swin_transformer_forward.7} parent=1 // pred_check
      _
    $region23: #{swin_transformer_forward.7} parent=1 // pred_check_branch
      %24 = sbr.rel (0) target = $region25
    $region24: #{swin_transformer_forward.7} parent=1 // pred_region
      _
    $region25: #{swin_transformer_forward.7} parent=1 // pred_fallthru
      _
    // Predicated region
    $region26: #{swin_transformer_forward.7} parent=1 // pred_check
      _
    $region27: #{swin_transformer_forward.7} parent=1 // pred_check_branch
      %26 = sbr.rel (0) target = $region29
    $region28: #{swin_transformer_forward.7} parent=1 // pred_region
      _
    $region29: #{swin_transformer_forward.7} parent=1 // pred_fallthru
      _
    %v28 = vld [vmem:[%s0] sm:$0xff]
    %v29 = vld [vmem:[%s0 + $0x8] sm:$0xff]
    %v30 = vld [vmem:[%s0 + $0x10] sm:$0xff]
    %v31 = vld [vmem:[%s0 + $0x18] sm:$0xff]
    %v32 = vld [vmem:[%s0 + $0x20] sm:$0xff]
    %v33 = vld [vmem:[%s0 + $0x28] sm:$0xff]
    %v34 = vld [vmem:[%s0 + $0x30] sm:$0xff]
    %v35 = vld [vmem:[%s0 + $0x38] sm:$0xff]
    %v36 = vld [vmem:[%s0 + $0x40] sm:$0xff]
    %v37 = vld [vmem:[%s0 + $0x48] sm:$0xff]
    %v38 = vld [vmem:[%s0 + $0x50] sm:$0xff]
    %v39 = vld [vmem:[%s0 + $0x58] sm:$0xff]
    %v40 = vld [vmem:[%s0 + $0x60] sm:$0xff]
    %v41 = vld [vmem:[%s0 + $0x68] sm:$0xff]
    %v42 = vld [vmem:[%s0 + $0x70] sm:$0xff]
    %v43 = vld [vmem:[%s0 + $0x78] sm:$0xff]
    %vm44 = vcmask 261120
    %v45 = vsel %vm44, %v28, 0.0
    %46 = vadd.xlane.f32.xlu0 %v45
    %v47 = vpop.xlane.xlu0 %46
    %v48 = vsel %vm44, %v29, 0.0
    %49 = vadd.xlane.f32.xlu0 %v48
    %v50 = vpop.xlane.xlu0 %49
    %v51 = vsel %vm44, %v30, 0.0
    %52 = vadd.xlane.f32.xlu0 %v51
    %v53 = vpop.xlane.xlu0 %52
    %v54 = vsel %vm44, %v31, 0.0
    %55 = vadd.xlane.f32.xlu0 %v54
    %v56 = vpop.xlane.xlu0 %55
    %v57 = vsel %vm44, %v32, 0.0
    %58 = vadd.xlane.f32.xlu0 %v57
    %v59 = vpop.xlane.xlu0 %58
    %v60 = vsel %vm44, %v33, 0.0
    %61 = vadd.xlane.f32.xlu0 %v60
    %v62 = vpop.xlane.xlu0 %61
    %v63 = vsel %vm44, %v34, 0.0
    %64 = vadd.xlane.f32.xlu0 %v63
    %v65 = vpop.xlane.xlu0 %64
    %v66 = vsel %vm44, %v35, 0.0
    %67 = vadd.xlane.f32.xlu0 %v66
    %v68 = vpop.xlane.xlu0 %67
    %v69 = vsel %vm44, %v36, 0.0
    %70 = vadd.xlane.f32.xlu0 %v69
    %v71 = vpop.xlane.xlu0 %70
    %v72 = vsel %vm44, %v37, 0.0
    %73 = vadd.xlane.f32.xlu0 %v72
    %v74 = vpop.xlane.xlu0 %73
    %v75 = vsel %vm44, %v38, 0.0
    %76 = vadd.xlane.f32.xlu0 %v75
    %v77 = vpop.xlane.xlu0 %76
    %v78 = vsel %vm44, %v39, 0.0
    %79 = vadd.xlane.f32.xlu0 %v78
    %v80 = vpop.xlane.xlu0 %79
    %v81 = vsel %vm44, %v40, 0.0
    %82 = vadd.xlane.f32.xlu0 %v81
    %v83 = vpop.xlane.xlu0 %82
    %v84 = vsel %vm44, %v41, 0.0
    %85 = vadd.xlane.f32.xlu0 %v84
    %v86 = vpop.xlane.xlu0 %85
    %v87 = vsel %vm44, %v42, 0.0
    %88 = vadd.xlane.f32.xlu0 %v87
    %v89 = vpop.xlane.xlu0 %88
    %v90 = vsel %vm44, %v43, 0.0
    %91 = vadd.xlane.f32.xlu0 %v90
    %v92 = vpop.xlane.xlu0 %91
    %v93 = vrcp.pop 32.0
    %v94 = vmul.f32 32.0, %v93
    %v95 = vsub.f32 1.0, %v94
    %v96 = vmul.f32 %v93, %v95
    %v97 = vadd.f32 %v93, %v96
    %vm98 = vweird.f32 %v93
    %v99 = vsel %vm98, %v93, %v97
    %v100 = vmul.f32 %v47, %v99
    %v101 = vmul.f32 %v50, %v99
    %v102 = vmul.f32 %v53, %v99
    %v103 = vmul.f32 %v56, %v99
    %v104 = vmul.f32 %v59, %v99
    %v105 = vmul.f32 %v62, %v99
    %v106 = vmul.f32 %v65, %v99
    %v107 = vmul.f32 %v68, %v99
    %v108 = vmul.f32 %v71, %v99
    %v109 = vmul.f32 %v74, %v99
    %v110 = vmul.f32 %v77, %v99
    %v111 = vmul.f32 %v80, %v99
    %v112 = vmul.f32 %v83, %v99
    %v113 = vmul.f32 %v86, %v99
    %v114 = vmul.f32 %v89, %v99
    %v115 = vmul.f32 %v92, %v99
    %v116 = vsub.f32 %v28, %v100
    %v117 = vsub.f32 %v29, %v101
    %v118 = vsub.f32 %v30, %v102
    %v119 = vsub.f32 %v31, %v103
    %v120 = vsub.f32 %v32, %v104
    %v121 = vsub.f32 %v33, %v105
    %v122 = vsub.f32 %v34, %v106
    %v123 = vsub.f32 %v35, %v107
    %v124 = vsub.f32 %v36, %v108
    %v125 = vsub.f32 %v37, %v109
    %v126 = vsub.f32 %v38, %v110
    %v127 = vsub.f32 %v39, %v111
    %v128 = vsub.f32 %v40, %v112
    %v129 = vsub.f32 %v41, %v113
    %v130 = vsub.f32 %v42, %v114
    %v131 = vsub.f32 %v43, %v115
    %v132 = vmul.f32 %v116, %v116
    %v133 = vmul.f32 %v117, %v117
    %v134 = vmul.f32 %v118, %v118
    %v135 = vmul.f32 %v119, %v119
    %v136 = vmul.f32 %v120, %v120
    %v137 = vmul.f32 %v121, %v121
    %v138 = vmul.f32 %v122, %v122
    %v139 = vmul.f32 %v123, %v123
    %v140 = vmul.f32 %v124, %v124
    %v141 = vmul.f32 %v125, %v125
    %v142 = vmul.f32 %v126, %v126
    %v143 = vmul.f32 %v127, %v127
    %v144 = vmul.f32 %v128, %v128
    %v145 = vmul.f32 %v129, %v129
    %v146 = vmul.f32 %v130, %v130
    %v147 = vmul.f32 %v131, %v131
    %v148 = vsel %vm44, %v132, 0.0
    %149 = vadd.xlane.f32.xlu0 %v148
    %v150 = vpop.xlane.xlu0 %149
    %v151 = vsel %vm44, %v133, 0.0
    %152 = vadd.xlane.f32.xlu0 %v151
    %v153 = vpop.xlane.xlu0 %152
    %v154 = vsel %vm44, %v134, 0.0
    %155 = vadd.xlane.f32.xlu0 %v154
    %v156 = vpop.xlane.xlu0 %155
    %v157 = vsel %vm44, %v135, 0.0
    %158 = vadd.xlane.f32.xlu0 %v157
    %v159 = vpop.xlane.xlu0 %158
    %v160 = vsel %vm44, %v136, 0.0
    %161 = vadd.xlane.f32.xlu0 %v160
    %v162 = vpop.xlane.xlu0 %161
    %v163 = vsel %vm44, %v137, 0.0
    %164 = vadd.xlane.f32.xlu0 %v163
    %v165 = vpop.xlane.xlu0 %164
    %v166 = vsel %vm44, %v138, 0.0
    %167 = vadd.xlane.f32.xlu0 %v166
    %v168 = vpop.xlane.xlu0 %167
    %v169 = vsel %vm44, %v139, 0.0
    %170 = vadd.xlane.f32.xlu0 %v169
    %v171 = vpop.xlane.xlu0 %170
    %v172 = vsel %vm44, %v140, 0.0
    %173 = vadd.xlane.f32.xlu0 %v172
    %v174 = vpop.xlane.xlu0 %173
    %v175 = vsel %vm44, %v141, 0.0
    %176 = vadd.xlane.f32.xlu0 %v175
    %v177 = vpop.xlane.xlu0 %176
    %v178 = vsel %vm44, %v142, 0.0
    %179 = vadd.xlane.f32.xlu0 %v178
    %v180 = vpop.xlane.xlu0 %179
    %v181 = vsel %vm44, %v143, 0.0
    %182 = vadd.xlane.f32.xlu0 %v181
    %v183 = vpop.xlane.xlu0 %182
    %v184 = vsel %vm44, %v144, 0.0
    %185 = vadd.xlane.f32.xlu0 %v184
    %v186 = vpop.xlane.xlu0 %185
    %v187 = vsel %vm44, %v145, 0.0
    %188 = vadd.xlane.f32.xlu0 %v187
    %v189 = vpop.xlane.xlu0 %188
    %v190 = vsel %vm44, %v146, 0.0
    %191 = vadd.xlane.f32.xlu0 %v190
    %v192 = vpop.xlane.xlu0 %191
    %v193 = vsel %vm44, %v147, 0.0
    %194 = vadd.xlane.f32.xlu0 %v193
    %v195 = vpop.xlane.xlu0 %194
    %v196 = vmul.f32 %v150, %v99
    %v197 = vmul.f32 %v153, %v99
    %v198 = vmul.f32 %v156, %v99
    %v199 = vmul.f32 %v159, %v99
    %v200 = vmul.f32 %v162, %v99
    %v201 = vmul.f32 %v165, %v99
    %v202 = vmul.f32 %v168, %v99
    %v203 = vmul.f32 %v171, %v99
    %v204 = vmul.f32 %v174, %v99
    %v205 = vmul.f32 %v177, %v99
    %v206 = vmul.f32 %v180, %v99
    %v207 = vmul.f32 %v183, %v99
    %v208 = vmul.f32 %v186, %v99
    %v209 = vmul.f32 %v189, %v99
    %v210 = vmul.f32 %v192, %v99
    %v211 = vmul.f32 %v195, %v99
    %v212 = vadd.f32 %v196, 1e-05
    %v213 = vadd.f32 %v197, 1e-05
    %v214 = vadd.f32 %v198, 1e-05
    %v215 = vadd.f32 %v199, 1e-05
    %v216 = vadd.f32 %v200, 1e-05
    %v217 = vadd.f32 %v201, 1e-05
    %v218 = vadd.f32 %v202, 1e-05
    %v219 = vadd.f32 %v203, 1e-05
    %v220 = vadd.f32 %v204, 1e-05
    %v221 = vadd.f32 %v205, 1e-05
    %v222 = vadd.f32 %v206, 1e-05
    %v223 = vadd.f32 %v207, 1e-05
    %v224 = vadd.f32 %v208, 1e-05
    %v225 = vadd.f32 %v209, 1e-05
    %v226 = vadd.f32 %v210, 1e-05
    %v227 = vadd.f32 %v211, 1e-05
    %v228 = vrsqrt.pop %v212
    %v229 = vmul.f32 %v228, %v212
    %v230 = vmul.f32 %v229, %v228
    %v231 = vmul.f32 0.5, %v230
    %v232 = vsub.f32 1.5, %v231
    %v233 = vmul.f32 %v228, %v232
    %vm234 = vweird.f32 %v212
    %vm235 = vweird.f32 %v228
    %vm236 = vmor %vm234, %vm235
    %v237 = vsel %vm236, %v228, %v233
    %v238 = vrsqrt.pop %v213
    %v239 = vmul.f32 %v238, %v213
    %v240 = vmul.f32 %v239, %v238
    %v241 = vmul.f32 0.5, %v240
    %v242 = vsub.f32 1.5, %v241
    %v243 = vmul.f32 %v238, %v242
    %vm244 = vweird.f32 %v213
    %vm245 = vweird.f32 %v238
    %vm246 = vmor %vm244, %vm245
    %v247 = vsel %vm246, %v238, %v243
    %v248 = vrsqrt.pop %v214
    %v249 = vmul.f32 %v248, %v214
    %v250 = vmul.f32 %v249, %v248
    %v251 = vmul.f32 0.5, %v250
    %v252 = vsub.f32 1.5, %v251
    %v253 = vmul.f32 %v248, %v252
    %vm254 = vweird.f32 %v214
    %vm255 = vweird.f32 %v248
    %vm256 = vmor %vm254, %vm255
    %v257 = vsel %vm256, %v248, %v253
    %v258 = vrsqrt.pop %v215
    %v259 = vmul.f32 %v258, %v215
    %v260 = vmul.f32 %v259, %v258
    %v261 = vmul.f32 0.5, %v260
    %v262 = vsub.f32 1.5, %v261
    %v263 = vmul.f32 %v258, %v262
    %vm264 = vweird.f32 %v215
    %vm265 = vweird.f32 %v258
    %vm266 = vmor %vm264, %vm265
    %v267 = vsel %vm266, %v258, %v263
    %v268 = vrsqrt.pop %v216
    %v269 = vmul.f32 %v268, %v216
    %v270 = vmul.f32 %v269, %v268
    %v271 = vmul.f32 0.5, %v270
    %v272 = vsub.f32 1.5, %v271
    %v273 = vmul.f32 %v268, %v272
    %vm274 = vweird.f32 %v216
    %vm275 = vweird.f32 %v268
    %vm276 = vmor %vm274, %vm275
    %v277 = vsel %vm276, %v268, %v273
    %v278 = vrsqrt.pop %v217
    %v279 = vmul.f32 %v278, %v217
    %v280 = vmul.f32 %v279, %v278
    %v281 = vmul.f32 0.5, %v280
    %v282 = vsub.f32 1.5, %v281
    %v283 = vmul.f32 %v278, %v282
    %vm284 = vweird.f32 %v217
    %vm285 = vweird.f32 %v278
    %vm286 = vmor %vm284, %vm285
    %v287 = vsel %vm286, %v278, %v283
    %v288 = vrsqrt.pop %v218
    %v289 = vmul.f32 %v288, %v218
    %v290 = vmul.f32 %v289, %v288
    %v291 = vmul.f32 0.5, %v290
    %v292 = vsub.f32 1.5, %v291
    %v293 = vmul.f32 %v288, %v292
    %vm294 = vweird.f32 %v218
    %vm295 = vweird.f32 %v288
    %vm296 = vmor %vm294, %vm295
    %v297 = vsel %vm296, %v288, %v293
    %v298 = vrsqrt.pop %v219
    %v299 = vmul.f32 %v298, %v219
    %v300 = vmul.f32 %v299, %v298
    %v301 = vmul.f32 0.5, %v300
    %v302 = vsub.f32 1.5, %v301
    %v303 = vmul.f32 %v298, %v302
    %vm304 = vweird.f32 %v219
    %vm305 = vweird.f32 %v298
    %vm306 = vmor %vm304, %vm305
    %v307 = vsel %vm306, %v298, %v303
    %v308 = vrsqrt.pop %v220
    %v309 = vmul.f32 %v308, %v220
    %v310 = vmul.f32 %v309, %v308
    %v311 = vmul.f32 0.5, %v310
    %v312 = vsub.f32 1.5, %v311
    %v313 = vmul.f32 %v308, %v312
    %vm314 = vweird.f32 %v220
    %vm315 = vweird.f32 %v308
    %vm316 = vmor %vm314, %vm315
    %v317 = vsel %vm316, %v308, %v313
    %v318 = vrsqrt.pop %v221
    %v319 = vmul.f32 %v318, %v221
    %v320 = vmul.f32 %v319, %v318
    %v321 = vmul.f32 0.5, %v320
    %v322 = vsub.f32 1.5, %v321
    %v323 = vmul.f32 %v318, %v322
    %vm324 = vweird.f32 %v221
    %vm325 = vweird.f32 %v318
    %vm326 = vmor %vm324, %vm325
    %v327 = vsel %vm326, %v318, %v323
    %v328 = vrsqrt.pop %v222
    %v329 = vmul.f32 %v328, %v222
    %v330 = vmul.f32 %v329, %v328
    %v331 = vmul.f32 0.5, %v330
    %v332 = vsub.f32 1.5, %v331
    %v333 = vmul.f32 %v328, %v332
    %vm334 = vweird.f32 %v222
    %vm335 = vweird.f32 %v328
    %vm336 = vmor %vm334, %vm335
    %v337 = vsel %vm336, %v328, %v333
    %v338 = vrsqrt.pop %v223
    %v339 = vmul.f32 %v338, %v223
    %v340 = vmul.f32 %v339, %v338
    %v341 = vmul.f32 0.5, %v340
    %v342 = vsub.f32 1.5, %v341
    %v343 = vmul.f32 %v338, %v342
    %vm344 = vweird.f32 %v223
    %vm345 = vweird.f32 %v338
    %vm346 = vmor %vm344, %vm345
    %v347 = vsel %vm346, %v338, %v343
    %v348 = vrsqrt.pop %v224
    %v349 = vmul.f32 %v348, %v224
    %v350 = vmul.f32 %v349, %v348
    %v351 = vmul.f32 0.5, %v350
    %v352 = vsub.f32 1.5, %v351
    %v353 = vmul.f32 %v348, %v352
    %vm354 = vweird.f32 %v224
    %vm355 = vweird.f32 %v348
    %vm356 = vmor %vm354, %vm355
    %v357 = vsel %vm356, %v348, %v353
    %v358 = vrsqrt.pop %v225
    %v359 = vmul.f32 %v358, %v225
    %v360 = vmul.f32 %v359, %v358
    %v361 = vmul.f32 0.5, %v360
    %v362 = vsub.f32 1.5, %v361
    %v363 = vmul.f32 %v358, %v362
    %vm364 = vweird.f32 %v225
    %vm365 = vweird.f32 %v358
    %vm366 = vmor %vm364, %vm365
    %v367 = vsel %vm366, %v358, %v363
    %v368 = vrsqrt.pop %v226
    %v369 = vmul.f32 %v368, %v226
    %v370 = vmul.f32 %v369, %v368
    %v371 = vmul.f32 0.5, %v370
    %v372 = vsub.f32 1.5, %v371
    %v373 = vmul.f32 %v368, %v372
    %vm374 = vweird.f32 %v226
    %vm375 = vweird.f32 %v368
    %vm376 = vmor %vm374, %vm375
    %v377 = vsel %vm376, %v368, %v373
    %v378 = vrsqrt.pop %v227
    %v379 = vmul.f32 %v378, %v227
    %v380 = vmul.f32 %v379, %v378
    %v381 = vmul.f32 0.5, %v380
    %v382 = vsub.f32 1.5, %v381
    %v383 = vmul.f32 %v378, %v382
    %vm384 = vweird.f32 %v227
    %vm385 = vweird.f32 %v378
    %vm386 = vmor %vm384, %vm385
    %v387 = vsel %vm386, %v378, %v383
    %v388 = vmul.f32 %v116, %v237
    %v389 = vmul.f32 %v117, %v247
    %v390 = vmul.f32 %v118, %v257
    %v391 = vmul.f32 %v119, %v267
    %v392 = vmul.f32 %v120, %v277
    %v393 = vmul.f32 %v121, %v287
    %v394 = vmul.f32 %v122, %v297
    %v395 = vmul.f32 %v123, %v307
    %v396 = vmul.f32 %v124, %v317
    %v397 = vmul.f32 %v125, %v327
    %v398 = vmul.f32 %v126, %v337
    %v399 = vmul.f32 %v127, %v347
    %v400 = vmul.f32 %v128, %v357
    %v401 = vmul.f32 %v129, %v367
    %v402 = vmul.f32 %v130, %v377
    %v403 = vmul.f32 %v131, %v387
    %v404 = vld [vmem:[%s1] sm:$0x1]
    %v406 = vperm.slane %v404, 0
    %v408 = vmul.f32 %v388, %v406
    %v409 = vmul.f32 %v389, %v406
    %v410 = vmul.f32 %v390, %v406
    %v411 = vmul.f32 %v391, %v406
    %v412 = vmul.f32 %v392, %v406
    %v413 = vmul.f32 %v393, %v406
    %v414 = vmul.f32 %v394, %v406
    %v415 = vmul.f32 %v395, %v406
    %v416 = vmul.f32 %v396, %v406
    %v417 = vmul.f32 %v397, %v406
    %v418 = vmul.f32 %v398, %v406
    %v419 = vmul.f32 %v399, %v406
    %v420 = vmul.f32 %v400, %v406
    %v421 = vmul.f32 %v401, %v406
    %v422 = vmul.f32 %v402, %v406
    %v423 = vmul.f32 %v403, %v406
    %v424 = vld [vmem:[%s2] sm:$0x1]
    %v426 = vperm.slane %v424, 0
    %v428 = vadd.f32 %v408, %v426
    %v429 = vadd.f32 %v409, %v426
    %v430 = vadd.f32 %v410, %v426
    %v431 = vadd.f32 %v411, %v426
    %v432 = vadd.f32 %v412, %v426
    %v433 = vadd.f32 %v413, %v426
    %v434 = vadd.f32 %v414, %v426
    %v435 = vadd.f32 %v415, %v426
    %v436 = vadd.f32 %v416, %v426
    %v437 = vadd.f32 %v417, %v426
    %v438 = vadd.f32 %v418, %v426
    %v439 = vadd.f32 %v419, %v426
    %v440 = vadd.f32 %v420, %v426
    %v441 = vadd.f32 %v421, %v426
    %v442 = vadd.f32 %v422, %v426
    %v443 = vadd.f32 %v423, %v426
    %v444 = vpack.c.bf16 %v429, %v428
    %v445 = vpack.c.bf16 %v431, %v430
    %v446 = vpack.c.bf16 %v433, %v432
    %v447 = vpack.c.bf16 %v435, %v434
    %v448 = vpack.c.bf16 %v437, %v436
    %v449 = vpack.c.bf16 %v439, %v438
    %v450 = vpack.c.bf16 %v441, %v440
    %v451 = vpack.c.bf16 %v443, %v442
    %v452 = vld [vmem:[%s3] sm:$0xf]
    %v453 = vld [vmem:[%s3 + $0x4] sm:$0xf]
    %v454 = vld [vmem:[%s3 + $0x8] sm:$0xf]
    %v455 = vld [vmem:[%s3 + $0xc] sm:$0xf]
    %v456 = vld [vmem:[%s4] sm:$0x1]
    %v458 = vperm.slane %v456, 0
    %v464 = vunpack.c.l.b16 %v452
    %v465 = vunpack.c.l.b16 %v453
    %v466 = vunpack.c.l.b16 %v454
    %v467 = vunpack.c.l.b16 %v455
    %v468 = vpack.c.b16 %v465, %v464
    %v469 = vpack.c.b16 %v467, %v466
    %v473 = vsel %vm44, %v444, 0
    %v476 = vsel %vm44, %v445, 0
    %v479 = vsel %vm44, %v446, 0
    %v482 = vsel %vm44, %v447, 0
    %v485 = vsel %vm44, %v448, 0
    %v488 = vsel %vm44, %v449, 0
    %v491 = vsel %vm44, %v450, 0
    %v494 = vsel %vm44, %v451, 0
    %496 = vmatpush.bf16.msra.mxu0 0
    %497 = vmatpush.bf16.msra.mxu0 0
    %498 = vmatpush.bf16.msra.mxu0 0
    %499 = vmatpush.bf16.msra.mxu0 0
    %500 = vmatpush.bf16.msra.mxu0 0
    %501 = vmatpush.bf16.msra.mxu0 0
    %502 = vmatpush.bf16.msra.mxu0 %v469
    %503 = vmatpush.bf16.msra.mxu0 %v468
    %504 = vmatmul.bf16.gmra.mxu0 %v473
    %v505 = vpop.f32.mrf.mxu0
    %v506 = vadd.f32 %v458, %v505
    %v507 = vpop.f32.mrf.mxu0
    %v508 = vadd.f32 %v458, %v507
    %509 = vmatmul.bf16.gmra.mxu0 %v476
    %v510 = vpop.f32.mrf.mxu0
    %v511 = vadd.f32 %v458, %v510
    %v512 = vpop.f32.mrf.mxu0
    %v513 = vadd.f32 %v458, %v512
    %514 = vmatmul.bf16.gmra.mxu0 %v479
    %v515 = vpop.f32.mrf.mxu0
    %v516 = vadd.f32 %v458, %v515
    %v517 = vpop.f32.mrf.mxu0
    %v518 = vadd.f32 %v458, %v517
    %519 = vmatmul.bf16.gmra.mxu0 %v482
    %v520 = vpop.f32.mrf.mxu0
    %v521 = vadd.f32 %v458, %v520
    %v522 = vpop.f32.mrf.mxu0
    %v523 = vadd.f32 %v458, %v522
    %524 = vmatmul.bf16.gmra.mxu0 %v485
    %v525 = vpop.f32.mrf.mxu0
    %v526 = vadd.f32 %v458, %v525
    %v527 = vpop.f32.mrf.mxu0
    %v528 = vadd.f32 %v458, %v527
    %529 = vmatmul.bf16.gmra.mxu0 %v488
    %v530 = vpop.f32.mrf.mxu0
    %v531 = vadd.f32 %v458, %v530
    %v532 = vpop.f32.mrf.mxu0
    %v533 = vadd.f32 %v458, %v532
    %534 = vmatmul.bf16.gmra.mxu0 %v491
    %v535 = vpop.f32.mrf.mxu0
    %v536 = vadd.f32 %v458, %v535
    %v537 = vpop.f32.mrf.mxu0
    %v538 = vadd.f32 %v458, %v537
    %539 = vmatmul.bf16.gmra.mxu0 %v494
    %v540 = vpop.f32.mrf.mxu0
    %v541 = vadd.f32 %v458, %v540
    %v542 = vpop.f32.mrf.mxu0
    %v543 = vadd.f32 %v458, %v542
    %544 = vdwg.mxu0
    %v545 = vmul.f32 %v506, %v506
    %v546 = vmul.f32 %v508, %v508
    %v547 = vmul.f32 %v511, %v511
    %v548 = vmul.f32 %v513, %v513
    %v549 = vmul.f32 %v516, %v516
    %v550 = vmul.f32 %v518, %v518
    %v551 = vmul.f32 %v521, %v521
    %v552 = vmul.f32 %v523, %v523
    %v553 = vmul.f32 %v526, %v526
    %v554 = vmul.f32 %v528, %v528
    %v555 = vmul.f32 %v531, %v531
    %v556 = vmul.f32 %v533, %v533
    %v557 = vmul.f32 %v536, %v536
    %v558 = vmul.f32 %v538, %v538
    %v559 = vmul.f32 %v541, %v541
    %v560 = vmul.f32 %v543, %v543
    %v561 = vmul.f32 %v506, %v545
    %v562 = vmul.f32 %v508, %v546
    %v563 = vmul.f32 %v511, %v547
    %v564 = vmul.f32 %v513, %v548
    %v565 = vmul.f32 %v516, %v549
    %v566 = vmul.f32 %v518, %v550
    %v567 = vmul.f32 %v521, %v551
    %v568 = vmul.f32 %v523, %v552
    %v569 = vmul.f32 %v526, %v553
    %v570 = vmul.f32 %v528, %v554
    %v571 = vmul.f32 %v531, %v555
    %v572 = vmul.f32 %v533, %v556
    %v573 = vmul.f32 %v536, %v557
    %v574 = vmul.f32 %v538, %v558
    %v575 = vmul.f32 %v541, %v559
    %v576 = vmul.f32 %v543, %v560
    %v577 = vmul.f32 %v561, 0.044715
    %v578 = vmul.f32 %v562, 0.044715
    %v579 = vmul.f32 %v563, 0.044715
    %v580 = vmul.f32 %v564, 0.044715
    %v581 = vmul.f32 %v565, 0.044715
    %v582 = vmul.f32 %v566, 0.044715
    %v583 = vmul.f32 %v567, 0.044715
    %v584 = vmul.f32 %v568, 0.044715
    %v585 = vmul.f32 %v569, 0.044715
    %v586 = vmul.f32 %v570, 0.044715
    %v587 = vmul.f32 %v571, 0.044715
    %v588 = vmul.f32 %v572, 0.044715
    %v589 = vmul.f32 %v573, 0.044715
    %v590 = vmul.f32 %v574, 0.044715
    %v591 = vmul.f32 %v575, 0.044715
    %v592 = vmul.f32 %v576, 0.044715
    %v593 = vadd.f32 %v506, %v577
    %v594 = vadd.f32 %v508, %v578
    %v595 = vadd.f32 %v511, %v579
    %v596 = vadd.f32 %v513, %v580
    %v597 = vadd.f32 %v516, %v581
    %v598 = vadd.f32 %v518, %v582
    %v599 = vadd.f32 %v521, %v583
    %v600 = vadd.f32 %v523, %v584
    %v601 = vadd.f32 %v526, %v585
    %v602 = vadd.f32 %v528, %v586
    %v603 = vadd.f32 %v531, %v587
    %v604 = vadd.f32 %v533, %v588
    %v605 = vadd.f32 %v536, %v589
    %v606 = vadd.f32 %v538, %v590
    %v607 = vadd.f32 %v541, %v591
    %v608 = vadd.f32 %v543, %v592
    %v609 = vmul.f32 %v593, 0.7978846
    %v610 = vmul.f32 %v594, 0.7978846
    %v611 = vmul.f32 %v595, 0.7978846
    %v612 = vmul.f32 %v596, 0.7978846
    %v613 = vmul.f32 %v597, 0.7978846
    %v614 = vmul.f32 %v598, 0.7978846
    %v615 = vmul.f32 %v599, 0.7978846
    %v616 = vmul.f32 %v600, 0.7978846
    %v617 = vmul.f32 %v601, 0.7978846
    %v618 = vmul.f32 %v602, 0.7978846
    %v619 = vmul.f32 %v603, 0.7978846
    %v620 = vmul.f32 %v604, 0.7978846
    %v621 = vmul.f32 %v605, 0.7978846
    %v622 = vmul.f32 %v606, 0.7978846
    %v623 = vmul.f32 %v607, 0.7978846
    %v624 = vmul.f32 %v608, 0.7978846
    %v625 = vtanh.pop %v609
    %v626 = vtanh.pop %v610
    %v627 = vtanh.pop %v611
    %v628 = vtanh.pop %v612
    %v629 = vtanh.pop %v613
    %v630 = vtanh.pop %v614
    %v631 = vtanh.pop %v615
    %v632 = vtanh.pop %v616
    %v633 = vtanh.pop %v617
    %v634 = vtanh.pop %v618
    %v635 = vtanh.pop %v619
    %v636 = vtanh.pop %v620
    %v637 = vtanh.pop %v621
    %v638 = vtanh.pop %v622
    %v639 = vtanh.pop %v623
    %v640 = vtanh.pop %v624
    %v641 = vadd.f32 %v625, 1.0
    %v642 = vadd.f32 %v626, 1.0
    %v643 = vadd.f32 %v627, 1.0
    %v644 = vadd.f32 %v628, 1.0
    %v645 = vadd.f32 %v629, 1.0
    %v646 = vadd.f32 %v630, 1.0
    %v647 = vadd.f32 %v631, 1.0
    %v648 = vadd.f32 %v632, 1.0
    %v649 = vadd.f32 %v633, 1.0
    %v650 = vadd.f32 %v634, 1.0
    %v651 = vadd.f32 %v635, 1.0
    %v652 = vadd.f32 %v636, 1.0
    %v653 = vadd.f32 %v637, 1.0
    %v654 = vadd.f32 %v638, 1.0
    %v655 = vadd.f32 %v639, 1.0
    %v656 = vadd.f32 %v640, 1.0
    %v657 = vmul.f32 %v641, 0.5
    %v658 = vmul.f32 %v642, 0.5
    %v659 = vmul.f32 %v643, 0.5
    %v660 = vmul.f32 %v644, 0.5
    %v661 = vmul.f32 %v645, 0.5
    %v662 = vmul.f32 %v646, 0.5
    %v663 = vmul.f32 %v647, 0.5
    %v664 = vmul.f32 %v648, 0.5
    %v665 = vmul.f32 %v649, 0.5
    %v666 = vmul.f32 %v650, 0.5
    %v667 = vmul.f32 %v651, 0.5
    %v668 = vmul.f32 %v652, 0.5
    %v669 = vmul.f32 %v653, 0.5
    %v670 = vmul.f32 %v654, 0.5
    %v671 = vmul.f32 %v655, 0.5
    %v672 = vmul.f32 %v656, 0.5
    %v673 = vmul.f32 %v506, %v657
    %v674 = vmul.f32 %v508, %v658
    %v675 = vmul.f32 %v511, %v659
    %v676 = vmul.f32 %v513, %v660
    %v677 = vmul.f32 %v516, %v661
    %v678 = vmul.f32 %v518, %v662
    %v679 = vmul.f32 %v521, %v663
    %v680 = vmul.f32 %v523, %v664
    %v681 = vmul.f32 %v526, %v665
    %v682 = vmul.f32 %v528, %v666
    %v683 = vmul.f32 %v531, %v667
    %v684 = vmul.f32 %v533, %v668
    %v685 = vmul.f32 %v536, %v669
    %v686 = vmul.f32 %v538, %v670
    %v687 = vmul.f32 %v541, %v671
    %v688 = vmul.f32 %v543, %v672
    %v689 = vpack.c.bf16 %v674, %v673
    %v690 = vpack.c.bf16 %v676, %v675
    %v691 = vpack.c.bf16 %v678, %v677
    %v692 = vpack.c.bf16 %v680, %v679
    %v693 = vpack.c.bf16 %v682, %v681
    %v694 = vpack.c.bf16 %v684, %v683
    %v695 = vpack.c.bf16 %v686, %v685
    %v696 = vpack.c.bf16 %v688, %v687
    %v697 = vld [vmem:[%s5] sm:$0xf]
    %v698 = vld [vmem:[%s5 + $0x4] sm:$0xf]
    %v699 = vld [vmem:[%s5 + $0x8] sm:$0xf]
    %v700 = vld [vmem:[%s5 + $0xc] sm:$0xf]
    %v701 = vld [vmem:[%s5 + $0x10] sm:$0xf]
    %v702 = vld [vmem:[%s5 + $0x14] sm:$0xf]
    %v703 = vld [vmem:[%s5 + $0x18] sm:$0xf]
    %v704 = vld [vmem:[%s5 + $0x1c] sm:$0xf]
    %v705 = vld [vmem:[%s5 + $0x20] sm:$0xf]
    %v706 = vld [vmem:[%s5 + $0x24] sm:$0xf]
    %v707 = vld [vmem:[%s5 + $0x28] sm:$0xf]
    %v708 = vld [vmem:[%s5 + $0x2c] sm:$0xf]
    %v709 = vld [vmem:[%s5 + $0x30] sm:$0xf]
    %v710 = vld [vmem:[%s5 + $0x34] sm:$0xf]
    %v711 = vld [vmem:[%s5 + $0x38] sm:$0xf]
    %v712 = vld [vmem:[%s5 + $0x3c] sm:$0xf]
    %v713 = vld [vmem:[%s6] sm:$0x1]
    %v715 = vperm.slane %v713, 0
    %v733 = vunpack.c.l.b16 %v697
    %v734 = vunpack.c.l.b16 %v698
    %v735 = vunpack.c.l.b16 %v699
    %v736 = vunpack.c.l.b16 %v700
    %v737 = vunpack.c.l.b16 %v701
    %v738 = vunpack.c.l.b16 %v702
    %v739 = vunpack.c.l.b16 %v703
    %v740 = vunpack.c.l.b16 %v704
    %v741 = vunpack.c.l.b16 %v705
    %v742 = vunpack.c.l.b16 %v706
    %v743 = vunpack.c.l.b16 %v707
    %v744 = vunpack.c.l.b16 %v708
    %v745 = vunpack.c.l.b16 %v709
    %v746 = vunpack.c.l.b16 %v710
    %v747 = vunpack.c.l.b16 %v711
    %v748 = vunpack.c.l.b16 %v712
    %v749 = vpack.c.b16 %v734, %v733
    %v750 = vpack.c.b16 %v736, %v735
    %v751 = vpack.c.b16 %v738, %v737
    %v752 = vpack.c.b16 %v740, %v739
    %v753 = vpack.c.b16 %v742, %v741
    %v754 = vpack.c.b16 %v744, %v743
    %v755 = vpack.c.b16 %v746, %v745
    %v756 = vpack.c.b16 %v748, %v747
    %765 = vmatpush.bf16.msra.mxu0 %v756
    %766 = vmatpush.bf16.msra.mxu0 %v755
    %767 = vmatpush.bf16.msra.mxu0 %v754
    %768 = vmatpush.bf16.msra.mxu0 %v753
    %769 = vmatpush.bf16.msra.mxu0 %v752
    %770 = vmatpush.bf16.msra.mxu0 %v751
    %771 = vmatpush.bf16.msra.mxu0 %v750
    %772 = vmatpush.bf16.msra.mxu0 %v749
    %773 = vmatmul.bf16.gmra.mxu0 %v689
    %v774 = vpop.f32.mrf.mxu0
    %v775 = vadd.f32 %v715, %v774
    %v776 = vpop.f32.mrf.mxu0
    %v777 = vadd.f32 %v715, %v776
    %778 = vmatmul.bf16.gmra.mxu0 %v690
    %v779 = vpop.f32.mrf.mxu0
    %v780 = vadd.f32 %v715, %v779
    %v781 = vpop.f32.mrf.mxu0
    %v782 = vadd.f32 %v715, %v781
    %783 = vmatmul.bf16.gmra.mxu0 %v691
    %v784 = vpop.f32.mrf.mxu0
    %v785 = vadd.f32 %v715, %v784
    %v786 = vpop.f32.mrf.mxu0
    %v787 = vadd.f32 %v715, %v786
    %788 = vmatmul.bf16.gmra.mxu0 %v692
    %v789 = vpop.f32.mrf.mxu0
    %v790 = vadd.f32 %v715, %v789
    %v791 = vpop.f32.mrf.mxu0
    %v792 = vadd.f32 %v715, %v791
    %793 = vmatmul.bf16.gmra.mxu0 %v693
    %v794 = vpop.f32.mrf.mxu0
    %v795 = vadd.f32 %v715, %v794
    %v796 = vpop.f32.mrf.mxu0
    %v797 = vadd.f32 %v715, %v796
    %798 = vmatmul.bf16.gmra.mxu0 %v694
    %v799 = vpop.f32.mrf.mxu0
    %v800 = vadd.f32 %v715, %v799
    %v801 = vpop.f32.mrf.mxu0
    %v802 = vadd.f32 %v715, %v801
    %803 = vmatmul.bf16.gmra.mxu0 %v695
    %v804 = vpop.f32.mrf.mxu0
    %v805 = vadd.f32 %v715, %v804
    %v806 = vpop.f32.mrf.mxu0
    %v807 = vadd.f32 %v715, %v806
    %808 = vmatmul.bf16.gmra.mxu0 %v696
    %v809 = vpop.f32.mrf.mxu0
    %v810 = vadd.f32 %v715, %v809
    %v811 = vpop.f32.mrf.mxu0
    %v812 = vadd.f32 %v715, %v811
    %813 = vdwg.mxu0
    %v814 = vadd.f32 %v28, %v775
    %v815 = vadd.f32 %v29, %v777
    %v816 = vadd.f32 %v30, %v780
    %v817 = vadd.f32 %v31, %v782
    %v818 = vadd.f32 %v32, %v785
    %v819 = vadd.f32 %v33, %v787
    %v820 = vadd.f32 %v34, %v790
    %v821 = vadd.f32 %v35, %v792
    %v822 = vadd.f32 %v36, %v795
    %v823 = vadd.f32 %v37, %v797
    %v824 = vadd.f32 %v38, %v800
    %v825 = vadd.f32 %v39, %v802
    %v826 = vadd.f32 %v40, %v805
    %v827 = vadd.f32 %v41, %v807
    %v828 = vadd.f32 %v42, %v810
    %v829 = vadd.f32 %v43, %v812
    %830 = vst.msk [vmem:[#allocation2] sm:$0xff] %vm44, %v814
    %831 = vst.msk [vmem:[#allocation2 + $0x8] sm:$0xff] %vm44, %v815
    %832 = vst.msk [vmem:[#allocation2 + $0x10] sm:$0xff] %vm44, %v816
    %833 = vst.msk [vmem:[#allocation2 + $0x18] sm:$0xff] %vm44, %v817
    %834 = vst.msk [vmem:[#allocation2 + $0x20] sm:$0xff] %vm44, %v818
    %835 = vst.msk [vmem:[#allocation2 + $0x28] sm:$0xff] %vm44, %v819
    %836 = vst.msk [vmem:[#allocation2 + $0x30] sm:$0xff] %vm44, %v820
    %837 = vst.msk [vmem:[#allocation2 + $0x38] sm:$0xff] %vm44, %v821
    %838 = vst.msk [vmem:[#allocation2 + $0x40] sm:$0xff] %vm44, %v822
    %839 = vst.msk [vmem:[#allocation2 + $0x48] sm:$0xff] %vm44, %v823
    %840 = vst.msk [vmem:[#allocation2 + $0x50] sm:$0xff] %vm44, %v824
    %841 = vst.msk [vmem:[#allocation2 + $0x58] sm:$0xff] %vm44, %v825
    %842 = vst.msk [vmem:[#allocation2 + $0x60] sm:$0xff] %vm44, %v826
    %843 = vst.msk [vmem:[#allocation2 + $0x68] sm:$0xff] %vm44, %v827
    %844 = vst.msk [vmem:[#allocation2 + $0x70] sm:$0xff] %vm44, %v828
    %845 = vst.msk [vmem:[#allocation2 + $0x78] sm:$0xff] %vm44, %v829
    // Predicated region
    $region30: #{swin_transformer_forward.7} parent=1 // pred_check
      _
    $region31: #{swin_transformer_forward.7} parent=1 // pred_check_branch
      %847 = sbr.rel (0) target = $region33
    $region32: #{swin_transformer_forward.7} parent=1 // pred_region
      %849 = vsyncadd [#allocation3], 0
      %s850 = sshll.u32 [#allocation2], 4
      %s851 = int_to_ptr.vmem [resolvable:$true] %s850
      %s852 = sshll.u32 %s7, 4
      %s853 = int_to_ptr.hbm [resolvable:$true] %s852
      %858 = dma.vmem_to_hbm [thread:$0]  %s851, 2048, %s853, [#allocation3], 128, 128, 8
    $region33: #{swin_transformer_forward.7} parent=1 // pred_fallthru
      _
    // Predicated region
    $region34: #{swin_transformer_forward.7} parent=1 // pred_check
      _
    $region35: #{swin_transformer_forward.7} parent=1 // pred_check_branch
      %860 = sbr.rel (0) target = $region37
    $region36: #{swin_transformer_forward.7} parent=1 // pred_region
      %862 = dma.done [#allocation3], 2048
    $region37: #{swin_transformer_forward.7} parent=1 // pred_fallthru
      _
    %863 = vsyncpa [#allocation3], 1

// kernel: swin_transformer_forward.4
$region0: #{swin_transformer_forward.4}
  #allocation0 [shape = 'u32[]', space=smem, size = 0x4, offset = 0x4, fixed_abs, tag = 'smem constant byte address 0x4 - core index']
  #allocation1 [shape = 'u32[72,128]{1,0:T(1,128)}', space=vmem, size = 0x9000, scoped, tag = 'internal scratch']
  %s0 = inlined_call_operand.vmem [shape: f32[8,16,32], index: 0, kind: input, shape index: {}]
  %s1 = inlined_call_operand.vmem [shape: f32[8,16,32], index: 1, kind: input, shape index: {}]
  %s2 = inlined_call_operand.vmem [shape: f32[1,4,16,16], index: 2, kind: input, shape index: {}]
  %s3 = inlined_call_operand.vmem [shape: f32[1,32], index: 3, kind: input, shape index: {}]
  %s4 = inlined_call_operand.vmem [shape: f32[1,32], index: 4, kind: input, shape index: {}]
  %s5 = inlined_call_operand.vmem [shape: bf16[32,96], index: 5, kind: input, shape index: {}]
  %s6 = inlined_call_operand.vmem [shape: f32[1,96], index: 6, kind: input, shape index: {}]
  %s7 = inlined_call_operand.vmem [shape: bf16[32,32], index: 7, kind: input, shape index: {}]
  %s8 = inlined_call_operand.vmem [shape: f32[1,32], index: 8, kind: input, shape index: {}]
  %s9 = inlined_call_operand.vmem [shape: f32[8,16,32], index: 9, kind: output, shape index: {}]
  %s10 = sld [smem:[#allocation0]]
  $region46: #{swin_transformer_forward.4} parent=0
    _
  %s12 = ssub.s32 1, %s10
  %s13 = scalar_select 0, %s12, %s10
  // Predicated region
  $region2: #{swin_transformer_forward.4} parent=0 // pred_check
    _
  $region3: #{swin_transformer_forward.4} parent=0 // pred_check_branch
    %15 = sbr.rel (0) target = $region5
  $region4: #{swin_transformer_forward.4} parent=0 // pred_region
    _
  $region5: #{swin_transformer_forward.4} parent=0 // pred_fallthru
    _
  // Predicated region
  $region6: #{swin_transformer_forward.4} parent=0 // pred_check
    _
  $region7: #{swin_transformer_forward.4} parent=0 // pred_check_branch
    %17 = sbr.rel (0) target = $region9
  $region8: #{swin_transformer_forward.4} parent=0 // pred_region
    _
  $region9: #{swin_transformer_forward.4} parent=0 // pred_fallthru
    _
  // Predicated region
  $region10: #{swin_transformer_forward.4} parent=0 // pred_check
    _
  $region11: #{swin_transformer_forward.4} parent=0 // pred_check_branch
    %19 = sbr.rel (0) target = $region13
  $region12: #{swin_transformer_forward.4} parent=0 // pred_region
    _
  $region13: #{swin_transformer_forward.4} parent=0 // pred_fallthru
    _
  // Predicated region
  $region14: #{swin_transformer_forward.4} parent=0 // pred_check
    _
  $region15: #{swin_transformer_forward.4} parent=0 // pred_check_branch
    %21 = sbr.rel (0) target = $region17
  $region16: #{swin_transformer_forward.4} parent=0 // pred_region
    _
  $region17: #{swin_transformer_forward.4} parent=0 // pred_fallthru
    _
  // Predicated region
  $region18: #{swin_transformer_forward.4} parent=0 // pred_check
    _
  $region19: #{swin_transformer_forward.4} parent=0 // pred_check_branch
    %23 = sbr.rel (0) target = $region21
  $region20: #{swin_transformer_forward.4} parent=0 // pred_region
    _
  $region21: #{swin_transformer_forward.4} parent=0 // pred_fallthru
    _
  // Predicated region
  $region22: #{swin_transformer_forward.4} parent=0 // pred_check
    _
  $region23: #{swin_transformer_forward.4} parent=0 // pred_check_branch
    %25 = sbr.rel (0) target = $region25
  $region24: #{swin_transformer_forward.4} parent=0 // pred_region
    _
  $region25: #{swin_transformer_forward.4} parent=0 // pred_fallthru
    _
  // Predicated region
  $region26: #{swin_transformer_forward.4} parent=0 // pred_check
    _
  $region27: #{swin_transformer_forward.4} parent=0 // pred_check_branch
    %27 = sbr.rel (0) target = $region29
  $region28: #{swin_transformer_forward.4} parent=0 // pred_region
    _
  $region29: #{swin_transformer_forward.4} parent=0 // pred_fallthru
    _
  // Predicated region
  $region30: #{swin_transformer_forward.4} parent=0 // pred_check
    _
  $region31: #{swin_transformer_forward.4} parent=0 // pred_check_branch
    %29 = sbr.rel (0) target = $region33
  $region32: #{swin_transformer_forward.4} parent=0 // pred_region
    _
  $region33: #{swin_transformer_forward.4} parent=0 // pred_fallthru
    _
  // Predicated region
  $region34: #{swin_transformer_forward.4} parent=0 // pred_check
    _
  $region35: #{swin_transformer_forward.4} parent=0 // pred_check_branch
    %31 = sbr.rel (0) target = $region37
  $region36: #{swin_transformer_forward.4} parent=0 // pred_region
    _
  $region37: #{swin_transformer_forward.4} parent=0 // pred_fallthru
    _
  %v33 = vld [vmem:[%s0] sm:$0xff]
  %v34 = vld [vmem:[%s0 + $0x8] sm:$0xff]
  %v35 = vld [vmem:[%s0 + $0x10] sm:$0xff]
  %v36 = vld [vmem:[%s0 + $0x18] sm:$0xff]
  %v37 = vld [vmem:[%s0 + $0x20] sm:$0xff]
  %v38 = vld [vmem:[%s0 + $0x28] sm:$0xff]
  %v39 = vld [vmem:[%s0 + $0x30] sm:$0xff]
  %v40 = vld [vmem:[%s0 + $0x38] sm:$0xff]
  %v41 = vld [vmem:[%s0 + $0x40] sm:$0xff]
  %v42 = vld [vmem:[%s0 + $0x48] sm:$0xff]
  %v43 = vld [vmem:[%s0 + $0x50] sm:$0xff]
  %v44 = vld [vmem:[%s0 + $0x58] sm:$0xff]
  %v45 = vld [vmem:[%s0 + $0x60] sm:$0xff]
  %v46 = vld [vmem:[%s0 + $0x68] sm:$0xff]
  %v47 = vld [vmem:[%s0 + $0x70] sm:$0xff]
  %v48 = vld [vmem:[%s0 + $0x78] sm:$0xff]
  %vm49 = vcmask 261120
  %v50 = vsel %vm49, %v33, 0.0
  %51 = vadd.xlane.f32.xlu0 %v50
  %v52 = vpop.xlane.xlu0 %51
  %v53 = vsel %vm49, %v34, 0.0
  %54 = vadd.xlane.f32.xlu0 %v53
  %v55 = vpop.xlane.xlu0 %54
  %v56 = vsel %vm49, %v35, 0.0
  %57 = vadd.xlane.f32.xlu0 %v56
  %v58 = vpop.xlane.xlu0 %57
  %v59 = vsel %vm49, %v36, 0.0
  %60 = vadd.xlane.f32.xlu0 %v59
  %v61 = vpop.xlane.xlu0 %60
  %v62 = vsel %vm49, %v37, 0.0
  %63 = vadd.xlane.f32.xlu0 %v62
  %v64 = vpop.xlane.xlu0 %63
  %v65 = vsel %vm49, %v38, 0.0
  %66 = vadd.xlane.f32.xlu0 %v65
  %v67 = vpop.xlane.xlu0 %66
  %v68 = vsel %vm49, %v39, 0.0
  %69 = vadd.xlane.f32.xlu0 %v68
  %v70 = vpop.xlane.xlu0 %69
  %v71 = vsel %vm49, %v40, 0.0
  %72 = vadd.xlane.f32.xlu0 %v71
  %v73 = vpop.xlane.xlu0 %72
  %v74 = vsel %vm49, %v41, 0.0
  %75 = vadd.xlane.f32.xlu0 %v74
  %v76 = vpop.xlane.xlu0 %75
  %v77 = vsel %vm49, %v42, 0.0
  %78 = vadd.xlane.f32.xlu0 %v77
  %v79 = vpop.xlane.xlu0 %78
  %v80 = vsel %vm49, %v43, 0.0
  %81 = vadd.xlane.f32.xlu0 %v80
  %v82 = vpop.xlane.xlu0 %81
  %v83 = vsel %vm49, %v44, 0.0
  %84 = vadd.xlane.f32.xlu0 %v83
  %v85 = vpop.xlane.xlu0 %84
  %v86 = vsel %vm49, %v45, 0.0
  %87 = vadd.xlane.f32.xlu0 %v86
  %v88 = vpop.xlane.xlu0 %87
  %v89 = vsel %vm49, %v46, 0.0
  %90 = vadd.xlane.f32.xlu0 %v89
  %v91 = vpop.xlane.xlu0 %90
  %v92 = vsel %vm49, %v47, 0.0
  %93 = vadd.xlane.f32.xlu0 %v92
  %v94 = vpop.xlane.xlu0 %93
  %v95 = vsel %vm49, %v48, 0.0
  %96 = vadd.xlane.f32.xlu0 %v95
  %v97 = vpop.xlane.xlu0 %96
  %v98 = vrcp.pop 32.0
  %v99 = vmul.f32 32.0, %v98
  %v100 = vsub.f32 1.0, %v99
  %v101 = vmul.f32 %v98, %v100
  %v102 = vadd.f32 %v98, %v101
  %vm103 = vweird.f32 %v98
  %v104 = vsel %vm103, %v98, %v102
  %v105 = vmul.f32 %v52, %v104
  %v106 = vmul.f32 %v55, %v104
  %v107 = vmul.f32 %v58, %v104
  %v108 = vmul.f32 %v61, %v104
  %v109 = vmul.f32 %v64, %v104
  %v110 = vmul.f32 %v67, %v104
  %v111 = vmul.f32 %v70, %v104
  %v112 = vmul.f32 %v73, %v104
  %v113 = vmul.f32 %v76, %v104
  %v114 = vmul.f32 %v79, %v104
  %v115 = vmul.f32 %v82, %v104
  %v116 = vmul.f32 %v85, %v104
  %v117 = vmul.f32 %v88, %v104
  %v118 = vmul.f32 %v91, %v104
  %v119 = vmul.f32 %v94, %v104
  %v120 = vmul.f32 %v97, %v104
  %v121 = vsub.f32 %v33, %v105
  %v122 = vsub.f32 %v34, %v106
  %v123 = vsub.f32 %v35, %v107
  %v124 = vsub.f32 %v36, %v108
  %v125 = vsub.f32 %v37, %v109
  %v126 = vsub.f32 %v38, %v110
  %v127 = vsub.f32 %v39, %v111
  %v128 = vsub.f32 %v40, %v112
  %v129 = vsub.f32 %v41, %v113
  %v130 = vsub.f32 %v42, %v114
  %v131 = vsub.f32 %v43, %v115
  %v132 = vsub.f32 %v44, %v116
  %v133 = vsub.f32 %v45, %v117
  %v134 = vsub.f32 %v46, %v118
  %v135 = vsub.f32 %v47, %v119
  %v136 = vsub.f32 %v48, %v120
  %v137 = vmul.f32 %v121, %v121
  %v138 = vmul.f32 %v122, %v122
  %v139 = vmul.f32 %v123, %v123
  %v140 = vmul.f32 %v124, %v124
  %v141 = vmul.f32 %v125, %v125
  %v142 = vmul.f32 %v126, %v126
  %v143 = vmul.f32 %v127, %v127
  %v144 = vmul.f32 %v128, %v128
  %v145 = vmul.f32 %v129, %v129
  %v146 = vmul.f32 %v130, %v130
  %v147 = vmul.f32 %v131, %v131
  %v148 = vmul.f32 %v132, %v132
  %v149 = vmul.f32 %v133, %v133
  %v150 = vmul.f32 %v134, %v134
  %v151 = vmul.f32 %v135, %v135
  %v152 = vmul.f32 %v136, %v136
  %v153 = vsel %vm49, %v137, 0.0
  %154 = vadd.xlane.f32.xlu0 %v153
  %v155 = vpop.xlane.xlu0 %154
  %v156 = vsel %vm49, %v138, 0.0
  %157 = vadd.xlane.f32.xlu0 %v156
  %v158 = vpop.xlane.xlu0 %157
  %v159 = vsel %vm49, %v139, 0.0
  %160 = vadd.xlane.f32.xlu0 %v159
  %v161 = vpop.xlane.xlu0 %160
  %v162 = vsel %vm49, %v140, 0.0
  %163 = vadd.xlane.f32.xlu0 %v162
  %v164 = vpop.xlane.xlu0 %163
  %v165 = vsel %vm49, %v141, 0.0
  %166 = vadd.xlane.f32.xlu0 %v165
  %v167 = vpop.xlane.xlu0 %166
  %v168 = vsel %vm49, %v142, 0.0
  %169 = vadd.xlane.f32.xlu0 %v168
  %v170 = vpop.xlane.xlu0 %169
  %v171 = vsel %vm49, %v143, 0.0
  %172 = vadd.xlane.f32.xlu0 %v171
  %v173 = vpop.xlane.xlu0 %172
  %v174 = vsel %vm49, %v144, 0.0
  %175 = vadd.xlane.f32.xlu0 %v174
  %v176 = vpop.xlane.xlu0 %175
  %v177 = vsel %vm49, %v145, 0.0
  %178 = vadd.xlane.f32.xlu0 %v177
  %v179 = vpop.xlane.xlu0 %178
  %v180 = vsel %vm49, %v146, 0.0
  %181 = vadd.xlane.f32.xlu0 %v180
  %v182 = vpop.xlane.xlu0 %181
  %v183 = vsel %vm49, %v147, 0.0
  %184 = vadd.xlane.f32.xlu0 %v183
  %v185 = vpop.xlane.xlu0 %184
  %v186 = vsel %vm49, %v148, 0.0
  %187 = vadd.xlane.f32.xlu0 %v186
  %v188 = vpop.xlane.xlu0 %187
  %v189 = vsel %vm49, %v149, 0.0
  %190 = vadd.xlane.f32.xlu0 %v189
  %v191 = vpop.xlane.xlu0 %190
  %v192 = vsel %vm49, %v150, 0.0
  %193 = vadd.xlane.f32.xlu0 %v192
  %v194 = vpop.xlane.xlu0 %193
  %v195 = vsel %vm49, %v151, 0.0
  %196 = vadd.xlane.f32.xlu0 %v195
  %v197 = vpop.xlane.xlu0 %196
  %v198 = vsel %vm49, %v152, 0.0
  %199 = vadd.xlane.f32.xlu0 %v198
  %v200 = vpop.xlane.xlu0 %199
  %v201 = vmul.f32 %v155, %v104
  %v202 = vmul.f32 %v158, %v104
  %v203 = vmul.f32 %v161, %v104
  %v204 = vmul.f32 %v164, %v104
  %v205 = vmul.f32 %v167, %v104
  %v206 = vmul.f32 %v170, %v104
  %v207 = vmul.f32 %v173, %v104
  %v208 = vmul.f32 %v176, %v104
  %v209 = vmul.f32 %v179, %v104
  %v210 = vmul.f32 %v182, %v104
  %v211 = vmul.f32 %v185, %v104
  %v212 = vmul.f32 %v188, %v104
  %v213 = vmul.f32 %v191, %v104
  %v214 = vmul.f32 %v194, %v104
  %v215 = vmul.f32 %v197, %v104
  %v216 = vmul.f32 %v200, %v104
  %v217 = vadd.f32 %v201, 1e-05
  %v218 = vadd.f32 %v202, 1e-05
  %v219 = vadd.f32 %v203, 1e-05
  %v220 = vadd.f32 %v204, 1e-05
  %v221 = vadd.f32 %v205, 1e-05
  %v222 = vadd.f32 %v206, 1e-05
  %v223 = vadd.f32 %v207, 1e-05
  %v224 = vadd.f32 %v208, 1e-05
  %v225 = vadd.f32 %v209, 1e-05
  %v226 = vadd.f32 %v210, 1e-05
  %v227 = vadd.f32 %v211, 1e-05
  %v228 = vadd.f32 %v212, 1e-05
  %v229 = vadd.f32 %v213, 1e-05
  %v230 = vadd.f32 %v214, 1e-05
  %v231 = vadd.f32 %v215, 1e-05
  %v232 = vadd.f32 %v216, 1e-05
  %v233 = vrsqrt.pop %v217
  %v234 = vmul.f32 %v233, %v217
  %v235 = vmul.f32 %v234, %v233
  %v236 = vmul.f32 0.5, %v235
  %v237 = vsub.f32 1.5, %v236
  %v238 = vmul.f32 %v233, %v237
  %vm239 = vweird.f32 %v217
  %vm240 = vweird.f32 %v233
  %vm241 = vmor %vm239, %vm240
  %v242 = vsel %vm241, %v233, %v238
  %v243 = vrsqrt.pop %v218
  %v244 = vmul.f32 %v243, %v218
  %v245 = vmul.f32 %v244, %v243
  %v246 = vmul.f32 0.5, %v245
  %v247 = vsub.f32 1.5, %v246
  %v248 = vmul.f32 %v243, %v247
  %vm249 = vweird.f32 %v218
  %vm250 = vweird.f32 %v243
  %vm251 = vmor %vm249, %vm250
  %v252 = vsel %vm251, %v243, %v248
  %v253 = vrsqrt.pop %v219
  %v254 = vmul.f32 %v253, %v219
  %v255 = vmul.f32 %v254, %v253
  %v256 = vmul.f32 0.5, %v255
  %v257 = vsub.f32 1.5, %v256
  %v258 = vmul.f32 %v253, %v257
  %vm259 = vweird.f32 %v219
  %vm260 = vweird.f32 %v253
  %vm261 = vmor %vm259, %vm260
  %v262 = vsel %vm261, %v253, %v258
  %v263 = vrsqrt.pop %v220
  %v264 = vmul.f32 %v263, %v220
  %v265 = vmul.f32 %v264, %v263
  %v266 = vmul.f32 0.5, %v265
  %v267 = vsub.f32 1.5, %v266
  %v268 = vmul.f32 %v263, %v267
  %vm269 = vweird.f32 %v220
  %vm270 = vweird.f32 %v263
  %vm271 = vmor %vm269, %vm270
  %v272 = vsel %vm271, %v263, %v268
  %v273 = vrsqrt.pop %v221
  %v274 = vmul.f32 %v273, %v221
  %v275 = vmul.f32 %v274, %v273
  %v276 = vmul.f32 0.5, %v275
  %v277 = vsub.f32 1.5, %v276
  %v278 = vmul.f32 %v273, %v277
  %vm279 = vweird.f32 %v221
  %vm280 = vweird.f32 %v273
  %vm281 = vmor %vm279, %vm280
  %v282 = vsel %vm281, %v273, %v278
  %v283 = vrsqrt.pop %v222
  %v284 = vmul.f32 %v283, %v222
  %v285 = vmul.f32 %v284, %v283
  %v286 = vmul.f32 0.5, %v285
  %v287 = vsub.f32 1.5, %v286
  %v288 = vmul.f32 %v283, %v287
  %vm289 = vweird.f32 %v222
  %vm290 = vweird.f32 %v283
  %vm291 = vmor %vm289, %vm290
  %v292 = vsel %vm291, %v283, %v288
  %v293 = vrsqrt.pop %v223
  %v294 = vmul.f32 %v293, %v223
  %v295 = vmul.f32 %v294, %v293
  %v296 = vmul.f32 0.5, %v295
  %v297 = vsub.f32 1.5, %v296
  %v298 = vmul.f32 %v293, %v297
  %vm299 = vweird.f32 %v223
  %vm300 = vweird.f32 %v293
  %vm301 = vmor %vm299, %vm300
  %v302 = vsel %vm301, %v293, %v298
  %v303 = vrsqrt.pop %v224
  %v304 = vmul.f32 %v303, %v224
  %v305 = vmul.f32 %v304, %v303
  %v306 = vmul.f32 0.5, %v305
  %v307 = vsub.f32 1.5, %v306
  %v308 = vmul.f32 %v303, %v307
  %vm309 = vweird.f32 %v224
  %vm310 = vweird.f32 %v303
  %vm311 = vmor %vm309, %vm310
  %v312 = vsel %vm311, %v303, %v308
  %v313 = vrsqrt.pop %v225
  %v314 = vmul.f32 %v313, %v225
  %v315 = vmul.f32 %v314, %v313
  %v316 = vmul.f32 0.5, %v315
  %v317 = vsub.f32 1.5, %v316
  %v318 = vmul.f32 %v313, %v317
  %vm319 = vweird.f32 %v225
  %vm320 = vweird.f32 %v313
  %vm321 = vmor %vm319, %vm320
  %v322 = vsel %vm321, %v313, %v318
  %v323 = vrsqrt.pop %v226
  %v324 = vmul.f32 %v323, %v226
  %v325 = vmul.f32 %v324, %v323
  %v326 = vmul.f32 0.5, %v325
  %v327 = vsub.f32 1.5, %v326
  %v328 = vmul.f32 %v323, %v327
  %vm329 = vweird.f32 %v226
  %vm330 = vweird.f32 %v323
  %vm331 = vmor %vm329, %vm330
  %v332 = vsel %vm331, %v323, %v328
  %v333 = vrsqrt.pop %v227
  %v334 = vmul.f32 %v333, %v227
  %v335 = vmul.f32 %v334, %v333
  %v336 = vmul.f32 0.5, %v335
  %v337 = vsub.f32 1.5, %v336
  %v338 = vmul.f32 %v333, %v337
  %vm339 = vweird.f32 %v227
  %vm340 = vweird.f32 %v333
  %vm341 = vmor %vm339, %vm340
  %v342 = vsel %vm341, %v333, %v338
  %v343 = vrsqrt.pop %v228
  %v344 = vmul.f32 %v343, %v228
  %v345 = vmul.f32 %v344, %v343
  %v346 = vmul.f32 0.5, %v345
  %v347 = vsub.f32 1.5, %v346
  %v348 = vmul.f32 %v343, %v347
  %vm349 = vweird.f32 %v228
  %vm350 = vweird.f32 %v343
  %vm351 = vmor %vm349, %vm350
  %v352 = vsel %vm351, %v343, %v348
  %v353 = vrsqrt.pop %v229
  %v354 = vmul.f32 %v353, %v229
  %v355 = vmul.f32 %v354, %v353
  %v356 = vmul.f32 0.5, %v355
  %v357 = vsub.f32 1.5, %v356
  %v358 = vmul.f32 %v353, %v357
  %vm359 = vweird.f32 %v229
  %vm360 = vweird.f32 %v353
  %vm361 = vmor %vm359, %vm360
  %v362 = vsel %vm361, %v353, %v358
  %v363 = vrsqrt.pop %v230
  %v364 = vmul.f32 %v363, %v230
  %v365 = vmul.f32 %v364, %v363
  %v366 = vmul.f32 0.5, %v365
  %v367 = vsub.f32 1.5, %v366
  %v368 = vmul.f32 %v363, %v367
  %vm369 = vweird.f32 %v230
  %vm370 = vweird.f32 %v363
  %vm371 = vmor %vm369, %vm370
  %v372 = vsel %vm371, %v363, %v368
  %v373 = vrsqrt.pop %v231
  %v374 = vmul.f32 %v373, %v231
  %v375 = vmul.f32 %v374, %v373
  %v376 = vmul.f32 0.5, %v375
  %v377 = vsub.f32 1.5, %v376
  %v378 = vmul.f32 %v373, %v377
  %vm379 = vweird.f32 %v231
  %vm380 = vweird.f32 %v373
  %vm381 = vmor %vm379, %vm380
  %v382 = vsel %vm381, %v373, %v378
  %v383 = vrsqrt.pop %v232
  %v384 = vmul.f32 %v383, %v232
  %v385 = vmul.f32 %v384, %v383
  %v386 = vmul.f32 0.5, %v385
  %v387 = vsub.f32 1.5, %v386
  %v388 = vmul.f32 %v383, %v387
  %vm389 = vweird.f32 %v232
  %vm390 = vweird.f32 %v383
  %vm391 = vmor %vm389, %vm390
  %v392 = vsel %vm391, %v383, %v388
  %v393 = vmul.f32 %v121, %v242
  %v394 = vmul.f32 %v122, %v252
  %v395 = vmul.f32 %v123, %v262
  %v396 = vmul.f32 %v124, %v272
  %v397 = vmul.f32 %v125, %v282
  %v398 = vmul.f32 %v126, %v292
  %v399 = vmul.f32 %v127, %v302
  %v400 = vmul.f32 %v128, %v312
  %v401 = vmul.f32 %v129, %v322
  %v402 = vmul.f32 %v130, %v332
  %v403 = vmul.f32 %v131, %v342
  %v404 = vmul.f32 %v132, %v352
  %v405 = vmul.f32 %v133, %v362
  %v406 = vmul.f32 %v134, %v372
  %v407 = vmul.f32 %v135, %v382
  %v408 = vmul.f32 %v136, %v392
  %v409 = vld [vmem:[%s3] sm:$0x1]
  %v411 = vperm.slane %v409, 0
  %v413 = vmul.f32 %v393, %v411
  %v414 = vmul.f32 %v394, %v411
  %v415 = vmul.f32 %v395, %v411
  %v416 = vmul.f32 %v396, %v411
  %v417 = vmul.f32 %v397, %v411
  %v418 = vmul.f32 %v398, %v411
  %v419 = vmul.f32 %v399, %v411
  %v420 = vmul.f32 %v400, %v411
  %v421 = vmul.f32 %v401, %v411
  %v422 = vmul.f32 %v402, %v411
  %v423 = vmul.f32 %v403, %v411
  %v424 = vmul.f32 %v404, %v411
  %v425 = vmul.f32 %v405, %v411
  %v426 = vmul.f32 %v406, %v411
  %v427 = vmul.f32 %v407, %v411
  %v428 = vmul.f32 %v408, %v411
  %v429 = vld [vmem:[%s4] sm:$0x1]
  %v431 = vperm.slane %v429, 0
  %v433 = vadd.f32 %v413, %v431
  %v434 = vadd.f32 %v414, %v431
  %v435 = vadd.f32 %v415, %v431
  %v436 = vadd.f32 %v416, %v431
  %v437 = vadd.f32 %v417, %v431
  %v438 = vadd.f32 %v418, %v431
  %v439 = vadd.f32 %v419, %v431
  %v440 = vadd.f32 %v420, %v431
  %v441 = vadd.f32 %v421, %v431
  %v442 = vadd.f32 %v422, %v431
  %v443 = vadd.f32 %v423, %v431
  %v444 = vadd.f32 %v424, %v431
  %v445 = vadd.f32 %v425, %v431
  %v446 = vadd.f32 %v426, %v431
  %v447 = vadd.f32 %v427, %v431
  %v448 = vadd.f32 %v428, %v431
  %v449 = vld [vmem:[%s1] sm:$0xff]
  %v450 = vld [vmem:[%s1 + $0x8] sm:$0xff]
  %v451 = vld [vmem:[%s1 + $0x10] sm:$0xff]
  %v452 = vld [vmem:[%s1 + $0x18] sm:$0xff]
  %v453 = vld [vmem:[%s1 + $0x20] sm:$0xff]
  %v454 = vld [vmem:[%s1 + $0x28] sm:$0xff]
  %v455 = vld [vmem:[%s1 + $0x30] sm:$0xff]
  %v456 = vld [vmem:[%s1 + $0x38] sm:$0xff]
  %v457 = vld [vmem:[%s1 + $0x40] sm:$0xff]
  %v458 = vld [vmem:[%s1 + $0x48] sm:$0xff]
  %v459 = vld [vmem:[%s1 + $0x50] sm:$0xff]
  %v460 = vld [vmem:[%s1 + $0x58] sm:$0xff]
  %v461 = vld [vmem:[%s1 + $0x60] sm:$0xff]
  %v462 = vld [vmem:[%s1 + $0x68] sm:$0xff]
  %v463 = vld [vmem:[%s1 + $0x70] sm:$0xff]
  %v464 = vld [vmem:[%s1 + $0x78] sm:$0xff]
  %v465 = vpack.c.bf16 %v434, %v433
  %v466 = vpack.c.bf16 %v436, %v435
  %v467 = vpack.c.bf16 %v438, %v437
  %v468 = vpack.c.bf16 %v440, %v439
  %v469 = vpack.c.bf16 %v442, %v441
  %v470 = vpack.c.bf16 %v444, %v443
  %v471 = vpack.c.bf16 %v446, %v445
  %v472 = vpack.c.bf16 %v448, %v447
  %v473 = vld [vmem:[%s5] sm:$0xf]
  %v474 = vld [vmem:[%s5 + $0x4] sm:$0xf]
  %v475 = vld [vmem:[%s5 + $0x8] sm:$0xf]
  %v476 = vld [vmem:[%s5 + $0xc] sm:$0xf]
  %v477 = vld [vmem:[%s6] sm:$0x1]
  %v479 = vperm.slane %v477, 0
  %v485 = vunpack.c.l.b16 %v473
  %v486 = vunpack.c.l.b16 %v474
  %v487 = vunpack.c.l.b16 %v475
  %v488 = vunpack.c.l.b16 %v476
  %v489 = vpack.c.b16 %v486, %v485
  %v490 = vpack.c.b16 %v488, %v487
  %v494 = vsel %vm49, %v465, 0
  %v497 = vsel %vm49, %v466, 0
  %v500 = vsel %vm49, %v467, 0
  %v503 = vsel %vm49, %v468, 0
  %v506 = vsel %vm49, %v469, 0
  %v509 = vsel %vm49, %v470, 0
  %v512 = vsel %vm49, %v471, 0
  %v515 = vsel %vm49, %v472, 0
  %517 = vmatpush.bf16.msra.mxu0 0
  %518 = vmatpush.bf16.msra.mxu0 0
  %519 = vmatpush.bf16.msra.mxu0 0
  %520 = vmatpush.bf16.msra.mxu0 0
  %521 = vmatpush.bf16.msra.mxu0 0
  %522 = vmatpush.bf16.msra.mxu0 0
  %523 = vmatpush.bf16.msra.mxu0 %v490
  %524 = vmatpush.bf16.msra.mxu0 %v489
  %525 = vmatmul.bf16.gmra.mxu0 %v494
  %v526 = vpop.f32.mrf.mxu0
  %v527 = vadd.f32 %v479, %v526
  %v528 = vpop.f32.mrf.mxu0
  %v529 = vadd.f32 %v479, %v528
  %530 = vmatmul.bf16.gmra.mxu0 %v497
  %v531 = vpop.f32.mrf.mxu0
  %v532 = vadd.f32 %v479, %v531
  %v533 = vpop.f32.mrf.mxu0
  %v534 = vadd.f32 %v479, %v533
  %535 = vmatmul.bf16.gmra.mxu0 %v500
  %v536 = vpop.f32.mrf.mxu0
  %v537 = vadd.f32 %v479, %v536
  %v538 = vpop.f32.mrf.mxu0
  %v539 = vadd.f32 %v479, %v538
  %540 = vmatmul.bf16.gmra.mxu0 %v503
  %v541 = vpop.f32.mrf.mxu0
  %v542 = vadd.f32 %v479, %v541
  %v543 = vpop.f32.mrf.mxu0
  %v544 = vadd.f32 %v479, %v543
  %545 = vmatmul.bf16.gmra.mxu0 %v506
  %v546 = vpop.f32.mrf.mxu0
  %v547 = vadd.f32 %v479, %v546
  %v548 = vpop.f32.mrf.mxu0
  %v549 = vadd.f32 %v479, %v548
  %550 = vmatmul.bf16.gmra.mxu0 %v509
  %v551 = vpop.f32.mrf.mxu0
  %v552 = vadd.f32 %v479, %v551
  %v553 = vpop.f32.mrf.mxu0
  %v554 = vadd.f32 %v479, %v553
  %555 = vmatmul.bf16.gmra.mxu0 %v512
  %v556 = vpop.f32.mrf.mxu0
  %v557 = vadd.f32 %v479, %v556
  %v558 = vpop.f32.mrf.mxu0
  %v559 = vadd.f32 %v479, %v558
  %560 = vmatmul.bf16.gmra.mxu0 %v515
  %v561 = vpop.f32.mrf.mxu0
  %v562 = vadd.f32 %v479, %v561
  %v563 = vpop.f32.mrf.mxu0
  %v564 = vadd.f32 %v479, %v563
  %565 = vdwg.mxu0
  %v566 = vmul.f32 %v527, 0.35355338
  %v567 = vmul.f32 %v529, 0.35355338
  %v568 = vmul.f32 %v532, 0.35355338
  %v569 = vmul.f32 %v534, 0.35355338
  %v570 = vmul.f32 %v537, 0.35355338
  %v571 = vmul.f32 %v539, 0.35355338
  %v572 = vmul.f32 %v542, 0.35355338
  %v573 = vmul.f32 %v544, 0.35355338
  %v574 = vmul.f32 %v547, 0.35355338
  %v575 = vmul.f32 %v549, 0.35355338
  %v576 = vmul.f32 %v552, 0.35355338
  %v577 = vmul.f32 %v554, 0.35355338
  %v578 = vmul.f32 %v557, 0.35355338
  %v579 = vmul.f32 %v559, 0.35355338
  %v580 = vmul.f32 %v562, 0.35355338
  %v581 = vmul.f32 %v564, 0.35355338
  %v582 = vpack.c.bf16 %v566, %v566
  %v583 = vpack.c.bf16 %v567, %v567
  %v584 = vpack.c.bf16 %v568, %v568
  %v585 = vpack.c.bf16 %v569, %v569
  %v586 = vpack.c.bf16 %v570, %v570
  %v587 = vpack.c.bf16 %v571, %v571
  %v588 = vpack.c.bf16 %v572, %v572
  %v589 = vpack.c.bf16 %v573, %v573
  %v590 = vpack.c.bf16 %v574, %v574
  %v591 = vpack.c.bf16 %v575, %v575
  %v592 = vpack.c.bf16 %v576, %v576
  %v593 = vpack.c.bf16 %v577, %v577
  %v594 = vpack.c.bf16 %v578, %v578
  %v595 = vpack.c.bf16 %v579, %v579
  %v596 = vpack.c.bf16 %v580, %v580
  %v597 = vpack.c.bf16 %v581, %v581
  %v598 = vpack.c.bf16 %v527, %v527
  %v599 = vpack.c.bf16 %v529, %v529
  %v600 = vpack.c.bf16 %v532, %v532
  %v601 = vpack.c.bf16 %v534, %v534
  %v602 = vpack.c.bf16 %v537, %v537
  %v603 = vpack.c.bf16 %v539, %v539
  %v604 = vpack.c.bf16 %v542, %v542
  %v605 = vpack.c.bf16 %v544, %v544
  %v606 = vpack.c.bf16 %v547, %v547
  %v607 = vpack.c.bf16 %v549, %v549
  %v608 = vpack.c.bf16 %v552, %v552
  %v609 = vpack.c.bf16 %v554, %v554
  %v610 = vpack.c.bf16 %v557, %v557
  %v611 = vpack.c.bf16 %v559, %v559
  %v612 = vpack.c.bf16 %v562, %v562
  %v613 = vpack.c.bf16 %v564, %v564
  %630 = vrot.lane.b32.xlu0 %v449, 64
  %v631 = vpop.permute.xlu0 %630
  %632 = vrot.lane.b32.xlu0 %v450, 64
  %v633 = vpop.permute.xlu0 %632
  %634 = vrot.lane.b32.xlu0 %v451, 64
  %v635 = vpop.permute.xlu0 %634
  %636 = vrot.lane.b32.xlu0 %v452, 64
  %v637 = vpop.permute.xlu0 %636
  %638 = vrot.lane.b32.xlu0 %v453, 64
  %v639 = vpop.permute.xlu0 %638
  %640 = vrot.lane.b32.xlu0 %v454, 64
  %v641 = vpop.permute.xlu0 %640
  %642 = vrot.lane.b32.xlu0 %v455, 64
  %v643 = vpop.permute.xlu0 %642
  %644 = vrot.lane.b32.xlu0 %v456, 64
  %v645 = vpop.permute.xlu0 %644
  %646 = vrot.lane.b32.xlu0 %v457, 64
  %v647 = vpop.permute.xlu0 %646
  %648 = vrot.lane.b32.xlu0 %v458, 64
  %v649 = vpop.permute.xlu0 %648
  %650 = vrot.lane.b32.xlu0 %v459, 64
  %v651 = vpop.permute.xlu0 %650
  %652 = vrot.lane.b32.xlu0 %v460, 64
  %v653 = vpop.permute.xlu0 %652
  %654 = vrot.lane.b32.xlu0 %v461, 64
  %v655 = vpop.permute.xlu0 %654
  %656 = vrot.lane.b32.xlu0 %v462, 64
  %v657 = vpop.permute.xlu0 %656
  %658 = vrot.lane.b32.xlu0 %v463, 64
  %v659 = vpop.permute.xlu0 %658
  %660 = vrot.lane.b32.xlu0 %v464, 64
  %v661 = vpop.permute.xlu0 %660
  %v678 = vmul.f32 %v527, %v631
  %v679 = vmul.f32 %v529, %v633
  %v680 = vmul.f32 %v532, %v635
  %v681 = vmul.f32 %v534, %v637
  %v682 = vmul.f32 %v537, %v639
  %v683 = vmul.f32 %v539, %v641
  %v684 = vmul.f32 %v542, %v643
  %v685 = vmul.f32 %v544, %v645
  %v686 = vmul.f32 %v547, %v647
  %v687 = vmul.f32 %v549, %v649
  %v688 = vmul.f32 %v552, %v651
  %v689 = vmul.f32 %v554, %v653
  %v690 = vmul.f32 %v557, %v655
  %v691 = vmul.f32 %v559, %v657
  %v692 = vmul.f32 %v562, %v659
  %v693 = vmul.f32 %v564, %v661
  %v694 = vpack.c.bf16 %v678, %v678
  %v695 = vpack.c.bf16 %v679, %v679
  %v696 = vpack.c.bf16 %v680, %v680
  %v697 = vpack.c.bf16 %v681, %v681
  %v698 = vpack.c.bf16 %v682, %v682
  %v699 = vpack.c.bf16 %v683, %v683
  %v700 = vpack.c.bf16 %v684, %v684
  %v701 = vpack.c.bf16 %v685, %v685
  %v702 = vpack.c.bf16 %v686, %v686
  %v703 = vpack.c.bf16 %v687, %v687
  %v704 = vpack.c.bf16 %v688, %v688
  %v705 = vpack.c.bf16 %v689, %v689
  %v706 = vpack.c.bf16 %v690, %v690
  %v707 = vpack.c.bf16 %v691, %v691
  %v708 = vpack.c.bf16 %v692, %v692
  %v709 = vpack.c.bf16 %v693, %v693
  %v710 = vld [vmem:[%s2] sm:$0xff]
  %v711 = vld [vmem:[%s2 + $0x8] sm:$0xff]
  %v712 = vld [vmem:[%s2 + $0x10] sm:$0xff]
  %v713 = vld [vmem:[%s2 + $0x18] sm:$0xff]
  %v714 = vld [vmem:[%s2 + $0x20] sm:$0xff]
  %v715 = vld [vmem:[%s2 + $0x28] sm:$0xff]
  %v716 = vld [vmem:[%s2 + $0x30] sm:$0xff]
  %v717 = vld [vmem:[%s2 + $0x38] sm:$0xff]
  %v720 = vunpack.c.l.b16 %v582
  %v721 = vunpack.c.l.b16 %v583
  %v722 = vpack.c.b16 %v721, %v720
  %v725 = vunpack.c.l.b16 %v598
  %v726 = vunpack.c.l.b16 %v599
  %v727 = vpack.c.b16 %v726, %v725
  %728 = vrot.lane.b32.xlu0 %v727, 96
  %v729 = vpop.permute.xlu0 %728
  %vm730 = vcmask 64512
  %v732 = vsel %vm730, %v722, 0
  %v735 = vsel %vm730, %v729, 0
  %737 = vmatpush.bf16.xpose.msra.mxu0 0
  %738 = vmatpush.bf16.xpose.msra.mxu0 0
  %739 = vmatpush.bf16.xpose.msra.mxu0 0
  %740 = vmatpush.bf16.xpose.msra.mxu0 0
  %741 = vmatpush.bf16.xpose.msra.mxu0 0
  %742 = vmatpush.bf16.xpose.msra.mxu0 0
  %743 = vmatpush.bf16.xpose.msra.mxu0 0
  %744 = vmatpush.bf16.xpose.msra.mxu0 %v735
  %745 = vmatmul.bf16.gmra.mxu0 %v732
  %v746 = vpop.f32.mrf.mxu0
  %v747 = vadd.f32 %v710, %v746
  %v748 = vpop.f32.mrf.mxu0
  %v749 = vadd.f32 %v711, %v748
  %750 = vdwg.mxu0
  %v753 = vunpack.c.l.b16 %v584
  %v754 = vunpack.c.l.b16 %v585
  %v755 = vpack.c.b16 %v754, %v753
  %v758 = vunpack.c.l.b16 %v600
  %v759 = vunpack.c.l.b16 %v601
  %v760 = vpack.c.b16 %v759, %v758
  %761 = vrot.lane.b32.xlu0 %v760, 96
  %v762 = vpop.permute.xlu0 %761
  %v764 = vsel %vm730, %v755, 0
  %v767 = vsel %vm730, %v762, 0
  %769 = vmatpush.bf16.xpose.msra.mxu0 0
  %770 = vmatpush.bf16.xpose.msra.mxu0 0
  %771 = vmatpush.bf16.xpose.msra.mxu0 0
  %772 = vmatpush.bf16.xpose.msra.mxu0 0
  %773 = vmatpush.bf16.xpose.msra.mxu0 0
  %774 = vmatpush.bf16.xpose.msra.mxu0 0
  %775 = vmatpush.bf16.xpose.msra.mxu0 0
  %776 = vmatpush.bf16.xpose.msra.mxu0 %v767
  %777 = vmatmul.bf16.gmra.mxu0 %v764
  %v778 = vpop.f32.mrf.mxu0
  %v779 = vadd.f32 %v710, %v778
  %v780 = vpop.f32.mrf.mxu0
  %v781 = vadd.f32 %v711, %v780
  %782 = vdwg.mxu0
  %v785 = vunpack.c.l.b16 %v586
  %v786 = vunpack.c.l.b16 %v587
  %v787 = vpack.c.b16 %v786, %v785
  %v790 = vunpack.c.l.b16 %v602
  %v791 = vunpack.c.l.b16 %v603
  %v792 = vpack.c.b16 %v791, %v790
  %793 = vrot.lane.b32.xlu0 %v792, 96
  %v794 = vpop.permute.xlu0 %793
  %v796 = vsel %vm730, %v787, 0
  %v799 = vsel %vm730, %v794, 0
  %801 = vmatpush.bf16.xpose.msra.mxu0 0
  %802 = vmatpush.bf16.xpose.msra.mxu0 0
  %803 = vmatpush.bf16.xpose.msra.mxu0 0
  %804 = vmatpush.bf16.xpose.msra.mxu0 0
  %805 = vmatpush.bf16.xpose.msra.mxu0 0
  %806 = vmatpush.bf16.xpose.msra.mxu0 0
  %807 = vmatpush.bf16.xpose.msra.mxu0 0
  %808 = vmatpush.bf16.xpose.msra.mxu0 %v799
  %809 = vmatmul.bf16.gmra.mxu0 %v796
  %v810 = vpop.f32.mrf.mxu0
  %v811 = vadd.f32 %v710, %v810
  %v812 = vpop.f32.mrf.mxu0
  %v813 = vadd.f32 %v711, %v812
  %814 = vdwg.mxu0
  %v817 = vunpack.c.l.b16 %v588
  %v818 = vunpack.c.l.b16 %v589
  %v819 = vpack.c.b16 %v818, %v817
  %v822 = vunpack.c.l.b16 %v604
  %v823 = vunpack.c.l.b16 %v605
  %v824 = vpack.c.b16 %v823, %v822
  %825 = vrot.lane.b32.xlu0 %v824, 96
  %v826 = vpop.permute.xlu0 %825
  %v828 = vsel %vm730, %v819, 0
  %v831 = vsel %vm730, %v826, 0
  %833 = vmatpush.bf16.xpose.msra.mxu0 0
  %834 = vmatpush.bf16.xpose.msra.mxu0 0
  %835 = vmatpush.bf16.xpose.msra.mxu0 0
  %836 = vmatpush.bf16.xpose.msra.mxu0 0
  %837 = vmatpush.bf16.xpose.msra.mxu0 0
  %838 = vmatpush.bf16.xpose.msra.mxu0 0
  %839 = vmatpush.bf16.xpose.msra.mxu0 0
  %840 = vmatpush.bf16.xpose.msra.mxu0 %v831
  %841 = vmatmul.bf16.gmra.mxu0 %v828
  %v842 = vpop.f32.mrf.mxu0
  %v843 = vadd.f32 %v710, %v842
  %v844 = vpop.f32.mrf.mxu0
  %v845 = vadd.f32 %v711, %v844
  %846 = vdwg.mxu0
  %v849 = vunpack.c.l.b16 %v590
  %v850 = vunpack.c.l.b16 %v591
  %v851 = vpack.c.b16 %v850, %v849
  %v854 = vunpack.c.l.b16 %v606
  %v855 = vunpack.c.l.b16 %v607
  %v856 = vpack.c.b16 %v855, %v854
  %857 = vrot.lane.b32.xlu0 %v856, 96
  %v858 = vpop.permute.xlu0 %857
  %v860 = vsel %vm730, %v851, 0
  %v863 = vsel %vm730, %v858, 0
  %865 = vmatpush.bf16.xpose.msra.mxu0 0
  %866 = vmatpush.bf16.xpose.msra.mxu0 0
  %867 = vmatpush.bf16.xpose.msra.mxu0 0
  %868 = vmatpush.bf16.xpose.msra.mxu0 0
  %869 = vmatpush.bf16.xpose.msra.mxu0 0
  %870 = vmatpush.bf16.xpose.msra.mxu0 0
  %871 = vmatpush.bf16.xpose.msra.mxu0 0
  %872 = vmatpush.bf16.xpose.msra.mxu0 %v863
  %873 = vmatmul.bf16.gmra.mxu0 %v860
  %v874 = vpop.f32.mrf.mxu0
  %v875 = vadd.f32 %v710, %v874
  %v876 = vpop.f32.mrf.mxu0
  %v877 = vadd.f32 %v711, %v876
  %878 = vdwg.mxu0
  %v881 = vunpack.c.l.b16 %v592
  %v882 = vunpack.c.l.b16 %v593
  %v883 = vpack.c.b16 %v882, %v881
  %v886 = vunpack.c.l.b16 %v608
  %v887 = vunpack.c.l.b16 %v609
  %v888 = vpack.c.b16 %v887, %v886
  %889 = vrot.lane.b32.xlu0 %v888, 96
  %v890 = vpop.permute.xlu0 %889
  %v892 = vsel %vm730, %v883, 0
  %v895 = vsel %vm730, %v890, 0
  %897 = vmatpush.bf16.xpose.msra.mxu0 0
  %898 = vmatpush.bf16.xpose.msra.mxu0 0
  %899 = vmatpush.bf16.xpose.msra.mxu0 0
  %900 = vmatpush.bf16.xpose.msra.mxu0 0
  %901 = vmatpush.bf16.xpose.msra.mxu0 0
  %902 = vmatpush.bf16.xpose.msra.mxu0 0
  %903 = vmatpush.bf16.xpose.msra.mxu0 0
  %904 = vmatpush.bf16.xpose.msra.mxu0 %v895
  %905 = vmatmul.bf16.gmra.mxu0 %v892
  %v906 = vpop.f32.mrf.mxu0
  %v907 = vadd.f32 %v710, %v906
  %v908 = vpop.f32.mrf.mxu0
  %v909 = vadd.f32 %v711, %v908
  %910 = vdwg.mxu0
  %v913 = vunpack.c.l.b16 %v594
  %v914 = vunpack.c.l.b16 %v595
  %v915 = vpack.c.b16 %v914, %v913
  %v918 = vunpack.c.l.b16 %v610
  %v919 = vunpack.c.l.b16 %v611
  %v920 = vpack.c.b16 %v919, %v918
  %921 = vrot.lane.b32.xlu0 %v920, 96
  %v922 = vpop.permute.xlu0 %921
  %v924 = vsel %vm730, %v915, 0
  %v927 = vsel %vm730, %v922, 0
  %929 = vmatpush.bf16.xpose.msra.mxu0 0
  %930 = vmatpush.bf16.xpose.msra.mxu0 0
  %931 = vmatpush.bf16.xpose.msra.mxu0 0
  %932 = vmatpush.bf16.xpose.msra.mxu0 0
  %933 = vmatpush.bf16.xpose.msra.mxu0 0
  %934 = vmatpush.bf16.xpose.msra.mxu0 0
  %935 = vmatpush.bf16.xpose.msra.mxu0 0
  %936 = vmatpush.bf16.xpose.msra.mxu0 %v927
  %937 = vmatmul.bf16.gmra.mxu0 %v924
  %v938 = vpop.f32.mrf.mxu0
  %v939 = vadd.f32 %v710, %v938
  %v940 = vpop.f32.mrf.mxu0
  %v941 = vadd.f32 %v711, %v940
  %942 = vdwg.mxu0
  %v945 = vunpack.c.l.b16 %v596
  %v946 = vunpack.c.l.b16 %v597
  %v947 = vpack.c.b16 %v946, %v945
  %v950 = vunpack.c.l.b16 %v612
  %v951 = vunpack.c.l.b16 %v613
  %v952 = vpack.c.b16 %v951, %v950
  %953 = vrot.lane.b32.xlu0 %v952, 96
  %v954 = vpop.permute.xlu0 %953
  %v956 = vsel %vm730, %v947, 0
  %v959 = vsel %vm730, %v954, 0
  %961 = vmatpush.bf16.xpose.msra.mxu0 0
  %962 = vmatpush.bf16.xpose.msra.mxu0 0
  %963 = vmatpush.bf16.xpose.msra.mxu0 0
  %964 = vmatpush.bf16.xpose.msra.mxu0 0
  %965 = vmatpush.bf16.xpose.msra.mxu0 0
  %966 = vmatpush.bf16.xpose.msra.mxu0 0
  %967 = vmatpush.bf16.xpose.msra.mxu0 0
  %968 = vmatpush.bf16.xpose.msra.mxu0 %v959
  %969 = vmatmul.bf16.gmra.mxu0 %v956
  %v970 = vpop.f32.mrf.mxu0
  %v971 = vadd.f32 %v710, %v970
  %v972 = vpop.f32.mrf.mxu0
  %v973 = vadd.f32 %v711, %v972
  %974 = vdwg.mxu0
  %vm975 = vcmask 130048
  %v976 = vsel %vm975, %v747, -inf
  %977 = vmax.xlane.f32.xlu0 %v976
  %v978 = vpop.xlane.xlu0 %977
  %v979 = vsel %vm975, %v749, -inf
  %980 = vmax.xlane.f32.xlu0 %v979
  %v981 = vpop.xlane.xlu0 %980
  %v982 = vsel %vm975, %v779, -inf
  %983 = vmax.xlane.f32.xlu0 %v982
  %v984 = vpop.xlane.xlu0 %983
  %v985 = vsel %vm975, %v781, -inf
  %986 = vmax.xlane.f32.xlu0 %v985
  %v987 = vpop.xlane.xlu0 %986
  %v988 = vsel %vm975, %v811, -inf
  %989 = vmax.xlane.f32.xlu0 %v988
  %v990 = vpop.xlane.xlu0 %989
  %v991 = vsel %vm975, %v813, -inf
  %992 = vmax.xlane.f32.xlu0 %v991
  %v993 = vpop.xlane.xlu0 %992
  %v994 = vsel %vm975, %v843, -inf
  %995 = vmax.xlane.f32.xlu0 %v994
  %v996 = vpop.xlane.xlu0 %995
  %v997 = vsel %vm975, %v845, -inf
  %998 = vmax.xlane.f32.xlu0 %v997
  %v999 = vpop.xlane.xlu0 %998
  %v1000 = vsel %vm975, %v875, -inf
  %1001 = vmax.xlane.f32.xlu0 %v1000
  %v1002 = vpop.xlane.xlu0 %1001
  %v1003 = vsel %vm975, %v877, -inf
  %1004 = vmax.xlane.f32.xlu0 %v1003
  %v1005 = vpop.xlane.xlu0 %1004
  %v1006 = vsel %vm975, %v907, -inf
  %1007 = vmax.xlane.f32.xlu0 %v1006
  %v1008 = vpop.xlane.xlu0 %1007
  %v1009 = vsel %vm975, %v909, -inf
  %1010 = vmax.xlane.f32.xlu0 %v1009
  %v1011 = vpop.xlane.xlu0 %1010
  %v1012 = vsel %vm975, %v939, -inf
  %1013 = vmax.xlane.f32.xlu0 %v1012
  %v1014 = vpop.xlane.xlu0 %1013
  %v1015 = vsel %vm975, %v941, -inf
  %1016 = vmax.xlane.f32.xlu0 %v1015
  %v1017 = vpop.xlane.xlu0 %1016
  %v1018 = vsel %vm975, %v971, -inf
  %1019 = vmax.xlane.f32.xlu0 %v1018
  %v1020 = vpop.xlane.xlu0 %1019
  %v1021 = vsel %vm975, %v973, -inf
  %1022 = vmax.xlane.f32.xlu0 %v1021
  %v1023 = vpop.xlane.xlu0 %1022
  %v1024 = vsub.f32 %v747, %v978
  %v1025 = vsub.f32 %v749, %v981
  %v1026 = vsub.f32 %v779, %v984
  %v1027 = vsub.f32 %v781, %v987
  %v1028 = vsub.f32 %v811, %v990
  %v1029 = vsub.f32 %v813, %v993
  %v1030 = vsub.f32 %v843, %v996
  %v1031 = vsub.f32 %v845, %v999
  %v1032 = vsub.f32 %v875, %v1002
  %v1033 = vsub.f32 %v877, %v1005
  %v1034 = vsub.f32 %v907, %v1008
  %v1035 = vsub.f32 %v909, %v1011
  %v1036 = vsub.f32 %v939, %v1014
  %v1037 = vsub.f32 %v941, %v1017
  %v1038 = vsub.f32 %v971, %v1020
  %v1039 = vsub.f32 %v973, %v1023
  %v1040 = vmul.f32 %v1024, 1.442695
  %v1041 = vpow.pop %v1040
  %v1042 = vmul.f32 %v1025, 1.442695
  %v1043 = vpow.pop %v1042
  %v1044 = vmul.f32 %v1026, 1.442695
  %v1045 = vpow.pop %v1044
  %v1046 = vmul.f32 %v1027, 1.442695
  %v1047 = vpow.pop %v1046
  %v1048 = vmul.f32 %v1028, 1.442695
  %v1049 = vpow.pop %v1048
  %v1050 = vmul.f32 %v1029, 1.442695
  %v1051 = vpow.pop %v1050
  %v1052 = vmul.f32 %v1030, 1.442695
  %v1053 = vpow.pop %v1052
  %v1054 = vmul.f32 %v1031, 1.442695
  %v1055 = vpow.pop %v1054
  %v1056 = vmul.f32 %v1032, 1.442695
  %v1057 = vpow.pop %v1056
  %v1058 = vmul.f32 %v1033, 1.442695
  %v1059 = vpow.pop %v1058
  %v1060 = vmul.f32 %v1034, 1.442695
  %v1061 = vpow.pop %v1060
  %v1062 = vmul.f32 %v1035, 1.442695
  %v1063 = vpow.pop %v1062
  %v1064 = vmul.f32 %v1036, 1.442695
  %v1065 = vpow.pop %v1064
  %v1066 = vmul.f32 %v1037, 1.442695
  %v1067 = vpow.pop %v1066
  %v1068 = vmul.f32 %v1038, 1.442695
  %v1069 = vpow.pop %v1068
  %v1070 = vmul.f32 %v1039, 1.442695
  %v1071 = vpow.pop %v1070
  %v1072 = vsel %vm975, %v1041, 0.0
  %1073 = vadd.xlane.f32.xlu0 %v1072
  %v1074 = vpop.xlane.xlu0 %1073
  %v1075 = vsel %vm975, %v1043, 0.0
  %1076 = vadd.xlane.f32.xlu0 %v1075
  %v1077 = vpop.xlane.xlu0 %1076
  %v1078 = vsel %vm975, %v1045, 0.0
  %1079 = vadd.xlane.f32.xlu0 %v1078
  %v1080 = vpop.xlane.xlu0 %1079
  %v1081 = vsel %vm975, %v1047, 0.0
  %1082 = vadd.xlane.f32.xlu0 %v1081
  %v1083 = vpop.xlane.xlu0 %1082
  %v1084 = vsel %vm975, %v1049, 0.0
  %1085 = vadd.xlane.f32.xlu0 %v1084
  %v1086 = vpop.xlane.xlu0 %1085
  %v1087 = vsel %vm975, %v1051, 0.0
  %1088 = vadd.xlane.f32.xlu0 %v1087
  %v1089 = vpop.xlane.xlu0 %1088
  %v1090 = vsel %vm975, %v1053, 0.0
  %1091 = vadd.xlane.f32.xlu0 %v1090
  %v1092 = vpop.xlane.xlu0 %1091
  %v1093 = vsel %vm975, %v1055, 0.0
  %1094 = vadd.xlane.f32.xlu0 %v1093
  %v1095 = vpop.xlane.xlu0 %1094
  %v1096 = vsel %vm975, %v1057, 0.0
  %1097 = vadd.xlane.f32.xlu0 %v1096
  %v1098 = vpop.xlane.xlu0 %1097
  %v1099 = vsel %vm975, %v1059, 0.0
  %1100 = vadd.xlane.f32.xlu0 %v1099
  %v1101 = vpop.xlane.xlu0 %1100
  %v1102 = vsel %vm975, %v1061, 0.0
  %1103 = vadd.xlane.f32.xlu0 %v1102
  %v1104 = vpop.xlane.xlu0 %1103
  %v1105 = vsel %vm975, %v1063, 0.0
  %1106 = vadd.xlane.f32.xlu0 %v1105
  %v1107 = vpop.xlane.xlu0 %1106
  %v1108 = vsel %vm975, %v1065, 0.0
  %1109 = vadd.xlane.f32.xlu0 %v1108
  %v1110 = vpop.xlane.xlu0 %1109
  %v1111 = vsel %vm975, %v1067, 0.0
  %1112 = vadd.xlane.f32.xlu0 %v1111
  %v1113 = vpop.xlane.xlu0 %1112
  %v1114 = vsel %vm975, %v1069, 0.0
  %1115 = vadd.xlane.f32.xlu0 %v1114
  %v1116 = vpop.xlane.xlu0 %1115
  %v1117 = vsel %vm975, %v1071, 0.0
  %1118 = vadd.xlane.f32.xlu0 %v1117
  %v1119 = vpop.xlane.xlu0 %1118
  %v1120 = vrcp.pop %v1074
  %v1121 = vrcp.pop %v1077
  %v1122 = vrcp.pop %v1080
  %v1123 = vrcp.pop %v1083
  %v1124 = vrcp.pop %v1086
  %v1125 = vrcp.pop %v1089
  %v1126 = vrcp.pop %v1092
  %v1127 = vrcp.pop %v1095
  %v1128 = vrcp.pop %v1098
  %v1129 = vrcp.pop %v1101
  %v1130 = vrcp.pop %v1104
  %v1131 = vrcp.pop %v1107
  %v1132 = vrcp.pop %v1110
  %v1133 = vrcp.pop %v1113
  %v1134 = vrcp.pop %v1116
  %v1135 = vrcp.pop %v1119
  %v1136 = vmul.f32 %v1041, %v1120
  %v1137 = vmul.f32 %v1043, %v1121
  %v1138 = vmul.f32 %v1045, %v1122
  %v1139 = vmul.f32 %v1047, %v1123
  %v1140 = vmul.f32 %v1049, %v1124
  %v1141 = vmul.f32 %v1051, %v1125
  %v1142 = vmul.f32 %v1053, %v1126
  %v1143 = vmul.f32 %v1055, %v1127
  %v1144 = vmul.f32 %v1057, %v1128
  %v1145 = vmul.f32 %v1059, %v1129
  %v1146 = vmul.f32 %v1061, %v1130
  %v1147 = vmul.f32 %v1063, %v1131
  %v1148 = vmul.f32 %v1065, %v1132
  %v1149 = vmul.f32 %v1067, %v1133
  %v1150 = vmul.f32 %v1069, %v1134
  %v1151 = vmul.f32 %v1071, %v1135
  %v1152 = vpack.c.bf16 %v1136, %v1136
  %v1153 = vpack.c.bf16 %v1137, %v1137
  %v1154 = vpack.c.bf16 %v1138, %v1138
  %v1155 = vpack.c.bf16 %v1139, %v1139
  %v1156 = vpack.c.bf16 %v1140, %v1140
  %v1157 = vpack.c.bf16 %v1141, %v1141
  %v1158 = vpack.c.bf16 %v1142, %v1142
  %v1159 = vpack.c.bf16 %v1143, %v1143
  %v1160 = vpack.c.bf16 %v1144, %v1144
  %v1161 = vpack.c.bf16 %v1145, %v1145
  %v1162 = vpack.c.bf16 %v1146, %v1146
  %v1163 = vpack.c.bf16 %v1147, %v1147
  %v1164 = vpack.c.bf16 %v1148, %v1148
  %v1165 = vpack.c.bf16 %v1149, %v1149
  %v1166 = vpack.c.bf16 %v1150, %v1150
  %v1167 = vpack.c.bf16 %v1151, %v1151
  %v1170 = vunpack.c.l.b16 %v1152
  %v1171 = vunpack.c.l.b16 %v1153
  %v1172 = vpack.c.b16 %v1171, %v1170
  %v1175 = vunpack.c.l.b16 %v694
  %v1176 = vunpack.c.l.b16 %v695
  %v1177 = vpack.c.b16 %v1176, %v1175
  %1178 = vrot.lane.b32.xlu0 %v1177, 64
  %v1179 = vpop.permute.xlu0 %1178
  %v1182 = vsel %vm975, %v1172, 0
  %1184 = vmatpush.bf16.msra.mxu0 0
  %1185 = vmatpush.bf16.msra.mxu0 0
  %1186 = vmatpush.bf16.msra.mxu0 0
  %1187 = vmatpush.bf16.msra.mxu0 0
  %1188 = vmatpush.bf16.msra.mxu0 0
  %1189 = vmatpush.bf16.msra.mxu0 0
  %1190 = vmatpush.bf16.msra.mxu0 0
  %1191 = vmatpush.bf16.msra.mxu0 %v1179
  %1192 = vmatmul.bf16.gmra.mxu0 %v1182
  %v1193 = vpop.f32.mrf.mxu0
  %v1194 = vadd.f32 0.0, %v1193
  %v1195 = vpop.f32.mrf.mxu0
  %v1196 = vadd.f32 0.0, %v1195
  %1197 = vdwg.mxu0
  %v1200 = vunpack.c.l.b16 %v1154
  %v1201 = vunpack.c.l.b16 %v1155
  %v1202 = vpack.c.b16 %v1201, %v1200
  %v1205 = vunpack.c.l.b16 %v696
  %v1206 = vunpack.c.l.b16 %v697
  %v1207 = vpack.c.b16 %v1206, %v1205
  %1208 = vrot.lane.b32.xlu0 %v1207, 64
  %v1209 = vpop.permute.xlu0 %1208
  %v1212 = vsel %vm975, %v1202, 0
  %1214 = vmatpush.bf16.msra.mxu0 0
  %1215 = vmatpush.bf16.msra.mxu0 0
  %1216 = vmatpush.bf16.msra.mxu0 0
  %1217 = vmatpush.bf16.msra.mxu0 0
  %1218 = vmatpush.bf16.msra.mxu0 0
  %1219 = vmatpush.bf16.msra.mxu0 0
  %1220 = vmatpush.bf16.msra.mxu0 0
  %1221 = vmatpush.bf16.msra.mxu0 %v1209
  %1222 = vmatmul.bf16.gmra.mxu0 %v1212
  %v1223 = vpop.f32.mrf.mxu0
  %v1224 = vadd.f32 0.0, %v1223
  %v1225 = vpop.f32.mrf.mxu0
  %v1226 = vadd.f32 0.0, %v1225
  %1227 = vdwg.mxu0
  %v1230 = vunpack.c.l.b16 %v1156
  %v1231 = vunpack.c.l.b16 %v1157
  %v1232 = vpack.c.b16 %v1231, %v1230
  %v1235 = vunpack.c.l.b16 %v698
  %v1236 = vunpack.c.l.b16 %v699
  %v1237 = vpack.c.b16 %v1236, %v1235
  %1238 = vrot.lane.b32.xlu0 %v1237, 64
  %v1239 = vpop.permute.xlu0 %1238
  %v1242 = vsel %vm975, %v1232, 0
  %1244 = vmatpush.bf16.msra.mxu0 0
  %1245 = vmatpush.bf16.msra.mxu0 0
  %1246 = vmatpush.bf16.msra.mxu0 0
  %1247 = vmatpush.bf16.msra.mxu0 0
  %1248 = vmatpush.bf16.msra.mxu0 0
  %1249 = vmatpush.bf16.msra.mxu0 0
  %1250 = vmatpush.bf16.msra.mxu0 0
  %1251 = vmatpush.bf16.msra.mxu0 %v1239
  %1252 = vmatmul.bf16.gmra.mxu0 %v1242
  %v1253 = vpop.f32.mrf.mxu0
  %v1254 = vadd.f32 0.0, %v1253
  %v1255 = vpop.f32.mrf.mxu0
  %v1256 = vadd.f32 0.0, %v1255
  %1257 = vdwg.mxu0
  %v1260 = vunpack.c.l.b16 %v1158
  %v1261 = vunpack.c.l.b16 %v1159
  %v1262 = vpack.c.b16 %v1261, %v1260
  %v1265 = vunpack.c.l.b16 %v700
  %v1266 = vunpack.c.l.b16 %v701
  %v1267 = vpack.c.b16 %v1266, %v1265
  %1268 = vrot.lane.b32.xlu0 %v1267, 64
  %v1269 = vpop.permute.xlu0 %1268
  %v1272 = vsel %vm975, %v1262, 0
  %1274 = vmatpush.bf16.msra.mxu0 0
  %1275 = vmatpush.bf16.msra.mxu0 0
  %1276 = vmatpush.bf16.msra.mxu0 0
  %1277 = vmatpush.bf16.msra.mxu0 0
  %1278 = vmatpush.bf16.msra.mxu0 0
  %1279 = vmatpush.bf16.msra.mxu0 0
  %1280 = vmatpush.bf16.msra.mxu0 0
  %1281 = vmatpush.bf16.msra.mxu0 %v1269
  %1282 = vmatmul.bf16.gmra.mxu0 %v1272
  %v1283 = vpop.f32.mrf.mxu0
  %v1284 = vadd.f32 0.0, %v1283
  %v1285 = vpop.f32.mrf.mxu0
  %v1286 = vadd.f32 0.0, %v1285
  %1287 = vdwg.mxu0
  %v1290 = vunpack.c.l.b16 %v1160
  %v1291 = vunpack.c.l.b16 %v1161
  %v1292 = vpack.c.b16 %v1291, %v1290
  %v1295 = vunpack.c.l.b16 %v702
  %v1296 = vunpack.c.l.b16 %v703
  %v1297 = vpack.c.b16 %v1296, %v1295
  %1298 = vrot.lane.b32.xlu0 %v1297, 64
  %v1299 = vpop.permute.xlu0 %1298
  %v1302 = vsel %vm975, %v1292, 0
  %1304 = vmatpush.bf16.msra.mxu0 0
  %1305 = vmatpush.bf16.msra.mxu0 0
  %1306 = vmatpush.bf16.msra.mxu0 0
  %1307 = vmatpush.bf16.msra.mxu0 0
  %1308 = vmatpush.bf16.msra.mxu0 0
  %1309 = vmatpush.bf16.msra.mxu0 0
  %1310 = vmatpush.bf16.msra.mxu0 0
  %1311 = vmatpush.bf16.msra.mxu0 %v1299
  %1312 = vmatmul.bf16.gmra.mxu0 %v1302
  %v1313 = vpop.f32.mrf.mxu0
  %v1314 = vadd.f32 0.0, %v1313
  %v1315 = vpop.f32.mrf.mxu0
  %v1316 = vadd.f32 0.0, %v1315
  %1317 = vdwg.mxu0
  %v1320 = vunpack.c.l.b16 %v1162
  %v1321 = vunpack.c.l.b16 %v1163
  %v1322 = vpack.c.b16 %v1321, %v1320
  %v1325 = vunpack.c.l.b16 %v704
  %v1326 = vunpack.c.l.b16 %v705
  %v1327 = vpack.c.b16 %v1326, %v1325
  %1328 = vrot.lane.b32.xlu0 %v1327, 64
  %v1329 = vpop.permute.xlu0 %1328
  %v1332 = vsel %vm975, %v1322, 0
  %1334 = vmatpush.bf16.msra.mxu0 0
  %1335 = vmatpush.bf16.msra.mxu0 0
  %1336 = vmatpush.bf16.msra.mxu0 0
  %1337 = vmatpush.bf16.msra.mxu0 0
  %1338 = vmatpush.bf16.msra.mxu0 0
  %1339 = vmatpush.bf16.msra.mxu0 0
  %1340 = vmatpush.bf16.msra.mxu0 0
  %1341 = vmatpush.bf16.msra.mxu0 %v1329
  %1342 = vmatmul.bf16.gmra.mxu0 %v1332
  %v1343 = vpop.f32.mrf.mxu0
  %v1344 = vadd.f32 0.0, %v1343
  %v1345 = vpop.f32.mrf.mxu0
  %v1346 = vadd.f32 0.0, %v1345
  %1347 = vdwg.mxu0
  %v1350 = vunpack.c.l.b16 %v1164
  %v1351 = vunpack.c.l.b16 %v1165
  %v1352 = vpack.c.b16 %v1351, %v1350
  %v1355 = vunpack.c.l.b16 %v706
  %v1356 = vunpack.c.l.b16 %v707
  %v1357 = vpack.c.b16 %v1356, %v1355
  %1358 = vrot.lane.b32.xlu0 %v1357, 64
  %v1359 = vpop.permute.xlu0 %1358
  %v1362 = vsel %vm975, %v1352, 0
  %1364 = vmatpush.bf16.msra.mxu0 0
  %1365 = vmatpush.bf16.msra.mxu0 0
  %1366 = vmatpush.bf16.msra.mxu0 0
  %1367 = vmatpush.bf16.msra.mxu0 0
  %1368 = vmatpush.bf16.msra.mxu0 0
  %1369 = vmatpush.bf16.msra.mxu0 0
  %1370 = vmatpush.bf16.msra.mxu0 0
  %1371 = vmatpush.bf16.msra.mxu0 %v1359
  %1372 = vmatmul.bf16.gmra.mxu0 %v1362
  %v1373 = vpop.f32.mrf.mxu0
  %v1374 = vadd.f32 0.0, %v1373
  %v1375 = vpop.f32.mrf.mxu0
  %v1376 = vadd.f32 0.0, %v1375
  %1377 = vdwg.mxu0
  %v1380 = vunpack.c.l.b16 %v1166
  %v1381 = vunpack.c.l.b16 %v1167
  %v1382 = vpack.c.b16 %v1381, %v1380
  %v1385 = vunpack.c.l.b16 %v708
  %v1386 = vunpack.c.l.b16 %v709
  %v1387 = vpack.c.b16 %v1386, %v1385
  %1388 = vrot.lane.b32.xlu0 %v1387, 64
  %v1389 = vpop.permute.xlu0 %1388
  %v1392 = vsel %vm975, %v1382, 0
  %1394 = vmatpush.bf16.msra.mxu0 0
  %1395 = vmatpush.bf16.msra.mxu0 0
  %1396 = vmatpush.bf16.msra.mxu0 0
  %1397 = vmatpush.bf16.msra.mxu0 0
  %1398 = vmatpush.bf16.msra.mxu0 0
  %1399 = vmatpush.bf16.msra.mxu0 0
  %1400 = vmatpush.bf16.msra.mxu0 0
  %1401 = vmatpush.bf16.msra.mxu0 %v1389
  %1402 = vmatmul.bf16.gmra.mxu0 %v1392
  %v1403 = vpop.f32.mrf.mxu0
  %v1404 = vadd.f32 0.0, %v1403
  %v1405 = vpop.f32.mrf.mxu0
  %v1406 = vadd.f32 0.0, %v1405
  %1407 = vdwg.mxu0
  %1408 = vrot.lane.b32.xlu0 %v722, 120
  %v1409 = vpop.permute.xlu0 %1408
  %1410 = vrot.lane.b32.xlu0 %v727, 88
  %v1411 = vpop.permute.xlu0 %1410
  %v1413 = vsel %vm730, %v1409, 0
  %v1416 = vsel %vm730, %v1411, 0
  %1418 = vmatpush.bf16.xpose.msra.mxu0 0
  %1419 = vmatpush.bf16.xpose.msra.mxu0 0
  %1420 = vmatpush.bf16.xpose.msra.mxu0 0
  %1421 = vmatpush.bf16.xpose.msra.mxu0 0
  %1422 = vmatpush.bf16.xpose.msra.mxu0 0
  %1423 = vmatpush.bf16.xpose.msra.mxu0 0
  %1424 = vmatpush.bf16.xpose.msra.mxu0 0
  %1425 = vmatpush.bf16.xpose.msra.mxu0 %v1416
  %1426 = vmatmul.bf16.gmra.mxu0 %v1413
  %v1427 = vpop.f32.mrf.mxu0
  %v1428 = vadd.f32 %v712, %v1427
  %v1429 = vpop.f32.mrf.mxu0
  %v1430 = vadd.f32 %v713, %v1429
  %1431 = vdwg.mxu0
  %1432 = vrot.lane.b32.xlu0 %v755, 120
  %v1433 = vpop.permute.xlu0 %1432
  %1434 = vrot.lane.b32.xlu0 %v760, 88
  %v1435 = vpop.permute.xlu0 %1434
  %v1437 = vsel %vm730, %v1433, 0
  %v1440 = vsel %vm730, %v1435, 0
  %1442 = vmatpush.bf16.xpose.msra.mxu0 0
  %1443 = vmatpush.bf16.xpose.msra.mxu0 0
  %1444 = vmatpush.bf16.xpose.msra.mxu0 0
  %1445 = vmatpush.bf16.xpose.msra.mxu0 0
  %1446 = vmatpush.bf16.xpose.msra.mxu0 0
  %1447 = vmatpush.bf16.xpose.msra.mxu0 0
  %1448 = vmatpush.bf16.xpose.msra.mxu0 0
  %1449 = vmatpush.bf16.xpose.msra.mxu0 %v1440
  %1450 = vmatmul.bf16.gmra.mxu0 %v1437
  %v1451 = vpop.f32.mrf.mxu0
  %v1452 = vadd.f32 %v712, %v1451
  %v1453 = vpop.f32.mrf.mxu0
  %v1454 = vadd.f32 %v713, %v1453
  %1455 = vdwg.mxu0
  %1456 = vrot.lane.b32.xlu0 %v787, 120
  %v1457 = vpop.permute.xlu0 %1456
  %1458 = vrot.lane.b32.xlu0 %v792, 88
  %v1459 = vpop.permute.xlu0 %1458
  %v1461 = vsel %vm730, %v1457, 0
  %v1464 = vsel %vm730, %v1459, 0
  %1466 = vmatpush.bf16.xpose.msra.mxu0 0
  %1467 = vmatpush.bf16.xpose.msra.mxu0 0
  %1468 = vmatpush.bf16.xpose.msra.mxu0 0
  %1469 = vmatpush.bf16.xpose.msra.mxu0 0
  %1470 = vmatpush.bf16.xpose.msra.mxu0 0
  %1471 = vmatpush.bf16.xpose.msra.mxu0 0
  %1472 = vmatpush.bf16.xpose.msra.mxu0 0
  %1473 = vmatpush.bf16.xpose.msra.mxu0 %v1464
  %1474 = vmatmul.bf16.gmra.mxu0 %v1461
  %v1475 = vpop.f32.mrf.mxu0
  %v1476 = vadd.f32 %v712, %v1475
  %v1477 = vpop.f32.mrf.mxu0
  %v1478 = vadd.f32 %v713, %v1477
  %1479 = vdwg.mxu0
  %1480 = vrot.lane.b32.xlu0 %v819, 120
  %v1481 = vpop.permute.xlu0 %1480
  %1482 = vrot.lane.b32.xlu0 %v824, 88
  %v1483 = vpop.permute.xlu0 %1482
  %v1485 = vsel %vm730, %v1481, 0
  %v1488 = vsel %vm730, %v1483, 0
  %1490 = vmatpush.bf16.xpose.msra.mxu0 0
  %1491 = vmatpush.bf16.xpose.msra.mxu0 0
  %1492 = vmatpush.bf16.xpose.msra.mxu0 0
  %1493 = vmatpush.bf16.xpose.msra.mxu0 0
  %1494 = vmatpush.bf16.xpose.msra.mxu0 0
  %1495 = vmatpush.bf16.xpose.msra.mxu0 0
  %1496 = vmatpush.bf16.xpose.msra.mxu0 0
  %1497 = vmatpush.bf16.xpose.msra.mxu0 %v1488
  %1498 = vmatmul.bf16.gmra.mxu0 %v1485
  %v1499 = vpop.f32.mrf.mxu0
  %v1500 = vadd.f32 %v712, %v1499
  %v1501 = vpop.f32.mrf.mxu0
  %v1502 = vadd.f32 %v713, %v1501
  %1503 = vdwg.mxu0
  %1504 = vrot.lane.b32.xlu0 %v851, 120
  %v1505 = vpop.permute.xlu0 %1504
  %1506 = vrot.lane.b32.xlu0 %v856, 88
  %v1507 = vpop.permute.xlu0 %1506
  %v1509 = vsel %vm730, %v1505, 0
  %v1512 = vsel %vm730, %v1507, 0
  %1514 = vmatpush.bf16.xpose.msra.mxu0 0
  %1515 = vmatpush.bf16.xpose.msra.mxu0 0
  %1516 = vmatpush.bf16.xpose.msra.mxu0 0
  %1517 = vmatpush.bf16.xpose.msra.mxu0 0
  %1518 = vmatpush.bf16.xpose.msra.mxu0 0
  %1519 = vmatpush.bf16.xpose.msra.mxu0 0
  %1520 = vmatpush.bf16.xpose.msra.mxu0 0
  %1521 = vmatpush.bf16.xpose.msra.mxu0 %v1512
  %1522 = vmatmul.bf16.gmra.mxu0 %v1509
  %v1523 = vpop.f32.mrf.mxu0
  %v1524 = vadd.f32 %v712, %v1523
  %v1525 = vpop.f32.mrf.mxu0
  %v1526 = vadd.f32 %v713, %v1525
  %1527 = vdwg.mxu0
  %1528 = vrot.lane.b32.xlu0 %v883, 120
  %v1529 = vpop.permute.xlu0 %1528
  %1530 = vrot.lane.b32.xlu0 %v888, 88
  %v1531 = vpop.permute.xlu0 %1530
  %v1533 = vsel %vm730, %v1529, 0
  %v1536 = vsel %vm730, %v1531, 0
  %1538 = vmatpush.bf16.xpose.msra.mxu0 0
  %1539 = vmatpush.bf16.xpose.msra.mxu0 0
  %1540 = vmatpush.bf16.xpose.msra.mxu0 0
  %1541 = vmatpush.bf16.xpose.msra.mxu0 0
  %1542 = vmatpush.bf16.xpose.msra.mxu0 0
  %1543 = vmatpush.bf16.xpose.msra.mxu0 0
  %1544 = vmatpush.bf16.xpose.msra.mxu0 0
  %1545 = vmatpush.bf16.xpose.msra.mxu0 %v1536
  %1546 = vmatmul.bf16.gmra.mxu0 %v1533
  %v1547 = vpop.f32.mrf.mxu0
  %v1548 = vadd.f32 %v712, %v1547
  %v1549 = vpop.f32.mrf.mxu0
  %v1550 = vadd.f32 %v713, %v1549
  %1551 = vdwg.mxu0
  %1552 = vrot.lane.b32.xlu0 %v915, 120
  %v1553 = vpop.permute.xlu0 %1552
  %1554 = vrot.lane.b32.xlu0 %v920, 88
  %v1555 = vpop.permute.xlu0 %1554
  %v1557 = vsel %vm730, %v1553, 0
  %v1560 = vsel %vm730, %v1555, 0
  %1562 = vmatpush.bf16.xpose.msra.mxu0 0
  %1563 = vmatpush.bf16.xpose.msra.mxu0 0
  %1564 = vmatpush.bf16.xpose.msra.mxu0 0
  %1565 = vmatpush.bf16.xpose.msra.mxu0 0
  %1566 = vmatpush.bf16.xpose.msra.mxu0 0
  %1567 = vmatpush.bf16.xpose.msra.mxu0 0
  %1568 = vmatpush.bf16.xpose.msra.mxu0 0
  %1569 = vmatpush.bf16.xpose.msra.mxu0 %v1560
  %1570 = vmatmul.bf16.gmra.mxu0 %v1557
  %v1571 = vpop.f32.mrf.mxu0
  %v1572 = vadd.f32 %v712, %v1571
  %v1573 = vpop.f32.mrf.mxu0
  %v1574 = vadd.f32 %v713, %v1573
  %1575 = vdwg.mxu0
  %1576 = vrot.lane.b32.xlu0 %v947, 120
  %v1577 = vpop.permute.xlu0 %1576
  %1578 = vrot.lane.b32.xlu0 %v952, 88
  %v1579 = vpop.permute.xlu0 %1578
  %v1581 = vsel %vm730, %v1577, 0
  %v1584 = vsel %vm730, %v1579, 0
  %1586 = vmatpush.bf16.xpose.msra.mxu0 0
  %1587 = vmatpush.bf16.xpose.msra.mxu0 0
  %1588 = vmatpush.bf16.xpose.msra.mxu0 0
  %1589 = vmatpush.bf16.xpose.msra.mxu0 0
  %1590 = vmatpush.bf16.xpose.msra.mxu0 0
  %1591 = vmatpush.bf16.xpose.msra.mxu0 0
  %1592 = vmatpush.bf16.xpose.msra.mxu0 0
  %1593 = vmatpush.bf16.xpose.msra.mxu0 %v1584
  %1594 = vmatmul.bf16.gmra.mxu0 %v1581
  %v1595 = vpop.f32.mrf.mxu0
  %v1596 = vadd.f32 %v712, %v1595
  %v1597 = vpop.f32.mrf.mxu0
  %v1598 = vadd.f32 %v713, %v1597
  %1599 = vdwg.mxu0
  %v1600 = vsel %vm975, %v1428, -inf
  %1601 = vmax.xlane.f32.xlu0 %v1600
  %v1602 = vpop.xlane.xlu0 %1601
  %v1603 = vsel %vm975, %v1430, -inf
  %1604 = vmax.xlane.f32.xlu0 %v1603
  %v1605 = vpop.xlane.xlu0 %1604
  %v1606 = vsel %vm975, %v1452, -inf
  %1607 = vmax.xlane.f32.xlu0 %v1606
  %v1608 = vpop.xlane.xlu0 %1607
  %v1609 = vsel %vm975, %v1454, -inf
  %1610 = vmax.xlane.f32.xlu0 %v1609
  %v1611 = vpop.xlane.xlu0 %1610
  %v1612 = vsel %vm975, %v1476, -inf
  %1613 = vmax.xlane.f32.xlu0 %v1612
  %v1614 = vpop.xlane.xlu0 %1613
  %v1615 = vsel %vm975, %v1478, -inf
  %1616 = vmax.xlane.f32.xlu0 %v1615
  %v1617 = vpop.xlane.xlu0 %1616
  %v1618 = vsel %vm975, %v1500, -inf
  %1619 = vmax.xlane.f32.xlu0 %v1618
  %v1620 = vpop.xlane.xlu0 %1619
  %v1621 = vsel %vm975, %v1502, -inf
  %1622 = vmax.xlane.f32.xlu0 %v1621
  %v1623 = vpop.xlane.xlu0 %1622
  %v1624 = vsel %vm975, %v1524, -inf
  %1625 = vmax.xlane.f32.xlu0 %v1624
  %v1626 = vpop.xlane.xlu0 %1625
  %v1627 = vsel %vm975, %v1526, -inf
  %1628 = vmax.xlane.f32.xlu0 %v1627
  %v1629 = vpop.xlane.xlu0 %1628
  %v1630 = vsel %vm975, %v1548, -inf
  %1631 = vmax.xlane.f32.xlu0 %v1630
  %v1632 = vpop.xlane.xlu0 %1631
  %v1633 = vsel %vm975, %v1550, -inf
  %1634 = vmax.xlane.f32.xlu0 %v1633
  %v1635 = vpop.xlane.xlu0 %1634
  %v1636 = vsel %vm975, %v1572, -inf
  %1637 = vmax.xlane.f32.xlu0 %v1636
  %v1638 = vpop.xlane.xlu0 %1637
  %v1639 = vsel %vm975, %v1574, -inf
  %1640 = vmax.xlane.f32.xlu0 %v1639
  %v1641 = vpop.xlane.xlu0 %1640
  %v1642 = vsel %vm975, %v1596, -inf
  %1643 = vmax.xlane.f32.xlu0 %v1642
  %v1644 = vpop.xlane.xlu0 %1643
  %v1645 = vsel %vm975, %v1598, -inf
  %1646 = vmax.xlane.f32.xlu0 %v1645
  %v1647 = vpop.xlane.xlu0 %1646
  %v1648 = vsub.f32 %v1428, %v1602
  %v1649 = vsub.f32 %v1430, %v1605
  %v1650 = vsub.f32 %v1452, %v1608
  %v1651 = vsub.f32 %v1454, %v1611
  %v1652 = vsub.f32 %v1476, %v1614
  %v1653 = vsub.f32 %v1478, %v1617
  %v1654 = vsub.f32 %v1500, %v1620
  %v1655 = vsub.f32 %v1502, %v1623
  %v1656 = vsub.f32 %v1524, %v1626
  %v1657 = vsub.f32 %v1526, %v1629
  %v1658 = vsub.f32 %v1548, %v1632
  %v1659 = vsub.f32 %v1550, %v1635
  %v1660 = vsub.f32 %v1572, %v1638
  %v1661 = vsub.f32 %v1574, %v1641
  %v1662 = vsub.f32 %v1596, %v1644
  %v1663 = vsub.f32 %v1598, %v1647
  %v1664 = vmul.f32 %v1648, 1.442695
  %v1665 = vpow.pop %v1664
  %v1666 = vmul.f32 %v1649, 1.442695
  %v1667 = vpow.pop %v1666
  %v1668 = vmul.f32 %v1650, 1.442695
  %v1669 = vpow.pop %v1668
  %v1670 = vmul.f32 %v1651, 1.442695
  %v1671 = vpow.pop %v1670
  %v1672 = vmul.f32 %v1652, 1.442695
  %v1673 = vpow.pop %v1672
  %v1674 = vmul.f32 %v1653, 1.442695
  %v1675 = vpow.pop %v1674
  %v1676 = vmul.f32 %v1654, 1.442695
  %v1677 = vpow.pop %v1676
  %v1678 = vmul.f32 %v1655, 1.442695
  %v1679 = vpow.pop %v1678
  %v1680 = vmul.f32 %v1656, 1.442695
  %v1681 = vpow.pop %v1680
  %v1682 = vmul.f32 %v1657, 1.442695
  %v1683 = vpow.pop %v1682
  %v1684 = vmul.f32 %v1658, 1.442695
  %v1685 = vpow.pop %v1684
  %v1686 = vmul.f32 %v1659, 1.442695
  %v1687 = vpow.pop %v1686
  %v1688 = vmul.f32 %v1660, 1.442695
  %v1689 = vpow.pop %v1688
  %v1690 = vmul.f32 %v1661, 1.442695
  %v1691 = vpow.pop %v1690
  %v1692 = vmul.f32 %v1662, 1.442695
  %v1693 = vpow.pop %v1692
  %v1694 = vmul.f32 %v1663, 1.442695
  %v1695 = vpow.pop %v1694
  %v1696 = vsel %vm975, %v1665, 0.0
  %1697 = vadd.xlane.f32.xlu0 %v1696
  %v1698 = vpop.xlane.xlu0 %1697
  %v1699 = vsel %vm975, %v1667, 0.0
  %1700 = vadd.xlane.f32.xlu0 %v1699
  %v1701 = vpop.xlane.xlu0 %1700
  %v1702 = vsel %vm975, %v1669, 0.0
  %1703 = vadd.xlane.f32.xlu0 %v1702
  %v1704 = vpop.xlane.xlu0 %1703
  %v1705 = vsel %vm975, %v1671, 0.0
  %1706 = vadd.xlane.f32.xlu0 %v1705
  %v1707 = vpop.xlane.xlu0 %1706
  %v1708 = vsel %vm975, %v1673, 0.0
  %1709 = vadd.xlane.f32.xlu0 %v1708
  %v1710 = vpop.xlane.xlu0 %1709
  %v1711 = vsel %vm975, %v1675, 0.0
  %1712 = vadd.xlane.f32.xlu0 %v1711
  %v1713 = vpop.xlane.xlu0 %1712
  %v1714 = vsel %vm975, %v1677, 0.0
  %1715 = vadd.xlane.f32.xlu0 %v1714
  %v1716 = vpop.xlane.xlu0 %1715
  %v1717 = vsel %vm975, %v1679, 0.0
  %1718 = vadd.xlane.f32.xlu0 %v1717
  %v1719 = vpop.xlane.xlu0 %1718
  %v1720 = vsel %vm975, %v1681, 0.0
  %1721 = vadd.xlane.f32.xlu0 %v1720
  %v1722 = vpop.xlane.xlu0 %1721
  %v1723 = vsel %vm975, %v1683, 0.0
  %1724 = vadd.xlane.f32.xlu0 %v1723
  %v1725 = vpop.xlane.xlu0 %1724
  %v1726 = vsel %vm975, %v1685, 0.0
  %1727 = vadd.xlane.f32.xlu0 %v1726
  %v1728 = vpop.xlane.xlu0 %1727
  %v1729 = vsel %vm975, %v1687, 0.0
  %1730 = vadd.xlane.f32.xlu0 %v1729
  %v1731 = vpop.xlane.xlu0 %1730
  %v1732 = vsel %vm975, %v1689, 0.0
  %1733 = vadd.xlane.f32.xlu0 %v1732
  %v1734 = vpop.xlane.xlu0 %1733
  %v1735 = vsel %vm975, %v1691, 0.0
  %1736 = vadd.xlane.f32.xlu0 %v1735
  %v1737 = vpop.xlane.xlu0 %1736
  %v1738 = vsel %vm975, %v1693, 0.0
  %1739 = vadd.xlane.f32.xlu0 %v1738
  %v1740 = vpop.xlane.xlu0 %1739
  %v1741 = vsel %vm975, %v1695, 0.0
  %1742 = vadd.xlane.f32.xlu0 %v1741
  %v1743 = vpop.xlane.xlu0 %1742
  %v1744 = vrcp.pop %v1698
  %v1745 = vrcp.pop %v1701
  %v1746 = vrcp.pop %v1704
  %v1747 = vrcp.pop %v1707
  %v1748 = vrcp.pop %v1710
  %v1749 = vrcp.pop %v1713
  %v1750 = vrcp.pop %v1716
  %v1751 = vrcp.pop %v1719
  %v1752 = vrcp.pop %v1722
  %v1753 = vrcp.pop %v1725
  %v1754 = vrcp.pop %v1728
  %v1755 = vrcp.pop %v1731
  %v1756 = vrcp.pop %v1734
  %v1757 = vrcp.pop %v1737
  %v1758 = vrcp.pop %v1740
  %v1759 = vrcp.pop %v1743
  %v1760 = vmul.f32 %v1665, %v1744
  %v1761 = vmul.f32 %v1667, %v1745
  %v1762 = vmul.f32 %v1669, %v1746
  %v1763 = vmul.f32 %v1671, %v1747
  %v1764 = vmul.f32 %v1673, %v1748
  %v1765 = vmul.f32 %v1675, %v1749
  %v1766 = vmul.f32 %v1677, %v1750
  %v1767 = vmul.f32 %v1679, %v1751
  %v1768 = vmul.f32 %v1681, %v1752
  %v1769 = vmul.f32 %v1683, %v1753
  %v1770 = vmul.f32 %v1685, %v1754
  %v1771 = vmul.f32 %v1687, %v1755
  %v1772 = vmul.f32 %v1689, %v1756
  %v1773 = vmul.f32 %v1691, %v1757
  %v1774 = vmul.f32 %v1693, %v1758
  %v1775 = vmul.f32 %v1695, %v1759
  %v1776 = vpack.c.bf16 %v1760, %v1760
  %v1777 = vpack.c.bf16 %v1761, %v1761
  %v1778 = vpack.c.bf16 %v1762, %v1762
  %v1779 = vpack.c.bf16 %v1763, %v1763
  %v1780 = vpack.c.bf16 %v1764, %v1764
  %v1781 = vpack.c.bf16 %v1765, %v1765
  %v1782 = vpack.c.bf16 %v1766, %v1766
  %v1783 = vpack.c.bf16 %v1767, %v1767
  %v1784 = vpack.c.bf16 %v1768, %v1768
  %v1785 = vpack.c.bf16 %v1769, %v1769
  %v1786 = vpack.c.bf16 %v1770, %v1770
  %v1787 = vpack.c.bf16 %v1771, %v1771
  %v1788 = vpack.c.bf16 %v1772, %v1772
  %v1789 = vpack.c.bf16 %v1773, %v1773
  %v1790 = vpack.c.bf16 %v1774, %v1774
  %v1791 = vpack.c.bf16 %v1775, %v1775
  %v1794 = vunpack.c.l.b16 %v1776
  %v1795 = vunpack.c.l.b16 %v1777
  %v1796 = vpack.c.b16 %v1795, %v1794
  %1797 = vrot.lane.b32.xlu0 %v1177, 56
  %v1798 = vpop.permute.xlu0 %1797
  %v1801 = vsel %vm975, %v1796, 0
  %1803 = vmatpush.bf16.msra.mxu0 0
  %1804 = vmatpush.bf16.msra.mxu0 0
  %1805 = vmatpush.bf16.msra.mxu0 0
  %1806 = vmatpush.bf16.msra.mxu0 0
  %1807 = vmatpush.bf16.msra.mxu0 0
  %1808 = vmatpush.bf16.msra.mxu0 0
  %1809 = vmatpush.bf16.msra.mxu0 0
  %1810 = vmatpush.bf16.msra.mxu0 %v1798
  %1811 = vmatmul.bf16.gmra.mxu0 %v1801
  %v1812 = vpop.f32.mrf.mxu0
  %v1813 = vadd.f32 0.0, %v1812
  %v1814 = vpop.f32.mrf.mxu0
  %v1815 = vadd.f32 0.0, %v1814
  %1816 = vdwg.mxu0
  %v1819 = vunpack.c.l.b16 %v1778
  %v1820 = vunpack.c.l.b16 %v1779
  %v1821 = vpack.c.b16 %v1820, %v1819
  %1822 = vrot.lane.b32.xlu0 %v1207, 56
  %v1823 = vpop.permute.xlu0 %1822
  %v1826 = vsel %vm975, %v1821, 0
  %1828 = vmatpush.bf16.msra.mxu0 0
  %1829 = vmatpush.bf16.msra.mxu0 0
  %1830 = vmatpush.bf16.msra.mxu0 0
  %1831 = vmatpush.bf16.msra.mxu0 0
  %1832 = vmatpush.bf16.msra.mxu0 0
  %1833 = vmatpush.bf16.msra.mxu0 0
  %1834 = vmatpush.bf16.msra.mxu0 0
  %1835 = vmatpush.bf16.msra.mxu0 %v1823
  %1836 = vmatmul.bf16.gmra.mxu0 %v1826
  %v1837 = vpop.f32.mrf.mxu0
  %v1838 = vadd.f32 0.0, %v1837
  %v1839 = vpop.f32.mrf.mxu0
  %v1840 = vadd.f32 0.0, %v1839
  %1841 = vdwg.mxu0
  %v1844 = vunpack.c.l.b16 %v1780
  %v1845 = vunpack.c.l.b16 %v1781
  %v1846 = vpack.c.b16 %v1845, %v1844
  %1847 = vrot.lane.b32.xlu0 %v1237, 56
  %v1848 = vpop.permute.xlu0 %1847
  %v1851 = vsel %vm975, %v1846, 0
  %1853 = vmatpush.bf16.msra.mxu0 0
  %1854 = vmatpush.bf16.msra.mxu0 0
  %1855 = vmatpush.bf16.msra.mxu0 0
  %1856 = vmatpush.bf16.msra.mxu0 0
  %1857 = vmatpush.bf16.msra.mxu0 0
  %1858 = vmatpush.bf16.msra.mxu0 0
  %1859 = vmatpush.bf16.msra.mxu0 0
  %1860 = vmatpush.bf16.msra.mxu0 %v1848
  %1861 = vmatmul.bf16.gmra.mxu0 %v1851
  %v1862 = vpop.f32.mrf.mxu0
  %v1863 = vadd.f32 0.0, %v1862
  %v1864 = vpop.f32.mrf.mxu0
  %v1865 = vadd.f32 0.0, %v1864
  %1866 = vdwg.mxu0
  %v1869 = vunpack.c.l.b16 %v1782
  %v1870 = vunpack.c.l.b16 %v1783
  %v1871 = vpack.c.b16 %v1870, %v1869
  %1872 = vrot.lane.b32.xlu0 %v1267, 56
  %v1873 = vpop.permute.xlu0 %1872
  %v1876 = vsel %vm975, %v1871, 0
  %1878 = vmatpush.bf16.msra.mxu0 0
  %1879 = vmatpush.bf16.msra.mxu0 0
  %1880 = vmatpush.bf16.msra.mxu0 0
  %1881 = vmatpush.bf16.msra.mxu0 0
  %1882 = vmatpush.bf16.msra.mxu0 0
  %1883 = vmatpush.bf16.msra.mxu0 0
  %1884 = vmatpush.bf16.msra.mxu0 0
  %1885 = vmatpush.bf16.msra.mxu0 %v1873
  %1886 = vmatmul.bf16.gmra.mxu0 %v1876
  %v1887 = vpop.f32.mrf.mxu0
  %v1888 = vadd.f32 0.0, %v1887
  %v1889 = vpop.f32.mrf.mxu0
  %v1890 = vadd.f32 0.0, %v1889
  %1891 = vdwg.mxu0
  %v1894 = vunpack.c.l.b16 %v1784
  %v1895 = vunpack.c.l.b16 %v1785
  %v1896 = vpack.c.b16 %v1895, %v1894
  %1897 = vrot.lane.b32.xlu0 %v1297, 56
  %v1898 = vpop.permute.xlu0 %1897
  %v1901 = vsel %vm975, %v1896, 0
  %1903 = vmatpush.bf16.msra.mxu0 0
  %1904 = vmatpush.bf16.msra.mxu0 0
  %1905 = vmatpush.bf16.msra.mxu0 0
  %1906 = vmatpush.bf16.msra.mxu0 0
  %1907 = vmatpush.bf16.msra.mxu0 0
  %1908 = vmatpush.bf16.msra.mxu0 0
  %1909 = vmatpush.bf16.msra.mxu0 0
  %1910 = vmatpush.bf16.msra.mxu0 %v1898
  %1911 = vmatmul.bf16.gmra.mxu0 %v1901
  %v1912 = vpop.f32.mrf.mxu0
  %v1913 = vadd.f32 0.0, %v1912
  %v1914 = vpop.f32.mrf.mxu0
  %v1915 = vadd.f32 0.0, %v1914
  %1916 = vdwg.mxu0
  %v1919 = vunpack.c.l.b16 %v1786
  %v1920 = vunpack.c.l.b16 %v1787
  %v1921 = vpack.c.b16 %v1920, %v1919
  %1922 = vrot.lane.b32.xlu0 %v1327, 56
  %v1923 = vpop.permute.xlu0 %1922
  %v1926 = vsel %vm975, %v1921, 0
  %1928 = vmatpush.bf16.msra.mxu0 0
  %1929 = vmatpush.bf16.msra.mxu0 0
  %1930 = vmatpush.bf16.msra.mxu0 0
  %1931 = vmatpush.bf16.msra.mxu0 0
  %1932 = vmatpush.bf16.msra.mxu0 0
  %1933 = vmatpush.bf16.msra.mxu0 0
  %1934 = vmatpush.bf16.msra.mxu0 0
  %1935 = vmatpush.bf16.msra.mxu0 %v1923
  %1936 = vmatmul.bf16.gmra.mxu0 %v1926
  %v1937 = vpop.f32.mrf.mxu0
  %v1938 = vadd.f32 0.0, %v1937
  %v1939 = vpop.f32.mrf.mxu0
  %v1940 = vadd.f32 0.0, %v1939
  %1941 = vdwg.mxu0
  %v1944 = vunpack.c.l.b16 %v1788
  %v1945 = vunpack.c.l.b16 %v1789
  %v1946 = vpack.c.b16 %v1945, %v1944
  %1947 = vrot.lane.b32.xlu0 %v1357, 56
  %v1948 = vpop.permute.xlu0 %1947
  %v1951 = vsel %vm975, %v1946, 0
  %1953 = vmatpush.bf16.msra.mxu0 0
  %1954 = vmatpush.bf16.msra.mxu0 0
  %1955 = vmatpush.bf16.msra.mxu0 0
  %1956 = vmatpush.bf16.msra.mxu0 0
  %1957 = vmatpush.bf16.msra.mxu0 0
  %1958 = vmatpush.bf16.msra.mxu0 0
  %1959 = vmatpush.bf16.msra.mxu0 0
  %1960 = vmatpush.bf16.msra.mxu0 %v1948
  %1961 = vmatmul.bf16.gmra.mxu0 %v1951
  %v1962 = vpop.f32.mrf.mxu0
  %v1963 = vadd.f32 0.0, %v1962
  %v1964 = vpop.f32.mrf.mxu0
  %v1965 = vadd.f32 0.0, %v1964
  %1966 = vdwg.mxu0
  %v1969 = vunpack.c.l.b16 %v1790
  %v1970 = vunpack.c.l.b16 %v1791
  %v1971 = vpack.c.b16 %v1970, %v1969
  %1972 = vrot.lane.b32.xlu0 %v1387, 56
  %v1973 = vpop.permute.xlu0 %1972
  %v1976 = vsel %vm975, %v1971, 0
  %1978 = vmatpush.bf16.msra.mxu0 0
  %1979 = vmatpush.bf16.msra.mxu0 0
  %1980 = vmatpush.bf16.msra.mxu0 0
  %1981 = vmatpush.bf16.msra.mxu0 0
  %1982 = vmatpush.bf16.msra.mxu0 0
  %1983 = vmatpush.bf16.msra.mxu0 0
  %1984 = vmatpush.bf16.msra.mxu0 0
  %1985 = vmatpush.bf16.msra.mxu0 %v1973
  %1986 = vmatmul.bf16.gmra.mxu0 %v1976
  %v1987 = vpop.f32.mrf.mxu0
  %v1988 = vadd.f32 0.0, %v1987
  %v1989 = vpop.f32.mrf.mxu0
  %v1990 = vadd.f32 0.0, %v1989
  %1991 = vdwg.mxu0
  %1992 = vrot.lane.b32.xlu0 %v722, 112
  %v1993 = vpop.permute.xlu0 %1992
  %1994 = vrot.lane.b32.xlu0 %v727, 80
  %v1995 = vpop.permute.xlu0 %1994
  %v1997 = vsel %vm730, %v1993, 0
  %v2000 = vsel %vm730, %v1995, 0
  %2002 = vmatpush.bf16.xpose.msra.mxu0 0
  %2003 = vmatpush.bf16.xpose.msra.mxu0 0
  %2004 = vmatpush.bf16.xpose.msra.mxu0 0
  %2005 = vmatpush.bf16.xpose.msra.mxu0 0
  %2006 = vmatpush.bf16.xpose.msra.mxu0 0
  %2007 = vmatpush.bf16.xpose.msra.mxu0 0
  %2008 = vmatpush.bf16.xpose.msra.mxu0 0
  %2009 = vmatpush.bf16.xpose.msra.mxu0 %v2000
  %2010 = vmatmul.bf16.gmra.mxu0 %v1997
  %v2011 = vpop.f32.mrf.mxu0
  %v2012 = vadd.f32 %v714, %v2011
  %v2013 = vpop.f32.mrf.mxu0
  %v2014 = vadd.f32 %v715, %v2013
  %2015 = vdwg.mxu0
  %2016 = vrot.lane.b32.xlu0 %v755, 112
  %v2017 = vpop.permute.xlu0 %2016
  %2018 = vrot.lane.b32.xlu0 %v760, 80
  %v2019 = vpop.permute.xlu0 %2018
  %v2021 = vsel %vm730, %v2017, 0
  %v2024 = vsel %vm730, %v2019, 0
  %2026 = vmatpush.bf16.xpose.msra.mxu0 0
  %2027 = vmatpush.bf16.xpose.msra.mxu0 0
  %2028 = vmatpush.bf16.xpose.msra.mxu0 0
  %2029 = vmatpush.bf16.xpose.msra.mxu0 0
  %2030 = vmatpush.bf16.xpose.msra.mxu0 0
  %2031 = vmatpush.bf16.xpose.msra.mxu0 0
  %2032 = vmatpush.bf16.xpose.msra.mxu0 0
  %2033 = vmatpush.bf16.xpose.msra.mxu0 %v2024
  %2034 = vmatmul.bf16.gmra.mxu0 %v2021
  %v2035 = vpop.f32.mrf.mxu0
  %v2036 = vadd.f32 %v714, %v2035
  %v2037 = vpop.f32.mrf.mxu0
  %v2038 = vadd.f32 %v715, %v2037
  %2039 = vdwg.mxu0
  %2040 = vrot.lane.b32.xlu0 %v787, 112
  %v2041 = vpop.permute.xlu0 %2040
  %2042 = vrot.lane.b32.xlu0 %v792, 80
  %v2043 = vpop.permute.xlu0 %2042
  %v2045 = vsel %vm730, %v2041, 0
  %v2048 = vsel %vm730, %v2043, 0
  %2050 = vmatpush.bf16.xpose.msra.mxu0 0
  %2051 = vmatpush.bf16.xpose.msra.mxu0 0
  %2052 = vmatpush.bf16.xpose.msra.mxu0 0
  %2053 = vmatpush.bf16.xpose.msra.mxu0 0
  %2054 = vmatpush.bf16.xpose.msra.mxu0 0
  %2055 = vmatpush.bf16.xpose.msra.mxu0 0
  %2056 = vmatpush.bf16.xpose.msra.mxu0 0
  %2057 = vmatpush.bf16.xpose.msra.mxu0 %v2048
  %2058 = vmatmul.bf16.gmra.mxu0 %v2045
  %v2059 = vpop.f32.mrf.mxu0
  %v2060 = vadd.f32 %v714, %v2059
  %v2061 = vpop.f32.mrf.mxu0
  %v2062 = vadd.f32 %v715, %v2061
  %2063 = vdwg.mxu0
  %2064 = vrot.lane.b32.xlu0 %v819, 112
  %v2065 = vpop.permute.xlu0 %2064
  %2066 = vrot.lane.b32.xlu0 %v824, 80
  %v2067 = vpop.permute.xlu0 %2066
  %v2069 = vsel %vm730, %v2065, 0
  %v2072 = vsel %vm730, %v2067, 0
  %2074 = vmatpush.bf16.xpose.msra.mxu0 0
  %2075 = vmatpush.bf16.xpose.msra.mxu0 0
  %2076 = vmatpush.bf16.xpose.msra.mxu0 0
  %2077 = vmatpush.bf16.xpose.msra.mxu0 0
  %2078 = vmatpush.bf16.xpose.msra.mxu0 0
  %2079 = vmatpush.bf16.xpose.msra.mxu0 0
  %2080 = vmatpush.bf16.xpose.msra.mxu0 0
  %2081 = vmatpush.bf16.xpose.msra.mxu0 %v2072
  %2082 = vmatmul.bf16.gmra.mxu0 %v2069
  %v2083 = vpop.f32.mrf.mxu0
  %v2084 = vadd.f32 %v714, %v2083
  %v2085 = vpop.f32.mrf.mxu0
  %v2086 = vadd.f32 %v715, %v2085
  %2087 = vdwg.mxu0
  %2088 = vrot.lane.b32.xlu0 %v851, 112
  %v2089 = vpop.permute.xlu0 %2088
  %2090 = vrot.lane.b32.xlu0 %v856, 80
  %v2091 = vpop.permute.xlu0 %2090
  %v2093 = vsel %vm730, %v2089, 0
  %v2096 = vsel %vm730, %v2091, 0
  %2098 = vmatpush.bf16.xpose.msra.mxu0 0
  %2099 = vmatpush.bf16.xpose.msra.mxu0 0
  %2100 = vmatpush.bf16.xpose.msra.mxu0 0
  %2101 = vmatpush.bf16.xpose.msra.mxu0 0
  %2102 = vmatpush.bf16.xpose.msra.mxu0 0
  %2103 = vmatpush.bf16.xpose.msra.mxu0 0
  %2104 = vmatpush.bf16.xpose.msra.mxu0 0
  %2105 = vmatpush.bf16.xpose.msra.mxu0 %v2096
  %2106 = vmatmul.bf16.gmra.mxu0 %v2093
  %v2107 = vpop.f32.mrf.mxu0
  %v2108 = vadd.f32 %v714, %v2107
  %v2109 = vpop.f32.mrf.mxu0
  %v2110 = vadd.f32 %v715, %v2109
  %2111 = vdwg.mxu0
  %2112 = vrot.lane.b32.xlu0 %v883, 112
  %v2113 = vpop.permute.xlu0 %2112
  %2114 = vrot.lane.b32.xlu0 %v888, 80
  %v2115 = vpop.permute.xlu0 %2114
  %v2117 = vsel %vm730, %v2113, 0
  %v2120 = vsel %vm730, %v2115, 0
  %2122 = vmatpush.bf16.xpose.msra.mxu0 0
  %2123 = vmatpush.bf16.xpose.msra.mxu0 0
  %2124 = vmatpush.bf16.xpose.msra.mxu0 0
  %2125 = vmatpush.bf16.xpose.msra.mxu0 0
  %2126 = vmatpush.bf16.xpose.msra.mxu0 0
  %2127 = vmatpush.bf16.xpose.msra.mxu0 0
  %2128 = vmatpush.bf16.xpose.msra.mxu0 0
  %2129 = vmatpush.bf16.xpose.msra.mxu0 %v2120
  %2130 = vmatmul.bf16.gmra.mxu0 %v2117
  %v2131 = vpop.f32.mrf.mxu0
  %v2132 = vadd.f32 %v714, %v2131
  %v2133 = vpop.f32.mrf.mxu0
  %v2134 = vadd.f32 %v715, %v2133
  %2135 = vdwg.mxu0
  %2136 = vrot.lane.b32.xlu0 %v915, 112
  %v2137 = vpop.permute.xlu0 %2136
  %2138 = vrot.lane.b32.xlu0 %v920, 80
  %v2139 = vpop.permute.xlu0 %2138
  %v2141 = vsel %vm730, %v2137, 0
  %v2144 = vsel %vm730, %v2139, 0
  %2146 = vmatpush.bf16.xpose.msra.mxu0 0
  %2147 = vmatpush.bf16.xpose.msra.mxu0 0
  %2148 = vmatpush.bf16.xpose.msra.mxu0 0
  %2149 = vmatpush.bf16.xpose.msra.mxu0 0
  %2150 = vmatpush.bf16.xpose.msra.mxu0 0
  %2151 = vmatpush.bf16.xpose.msra.mxu0 0
  %2152 = vmatpush.bf16.xpose.msra.mxu0 0
  %2153 = vmatpush.bf16.xpose.msra.mxu0 %v2144
  %2154 = vmatmul.bf16.gmra.mxu0 %v2141
  %v2155 = vpop.f32.mrf.mxu0
  %v2156 = vadd.f32 %v714, %v2155
  %v2157 = vpop.f32.mrf.mxu0
  %v2158 = vadd.f32 %v715, %v2157
  %2159 = vdwg.mxu0
  %2160 = vrot.lane.b32.xlu0 %v947, 112
  %v2161 = vpop.permute.xlu0 %2160
  %2162 = vrot.lane.b32.xlu0 %v952, 80
  %v2163 = vpop.permute.xlu0 %2162
  %v2165 = vsel %vm730, %v2161, 0
  %v2168 = vsel %vm730, %v2163, 0
  %2170 = vmatpush.bf16.xpose.msra.mxu0 0
  %2171 = vmatpush.bf16.xpose.msra.mxu0 0
  %2172 = vmatpush.bf16.xpose.msra.mxu0 0
  %2173 = vmatpush.bf16.xpose.msra.mxu0 0
  %2174 = vmatpush.bf16.xpose.msra.mxu0 0
  %2175 = vmatpush.bf16.xpose.msra.mxu0 0
  %2176 = vmatpush.bf16.xpose.msra.mxu0 0
  %2177 = vmatpush.bf16.xpose.msra.mxu0 %v2168
  %2178 = vmatmul.bf16.gmra.mxu0 %v2165
  %v2179 = vpop.f32.mrf.mxu0
  %v2180 = vadd.f32 %v714, %v2179
  %v2181 = vpop.f32.mrf.mxu0
  %v2182 = vadd.f32 %v715, %v2181
  %2183 = vdwg.mxu0
  %v2184 = vsel %vm975, %v2012, -inf
  %2185 = vmax.xlane.f32.xlu0 %v2184
  %v2186 = vpop.xlane.xlu0 %2185
  %v2187 = vsel %vm975, %v2014, -inf
  %2188 = vmax.xlane.f32.xlu0 %v2187
  %v2189 = vpop.xlane.xlu0 %2188
  %v2190 = vsel %vm975, %v2036, -inf
  %2191 = vmax.xlane.f32.xlu0 %v2190
  %v2192 = vpop.xlane.xlu0 %2191
  %v2193 = vsel %vm975, %v2038, -inf
  %2194 = vmax.xlane.f32.xlu0 %v2193
  %v2195 = vpop.xlane.xlu0 %2194
  %v2196 = vsel %vm975, %v2060, -inf
  %2197 = vmax.xlane.f32.xlu0 %v2196
  %v2198 = vpop.xlane.xlu0 %2197
  %v2199 = vsel %vm975, %v2062, -inf
  %2200 = vmax.xlane.f32.xlu0 %v2199
  %v2201 = vpop.xlane.xlu0 %2200
  %v2202 = vsel %vm975, %v2084, -inf
  %2203 = vmax.xlane.f32.xlu0 %v2202
  %v2204 = vpop.xlane.xlu0 %2203
  %v2205 = vsel %vm975, %v2086, -inf
  %2206 = vmax.xlane.f32.xlu0 %v2205
  %v2207 = vpop.xlane.xlu0 %2206
  %v2208 = vsel %vm975, %v2108, -inf
  %2209 = vmax.xlane.f32.xlu0 %v2208
  %v2210 = vpop.xlane.xlu0 %2209
  %v2211 = vsel %vm975, %v2110, -inf
  %2212 = vmax.xlane.f32.xlu0 %v2211
  %v2213 = vpop.xlane.xlu0 %2212
  %v2214 = vsel %vm975, %v2132, -inf
  %2215 = vmax.xlane.f32.xlu0 %v2214
  %v2216 = vpop.xlane.xlu0 %2215
  %v2217 = vsel %vm975, %v2134, -inf
  %2218 = vmax.xlane.f32.xlu0 %v2217
  %v2219 = vpop.xlane.xlu0 %2218
  %v2220 = vsel %vm975, %v2156, -inf
  %2221 = vmax.xlane.f32.xlu0 %v2220
  %v2222 = vpop.xlane.xlu0 %2221
  %v2223 = vsel %vm975, %v2158, -inf
  %2224 = vmax.xlane.f32.xlu0 %v2223
  %v2225 = vpop.xlane.xlu0 %2224
  %v2226 = vsel %vm975, %v2180, -inf
  %2227 = vmax.xlane.f32.xlu0 %v2226
  %v2228 = vpop.xlane.xlu0 %2227
  %v2229 = vsel %vm975, %v2182, -inf
  %2230 = vmax.xlane.f32.xlu0 %v2229
  %v2231 = vpop.xlane.xlu0 %2230
  %v2232 = vsub.f32 %v2012, %v2186
  %v2233 = vsub.f32 %v2014, %v2189
  %v2234 = vsub.f32 %v2036, %v2192
  %v2235 = vsub.f32 %v2038, %v2195
  %v2236 = vsub.f32 %v2060, %v2198
  %v2237 = vsub.f32 %v2062, %v2201
  %v2238 = vsub.f32 %v2084, %v2204
  %v2239 = vsub.f32 %v2086, %v2207
  %v2240 = vsub.f32 %v2108, %v2210
  %v2241 = vsub.f32 %v2110, %v2213
  %v2242 = vsub.f32 %v2132, %v2216
  %v2243 = vsub.f32 %v2134, %v2219
  %v2244 = vsub.f32 %v2156, %v2222
  %v2245 = vsub.f32 %v2158, %v2225
  %v2246 = vsub.f32 %v2180, %v2228
  %v2247 = vsub.f32 %v2182, %v2231
  %v2248 = vmul.f32 %v2232, 1.442695
  %v2249 = vpow.pop %v2248
  %v2250 = vmul.f32 %v2233, 1.442695
  %v2251 = vpow.pop %v2250
  %v2252 = vmul.f32 %v2234, 1.442695
  %v2253 = vpow.pop %v2252
  %v2254 = vmul.f32 %v2235, 1.442695
  %v2255 = vpow.pop %v2254
  %v2256 = vmul.f32 %v2236, 1.442695
  %v2257 = vpow.pop %v2256
  %v2258 = vmul.f32 %v2237, 1.442695
  %v2259 = vpow.pop %v2258
  %v2260 = vmul.f32 %v2238, 1.442695
  %v2261 = vpow.pop %v2260
  %v2262 = vmul.f32 %v2239, 1.442695
  %v2263 = vpow.pop %v2262
  %v2264 = vmul.f32 %v2240, 1.442695
  %v2265 = vpow.pop %v2264
  %v2266 = vmul.f32 %v2241, 1.442695
  %v2267 = vpow.pop %v2266
  %v2268 = vmul.f32 %v2242, 1.442695
  %v2269 = vpow.pop %v2268
  %v2270 = vmul.f32 %v2243, 1.442695
  %v2271 = vpow.pop %v2270
  %v2272 = vmul.f32 %v2244, 1.442695
  %v2273 = vpow.pop %v2272
  %v2274 = vmul.f32 %v2245, 1.442695
  %v2275 = vpow.pop %v2274
  %v2276 = vmul.f32 %v2246, 1.442695
  %v2277 = vpow.pop %v2276
  %v2278 = vmul.f32 %v2247, 1.442695
  %v2279 = vpow.pop %v2278
  %v2280 = vsel %vm975, %v2249, 0.0
  %2281 = vadd.xlane.f32.xlu0 %v2280
  %v2282 = vpop.xlane.xlu0 %2281
  %v2283 = vsel %vm975, %v2251, 0.0
  %2284 = vadd.xlane.f32.xlu0 %v2283
  %v2285 = vpop.xlane.xlu0 %2284
  %v2286 = vsel %vm975, %v2253, 0.0
  %2287 = vadd.xlane.f32.xlu0 %v2286
  %v2288 = vpop.xlane.xlu0 %2287
  %v2289 = vsel %vm975, %v2255, 0.0
  %2290 = vadd.xlane.f32.xlu0 %v2289
  %v2291 = vpop.xlane.xlu0 %2290
  %v2292 = vsel %vm975, %v2257, 0.0
  %2293 = vadd.xlane.f32.xlu0 %v2292
  %v2294 = vpop.xlane.xlu0 %2293
  %v2295 = vsel %vm975, %v2259, 0.0
  %2296 = vadd.xlane.f32.xlu0 %v2295
  %v2297 = vpop.xlane.xlu0 %2296
  %v2298 = vsel %vm975, %v2261, 0.0
  %2299 = vadd.xlane.f32.xlu0 %v2298
  %v2300 = vpop.xlane.xlu0 %2299
  %v2301 = vsel %vm975, %v2263, 0.0
  %2302 = vadd.xlane.f32.xlu0 %v2301
  %v2303 = vpop.xlane.xlu0 %2302
  %v2304 = vsel %vm975, %v2265, 0.0
  %2305 = vadd.xlane.f32.xlu0 %v2304
  %v2306 = vpop.xlane.xlu0 %2305
  %v2307 = vsel %vm975, %v2267, 0.0
  %2308 = vadd.xlane.f32.xlu0 %v2307
  %v2309 = vpop.xlane.xlu0 %2308
  %v2310 = vsel %vm975, %v2269, 0.0
  %2311 = vadd.xlane.f32.xlu0 %v2310
  %v2312 = vpop.xlane.xlu0 %2311
  %v2313 = vsel %vm975, %v2271, 0.0
  %2314 = vadd.xlane.f32.xlu0 %v2313
  %v2315 = vpop.xlane.xlu0 %2314
  %v2316 = vsel %vm975, %v2273, 0.0
  %2317 = vadd.xlane.f32.xlu0 %v2316
  %v2318 = vpop.xlane.xlu0 %2317
  %v2319 = vsel %vm975, %v2275, 0.0
  %2320 = vadd.xlane.f32.xlu0 %v2319
  %v2321 = vpop.xlane.xlu0 %2320
  %v2322 = vsel %vm975, %v2277, 0.0
  %2323 = vadd.xlane.f32.xlu0 %v2322
  %v2324 = vpop.xlane.xlu0 %2323
  %v2325 = vsel %vm975, %v2279, 0.0
  %2326 = vadd.xlane.f32.xlu0 %v2325
  %v2327 = vpop.xlane.xlu0 %2326
  %v2328 = vrcp.pop %v2282
  %v2329 = vrcp.pop %v2285
  %v2330 = vrcp.pop %v2288
  %v2331 = vrcp.pop %v2291
  %v2332 = vrcp.pop %v2294
  %v2333 = vrcp.pop %v2297
  %v2334 = vrcp.pop %v2300
  %v2335 = vrcp.pop %v2303
  %v2336 = vrcp.pop %v2306
  %v2337 = vrcp.pop %v2309
  %v2338 = vrcp.pop %v2312
  %v2339 = vrcp.pop %v2315
  %v2340 = vrcp.pop %v2318
  %v2341 = vrcp.pop %v2321
  %v2342 = vrcp.pop %v2324
  %v2343 = vrcp.pop %v2327
  %v2344 = vmul.f32 %v2249, %v2328
  %v2345 = vmul.f32 %v2251, %v2329
  %v2346 = vmul.f32 %v2253, %v2330
  %v2347 = vmul.f32 %v2255, %v2331
  %v2348 = vmul.f32 %v2257, %v2332
  %v2349 = vmul.f32 %v2259, %v2333
  %v2350 = vmul.f32 %v2261, %v2334
  %v2351 = vmul.f32 %v2263, %v2335
  %v2352 = vmul.f32 %v2265, %v2336
  %v2353 = vmul.f32 %v2267, %v2337
  %v2354 = vmul.f32 %v2269, %v2338
  %v2355 = vmul.f32 %v2271, %v2339
  %v2356 = vmul.f32 %v2273, %v2340
  %v2357 = vmul.f32 %v2275, %v2341
  %v2358 = vmul.f32 %v2277, %v2342
  %v2359 = vmul.f32 %v2279, %v2343
  %v2360 = vpack.c.bf16 %v2344, %v2344
  %v2361 = vpack.c.bf16 %v2345, %v2345
  %v2362 = vpack.c.bf16 %v2346, %v2346
  %v2363 = vpack.c.bf16 %v2347, %v2347
  %v2364 = vpack.c.bf16 %v2348, %v2348
  %v2365 = vpack.c.bf16 %v2349, %v2349
  %v2366 = vpack.c.bf16 %v2350, %v2350
  %v2367 = vpack.c.bf16 %v2351, %v2351
  %v2368 = vpack.c.bf16 %v2352, %v2352
  %v2369 = vpack.c.bf16 %v2353, %v2353
  %v2370 = vpack.c.bf16 %v2354, %v2354
  %v2371 = vpack.c.bf16 %v2355, %v2355
  %v2372 = vpack.c.bf16 %v2356, %v2356
  %v2373 = vpack.c.bf16 %v2357, %v2357
  %v2374 = vpack.c.bf16 %v2358, %v2358
  %v2375 = vpack.c.bf16 %v2359, %v2359
  %v2378 = vunpack.c.l.b16 %v2360
  %v2379 = vunpack.c.l.b16 %v2361
  %v2380 = vpack.c.b16 %v2379, %v2378
  %2381 = vrot.lane.b32.xlu0 %v1177, 48
  %v2382 = vpop.permute.xlu0 %2381
  %v2385 = vsel %vm975, %v2380, 0
  %2387 = vmatpush.bf16.msra.mxu0 0
  %2388 = vmatpush.bf16.msra.mxu0 0
  %2389 = vmatpush.bf16.msra.mxu0 0
  %2390 = vmatpush.bf16.msra.mxu0 0
  %2391 = vmatpush.bf16.msra.mxu0 0
  %2392 = vmatpush.bf16.msra.mxu0 0
  %2393 = vmatpush.bf16.msra.mxu0 0
  %2394 = vmatpush.bf16.msra.mxu0 %v2382
  %2395 = vmatmul.bf16.gmra.mxu0 %v2385
  %v2396 = vpop.f32.mrf.mxu0
  %v2397 = vadd.f32 0.0, %v2396
  %v2398 = vpop.f32.mrf.mxu0
  %v2399 = vadd.f32 0.0, %v2398
  %2400 = vdwg.mxu0
  %v2403 = vunpack.c.l.b16 %v2362
  %v2404 = vunpack.c.l.b16 %v2363
  %v2405 = vpack.c.b16 %v2404, %v2403
  %2406 = vrot.lane.b32.xlu0 %v1207, 48
  %v2407 = vpop.permute.xlu0 %2406
  %v2410 = vsel %vm975, %v2405, 0
  %2412 = vmatpush.bf16.msra.mxu0 0
  %2413 = vmatpush.bf16.msra.mxu0 0
  %2414 = vmatpush.bf16.msra.mxu0 0
  %2415 = vmatpush.bf16.msra.mxu0 0
  %2416 = vmatpush.bf16.msra.mxu0 0
  %2417 = vmatpush.bf16.msra.mxu0 0
  %2418 = vmatpush.bf16.msra.mxu0 0
  %2419 = vmatpush.bf16.msra.mxu0 %v2407
  %2420 = vmatmul.bf16.gmra.mxu0 %v2410
  %v2421 = vpop.f32.mrf.mxu0
  %v2422 = vadd.f32 0.0, %v2421
  %v2423 = vpop.f32.mrf.mxu0
  %v2424 = vadd.f32 0.0, %v2423
  %2425 = vdwg.mxu0
  %v2428 = vunpack.c.l.b16 %v2364
  %v2429 = vunpack.c.l.b16 %v2365
  %v2430 = vpack.c.b16 %v2429, %v2428
  %2431 = vrot.lane.b32.xlu0 %v1237, 48
  %v2432 = vpop.permute.xlu0 %2431
  %v2435 = vsel %vm975, %v2430, 0
  %2437 = vmatpush.bf16.msra.mxu0 0
  %2438 = vmatpush.bf16.msra.mxu0 0
  %2439 = vmatpush.bf16.msra.mxu0 0
  %2440 = vmatpush.bf16.msra.mxu0 0
  %2441 = vmatpush.bf16.msra.mxu0 0
  %2442 = vmatpush.bf16.msra.mxu0 0
  %2443 = vmatpush.bf16.msra.mxu0 0
  %2444 = vmatpush.bf16.msra.mxu0 %v2432
  %2445 = vmatmul.bf16.gmra.mxu0 %v2435
  %v2446 = vpop.f32.mrf.mxu0
  %v2447 = vadd.f32 0.0, %v2446
  %v2448 = vpop.f32.mrf.mxu0
  %v2449 = vadd.f32 0.0, %v2448
  %2450 = vdwg.mxu0
  %v2453 = vunpack.c.l.b16 %v2366
  %v2454 = vunpack.c.l.b16 %v2367
  %v2455 = vpack.c.b16 %v2454, %v2453
  %2456 = vrot.lane.b32.xlu0 %v1267, 48
  %v2457 = vpop.permute.xlu0 %2456
  %v2460 = vsel %vm975, %v2455, 0
  %2462 = vmatpush.bf16.msra.mxu0 0
  %2463 = vmatpush.bf16.msra.mxu0 0
  %2464 = vmatpush.bf16.msra.mxu0 0
  %2465 = vmatpush.bf16.msra.mxu0 0
  %2466 = vmatpush.bf16.msra.mxu0 0
  %2467 = vmatpush.bf16.msra.mxu0 0
  %2468 = vmatpush.bf16.msra.mxu0 0
  %2469 = vmatpush.bf16.msra.mxu0 %v2457
  %2470 = vmatmul.bf16.gmra.mxu0 %v2460
  %v2471 = vpop.f32.mrf.mxu0
  %v2472 = vadd.f32 0.0, %v2471
  %v2473 = vpop.f32.mrf.mxu0
  %v2474 = vadd.f32 0.0, %v2473
  %2475 = vdwg.mxu0
  %v2478 = vunpack.c.l.b16 %v2368
  %v2479 = vunpack.c.l.b16 %v2369
  %v2480 = vpack.c.b16 %v2479, %v2478
  %2481 = vrot.lane.b32.xlu0 %v1297, 48
  %v2482 = vpop.permute.xlu0 %2481
  %v2485 = vsel %vm975, %v2480, 0
  %2487 = vmatpush.bf16.msra.mxu0 0
  %2488 = vmatpush.bf16.msra.mxu0 0
  %2489 = vmatpush.bf16.msra.mxu0 0
  %2490 = vmatpush.bf16.msra.mxu0 0
  %2491 = vmatpush.bf16.msra.mxu0 0
  %2492 = vmatpush.bf16.msra.mxu0 0
  %2493 = vmatpush.bf16.msra.mxu0 0
  %2494 = vmatpush.bf16.msra.mxu0 %v2482
  %2495 = vmatmul.bf16.gmra.mxu0 %v2485
  %v2496 = vpop.f32.mrf.mxu0
  %v2497 = vadd.f32 0.0, %v2496
  %v2498 = vpop.f32.mrf.mxu0
  %v2499 = vadd.f32 0.0, %v2498
  %2500 = vdwg.mxu0
  %v2503 = vunpack.c.l.b16 %v2370
  %v2504 = vunpack.c.l.b16 %v2371
  %v2505 = vpack.c.b16 %v2504, %v2503
  %2506 = vrot.lane.b32.xlu0 %v1327, 48
  %v2507 = vpop.permute.xlu0 %2506
  %v2510 = vsel %vm975, %v2505, 0
  %2512 = vmatpush.bf16.msra.mxu0 0
  %2513 = vmatpush.bf16.msra.mxu0 0
  %2514 = vmatpush.bf16.msra.mxu0 0
  %2515 = vmatpush.bf16.msra.mxu0 0
  %2516 = vmatpush.bf16.msra.mxu0 0
  %2517 = vmatpush.bf16.msra.mxu0 0
  %2518 = vmatpush.bf16.msra.mxu0 0
  %2519 = vmatpush.bf16.msra.mxu0 %v2507
  %2520 = vmatmul.bf16.gmra.mxu0 %v2510
  %v2521 = vpop.f32.mrf.mxu0
  %v2522 = vadd.f32 0.0, %v2521
  %v2523 = vpop.f32.mrf.mxu0
  %v2524 = vadd.f32 0.0, %v2523
  %2525 = vdwg.mxu0
  %v2528 = vunpack.c.l.b16 %v2372
  %v2529 = vunpack.c.l.b16 %v2373
  %v2530 = vpack.c.b16 %v2529, %v2528
  %2531 = vrot.lane.b32.xlu0 %v1357, 48
  %v2532 = vpop.permute.xlu0 %2531
  %v2535 = vsel %vm975, %v2530, 0
  %2537 = vmatpush.bf16.msra.mxu0 0
  %2538 = vmatpush.bf16.msra.mxu0 0
  %2539 = vmatpush.bf16.msra.mxu0 0
  %2540 = vmatpush.bf16.msra.mxu0 0
  %2541 = vmatpush.bf16.msra.mxu0 0
  %2542 = vmatpush.bf16.msra.mxu0 0
  %2543 = vmatpush.bf16.msra.mxu0 0
  %2544 = vmatpush.bf16.msra.mxu0 %v2532
  %2545 = vmatmul.bf16.gmra.mxu0 %v2535
  %v2546 = vpop.f32.mrf.mxu0
  %v2547 = vadd.f32 0.0, %v2546
  %v2548 = vpop.f32.mrf.mxu0
  %v2549 = vadd.f32 0.0, %v2548
  %2550 = vdwg.mxu0
  %v2553 = vunpack.c.l.b16 %v2374
  %v2554 = vunpack.c.l.b16 %v2375
  %v2555 = vpack.c.b16 %v2554, %v2553
  %2556 = vrot.lane.b32.xlu0 %v1387, 48
  %v2557 = vpop.permute.xlu0 %2556
  %v2560 = vsel %vm975, %v2555, 0
  %2562 = vmatpush.bf16.msra.mxu0 0
  %2563 = vmatpush.bf16.msra.mxu0 0
  %2564 = vmatpush.bf16.msra.mxu0 0
  %2565 = vmatpush.bf16.msra.mxu0 0
  %2566 = vmatpush.bf16.msra.mxu0 0
  %2567 = vmatpush.bf16.msra.mxu0 0
  %2568 = vmatpush.bf16.msra.mxu0 0
  %2569 = vmatpush.bf16.msra.mxu0 %v2557
  %2570 = vmatmul.bf16.gmra.mxu0 %v2560
  %v2571 = vpop.f32.mrf.mxu0
  %v2572 = vadd.f32 0.0, %v2571
  %v2573 = vpop.f32.mrf.mxu0
  %v2574 = vadd.f32 0.0, %v2573
  %2575 = vdwg.mxu0
  %2576 = vrot.lane.b32.xlu0 %v722, 104
  %v2577 = vpop.permute.xlu0 %2576
  %2578 = vrot.lane.b32.xlu0 %v727, 72
  %v2579 = vpop.permute.xlu0 %2578
  %v2581 = vsel %vm730, %v2577, 0
  %v2584 = vsel %vm730, %v2579, 0
  %2586 = vmatpush.bf16.xpose.msra.mxu0 0
  %2587 = vmatpush.bf16.xpose.msra.mxu0 0
  %2588 = vmatpush.bf16.xpose.msra.mxu0 0
  %2589 = vmatpush.bf16.xpose.msra.mxu0 0
  %2590 = vmatpush.bf16.xpose.msra.mxu0 0
  %2591 = vmatpush.bf16.xpose.msra.mxu0 0
  %2592 = vmatpush.bf16.xpose.msra.mxu0 0
  %2593 = vmatpush.bf16.xpose.msra.mxu0 %v2584
  %2594 = vmatmul.bf16.gmra.mxu0 %v2581
  %v2595 = vpop.f32.mrf.mxu0
  %v2596 = vadd.f32 %v716, %v2595
  %v2597 = vpop.f32.mrf.mxu0
  %v2598 = vadd.f32 %v717, %v2597
  %2599 = vdwg.mxu0
  %2600 = vrot.lane.b32.xlu0 %v755, 104
  %v2601 = vpop.permute.xlu0 %2600
  %2602 = vrot.lane.b32.xlu0 %v760, 72
  %v2603 = vpop.permute.xlu0 %2602
  %v2605 = vsel %vm730, %v2601, 0
  %v2608 = vsel %vm730, %v2603, 0
  %2610 = vmatpush.bf16.xpose.msra.mxu0 0
  %2611 = vmatpush.bf16.xpose.msra.mxu0 0
  %2612 = vmatpush.bf16.xpose.msra.mxu0 0
  %2613 = vmatpush.bf16.xpose.msra.mxu0 0
  %2614 = vmatpush.bf16.xpose.msra.mxu0 0
  %2615 = vmatpush.bf16.xpose.msra.mxu0 0
  %2616 = vmatpush.bf16.xpose.msra.mxu0 0
  %2617 = vmatpush.bf16.xpose.msra.mxu0 %v2608
  %2618 = vmatmul.bf16.gmra.mxu0 %v2605
  %v2619 = vpop.f32.mrf.mxu0
  %v2620 = vadd.f32 %v716, %v2619
  %v2621 = vpop.f32.mrf.mxu0
  %v2622 = vadd.f32 %v717, %v2621
  %2623 = vdwg.mxu0
  %2624 = vrot.lane.b32.xlu0 %v787, 104
  %v2625 = vpop.permute.xlu0 %2624
  %2626 = vrot.lane.b32.xlu0 %v792, 72
  %v2627 = vpop.permute.xlu0 %2626
  %v2629 = vsel %vm730, %v2625, 0
  %v2632 = vsel %vm730, %v2627, 0
  %2634 = vmatpush.bf16.xpose.msra.mxu0 0
  %2635 = vmatpush.bf16.xpose.msra.mxu0 0
  %2636 = vmatpush.bf16.xpose.msra.mxu0 0
  %2637 = vmatpush.bf16.xpose.msra.mxu0 0
  %2638 = vmatpush.bf16.xpose.msra.mxu0 0
  %2639 = vmatpush.bf16.xpose.msra.mxu0 0
  %2640 = vmatpush.bf16.xpose.msra.mxu0 0
  %2641 = vmatpush.bf16.xpose.msra.mxu0 %v2632
  %2642 = vmatmul.bf16.gmra.mxu0 %v2629
  %v2643 = vpop.f32.mrf.mxu0
  %v2644 = vadd.f32 %v716, %v2643
  %v2645 = vpop.f32.mrf.mxu0
  %v2646 = vadd.f32 %v717, %v2645
  %2647 = vdwg.mxu0
  %2648 = vrot.lane.b32.xlu0 %v819, 104
  %v2649 = vpop.permute.xlu0 %2648
  %2650 = vrot.lane.b32.xlu0 %v824, 72
  %v2651 = vpop.permute.xlu0 %2650
  %v2653 = vsel %vm730, %v2649, 0
  %v2656 = vsel %vm730, %v2651, 0
  %2658 = vmatpush.bf16.xpose.msra.mxu0 0
  %2659 = vmatpush.bf16.xpose.msra.mxu0 0
  %2660 = vmatpush.bf16.xpose.msra.mxu0 0
  %2661 = vmatpush.bf16.xpose.msra.mxu0 0
  %2662 = vmatpush.bf16.xpose.msra.mxu0 0
  %2663 = vmatpush.bf16.xpose.msra.mxu0 0
  %2664 = vmatpush.bf16.xpose.msra.mxu0 0
  %2665 = vmatpush.bf16.xpose.msra.mxu0 %v2656
  %2666 = vmatmul.bf16.gmra.mxu0 %v2653
  %v2667 = vpop.f32.mrf.mxu0
  %v2668 = vadd.f32 %v716, %v2667
  %v2669 = vpop.f32.mrf.mxu0
  %v2670 = vadd.f32 %v717, %v2669
  %2671 = vdwg.mxu0
  %2672 = vrot.lane.b32.xlu0 %v851, 104
  %v2673 = vpop.permute.xlu0 %2672
  %2674 = vrot.lane.b32.xlu0 %v856, 72
  %v2675 = vpop.permute.xlu0 %2674
  %v2677 = vsel %vm730, %v2673, 0
  %v2680 = vsel %vm730, %v2675, 0
  %2682 = vmatpush.bf16.xpose.msra.mxu0 0
  %2683 = vmatpush.bf16.xpose.msra.mxu0 0
  %2684 = vmatpush.bf16.xpose.msra.mxu0 0
  %2685 = vmatpush.bf16.xpose.msra.mxu0 0
  %2686 = vmatpush.bf16.xpose.msra.mxu0 0
  %2687 = vmatpush.bf16.xpose.msra.mxu0 0
  %2688 = vmatpush.bf16.xpose.msra.mxu0 0
  %2689 = vmatpush.bf16.xpose.msra.mxu0 %v2680
  %2690 = vmatmul.bf16.gmra.mxu0 %v2677
  %v2691 = vpop.f32.mrf.mxu0
  %v2692 = vadd.f32 %v716, %v2691
  %v2693 = vpop.f32.mrf.mxu0
  %v2694 = vadd.f32 %v717, %v2693
  %2695 = vdwg.mxu0
  %2696 = vrot.lane.b32.xlu0 %v883, 104
  %v2697 = vpop.permute.xlu0 %2696
  %2698 = vrot.lane.b32.xlu0 %v888, 72
  %v2699 = vpop.permute.xlu0 %2698
  %v2701 = vsel %vm730, %v2697, 0
  %v2704 = vsel %vm730, %v2699, 0
  %2706 = vmatpush.bf16.xpose.msra.mxu0 0
  %2707 = vmatpush.bf16.xpose.msra.mxu0 0
  %2708 = vmatpush.bf16.xpose.msra.mxu0 0
  %2709 = vmatpush.bf16.xpose.msra.mxu0 0
  %2710 = vmatpush.bf16.xpose.msra.mxu0 0
  %2711 = vmatpush.bf16.xpose.msra.mxu0 0
  %2712 = vmatpush.bf16.xpose.msra.mxu0 0
  %2713 = vmatpush.bf16.xpose.msra.mxu0 %v2704
  %2714 = vmatmul.bf16.gmra.mxu0 %v2701
  %v2715 = vpop.f32.mrf.mxu0
  %v2716 = vadd.f32 %v716, %v2715
  %v2717 = vpop.f32.mrf.mxu0
  %v2718 = vadd.f32 %v717, %v2717
  %2719 = vdwg.mxu0
  %2720 = vrot.lane.b32.xlu0 %v915, 104
  %v2721 = vpop.permute.xlu0 %2720
  %2722 = vrot.lane.b32.xlu0 %v920, 72
  %v2723 = vpop.permute.xlu0 %2722
  %v2725 = vsel %vm730, %v2721, 0
  %v2728 = vsel %vm730, %v2723, 0
  %2730 = vmatpush.bf16.xpose.msra.mxu0 0
  %2731 = vmatpush.bf16.xpose.msra.mxu0 0
  %2732 = vmatpush.bf16.xpose.msra.mxu0 0
  %2733 = vmatpush.bf16.xpose.msra.mxu0 0
  %2734 = vmatpush.bf16.xpose.msra.mxu0 0
  %2735 = vmatpush.bf16.xpose.msra.mxu0 0
  %2736 = vmatpush.bf16.xpose.msra.mxu0 0
  %2737 = vmatpush.bf16.xpose.msra.mxu0 %v2728
  %2738 = vmatmul.bf16.gmra.mxu0 %v2725
  %v2739 = vpop.f32.mrf.mxu0
  %v2740 = vadd.f32 %v716, %v2739
  %v2741 = vpop.f32.mrf.mxu0
  %v2742 = vadd.f32 %v717, %v2741
  %2743 = vdwg.mxu0
  %2744 = vrot.lane.b32.xlu0 %v947, 104
  %v2745 = vpop.permute.xlu0 %2744
  %2746 = vrot.lane.b32.xlu0 %v952, 72
  %v2747 = vpop.permute.xlu0 %2746
  %v2749 = vsel %vm730, %v2745, 0
  %v2752 = vsel %vm730, %v2747, 0
  %2754 = vmatpush.bf16.xpose.msra.mxu0 0
  %2755 = vmatpush.bf16.xpose.msra.mxu0 0
  %2756 = vmatpush.bf16.xpose.msra.mxu0 0
  %2757 = vmatpush.bf16.xpose.msra.mxu0 0
  %2758 = vmatpush.bf16.xpose.msra.mxu0 0
  %2759 = vmatpush.bf16.xpose.msra.mxu0 0
  %2760 = vmatpush.bf16.xpose.msra.mxu0 0
  %2761 = vmatpush.bf16.xpose.msra.mxu0 %v2752
  %2762 = vmatmul.bf16.gmra.mxu0 %v2749
  %v2763 = vpop.f32.mrf.mxu0
  %v2764 = vadd.f32 %v716, %v2763
  %v2765 = vpop.f32.mrf.mxu0
  %v2766 = vadd.f32 %v717, %v2765
  %2767 = vdwg.mxu0
  %v2768 = vsel %vm975, %v2596, -inf
  %2769 = vmax.xlane.f32.xlu0 %v2768
  %v2770 = vpop.xlane.xlu0 %2769
  %v2771 = vsel %vm975, %v2598, -inf
  %2772 = vmax.xlane.f32.xlu0 %v2771
  %v2773 = vpop.xlane.xlu0 %2772
  %v2774 = vsel %vm975, %v2620, -inf
  %2775 = vmax.xlane.f32.xlu0 %v2774
  %v2776 = vpop.xlane.xlu0 %2775
  %v2777 = vsel %vm975, %v2622, -inf
  %2778 = vmax.xlane.f32.xlu0 %v2777
  %v2779 = vpop.xlane.xlu0 %2778
  %v2780 = vsel %vm975, %v2644, -inf
  %2781 = vmax.xlane.f32.xlu0 %v2780
  %v2782 = vpop.xlane.xlu0 %2781
  %v2783 = vsel %vm975, %v2646, -inf
  %2784 = vmax.xlane.f32.xlu0 %v2783
  %v2785 = vpop.xlane.xlu0 %2784
  %v2786 = vsel %vm975, %v2668, -inf
  %2787 = vmax.xlane.f32.xlu0 %v2786
  %v2788 = vpop.xlane.xlu0 %2787
  %v2789 = vsel %vm975, %v2670, -inf
  %2790 = vmax.xlane.f32.xlu0 %v2789
  %v2791 = vpop.xlane.xlu0 %2790
  %v2792 = vsel %vm975, %v2692, -inf
  %2793 = vmax.xlane.f32.xlu0 %v2792
  %v2794 = vpop.xlane.xlu0 %2793
  %v2795 = vsel %vm975, %v2694, -inf
  %2796 = vmax.xlane.f32.xlu0 %v2795
  %v2797 = vpop.xlane.xlu0 %2796
  %v2798 = vsel %vm975, %v2716, -inf
  %2799 = vmax.xlane.f32.xlu0 %v2798
  %v2800 = vpop.xlane.xlu0 %2799
  %v2801 = vsel %vm975, %v2718, -inf
  %2802 = vmax.xlane.f32.xlu0 %v2801
  %v2803 = vpop.xlane.xlu0 %2802
  %v2804 = vsel %vm975, %v2740, -inf
  %2805 = vmax.xlane.f32.xlu0 %v2804
  %v2806 = vpop.xlane.xlu0 %2805
  %v2807 = vsel %vm975, %v2742, -inf
  %2808 = vmax.xlane.f32.xlu0 %v2807
  %v2809 = vpop.xlane.xlu0 %2808
  %v2810 = vsel %vm975, %v2764, -inf
  %2811 = vmax.xlane.f32.xlu0 %v2810
  %v2812 = vpop.xlane.xlu0 %2811
  %v2813 = vsel %vm975, %v2766, -inf
  %2814 = vmax.xlane.f32.xlu0 %v2813
  %v2815 = vpop.xlane.xlu0 %2814
  %v2816 = vsub.f32 %v2596, %v2770
  %v2817 = vsub.f32 %v2598, %v2773
  %v2818 = vsub.f32 %v2620, %v2776
  %v2819 = vsub.f32 %v2622, %v2779
  %v2820 = vsub.f32 %v2644, %v2782
  %v2821 = vsub.f32 %v2646, %v2785
  %v2822 = vsub.f32 %v2668, %v2788
  %v2823 = vsub.f32 %v2670, %v2791
  %v2824 = vsub.f32 %v2692, %v2794
  %v2825 = vsub.f32 %v2694, %v2797
  %v2826 = vsub.f32 %v2716, %v2800
  %v2827 = vsub.f32 %v2718, %v2803
  %v2828 = vsub.f32 %v2740, %v2806
  %v2829 = vsub.f32 %v2742, %v2809
  %v2830 = vsub.f32 %v2764, %v2812
  %v2831 = vsub.f32 %v2766, %v2815
  %v2832 = vmul.f32 %v2816, 1.442695
  %v2833 = vpow.pop %v2832
  %v2834 = vmul.f32 %v2817, 1.442695
  %v2835 = vpow.pop %v2834
  %v2836 = vmul.f32 %v2818, 1.442695
  %v2837 = vpow.pop %v2836
  %v2838 = vmul.f32 %v2819, 1.442695
  %v2839 = vpow.pop %v2838
  %v2840 = vmul.f32 %v2820, 1.442695
  %v2841 = vpow.pop %v2840
  %v2842 = vmul.f32 %v2821, 1.442695
  %v2843 = vpow.pop %v2842
  %v2844 = vmul.f32 %v2822, 1.442695
  %v2845 = vpow.pop %v2844
  %v2846 = vmul.f32 %v2823, 1.442695
  %v2847 = vpow.pop %v2846
  %v2848 = vmul.f32 %v2824, 1.442695
  %v2849 = vpow.pop %v2848
  %v2850 = vmul.f32 %v2825, 1.442695
  %v2851 = vpow.pop %v2850
  %v2852 = vmul.f32 %v2826, 1.442695
  %v2853 = vpow.pop %v2852
  %v2854 = vmul.f32 %v2827, 1.442695
  %v2855 = vpow.pop %v2854
  %v2856 = vmul.f32 %v2828, 1.442695
  %v2857 = vpow.pop %v2856
  %v2858 = vmul.f32 %v2829, 1.442695
  %v2859 = vpow.pop %v2858
  %v2860 = vmul.f32 %v2830, 1.442695
  %v2861 = vpow.pop %v2860
  %v2862 = vmul.f32 %v2831, 1.442695
  %v2863 = vpow.pop %v2862
  %v2864 = vsel %vm975, %v2833, 0.0
  %2865 = vadd.xlane.f32.xlu0 %v2864
  %v2866 = vpop.xlane.xlu0 %2865
  %v2867 = vsel %vm975, %v2835, 0.0
  %2868 = vadd.xlane.f32.xlu0 %v2867
  %v2869 = vpop.xlane.xlu0 %2868
  %v2870 = vsel %vm975, %v2837, 0.0
  %2871 = vadd.xlane.f32.xlu0 %v2870
  %v2872 = vpop.xlane.xlu0 %2871
  %v2873 = vsel %vm975, %v2839, 0.0
  %2874 = vadd.xlane.f32.xlu0 %v2873
  %v2875 = vpop.xlane.xlu0 %2874
  %v2876 = vsel %vm975, %v2841, 0.0
  %2877 = vadd.xlane.f32.xlu0 %v2876
  %v2878 = vpop.xlane.xlu0 %2877
  %v2879 = vsel %vm975, %v2843, 0.0
  %2880 = vadd.xlane.f32.xlu0 %v2879
  %v2881 = vpop.xlane.xlu0 %2880
  %v2882 = vsel %vm975, %v2845, 0.0
  %2883 = vadd.xlane.f32.xlu0 %v2882
  %v2884 = vpop.xlane.xlu0 %2883
  %v2885 = vsel %vm975, %v2847, 0.0
  %2886 = vadd.xlane.f32.xlu0 %v2885
  %v2887 = vpop.xlane.xlu0 %2886
  %v2888 = vsel %vm975, %v2849, 0.0
  %2889 = vadd.xlane.f32.xlu0 %v2888
  %v2890 = vpop.xlane.xlu0 %2889
  %v2891 = vsel %vm975, %v2851, 0.0
  %2892 = vadd.xlane.f32.xlu0 %v2891
  %v2893 = vpop.xlane.xlu0 %2892
  %v2894 = vsel %vm975, %v2853, 0.0
  %2895 = vadd.xlane.f32.xlu0 %v2894
  %v2896 = vpop.xlane.xlu0 %2895
  %v2897 = vsel %vm975, %v2855, 0.0
  %2898 = vadd.xlane.f32.xlu0 %v2897
  %v2899 = vpop.xlane.xlu0 %2898
  %v2900 = vsel %vm975, %v2857, 0.0
  %2901 = vadd.xlane.f32.xlu0 %v2900
  %v2902 = vpop.xlane.xlu0 %2901
  %v2903 = vsel %vm975, %v2859, 0.0
  %2904 = vadd.xlane.f32.xlu0 %v2903
  %v2905 = vpop.xlane.xlu0 %2904
  %v2906 = vsel %vm975, %v2861, 0.0
  %2907 = vadd.xlane.f32.xlu0 %v2906
  %v2908 = vpop.xlane.xlu0 %2907
  %v2909 = vsel %vm975, %v2863, 0.0
  %2910 = vadd.xlane.f32.xlu0 %v2909
  %v2911 = vpop.xlane.xlu0 %2910
  %v2912 = vrcp.pop %v2866
  %v2913 = vrcp.pop %v2869
  %v2914 = vrcp.pop %v2872
  %v2915 = vrcp.pop %v2875
  %v2916 = vrcp.pop %v2878
  %v2917 = vrcp.pop %v2881
  %v2918 = vrcp.pop %v2884
  %v2919 = vrcp.pop %v2887
  %v2920 = vrcp.pop %v2890
  %v2921 = vrcp.pop %v2893
  %v2922 = vrcp.pop %v2896
  %v2923 = vrcp.pop %v2899
  %v2924 = vrcp.pop %v2902
  %v2925 = vrcp.pop %v2905
  %v2926 = vrcp.pop %v2908
  %v2927 = vrcp.pop %v2911
  %v2928 = vmul.f32 %v2833, %v2912
  %v2929 = vmul.f32 %v2835, %v2913
  %v2930 = vmul.f32 %v2837, %v2914
  %v2931 = vmul.f32 %v2839, %v2915
  %v2932 = vmul.f32 %v2841, %v2916
  %v2933 = vmul.f32 %v2843, %v2917
  %v2934 = vmul.f32 %v2845, %v2918
  %v2935 = vmul.f32 %v2847, %v2919
  %v2936 = vmul.f32 %v2849, %v2920
  %v2937 = vmul.f32 %v2851, %v2921
  %v2938 = vmul.f32 %v2853, %v2922
  %v2939 = vmul.f32 %v2855, %v2923
  %v2940 = vmul.f32 %v2857, %v2924
  %v2941 = vmul.f32 %v2859, %v2925
  %v2942 = vmul.f32 %v2861, %v2926
  %v2943 = vmul.f32 %v2863, %v2927
  %v2944 = vpack.c.bf16 %v2928, %v2928
  %v2945 = vpack.c.bf16 %v2929, %v2929
  %v2946 = vpack.c.bf16 %v2930, %v2930
  %v2947 = vpack.c.bf16 %v2931, %v2931
  %v2948 = vpack.c.bf16 %v2932, %v2932
  %v2949 = vpack.c.bf16 %v2933, %v2933
  %v2950 = vpack.c.bf16 %v2934, %v2934
  %v2951 = vpack.c.bf16 %v2935, %v2935
  %v2952 = vpack.c.bf16 %v2936, %v2936
  %v2953 = vpack.c.bf16 %v2937, %v2937
  %v2954 = vpack.c.bf16 %v2938, %v2938
  %v2955 = vpack.c.bf16 %v2939, %v2939
  %v2956 = vpack.c.bf16 %v2940, %v2940
  %v2957 = vpack.c.bf16 %v2941, %v2941
  %v2958 = vpack.c.bf16 %v2942, %v2942
  %v2959 = vpack.c.bf16 %v2943, %v2943
  %v2962 = vunpack.c.l.b16 %v2944
  %v2963 = vunpack.c.l.b16 %v2945
  %v2964 = vpack.c.b16 %v2963, %v2962
  %2965 = vrot.lane.b32.xlu0 %v1177, 40
  %v2966 = vpop.permute.xlu0 %2965
  %v2969 = vsel %vm975, %v2964, 0
  %2971 = vmatpush.bf16.msra.mxu0 0
  %2972 = vmatpush.bf16.msra.mxu0 0
  %2973 = vmatpush.bf16.msra.mxu0 0
  %2974 = vmatpush.bf16.msra.mxu0 0
  %2975 = vmatpush.bf16.msra.mxu0 0
  %2976 = vmatpush.bf16.msra.mxu0 0
  %2977 = vmatpush.bf16.msra.mxu0 0
  %2978 = vmatpush.bf16.msra.mxu0 %v2966
  %2979 = vmatmul.bf16.gmra.mxu0 %v2969
  %v2980 = vpop.f32.mrf.mxu0
  %v2981 = vadd.f32 0.0, %v2980
  %v2982 = vpop.f32.mrf.mxu0
  %v2983 = vadd.f32 0.0, %v2982
  %2984 = vdwg.mxu0
  %v2987 = vunpack.c.l.b16 %v2946
  %v2988 = vunpack.c.l.b16 %v2947
  %v2989 = vpack.c.b16 %v2988, %v2987
  %2990 = vrot.lane.b32.xlu0 %v1207, 40
  %v2991 = vpop.permute.xlu0 %2990
  %v2994 = vsel %vm975, %v2989, 0
  %2996 = vmatpush.bf16.msra.mxu0 0
  %2997 = vmatpush.bf16.msra.mxu0 0
  %2998 = vmatpush.bf16.msra.mxu0 0
  %2999 = vmatpush.bf16.msra.mxu0 0
  %3000 = vmatpush.bf16.msra.mxu0 0
  %3001 = vmatpush.bf16.msra.mxu0 0
  %3002 = vmatpush.bf16.msra.mxu0 0
  %3003 = vmatpush.bf16.msra.mxu0 %v2991
  %3004 = vmatmul.bf16.gmra.mxu0 %v2994
  %v3005 = vpop.f32.mrf.mxu0
  %v3006 = vadd.f32 0.0, %v3005
  %v3007 = vpop.f32.mrf.mxu0
  %v3008 = vadd.f32 0.0, %v3007
  %3009 = vdwg.mxu0
  %v3012 = vunpack.c.l.b16 %v2948
  %v3013 = vunpack.c.l.b16 %v2949
  %v3014 = vpack.c.b16 %v3013, %v3012
  %3015 = vrot.lane.b32.xlu0 %v1237, 40
  %v3016 = vpop.permute.xlu0 %3015
  %v3019 = vsel %vm975, %v3014, 0
  %3021 = vmatpush.bf16.msra.mxu0 0
  %3022 = vmatpush.bf16.msra.mxu0 0
  %3023 = vmatpush.bf16.msra.mxu0 0
  %3024 = vmatpush.bf16.msra.mxu0 0
  %3025 = vmatpush.bf16.msra.mxu0 0
  %3026 = vmatpush.bf16.msra.mxu0 0
  %3027 = vmatpush.bf16.msra.mxu0 0
  %3028 = vmatpush.bf16.msra.mxu0 %v3016
  %3029 = vmatmul.bf16.gmra.mxu0 %v3019
  %v3030 = vpop.f32.mrf.mxu0
  %v3031 = vadd.f32 0.0, %v3030
  %v3032 = vpop.f32.mrf.mxu0
  %v3033 = vadd.f32 0.0, %v3032
  %3034 = vdwg.mxu0
  %v3037 = vunpack.c.l.b16 %v2950
  %v3038 = vunpack.c.l.b16 %v2951
  %v3039 = vpack.c.b16 %v3038, %v3037
  %3040 = vrot.lane.b32.xlu0 %v1267, 40
  %v3041 = vpop.permute.xlu0 %3040
  %v3044 = vsel %vm975, %v3039, 0
  %3046 = vmatpush.bf16.msra.mxu0 0
  %3047 = vmatpush.bf16.msra.mxu0 0
  %3048 = vmatpush.bf16.msra.mxu0 0
  %3049 = vmatpush.bf16.msra.mxu0 0
  %3050 = vmatpush.bf16.msra.mxu0 0
  %3051 = vmatpush.bf16.msra.mxu0 0
  %3052 = vmatpush.bf16.msra.mxu0 0
  %3053 = vmatpush.bf16.msra.mxu0 %v3041
  %3054 = vmatmul.bf16.gmra.mxu0 %v3044
  %v3055 = vpop.f32.mrf.mxu0
  %v3056 = vadd.f32 0.0, %v3055
  %v3057 = vpop.f32.mrf.mxu0
  %v3058 = vadd.f32 0.0, %v3057
  %3059 = vdwg.mxu0
  %v3062 = vunpack.c.l.b16 %v2952
  %v3063 = vunpack.c.l.b16 %v2953
  %v3064 = vpack.c.b16 %v3063, %v3062
  %3065 = vrot.lane.b32.xlu0 %v1297, 40
  %v3066 = vpop.permute.xlu0 %3065
  %v3069 = vsel %vm975, %v3064, 0
  %3071 = vmatpush.bf16.msra.mxu0 0
  %3072 = vmatpush.bf16.msra.mxu0 0
  %3073 = vmatpush.bf16.msra.mxu0 0
  %3074 = vmatpush.bf16.msra.mxu0 0
  %3075 = vmatpush.bf16.msra.mxu0 0
  %3076 = vmatpush.bf16.msra.mxu0 0
  %3077 = vmatpush.bf16.msra.mxu0 0
  %3078 = vmatpush.bf16.msra.mxu0 %v3066
  %3079 = vmatmul.bf16.gmra.mxu0 %v3069
  %v3080 = vpop.f32.mrf.mxu0
  %v3081 = vadd.f32 0.0, %v3080
  %v3082 = vpop.f32.mrf.mxu0
  %v3083 = vadd.f32 0.0, %v3082
  %3084 = vdwg.mxu0
  %v3087 = vunpack.c.l.b16 %v2954
  %v3088 = vunpack.c.l.b16 %v2955
  %v3089 = vpack.c.b16 %v3088, %v3087
  %3090 = vrot.lane.b32.xlu0 %v1327, 40
  %v3091 = vpop.permute.xlu0 %3090
  %v3094 = vsel %vm975, %v3089, 0
  %3096 = vmatpush.bf16.msra.mxu0 0
  %3097 = vmatpush.bf16.msra.mxu0 0
  %3098 = vmatpush.bf16.msra.mxu0 0
  %3099 = vmatpush.bf16.msra.mxu0 0
  %3100 = vmatpush.bf16.msra.mxu0 0
  %3101 = vmatpush.bf16.msra.mxu0 0
  %3102 = vmatpush.bf16.msra.mxu0 0
  %3103 = vmatpush.bf16.msra.mxu0 %v3091
  %3104 = vmatmul.bf16.gmra.mxu0 %v3094
  %v3105 = vpop.f32.mrf.mxu0
  %v3106 = vadd.f32 0.0, %v3105
  %v3107 = vpop.f32.mrf.mxu0
  %v3108 = vadd.f32 0.0, %v3107
  %3109 = vdwg.mxu0
  %v3112 = vunpack.c.l.b16 %v2956
  %v3113 = vunpack.c.l.b16 %v2957
  %v3114 = vpack.c.b16 %v3113, %v3112
  %3115 = vrot.lane.b32.xlu0 %v1357, 40
  %v3116 = vpop.permute.xlu0 %3115
  %v3119 = vsel %vm975, %v3114, 0
  %3121 = vmatpush.bf16.msra.mxu0 0
  %3122 = vmatpush.bf16.msra.mxu0 0
  %3123 = vmatpush.bf16.msra.mxu0 0
  %3124 = vmatpush.bf16.msra.mxu0 0
  %3125 = vmatpush.bf16.msra.mxu0 0
  %3126 = vmatpush.bf16.msra.mxu0 0
  %3127 = vmatpush.bf16.msra.mxu0 0
  %3128 = vmatpush.bf16.msra.mxu0 %v3116
  %3129 = vmatmul.bf16.gmra.mxu0 %v3119
  %v3130 = vpop.f32.mrf.mxu0
  %v3131 = vadd.f32 0.0, %v3130
  %v3132 = vpop.f32.mrf.mxu0
  %v3133 = vadd.f32 0.0, %v3132
  %3134 = vdwg.mxu0
  %v3137 = vunpack.c.l.b16 %v2958
  %v3138 = vunpack.c.l.b16 %v2959
  %v3139 = vpack.c.b16 %v3138, %v3137
  %3140 = vrot.lane.b32.xlu0 %v1387, 40
  %v3141 = vpop.permute.xlu0 %3140
  %v3144 = vsel %vm975, %v3139, 0
  %3146 = vmatpush.bf16.msra.mxu0 0
  %3147 = vmatpush.bf16.msra.mxu0 0
  %3148 = vmatpush.bf16.msra.mxu0 0
  %3149 = vmatpush.bf16.msra.mxu0 0
  %3150 = vmatpush.bf16.msra.mxu0 0
  %3151 = vmatpush.bf16.msra.mxu0 0
  %3152 = vmatpush.bf16.msra.mxu0 0
  %3153 = vmatpush.bf16.msra.mxu0 %v3141
  %3154 = vmatmul.bf16.gmra.mxu0 %v3144
  %v3155 = vpop.f32.mrf.mxu0
  %v3156 = vadd.f32 0.0, %v3155
  %v3157 = vpop.f32.mrf.mxu0
  %v3158 = vadd.f32 0.0, %v3157
  %3159 = vdwg.mxu0
  %3176 = vrot.lane.b32.xlu0 %v1813, 8
  %v3177 = vpop.permute.xlu0 %3176
  %3178 = vrot.lane.b32.xlu0 %v1815, 8
  %v3179 = vpop.permute.xlu0 %3178
  %3180 = vrot.lane.b32.xlu0 %v1838, 8
  %v3181 = vpop.permute.xlu0 %3180
  %3182 = vrot.lane.b32.xlu0 %v1840, 8
  %v3183 = vpop.permute.xlu0 %3182
  %3184 = vrot.lane.b32.xlu0 %v1863, 8
  %v3185 = vpop.permute.xlu0 %3184
  %3186 = vrot.lane.b32.xlu0 %v1865, 8
  %v3187 = vpop.permute.xlu0 %3186
  %3188 = vrot.lane.b32.xlu0 %v1888, 8
  %v3189 = vpop.permute.xlu0 %3188
  %3190 = vrot.lane.b32.xlu0 %v1890, 8
  %v3191 = vpop.permute.xlu0 %3190
  %3192 = vrot.lane.b32.xlu0 %v1913, 8
  %v3193 = vpop.permute.xlu0 %3192
  %3194 = vrot.lane.b32.xlu0 %v1915, 8
  %v3195 = vpop.permute.xlu0 %3194
  %3196 = vrot.lane.b32.xlu0 %v1938, 8
  %v3197 = vpop.permute.xlu0 %3196
  %3198 = vrot.lane.b32.xlu0 %v1940, 8
  %v3199 = vpop.permute.xlu0 %3198
  %3200 = vrot.lane.b32.xlu0 %v1963, 8
  %v3201 = vpop.permute.xlu0 %3200
  %3202 = vrot.lane.b32.xlu0 %v1965, 8
  %v3203 = vpop.permute.xlu0 %3202
  %3204 = vrot.lane.b32.xlu0 %v1988, 8
  %v3205 = vpop.permute.xlu0 %3204
  %3206 = vrot.lane.b32.xlu0 %v1990, 8
  %v3207 = vpop.permute.xlu0 %3206
  %3240 = vrot.lane.b32.xlu0 %v2397, 16
  %v3241 = vpop.permute.xlu0 %3240
  %3242 = vrot.lane.b32.xlu0 %v2399, 16
  %v3243 = vpop.permute.xlu0 %3242
  %3244 = vrot.lane.b32.xlu0 %v2422, 16
  %v3245 = vpop.permute.xlu0 %3244
  %3246 = vrot.lane.b32.xlu0 %v2424, 16
  %v3247 = vpop.permute.xlu0 %3246
  %3248 = vrot.lane.b32.xlu0 %v2447, 16
  %v3249 = vpop.permute.xlu0 %3248
  %3250 = vrot.lane.b32.xlu0 %v2449, 16
  %v3251 = vpop.permute.xlu0 %3250
  %3252 = vrot.lane.b32.xlu0 %v2472, 16
  %v3253 = vpop.permute.xlu0 %3252
  %3254 = vrot.lane.b32.xlu0 %v2474, 16
  %v3255 = vpop.permute.xlu0 %3254
  %3256 = vrot.lane.b32.xlu0 %v2497, 16
  %v3257 = vpop.permute.xlu0 %3256
  %3258 = vrot.lane.b32.xlu0 %v2499, 16
  %v3259 = vpop.permute.xlu0 %3258
  %3260 = vrot.lane.b32.xlu0 %v2522, 16
  %v3261 = vpop.permute.xlu0 %3260
  %3262 = vrot.lane.b32.xlu0 %v2524, 16
  %v3263 = vpop.permute.xlu0 %3262
  %3264 = vrot.lane.b32.xlu0 %v2547, 16
  %v3265 = vpop.permute.xlu0 %3264
  %3266 = vrot.lane.b32.xlu0 %v2549, 16
  %v3267 = vpop.permute.xlu0 %3266
  %3268 = vrot.lane.b32.xlu0 %v2572, 16
  %v3269 = vpop.permute.xlu0 %3268
  %3270 = vrot.lane.b32.xlu0 %v2574, 16
  %v3271 = vpop.permute.xlu0 %3270
  %3304 = vrot.lane.b32.xlu0 %v2981, 24
  %v3305 = vpop.permute.xlu0 %3304
  %3306 = vrot.lane.b32.xlu0 %v2983, 24
  %v3307 = vpop.permute.xlu0 %3306
  %3308 = vrot.lane.b32.xlu0 %v3006, 24
  %v3309 = vpop.permute.xlu0 %3308
  %3310 = vrot.lane.b32.xlu0 %v3008, 24
  %v3311 = vpop.permute.xlu0 %3310
  %3312 = vrot.lane.b32.xlu0 %v3031, 24
  %v3313 = vpop.permute.xlu0 %3312
  %3314 = vrot.lane.b32.xlu0 %v3033, 24
  %v3315 = vpop.permute.xlu0 %3314
  %3316 = vrot.lane.b32.xlu0 %v3056, 24
  %v3317 = vpop.permute.xlu0 %3316
  %3318 = vrot.lane.b32.xlu0 %v3058, 24
  %v3319 = vpop.permute.xlu0 %3318
  %3320 = vrot.lane.b32.xlu0 %v3081, 24
  %v3321 = vpop.permute.xlu0 %3320
  %3322 = vrot.lane.b32.xlu0 %v3083, 24
  %v3323 = vpop.permute.xlu0 %3322
  %3324 = vrot.lane.b32.xlu0 %v3106, 24
  %v3325 = vpop.permute.xlu0 %3324
  %3326 = vrot.lane.b32.xlu0 %v3108, 24
  %v3327 = vpop.permute.xlu0 %3326
  %3328 = vrot.lane.b32.xlu0 %v3131, 24
  %v3329 = vpop.permute.xlu0 %3328
  %3330 = vrot.lane.b32.xlu0 %v3133, 24
  %v3331 = vpop.permute.xlu0 %3330
  %3332 = vrot.lane.b32.xlu0 %v3156, 24
  %v3333 = vpop.permute.xlu0 %3332
  %3334 = vrot.lane.b32.xlu0 %v3158, 24
  %v3335 = vpop.permute.xlu0 %3334
  %v3352 = vsel %vm730, %v1194, %v3177
  %v3353 = vsel %vm730, %v1196, %v3179
  %v3354 = vsel %vm730, %v1224, %v3181
  %v3355 = vsel %vm730, %v1226, %v3183
  %v3356 = vsel %vm730, %v1254, %v3185
  %v3357 = vsel %vm730, %v1256, %v3187
  %v3358 = vsel %vm730, %v1284, %v3189
  %v3359 = vsel %vm730, %v1286, %v3191
  %v3360 = vsel %vm730, %v1314, %v3193
  %v3361 = vsel %vm730, %v1316, %v3195
  %v3362 = vsel %vm730, %v1344, %v3197
  %v3363 = vsel %vm730, %v1346, %v3199
  %v3364 = vsel %vm730, %v1374, %v3201
  %v3365 = vsel %vm730, %v1376, %v3203
  %v3366 = vsel %vm730, %v1404, %v3205
  %v3367 = vsel %vm730, %v1406, %v3207
  %v3368 = vsel %vm975, %v3352, %v3241
  %v3369 = vsel %vm975, %v3353, %v3243
  %v3370 = vsel %vm975, %v3354, %v3245
  %v3371 = vsel %vm975, %v3355, %v3247
  %v3372 = vsel %vm975, %v3356, %v3249
  %v3373 = vsel %vm975, %v3357, %v3251
  %v3374 = vsel %vm975, %v3358, %v3253
  %v3375 = vsel %vm975, %v3359, %v3255
  %v3376 = vsel %vm975, %v3360, %v3257
  %v3377 = vsel %vm975, %v3361, %v3259
  %v3378 = vsel %vm975, %v3362, %v3261
  %v3379 = vsel %vm975, %v3363, %v3263
  %v3380 = vsel %vm975, %v3364, %v3265
  %v3381 = vsel %vm975, %v3365, %v3267
  %v3382 = vsel %vm975, %v3366, %v3269
  %v3383 = vsel %vm975, %v3367, %v3271
  %vm3384 = vcmask 195584
  %v3385 = vsel %vm3384, %v3368, %v3305
  %v3386 = vsel %vm3384, %v3369, %v3307
  %v3387 = vsel %vm3384, %v3370, %v3309
  %v3388 = vsel %vm3384, %v3371, %v3311
  %v3389 = vsel %vm3384, %v3372, %v3313
  %v3390 = vsel %vm3384, %v3373, %v3315
  %v3391 = vsel %vm3384, %v3374, %v3317
  %v3392 = vsel %vm3384, %v3375, %v3319
  %v3393 = vsel %vm3384, %v3376, %v3321
  %v3394 = vsel %vm3384, %v3377, %v3323
  %v3395 = vsel %vm3384, %v3378, %v3325
  %v3396 = vsel %vm3384, %v3379, %v3327
  %v3397 = vsel %vm3384, %v3380, %v3329
  %v3398 = vsel %vm3384, %v3381, %v3331
  %v3399 = vsel %vm3384, %v3382, %v3333
  %v3400 = vsel %vm3384, %v3383, %v3335
  %v3401 = vpack.c.bf16 %v3386, %v3385
  %v3402 = vpack.c.bf16 %v3388, %v3387
  %v3403 = vpack.c.bf16 %v3390, %v3389
  %v3404 = vpack.c.bf16 %v3392, %v3391
  %v3405 = vpack.c.bf16 %v3394, %v3393
  %v3406 = vpack.c.bf16 %v3396, %v3395
  %v3407 = vpack.c.bf16 %v3398, %v3397
  %v3408 = vpack.c.bf16 %v3400, %v3399
  %v3409 = vld [vmem:[%s7] sm:$0xf]
  %v3410 = vld [vmem:[%s7 + $0x4] sm:$0xf]
  %v3411 = vld [vmem:[%s7 + $0x8] sm:$0xf]
  %v3412 = vld [vmem:[%s7 + $0xc] sm:$0xf]
  %v3413 = vld [vmem:[%s8] sm:$0x1]
  %v3415 = vperm.slane %v3413, 0
  %v3421 = vunpack.c.l.b16 %v3409
  %v3422 = vunpack.c.l.b16 %v3410
  %v3423 = vunpack.c.l.b16 %v3411
  %v3424 = vunpack.c.l.b16 %v3412
  %v3425 = vpack.c.b16 %v3422, %v3421
  %v3426 = vpack.c.b16 %v3424, %v3423
  %v3430 = vsel %vm49, %v3401, 0
  %v3433 = vsel %vm49, %v3402, 0
  %v3436 = vsel %vm49, %v3403, 0
  %v3439 = vsel %vm49, %v3404, 0
  %v3442 = vsel %vm49, %v3405, 0
  %v3445 = vsel %vm49, %v3406, 0
  %v3448 = vsel %vm49, %v3407, 0
  %v3451 = vsel %vm49, %v3408, 0
  %3453 = vmatpush.bf16.msra.mxu0 0
  %3454 = vmatpush.bf16.msra.mxu0 0
  %3455 = vmatpush.bf16.msra.mxu0 0
  %3456 = vmatpush.bf16.msra.mxu0 0
  %3457 = vmatpush.bf16.msra.mxu0 0
  %3458 = vmatpush.bf16.msra.mxu0 0
  %3459 = vmatpush.bf16.msra.mxu0 %v3426
  %3460 = vmatpush.bf16.msra.mxu0 %v3425
  %3461 = vmatmul.bf16.gmra.mxu0 %v3430
  %v3462 = vpop.f32.mrf.mxu0
  %v3463 = vadd.f32 %v3415, %v3462
  %v3464 = vpop.f32.mrf.mxu0
  %v3465 = vadd.f32 %v3415, %v3464
  %3466 = vmatmul.bf16.gmra.mxu0 %v3433
  %v3467 = vpop.f32.mrf.mxu0
  %v3468 = vadd.f32 %v3415, %v3467
  %v3469 = vpop.f32.mrf.mxu0
  %v3470 = vadd.f32 %v3415, %v3469
  %3471 = vmatmul.bf16.gmra.mxu0 %v3436
  %v3472 = vpop.f32.mrf.mxu0
  %v3473 = vadd.f32 %v3415, %v3472
  %v3474 = vpop.f32.mrf.mxu0
  %v3475 = vadd.f32 %v3415, %v3474
  %3476 = vmatmul.bf16.gmra.mxu0 %v3439
  %v3477 = vpop.f32.mrf.mxu0
  %v3478 = vadd.f32 %v3415, %v3477
  %v3479 = vpop.f32.mrf.mxu0
  %v3480 = vadd.f32 %v3415, %v3479
  %3481 = vmatmul.bf16.gmra.mxu0 %v3442
  %v3482 = vpop.f32.mrf.mxu0
  %v3483 = vadd.f32 %v3415, %v3482
  %v3484 = vpop.f32.mrf.mxu0
  %v3485 = vadd.f32 %v3415, %v3484
  %3486 = vmatmul.bf16.gmra.mxu0 %v3445
  %v3487 = vpop.f32.mrf.mxu0
  %v3488 = vadd.f32 %v3415, %v3487
  %v3489 = vpop.f32.mrf.mxu0
  %v3490 = vadd.f32 %v3415, %v3489
  %3491 = vmatmul.bf16.gmra.mxu0 %v3448
  %v3492 = vpop.f32.mrf.mxu0
  %v3493 = vadd.f32 %v3415, %v3492
  %v3494 = vpop.f32.mrf.mxu0
  %v3495 = vadd.f32 %v3415, %v3494
  %3496 = vmatmul.bf16.gmra.mxu0 %v3451
  %v3497 = vpop.f32.mrf.mxu0
  %v3498 = vadd.f32 %v3415, %v3497
  %v3499 = vpop.f32.mrf.mxu0
  %v3500 = vadd.f32 %v3415, %v3499
  %3501 = vdwg.mxu0
  %3502 = vst.msk [vmem:[%s9] sm:$0xff] %vm49, %v3463
  %3503 = vst.msk [vmem:[%s9 + $0x8] sm:$0xff] %vm49, %v3465
  %3504 = vst.msk [vmem:[%s9 + $0x10] sm:$0xff] %vm49, %v3468
  %3505 = vst.msk [vmem:[%s9 + $0x18] sm:$0xff] %vm49, %v3470
  %3506 = vst.msk [vmem:[%s9 + $0x20] sm:$0xff] %vm49, %v3473
  %3507 = vst.msk [vmem:[%s9 + $0x28] sm:$0xff] %vm49, %v3475
  %3508 = vst.msk [vmem:[%s9 + $0x30] sm:$0xff] %vm49, %v3478
  %3509 = vst.msk [vmem:[%s9 + $0x38] sm:$0xff] %vm49, %v3480
  %3510 = vst.msk [vmem:[%s9 + $0x40] sm:$0xff] %vm49, %v3483
  %3511 = vst.msk [vmem:[%s9 + $0x48] sm:$0xff] %vm49, %v3485
  %3512 = vst.msk [vmem:[%s9 + $0x50] sm:$0xff] %vm49, %v3488
  %3513 = vst.msk [vmem:[%s9 + $0x58] sm:$0xff] %vm49, %v3490
  %3514 = vst.msk [vmem:[%s9 + $0x60] sm:$0xff] %vm49, %v3493
  %3515 = vst.msk [vmem:[%s9 + $0x68] sm:$0xff] %vm49, %v3495
  %3516 = vst.msk [vmem:[%s9 + $0x70] sm:$0xff] %vm49, %v3498
  %3517 = vst.msk [vmem:[%s9 + $0x78] sm:$0xff] %vm49, %v3500
  // Predicated region
  $region38: #{swin_transformer_forward.4} parent=0 // pred_check
    _
  $region39: #{swin_transformer_forward.4} parent=0 // pred_check_branch
    %3519 = sbr.rel (0) target = $region41
  $region40: #{swin_transformer_forward.4} parent=0 // pred_region
    _
  $region41: #{swin_transformer_forward.4} parent=0 // pred_fallthru
    _
  // Predicated region
  $region42: #{swin_transformer_forward.4} parent=0 // pred_check
    _
  $region43: #{swin_transformer_forward.4} parent=0 // pred_check_branch
    %3521 = sbr.rel (0) target = $region45
  $region44: #{swin_transformer_forward.4} parent=0 // pred_region
    _
  $region45: #{swin_transformer_forward.4} parent=0 // pred_fallthru
    _

// kernel: swin_transformer_forward.6
$region0: #{swin_transformer_forward.6}
  #allocation0 [shape = 'u32[]', space=smem, size = 0x4, offset = 0x4, fixed_abs, tag = 'smem constant byte address 0x4 - core index']
  #allocation1 [shape = 'u32[72,128]{1,0:T(1,128)}', space=vmem, size = 0x9000, scoped, tag = 'internal scratch']
  %s0 = inlined_call_operand.vmem [shape: f32[8,16,32], index: 0, kind: input, shape index: {}]
  %s1 = inlined_call_operand.vmem [shape: f32[8,16,32], index: 1, kind: input, shape index: {}]
  %s2 = inlined_call_operand.vmem [shape: f32[8,4,16,16], index: 2, kind: input, shape index: {}]
  %s3 = inlined_call_operand.vmem [shape: f32[1,32], index: 3, kind: input, shape index: {}]
  %s4 = inlined_call_operand.vmem [shape: f32[1,32], index: 4, kind: input, shape index: {}]
  %s5 = inlined_call_operand.vmem [shape: bf16[32,96], index: 5, kind: input, shape index: {}]
  %s6 = inlined_call_operand.vmem [shape: f32[1,96], index: 6, kind: input, shape index: {}]
  %s7 = inlined_call_operand.vmem [shape: bf16[32,32], index: 7, kind: input, shape index: {}]
  %s8 = inlined_call_operand.vmem [shape: f32[1,32], index: 8, kind: input, shape index: {}]
  %s9 = inlined_call_operand.vmem [shape: f32[8,16,32], index: 9, kind: output, shape index: {}]
  %s10 = sld [smem:[#allocation0]]
  $region46: #{swin_transformer_forward.6} parent=0
    _
  %s12 = ssub.s32 1, %s10
  %s13 = scalar_select 0, %s12, %s10
  // Predicated region
  $region2: #{swin_transformer_forward.6} parent=0 // pred_check
    _
  $region3: #{swin_transformer_forward.6} parent=0 // pred_check_branch
    %15 = sbr.rel (0) target = $region5
  $region4: #{swin_transformer_forward.6} parent=0 // pred_region
    _
  $region5: #{swin_transformer_forward.6} parent=0 // pred_fallthru
    _
  // Predicated region
  $region6: #{swin_transformer_forward.6} parent=0 // pred_check
    _
  $region7: #{swin_transformer_forward.6} parent=0 // pred_check_branch
    %17 = sbr.rel (0) target = $region9
  $region8: #{swin_transformer_forward.6} parent=0 // pred_region
    _
  $region9: #{swin_transformer_forward.6} parent=0 // pred_fallthru
    _
  // Predicated region
  $region10: #{swin_transformer_forward.6} parent=0 // pred_check
    _
  $region11: #{swin_transformer_forward.6} parent=0 // pred_check_branch
    %19 = sbr.rel (0) target = $region13
  $region12: #{swin_transformer_forward.6} parent=0 // pred_region
    _
  $region13: #{swin_transformer_forward.6} parent=0 // pred_fallthru
    _
  // Predicated region
  $region14: #{swin_transformer_forward.6} parent=0 // pred_check
    _
  $region15: #{swin_transformer_forward.6} parent=0 // pred_check_branch
    %21 = sbr.rel (0) target = $region17
  $region16: #{swin_transformer_forward.6} parent=0 // pred_region
    _
  $region17: #{swin_transformer_forward.6} parent=0 // pred_fallthru
    _
  // Predicated region
  $region18: #{swin_transformer_forward.6} parent=0 // pred_check
    _
  $region19: #{swin_transformer_forward.6} parent=0 // pred_check_branch
    %23 = sbr.rel (0) target = $region21
  $region20: #{swin_transformer_forward.6} parent=0 // pred_region
    _
  $region21: #{swin_transformer_forward.6} parent=0 // pred_fallthru
    _
  // Predicated region
  $region22: #{swin_transformer_forward.6} parent=0 // pred_check
    _
  $region23: #{swin_transformer_forward.6} parent=0 // pred_check_branch
    %25 = sbr.rel (0) target = $region25
  $region24: #{swin_transformer_forward.6} parent=0 // pred_region
    _
  $region25: #{swin_transformer_forward.6} parent=0 // pred_fallthru
    _
  // Predicated region
  $region26: #{swin_transformer_forward.6} parent=0 // pred_check
    _
  $region27: #{swin_transformer_forward.6} parent=0 // pred_check_branch
    %27 = sbr.rel (0) target = $region29
  $region28: #{swin_transformer_forward.6} parent=0 // pred_region
    _
  $region29: #{swin_transformer_forward.6} parent=0 // pred_fallthru
    _
  // Predicated region
  $region30: #{swin_transformer_forward.6} parent=0 // pred_check
    _
  $region31: #{swin_transformer_forward.6} parent=0 // pred_check_branch
    %29 = sbr.rel (0) target = $region33
  $region32: #{swin_transformer_forward.6} parent=0 // pred_region
    _
  $region33: #{swin_transformer_forward.6} parent=0 // pred_fallthru
    _
  // Predicated region
  $region34: #{swin_transformer_forward.6} parent=0 // pred_check
    _
  $region35: #{swin_transformer_forward.6} parent=0 // pred_check_branch
    %31 = sbr.rel (0) target = $region37
  $region36: #{swin_transformer_forward.6} parent=0 // pred_region
    _
  $region37: #{swin_transformer_forward.6} parent=0 // pred_fallthru
    _
  %v33 = vld [vmem:[%s0] sm:$0xff]
  %v34 = vld [vmem:[%s0 + $0x8] sm:$0xff]
  %v35 = vld [vmem:[%s0 + $0x10] sm:$0xff]
  %v36 = vld [vmem:[%s0 + $0x18] sm:$0xff]
  %v37 = vld [vmem:[%s0 + $0x20] sm:$0xff]
  %v38 = vld [vmem:[%s0 + $0x28] sm:$0xff]
  %v39 = vld [vmem:[%s0 + $0x30] sm:$0xff]
  %v40 = vld [vmem:[%s0 + $0x38] sm:$0xff]
  %v41 = vld [vmem:[%s0 + $0x40] sm:$0xff]
  %v42 = vld [vmem:[%s0 + $0x48] sm:$0xff]
  %v43 = vld [vmem:[%s0 + $0x50] sm:$0xff]
  %v44 = vld [vmem:[%s0 + $0x58] sm:$0xff]
  %v45 = vld [vmem:[%s0 + $0x60] sm:$0xff]
  %v46 = vld [vmem:[%s0 + $0x68] sm:$0xff]
  %v47 = vld [vmem:[%s0 + $0x70] sm:$0xff]
  %v48 = vld [vmem:[%s0 + $0x78] sm:$0xff]
  %vm49 = vcmask 261120
  %v50 = vsel %vm49, %v33, 0.0
  %51 = vadd.xlane.f32.xlu0 %v50
  %v52 = vpop.xlane.xlu0 %51
  %v53 = vsel %vm49, %v34, 0.0
  %54 = vadd.xlane.f32.xlu0 %v53
  %v55 = vpop.xlane.xlu0 %54
  %v56 = vsel %vm49, %v35, 0.0
  %57 = vadd.xlane.f32.xlu0 %v56
  %v58 = vpop.xlane.xlu0 %57
  %v59 = vsel %vm49, %v36, 0.0
  %60 = vadd.xlane.f32.xlu0 %v59
  %v61 = vpop.xlane.xlu0 %60
  %v62 = vsel %vm49, %v37, 0.0
  %63 = vadd.xlane.f32.xlu0 %v62
  %v64 = vpop.xlane.xlu0 %63
  %v65 = vsel %vm49, %v38, 0.0
  %66 = vadd.xlane.f32.xlu0 %v65
  %v67 = vpop.xlane.xlu0 %66
  %v68 = vsel %vm49, %v39, 0.0
  %69 = vadd.xlane.f32.xlu0 %v68
  %v70 = vpop.xlane.xlu0 %69
  %v71 = vsel %vm49, %v40, 0.0
  %72 = vadd.xlane.f32.xlu0 %v71
  %v73 = vpop.xlane.xlu0 %72
  %v74 = vsel %vm49, %v41, 0.0
  %75 = vadd.xlane.f32.xlu0 %v74
  %v76 = vpop.xlane.xlu0 %75
  %v77 = vsel %vm49, %v42, 0.0
  %78 = vadd.xlane.f32.xlu0 %v77
  %v79 = vpop.xlane.xlu0 %78
  %v80 = vsel %vm49, %v43, 0.0
  %81 = vadd.xlane.f32.xlu0 %v80
  %v82 = vpop.xlane.xlu0 %81
  %v83 = vsel %vm49, %v44, 0.0
  %84 = vadd.xlane.f32.xlu0 %v83
  %v85 = vpop.xlane.xlu0 %84
  %v86 = vsel %vm49, %v45, 0.0
  %87 = vadd.xlane.f32.xlu0 %v86
  %v88 = vpop.xlane.xlu0 %87
  %v89 = vsel %vm49, %v46, 0.0
  %90 = vadd.xlane.f32.xlu0 %v89
  %v91 = vpop.xlane.xlu0 %90
  %v92 = vsel %vm49, %v47, 0.0
  %93 = vadd.xlane.f32.xlu0 %v92
  %v94 = vpop.xlane.xlu0 %93
  %v95 = vsel %vm49, %v48, 0.0
  %96 = vadd.xlane.f32.xlu0 %v95
  %v97 = vpop.xlane.xlu0 %96
  %v98 = vrcp.pop 32.0
  %v99 = vmul.f32 32.0, %v98
  %v100 = vsub.f32 1.0, %v99
  %v101 = vmul.f32 %v98, %v100
  %v102 = vadd.f32 %v98, %v101
  %vm103 = vweird.f32 %v98
  %v104 = vsel %vm103, %v98, %v102
  %v105 = vmul.f32 %v52, %v104
  %v106 = vmul.f32 %v55, %v104
  %v107 = vmul.f32 %v58, %v104
  %v108 = vmul.f32 %v61, %v104
  %v109 = vmul.f32 %v64, %v104
  %v110 = vmul.f32 %v67, %v104
  %v111 = vmul.f32 %v70, %v104
  %v112 = vmul.f32 %v73, %v104
  %v113 = vmul.f32 %v76, %v104
  %v114 = vmul.f32 %v79, %v104
  %v115 = vmul.f32 %v82, %v104
  %v116 = vmul.f32 %v85, %v104
  %v117 = vmul.f32 %v88, %v104
  %v118 = vmul.f32 %v91, %v104
  %v119 = vmul.f32 %v94, %v104
  %v120 = vmul.f32 %v97, %v104
  %v121 = vsub.f32 %v33, %v105
  %v122 = vsub.f32 %v34, %v106
  %v123 = vsub.f32 %v35, %v107
  %v124 = vsub.f32 %v36, %v108
  %v125 = vsub.f32 %v37, %v109
  %v126 = vsub.f32 %v38, %v110
  %v127 = vsub.f32 %v39, %v111
  %v128 = vsub.f32 %v40, %v112
  %v129 = vsub.f32 %v41, %v113
  %v130 = vsub.f32 %v42, %v114
  %v131 = vsub.f32 %v43, %v115
  %v132 = vsub.f32 %v44, %v116
  %v133 = vsub.f32 %v45, %v117
  %v134 = vsub.f32 %v46, %v118
  %v135 = vsub.f32 %v47, %v119
  %v136 = vsub.f32 %v48, %v120
  %v137 = vmul.f32 %v121, %v121
  %v138 = vmul.f32 %v122, %v122
  %v139 = vmul.f32 %v123, %v123
  %v140 = vmul.f32 %v124, %v124
  %v141 = vmul.f32 %v125, %v125
  %v142 = vmul.f32 %v126, %v126
  %v143 = vmul.f32 %v127, %v127
  %v144 = vmul.f32 %v128, %v128
  %v145 = vmul.f32 %v129, %v129
  %v146 = vmul.f32 %v130, %v130
  %v147 = vmul.f32 %v131, %v131
  %v148 = vmul.f32 %v132, %v132
  %v149 = vmul.f32 %v133, %v133
  %v150 = vmul.f32 %v134, %v134
  %v151 = vmul.f32 %v135, %v135
  %v152 = vmul.f32 %v136, %v136
  %v153 = vsel %vm49, %v137, 0.0
  %154 = vadd.xlane.f32.xlu0 %v153
  %v155 = vpop.xlane.xlu0 %154
  %v156 = vsel %vm49, %v138, 0.0
  %157 = vadd.xlane.f32.xlu0 %v156
  %v158 = vpop.xlane.xlu0 %157
  %v159 = vsel %vm49, %v139, 0.0
  %160 = vadd.xlane.f32.xlu0 %v159
  %v161 = vpop.xlane.xlu0 %160
  %v162 = vsel %vm49, %v140, 0.0
  %163 = vadd.xlane.f32.xlu0 %v162
  %v164 = vpop.xlane.xlu0 %163
  %v165 = vsel %vm49, %v141, 0.0
  %166 = vadd.xlane.f32.xlu0 %v165
  %v167 = vpop.xlane.xlu0 %166
  %v168 = vsel %vm49, %v142, 0.0
  %169 = vadd.xlane.f32.xlu0 %v168
  %v170 = vpop.xlane.xlu0 %169
  %v171 = vsel %vm49, %v143, 0.0
  %172 = vadd.xlane.f32.xlu0 %v171
  %v173 = vpop.xlane.xlu0 %172
  %v174 = vsel %vm49, %v144, 0.0
  %175 = vadd.xlane.f32.xlu0 %v174
  %v176 = vpop.xlane.xlu0 %175
  %v177 = vsel %vm49, %v145, 0.0
  %178 = vadd.xlane.f32.xlu0 %v177
  %v179 = vpop.xlane.xlu0 %178
  %v180 = vsel %vm49, %v146, 0.0
  %181 = vadd.xlane.f32.xlu0 %v180
  %v182 = vpop.xlane.xlu0 %181
  %v183 = vsel %vm49, %v147, 0.0
  %184 = vadd.xlane.f32.xlu0 %v183
  %v185 = vpop.xlane.xlu0 %184
  %v186 = vsel %vm49, %v148, 0.0
  %187 = vadd.xlane.f32.xlu0 %v186
  %v188 = vpop.xlane.xlu0 %187
  %v189 = vsel %vm49, %v149, 0.0
  %190 = vadd.xlane.f32.xlu0 %v189
  %v191 = vpop.xlane.xlu0 %190
  %v192 = vsel %vm49, %v150, 0.0
  %193 = vadd.xlane.f32.xlu0 %v192
  %v194 = vpop.xlane.xlu0 %193
  %v195 = vsel %vm49, %v151, 0.0
  %196 = vadd.xlane.f32.xlu0 %v195
  %v197 = vpop.xlane.xlu0 %196
  %v198 = vsel %vm49, %v152, 0.0
  %199 = vadd.xlane.f32.xlu0 %v198
  %v200 = vpop.xlane.xlu0 %199
  %v201 = vmul.f32 %v155, %v104
  %v202 = vmul.f32 %v158, %v104
  %v203 = vmul.f32 %v161, %v104
  %v204 = vmul.f32 %v164, %v104
  %v205 = vmul.f32 %v167, %v104
  %v206 = vmul.f32 %v170, %v104
  %v207 = vmul.f32 %v173, %v104
  %v208 = vmul.f32 %v176, %v104
  %v209 = vmul.f32 %v179, %v104
  %v210 = vmul.f32 %v182, %v104
  %v211 = vmul.f32 %v185, %v104
  %v212 = vmul.f32 %v188, %v104
  %v213 = vmul.f32 %v191, %v104
  %v214 = vmul.f32 %v194, %v104
  %v215 = vmul.f32 %v197, %v104
  %v216 = vmul.f32 %v200, %v104
  %v217 = vadd.f32 %v201, 1e-05
  %v218 = vadd.f32 %v202, 1e-05
  %v219 = vadd.f32 %v203, 1e-05
  %v220 = vadd.f32 %v204, 1e-05
  %v221 = vadd.f32 %v205, 1e-05
  %v222 = vadd.f32 %v206, 1e-05
  %v223 = vadd.f32 %v207, 1e-05
  %v224 = vadd.f32 %v208, 1e-05
  %v225 = vadd.f32 %v209, 1e-05
  %v226 = vadd.f32 %v210, 1e-05
  %v227 = vadd.f32 %v211, 1e-05
  %v228 = vadd.f32 %v212, 1e-05
  %v229 = vadd.f32 %v213, 1e-05
  %v230 = vadd.f32 %v214, 1e-05
  %v231 = vadd.f32 %v215, 1e-05
  %v232 = vadd.f32 %v216, 1e-05
  %v233 = vrsqrt.pop %v217
  %v234 = vmul.f32 %v233, %v217
  %v235 = vmul.f32 %v234, %v233
  %v236 = vmul.f32 0.5, %v235
  %v237 = vsub.f32 1.5, %v236
  %v238 = vmul.f32 %v233, %v237
  %vm239 = vweird.f32 %v217
  %vm240 = vweird.f32 %v233
  %vm241 = vmor %vm239, %vm240
  %v242 = vsel %vm241, %v233, %v238
  %v243 = vrsqrt.pop %v218
  %v244 = vmul.f32 %v243, %v218
  %v245 = vmul.f32 %v244, %v243
  %v246 = vmul.f32 0.5, %v245
  %v247 = vsub.f32 1.5, %v246
  %v248 = vmul.f32 %v243, %v247
  %vm249 = vweird.f32 %v218
  %vm250 = vweird.f32 %v243
  %vm251 = vmor %vm249, %vm250
  %v252 = vsel %vm251, %v243, %v248
  %v253 = vrsqrt.pop %v219
  %v254 = vmul.f32 %v253, %v219
  %v255 = vmul.f32 %v254, %v253
  %v256 = vmul.f32 0.5, %v255
  %v257 = vsub.f32 1.5, %v256
  %v258 = vmul.f32 %v253, %v257
  %vm259 = vweird.f32 %v219
  %vm260 = vweird.f32 %v253
  %vm261 = vmor %vm259, %vm260
  %v262 = vsel %vm261, %v253, %v258
  %v263 = vrsqrt.pop %v220
  %v264 = vmul.f32 %v263, %v220
  %v265 = vmul.f32 %v264, %v263
  %v266 = vmul.f32 0.5, %v265
  %v267 = vsub.f32 1.5, %v266
  %v268 = vmul.f32 %v263, %v267
  %vm269 = vweird.f32 %v220
  %vm270 = vweird.f32 %v263
  %vm271 = vmor %vm269, %vm270
  %v272 = vsel %vm271, %v263, %v268
  %v273 = vrsqrt.pop %v221
  %v274 = vmul.f32 %v273, %v221
  %v275 = vmul.f32 %v274, %v273
  %v276 = vmul.f32 0.5, %v275
  %v277 = vsub.f32 1.5, %v276
  %v278 = vmul.f32 %v273, %v277
  %vm279 = vweird.f32 %v221
  %vm280 = vweird.f32 %v273
  %vm281 = vmor %vm279, %vm280
  %v282 = vsel %vm281, %v273, %v278
  %v283 = vrsqrt.pop %v222
  %v284 = vmul.f32 %v283, %v222
  %v285 = vmul.f32 %v284, %v283
  %v286 = vmul.f32 0.5, %v285
  %v287 = vsub.f32 1.5, %v286
  %v288 = vmul.f32 %v283, %v287
  %vm289 = vweird.f32 %v222
  %vm290 = vweird.f32 %v283
  %vm291 = vmor %vm289, %vm290
  %v292 = vsel %vm291, %v283, %v288
  %v293 = vrsqrt.pop %v223
  %v294 = vmul.f32 %v293, %v223
  %v295 = vmul.f32 %v294, %v293
  %v296 = vmul.f32 0.5, %v295
  %v297 = vsub.f32 1.5, %v296
  %v298 = vmul.f32 %v293, %v297
  %vm299 = vweird.f32 %v223
  %vm300 = vweird.f32 %v293
  %vm301 = vmor %vm299, %vm300
  %v302 = vsel %vm301, %v293, %v298
  %v303 = vrsqrt.pop %v224
  %v304 = vmul.f32 %v303, %v224
  %v305 = vmul.f32 %v304, %v303
  %v306 = vmul.f32 0.5, %v305
  %v307 = vsub.f32 1.5, %v306
  %v308 = vmul.f32 %v303, %v307
  %vm309 = vweird.f32 %v224
  %vm310 = vweird.f32 %v303
  %vm311 = vmor %vm309, %vm310
  %v312 = vsel %vm311, %v303, %v308
  %v313 = vrsqrt.pop %v225
  %v314 = vmul.f32 %v313, %v225
  %v315 = vmul.f32 %v314, %v313
  %v316 = vmul.f32 0.5, %v315
  %v317 = vsub.f32 1.5, %v316
  %v318 = vmul.f32 %v313, %v317
  %vm319 = vweird.f32 %v225
  %vm320 = vweird.f32 %v313
  %vm321 = vmor %vm319, %vm320
  %v322 = vsel %vm321, %v313, %v318
  %v323 = vrsqrt.pop %v226
  %v324 = vmul.f32 %v323, %v226
  %v325 = vmul.f32 %v324, %v323
  %v326 = vmul.f32 0.5, %v325
  %v327 = vsub.f32 1.5, %v326
  %v328 = vmul.f32 %v323, %v327
  %vm329 = vweird.f32 %v226
  %vm330 = vweird.f32 %v323
  %vm331 = vmor %vm329, %vm330
  %v332 = vsel %vm331, %v323, %v328
  %v333 = vrsqrt.pop %v227
  %v334 = vmul.f32 %v333, %v227
  %v335 = vmul.f32 %v334, %v333
  %v336 = vmul.f32 0.5, %v335
  %v337 = vsub.f32 1.5, %v336
  %v338 = vmul.f32 %v333, %v337
  %vm339 = vweird.f32 %v227
  %vm340 = vweird.f32 %v333
  %vm341 = vmor %vm339, %vm340
  %v342 = vsel %vm341, %v333, %v338
  %v343 = vrsqrt.pop %v228
  %v344 = vmul.f32 %v343, %v228
  %v345 = vmul.f32 %v344, %v343
  %v346 = vmul.f32 0.5, %v345
  %v347 = vsub.f32 1.5, %v346
  %v348 = vmul.f32 %v343, %v347
  %vm349 = vweird.f32 %v228
  %vm350 = vweird.f32 %v343
  %vm351 = vmor %vm349, %vm350
  %v352 = vsel %vm351, %v343, %v348
  %v353 = vrsqrt.pop %v229
  %v354 = vmul.f32 %v353, %v229
  %v355 = vmul.f32 %v354, %v353
  %v356 = vmul.f32 0.5, %v355
  %v357 = vsub.f32 1.5, %v356
  %v358 = vmul.f32 %v353, %v357
  %vm359 = vweird.f32 %v229
  %vm360 = vweird.f32 %v353
  %vm361 = vmor %vm359, %vm360
  %v362 = vsel %vm361, %v353, %v358
  %v363 = vrsqrt.pop %v230
  %v364 = vmul.f32 %v363, %v230
  %v365 = vmul.f32 %v364, %v363
  %v366 = vmul.f32 0.5, %v365
  %v367 = vsub.f32 1.5, %v366
  %v368 = vmul.f32 %v363, %v367
  %vm369 = vweird.f32 %v230
  %vm370 = vweird.f32 %v363
  %vm371 = vmor %vm369, %vm370
  %v372 = vsel %vm371, %v363, %v368
  %v373 = vrsqrt.pop %v231
  %v374 = vmul.f32 %v373, %v231
  %v375 = vmul.f32 %v374, %v373
  %v376 = vmul.f32 0.5, %v375
  %v377 = vsub.f32 1.5, %v376
  %v378 = vmul.f32 %v373, %v377
  %vm379 = vweird.f32 %v231
  %vm380 = vweird.f32 %v373
  %vm381 = vmor %vm379, %vm380
  %v382 = vsel %vm381, %v373, %v378
  %v383 = vrsqrt.pop %v232
  %v384 = vmul.f32 %v383, %v232
  %v385 = vmul.f32 %v384, %v383
  %v386 = vmul.f32 0.5, %v385
  %v387 = vsub.f32 1.5, %v386
  %v388 = vmul.f32 %v383, %v387
  %vm389 = vweird.f32 %v232
  %vm390 = vweird.f32 %v383
  %vm391 = vmor %vm389, %vm390
  %v392 = vsel %vm391, %v383, %v388
  %v393 = vmul.f32 %v121, %v242
  %v394 = vmul.f32 %v122, %v252
  %v395 = vmul.f32 %v123, %v262
  %v396 = vmul.f32 %v124, %v272
  %v397 = vmul.f32 %v125, %v282
  %v398 = vmul.f32 %v126, %v292
  %v399 = vmul.f32 %v127, %v302
  %v400 = vmul.f32 %v128, %v312
  %v401 = vmul.f32 %v129, %v322
  %v402 = vmul.f32 %v130, %v332
  %v403 = vmul.f32 %v131, %v342
  %v404 = vmul.f32 %v132, %v352
  %v405 = vmul.f32 %v133, %v362
  %v406 = vmul.f32 %v134, %v372
  %v407 = vmul.f32 %v135, %v382
  %v408 = vmul.f32 %v136, %v392
  %v409 = vld [vmem:[%s3] sm:$0x1]
  %v411 = vperm.slane %v409, 0
  %v413 = vmul.f32 %v393, %v411
  %v414 = vmul.f32 %v394, %v411
  %v415 = vmul.f32 %v395, %v411
  %v416 = vmul.f32 %v396, %v411
  %v417 = vmul.f32 %v397, %v411
  %v418 = vmul.f32 %v398, %v411
  %v419 = vmul.f32 %v399, %v411
  %v420 = vmul.f32 %v400, %v411
  %v421 = vmul.f32 %v401, %v411
  %v422 = vmul.f32 %v402, %v411
  %v423 = vmul.f32 %v403, %v411
  %v424 = vmul.f32 %v404, %v411
  %v425 = vmul.f32 %v405, %v411
  %v426 = vmul.f32 %v406, %v411
  %v427 = vmul.f32 %v407, %v411
  %v428 = vmul.f32 %v408, %v411
  %v429 = vld [vmem:[%s4] sm:$0x1]
  %v431 = vperm.slane %v429, 0
  %v433 = vadd.f32 %v413, %v431
  %v434 = vadd.f32 %v414, %v431
  %v435 = vadd.f32 %v415, %v431
  %v436 = vadd.f32 %v416, %v431
  %v437 = vadd.f32 %v417, %v431
  %v438 = vadd.f32 %v418, %v431
  %v439 = vadd.f32 %v419, %v431
  %v440 = vadd.f32 %v420, %v431
  %v441 = vadd.f32 %v421, %v431
  %v442 = vadd.f32 %v422, %v431
  %v443 = vadd.f32 %v423, %v431
  %v444 = vadd.f32 %v424, %v431
  %v445 = vadd.f32 %v425, %v431
  %v446 = vadd.f32 %v426, %v431
  %v447 = vadd.f32 %v427, %v431
  %v448 = vadd.f32 %v428, %v431
  %v449 = vld [vmem:[%s1] sm:$0xff]
  %v450 = vld [vmem:[%s1 + $0x8] sm:$0xff]
  %v451 = vld [vmem:[%s1 + $0x10] sm:$0xff]
  %v452 = vld [vmem:[%s1 + $0x18] sm:$0xff]
  %v453 = vld [vmem:[%s1 + $0x20] sm:$0xff]
  %v454 = vld [vmem:[%s1 + $0x28] sm:$0xff]
  %v455 = vld [vmem:[%s1 + $0x30] sm:$0xff]
  %v456 = vld [vmem:[%s1 + $0x38] sm:$0xff]
  %v457 = vld [vmem:[%s1 + $0x40] sm:$0xff]
  %v458 = vld [vmem:[%s1 + $0x48] sm:$0xff]
  %v459 = vld [vmem:[%s1 + $0x50] sm:$0xff]
  %v460 = vld [vmem:[%s1 + $0x58] sm:$0xff]
  %v461 = vld [vmem:[%s1 + $0x60] sm:$0xff]
  %v462 = vld [vmem:[%s1 + $0x68] sm:$0xff]
  %v463 = vld [vmem:[%s1 + $0x70] sm:$0xff]
  %v464 = vld [vmem:[%s1 + $0x78] sm:$0xff]
  %v465 = vpack.c.bf16 %v434, %v433
  %v466 = vpack.c.bf16 %v436, %v435
  %v467 = vpack.c.bf16 %v438, %v437
  %v468 = vpack.c.bf16 %v440, %v439
  %v469 = vpack.c.bf16 %v442, %v441
  %v470 = vpack.c.bf16 %v444, %v443
  %v471 = vpack.c.bf16 %v446, %v445
  %v472 = vpack.c.bf16 %v448, %v447
  %v473 = vld [vmem:[%s5] sm:$0xf]
  %v474 = vld [vmem:[%s5 + $0x4] sm:$0xf]
  %v475 = vld [vmem:[%s5 + $0x8] sm:$0xf]
  %v476 = vld [vmem:[%s5 + $0xc] sm:$0xf]
  %v477 = vld [vmem:[%s6] sm:$0x1]
  %v479 = vperm.slane %v477, 0
  %v485 = vunpack.c.l.b16 %v473
  %v486 = vunpack.c.l.b16 %v474
  %v487 = vunpack.c.l.b16 %v475
  %v488 = vunpack.c.l.b16 %v476
  %v489 = vpack.c.b16 %v486, %v485
  %v490 = vpack.c.b16 %v488, %v487
  %v494 = vsel %vm49, %v465, 0
  %v497 = vsel %vm49, %v466, 0
  %v500 = vsel %vm49, %v467, 0
  %v503 = vsel %vm49, %v468, 0
  %v506 = vsel %vm49, %v469, 0
  %v509 = vsel %vm49, %v470, 0
  %v512 = vsel %vm49, %v471, 0
  %v515 = vsel %vm49, %v472, 0
  %517 = vmatpush.bf16.msra.mxu0 0
  %518 = vmatpush.bf16.msra.mxu0 0
  %519 = vmatpush.bf16.msra.mxu0 0
  %520 = vmatpush.bf16.msra.mxu0 0
  %521 = vmatpush.bf16.msra.mxu0 0
  %522 = vmatpush.bf16.msra.mxu0 0
  %523 = vmatpush.bf16.msra.mxu0 %v490
  %524 = vmatpush.bf16.msra.mxu0 %v489
  %525 = vmatmul.bf16.gmra.mxu0 %v494
  %v526 = vpop.f32.mrf.mxu0
  %v527 = vadd.f32 %v479, %v526
  %v528 = vpop.f32.mrf.mxu0
  %v529 = vadd.f32 %v479, %v528
  %530 = vmatmul.bf16.gmra.mxu0 %v497
  %v531 = vpop.f32.mrf.mxu0
  %v532 = vadd.f32 %v479, %v531
  %v533 = vpop.f32.mrf.mxu0
  %v534 = vadd.f32 %v479, %v533
  %535 = vmatmul.bf16.gmra.mxu0 %v500
  %v536 = vpop.f32.mrf.mxu0
  %v537 = vadd.f32 %v479, %v536
  %v538 = vpop.f32.mrf.mxu0
  %v539 = vadd.f32 %v479, %v538
  %540 = vmatmul.bf16.gmra.mxu0 %v503
  %v541 = vpop.f32.mrf.mxu0
  %v542 = vadd.f32 %v479, %v541
  %v543 = vpop.f32.mrf.mxu0
  %v544 = vadd.f32 %v479, %v543
  %545 = vmatmul.bf16.gmra.mxu0 %v506
  %v546 = vpop.f32.mrf.mxu0
  %v547 = vadd.f32 %v479, %v546
  %v548 = vpop.f32.mrf.mxu0
  %v549 = vadd.f32 %v479, %v548
  %550 = vmatmul.bf16.gmra.mxu0 %v509
  %v551 = vpop.f32.mrf.mxu0
  %v552 = vadd.f32 %v479, %v551
  %v553 = vpop.f32.mrf.mxu0
  %v554 = vadd.f32 %v479, %v553
  %555 = vmatmul.bf16.gmra.mxu0 %v512
  %v556 = vpop.f32.mrf.mxu0
  %v557 = vadd.f32 %v479, %v556
  %v558 = vpop.f32.mrf.mxu0
  %v559 = vadd.f32 %v479, %v558
  %560 = vmatmul.bf16.gmra.mxu0 %v515
  %v561 = vpop.f32.mrf.mxu0
  %v562 = vadd.f32 %v479, %v561
  %v563 = vpop.f32.mrf.mxu0
  %v564 = vadd.f32 %v479, %v563
  %565 = vdwg.mxu0
  %v566 = vmul.f32 %v527, 0.35355338
  %v567 = vmul.f32 %v529, 0.35355338
  %v568 = vmul.f32 %v532, 0.35355338
  %v569 = vmul.f32 %v534, 0.35355338
  %v570 = vmul.f32 %v537, 0.35355338
  %v571 = vmul.f32 %v539, 0.35355338
  %v572 = vmul.f32 %v542, 0.35355338
  %v573 = vmul.f32 %v544, 0.35355338
  %v574 = vmul.f32 %v547, 0.35355338
  %v575 = vmul.f32 %v549, 0.35355338
  %v576 = vmul.f32 %v552, 0.35355338
  %v577 = vmul.f32 %v554, 0.35355338
  %v578 = vmul.f32 %v557, 0.35355338
  %v579 = vmul.f32 %v559, 0.35355338
  %v580 = vmul.f32 %v562, 0.35355338
  %v581 = vmul.f32 %v564, 0.35355338
  %v582 = vpack.c.bf16 %v566, %v566
  %v583 = vpack.c.bf16 %v567, %v567
  %v584 = vpack.c.bf16 %v568, %v568
  %v585 = vpack.c.bf16 %v569, %v569
  %v586 = vpack.c.bf16 %v570, %v570
  %v587 = vpack.c.bf16 %v571, %v571
  %v588 = vpack.c.bf16 %v572, %v572
  %v589 = vpack.c.bf16 %v573, %v573
  %v590 = vpack.c.bf16 %v574, %v574
  %v591 = vpack.c.bf16 %v575, %v575
  %v592 = vpack.c.bf16 %v576, %v576
  %v593 = vpack.c.bf16 %v577, %v577
  %v594 = vpack.c.bf16 %v578, %v578
  %v595 = vpack.c.bf16 %v579, %v579
  %v596 = vpack.c.bf16 %v580, %v580
  %v597 = vpack.c.bf16 %v581, %v581
  %v598 = vpack.c.bf16 %v527, %v527
  %v599 = vpack.c.bf16 %v529, %v529
  %v600 = vpack.c.bf16 %v532, %v532
  %v601 = vpack.c.bf16 %v534, %v534
  %v602 = vpack.c.bf16 %v537, %v537
  %v603 = vpack.c.bf16 %v539, %v539
  %v604 = vpack.c.bf16 %v542, %v542
  %v605 = vpack.c.bf16 %v544, %v544
  %v606 = vpack.c.bf16 %v547, %v547
  %v607 = vpack.c.bf16 %v549, %v549
  %v608 = vpack.c.bf16 %v552, %v552
  %v609 = vpack.c.bf16 %v554, %v554
  %v610 = vpack.c.bf16 %v557, %v557
  %v611 = vpack.c.bf16 %v559, %v559
  %v612 = vpack.c.bf16 %v562, %v562
  %v613 = vpack.c.bf16 %v564, %v564
  %630 = vrot.lane.b32.xlu0 %v449, 64
  %v631 = vpop.permute.xlu0 %630
  %632 = vrot.lane.b32.xlu0 %v450, 64
  %v633 = vpop.permute.xlu0 %632
  %634 = vrot.lane.b32.xlu0 %v451, 64
  %v635 = vpop.permute.xlu0 %634
  %636 = vrot.lane.b32.xlu0 %v452, 64
  %v637 = vpop.permute.xlu0 %636
  %638 = vrot.lane.b32.xlu0 %v453, 64
  %v639 = vpop.permute.xlu0 %638
  %640 = vrot.lane.b32.xlu0 %v454, 64
  %v641 = vpop.permute.xlu0 %640
  %642 = vrot.lane.b32.xlu0 %v455, 64
  %v643 = vpop.permute.xlu0 %642
  %644 = vrot.lane.b32.xlu0 %v456, 64
  %v645 = vpop.permute.xlu0 %644
  %646 = vrot.lane.b32.xlu0 %v457, 64
  %v647 = vpop.permute.xlu0 %646
  %648 = vrot.lane.b32.xlu0 %v458, 64
  %v649 = vpop.permute.xlu0 %648
  %650 = vrot.lane.b32.xlu0 %v459, 64
  %v651 = vpop.permute.xlu0 %650
  %652 = vrot.lane.b32.xlu0 %v460, 64
  %v653 = vpop.permute.xlu0 %652
  %654 = vrot.lane.b32.xlu0 %v461, 64
  %v655 = vpop.permute.xlu0 %654
  %656 = vrot.lane.b32.xlu0 %v462, 64
  %v657 = vpop.permute.xlu0 %656
  %658 = vrot.lane.b32.xlu0 %v463, 64
  %v659 = vpop.permute.xlu0 %658
  %660 = vrot.lane.b32.xlu0 %v464, 64
  %v661 = vpop.permute.xlu0 %660
  %v678 = vmul.f32 %v527, %v631
  %v679 = vmul.f32 %v529, %v633
  %v680 = vmul.f32 %v532, %v635
  %v681 = vmul.f32 %v534, %v637
  %v682 = vmul.f32 %v537, %v639
  %v683 = vmul.f32 %v539, %v641
  %v684 = vmul.f32 %v542, %v643
  %v685 = vmul.f32 %v544, %v645
  %v686 = vmul.f32 %v547, %v647
  %v687 = vmul.f32 %v549, %v649
  %v688 = vmul.f32 %v552, %v651
  %v689 = vmul.f32 %v554, %v653
  %v690 = vmul.f32 %v557, %v655
  %v691 = vmul.f32 %v559, %v657
  %v692 = vmul.f32 %v562, %v659
  %v693 = vmul.f32 %v564, %v661
  %v694 = vpack.c.bf16 %v678, %v678
  %v695 = vpack.c.bf16 %v679, %v679
  %v696 = vpack.c.bf16 %v680, %v680
  %v697 = vpack.c.bf16 %v681, %v681
  %v698 = vpack.c.bf16 %v682, %v682
  %v699 = vpack.c.bf16 %v683, %v683
  %v700 = vpack.c.bf16 %v684, %v684
  %v701 = vpack.c.bf16 %v685, %v685
  %v702 = vpack.c.bf16 %v686, %v686
  %v703 = vpack.c.bf16 %v687, %v687
  %v704 = vpack.c.bf16 %v688, %v688
  %v705 = vpack.c.bf16 %v689, %v689
  %v706 = vpack.c.bf16 %v690, %v690
  %v707 = vpack.c.bf16 %v691, %v691
  %v708 = vpack.c.bf16 %v692, %v692
  %v709 = vpack.c.bf16 %v693, %v693
  %v710 = vld [vmem:[%s2] sm:$0xff]
  %v711 = vld [vmem:[%s2 + $0x8] sm:$0xff]
  %v712 = vld [vmem:[%s2 + $0x10] sm:$0xff]
  %v713 = vld [vmem:[%s2 + $0x18] sm:$0xff]
  %v714 = vld [vmem:[%s2 + $0x20] sm:$0xff]
  %v715 = vld [vmem:[%s2 + $0x28] sm:$0xff]
  %v716 = vld [vmem:[%s2 + $0x30] sm:$0xff]
  %v717 = vld [vmem:[%s2 + $0x38] sm:$0xff]
  %v718 = vld [vmem:[%s2 + $0x40] sm:$0xff]
  %v719 = vld [vmem:[%s2 + $0x48] sm:$0xff]
  %v720 = vld [vmem:[%s2 + $0x50] sm:$0xff]
  %v721 = vld [vmem:[%s2 + $0x58] sm:$0xff]
  %v722 = vld [vmem:[%s2 + $0x60] sm:$0xff]
  %v723 = vld [vmem:[%s2 + $0x68] sm:$0xff]
  %v724 = vld [vmem:[%s2 + $0x70] sm:$0xff]
  %v725 = vld [vmem:[%s2 + $0x78] sm:$0xff]
  %v726 = vld [vmem:[%s2 + $0x80] sm:$0xff]
  %v727 = vld [vmem:[%s2 + $0x88] sm:$0xff]
  %v728 = vld [vmem:[%s2 + $0x90] sm:$0xff]
  %v729 = vld [vmem:[%s2 + $0x98] sm:$0xff]
  %v730 = vld [vmem:[%s2 + $0xa0] sm:$0xff]
  %v731 = vld [vmem:[%s2 + $0xa8] sm:$0xff]
  %v732 = vld [vmem:[%s2 + $0xb0] sm:$0xff]
  %v733 = vld [vmem:[%s2 + $0xb8] sm:$0xff]
  %v734 = vld [vmem:[%s2 + $0xc0] sm:$0xff]
  %v735 = vld [vmem:[%s2 + $0xc8] sm:$0xff]
  %v736 = vld [vmem:[%s2 + $0xd0] sm:$0xff]
  %v737 = vld [vmem:[%s2 + $0xd8] sm:$0xff]
  %v738 = vld [vmem:[%s2 + $0xe0] sm:$0xff]
  %v739 = vld [vmem:[%s2 + $0xe8] sm:$0xff]
  %v740 = vld [vmem:[%s2 + $0xf0] sm:$0xff]
  %v741 = vld [vmem:[%s2 + $0xf8] sm:$0xff]
  %v742 = vld [vmem:[%s2 + $0x100] sm:$0xff]
  %v743 = vld [vmem:[%s2 + $0x108] sm:$0xff]
  %v744 = vld [vmem:[%s2 + $0x110] sm:$0xff]
  %v745 = vld [vmem:[%s2 + $0x118] sm:$0xff]
  %v746 = vld [vmem:[%s2 + $0x120] sm:$0xff]
  %v747 = vld [vmem:[%s2 + $0x128] sm:$0xff]
  %v748 = vld [vmem:[%s2 + $0x130] sm:$0xff]
  %v749 = vld [vmem:[%s2 + $0x138] sm:$0xff]
  %v750 = vld [vmem:[%s2 + $0x140] sm:$0xff]
  %v751 = vld [vmem:[%s2 + $0x148] sm:$0xff]
  %v752 = vld [vmem:[%s2 + $0x150] sm:$0xff]
  %v753 = vld [vmem:[%s2 + $0x158] sm:$0xff]
  %v754 = vld [vmem:[%s2 + $0x160] sm:$0xff]
  %v755 = vld [vmem:[%s2 + $0x168] sm:$0xff]
  %v756 = vld [vmem:[%s2 + $0x170] sm:$0xff]
  %v757 = vld [vmem:[%s2 + $0x178] sm:$0xff]
  %v758 = vld [vmem:[%s2 + $0x180] sm:$0xff]
  %v759 = vld [vmem:[%s2 + $0x188] sm:$0xff]
  %v760 = vld [vmem:[%s2 + $0x190] sm:$0xff]
  %v761 = vld [vmem:[%s2 + $0x198] sm:$0xff]
  %v762 = vld [vmem:[%s2 + $0x1a0] sm:$0xff]
  %v763 = vld [vmem:[%s2 + $0x1a8] sm:$0xff]
  %v764 = vld [vmem:[%s2 + $0x1b0] sm:$0xff]
  %v765 = vld [vmem:[%s2 + $0x1b8] sm:$0xff]
  %v766 = vld [vmem:[%s2 + $0x1c0] sm:$0xff]
  %v767 = vld [vmem:[%s2 + $0x1c8] sm:$0xff]
  %v768 = vld [vmem:[%s2 + $0x1d0] sm:$0xff]
  %v769 = vld [vmem:[%s2 + $0x1d8] sm:$0xff]
  %v770 = vld [vmem:[%s2 + $0x1e0] sm:$0xff]
  %v771 = vld [vmem:[%s2 + $0x1e8] sm:$0xff]
  %v772 = vld [vmem:[%s2 + $0x1f0] sm:$0xff]
  %v773 = vld [vmem:[%s2 + $0x1f8] sm:$0xff]
  %v776 = vunpack.c.l.b16 %v582
  %v777 = vunpack.c.l.b16 %v583
  %v778 = vpack.c.b16 %v777, %v776
  %v781 = vunpack.c.l.b16 %v598
  %v782 = vunpack.c.l.b16 %v599
  %v783 = vpack.c.b16 %v782, %v781
  %784 = vrot.lane.b32.xlu0 %v783, 96
  %v785 = vpop.permute.xlu0 %784
  %vm786 = vcmask 64512
  %v788 = vsel %vm786, %v778, 0
  %v791 = vsel %vm786, %v785, 0
  %793 = vmatpush.bf16.xpose.msra.mxu0 0
  %794 = vmatpush.bf16.xpose.msra.mxu0 0
  %795 = vmatpush.bf16.xpose.msra.mxu0 0
  %796 = vmatpush.bf16.xpose.msra.mxu0 0
  %797 = vmatpush.bf16.xpose.msra.mxu0 0
  %798 = vmatpush.bf16.xpose.msra.mxu0 0
  %799 = vmatpush.bf16.xpose.msra.mxu0 0
  %800 = vmatpush.bf16.xpose.msra.mxu0 %v791
  %801 = vmatmul.bf16.gmra.mxu0 %v788
  %v802 = vpop.f32.mrf.mxu0
  %v803 = vadd.f32 %v710, %v802
  %v804 = vpop.f32.mrf.mxu0
  %v805 = vadd.f32 %v711, %v804
  %806 = vdwg.mxu0
  %v809 = vunpack.c.l.b16 %v584
  %v810 = vunpack.c.l.b16 %v585
  %v811 = vpack.c.b16 %v810, %v809
  %v814 = vunpack.c.l.b16 %v600
  %v815 = vunpack.c.l.b16 %v601
  %v816 = vpack.c.b16 %v815, %v814
  %817 = vrot.lane.b32.xlu0 %v816, 96
  %v818 = vpop.permute.xlu0 %817
  %v820 = vsel %vm786, %v811, 0
  %v823 = vsel %vm786, %v818, 0
  %825 = vmatpush.bf16.xpose.msra.mxu0 0
  %826 = vmatpush.bf16.xpose.msra.mxu0 0
  %827 = vmatpush.bf16.xpose.msra.mxu0 0
  %828 = vmatpush.bf16.xpose.msra.mxu0 0
  %829 = vmatpush.bf16.xpose.msra.mxu0 0
  %830 = vmatpush.bf16.xpose.msra.mxu0 0
  %831 = vmatpush.bf16.xpose.msra.mxu0 0
  %832 = vmatpush.bf16.xpose.msra.mxu0 %v823
  %833 = vmatmul.bf16.gmra.mxu0 %v820
  %v834 = vpop.f32.mrf.mxu0
  %v835 = vadd.f32 %v718, %v834
  %v836 = vpop.f32.mrf.mxu0
  %v837 = vadd.f32 %v719, %v836
  %838 = vdwg.mxu0
  %v841 = vunpack.c.l.b16 %v586
  %v842 = vunpack.c.l.b16 %v587
  %v843 = vpack.c.b16 %v842, %v841
  %v846 = vunpack.c.l.b16 %v602
  %v847 = vunpack.c.l.b16 %v603
  %v848 = vpack.c.b16 %v847, %v846
  %849 = vrot.lane.b32.xlu0 %v848, 96
  %v850 = vpop.permute.xlu0 %849
  %v852 = vsel %vm786, %v843, 0
  %v855 = vsel %vm786, %v850, 0
  %857 = vmatpush.bf16.xpose.msra.mxu0 0
  %858 = vmatpush.bf16.xpose.msra.mxu0 0
  %859 = vmatpush.bf16.xpose.msra.mxu0 0
  %860 = vmatpush.bf16.xpose.msra.mxu0 0
  %861 = vmatpush.bf16.xpose.msra.mxu0 0
  %862 = vmatpush.bf16.xpose.msra.mxu0 0
  %863 = vmatpush.bf16.xpose.msra.mxu0 0
  %864 = vmatpush.bf16.xpose.msra.mxu0 %v855
  %865 = vmatmul.bf16.gmra.mxu0 %v852
  %v866 = vpop.f32.mrf.mxu0
  %v867 = vadd.f32 %v726, %v866
  %v868 = vpop.f32.mrf.mxu0
  %v869 = vadd.f32 %v727, %v868
  %870 = vdwg.mxu0
  %v873 = vunpack.c.l.b16 %v588
  %v874 = vunpack.c.l.b16 %v589
  %v875 = vpack.c.b16 %v874, %v873
  %v878 = vunpack.c.l.b16 %v604
  %v879 = vunpack.c.l.b16 %v605
  %v880 = vpack.c.b16 %v879, %v878
  %881 = vrot.lane.b32.xlu0 %v880, 96
  %v882 = vpop.permute.xlu0 %881
  %v884 = vsel %vm786, %v875, 0
  %v887 = vsel %vm786, %v882, 0
  %889 = vmatpush.bf16.xpose.msra.mxu0 0
  %890 = vmatpush.bf16.xpose.msra.mxu0 0
  %891 = vmatpush.bf16.xpose.msra.mxu0 0
  %892 = vmatpush.bf16.xpose.msra.mxu0 0
  %893 = vmatpush.bf16.xpose.msra.mxu0 0
  %894 = vmatpush.bf16.xpose.msra.mxu0 0
  %895 = vmatpush.bf16.xpose.msra.mxu0 0
  %896 = vmatpush.bf16.xpose.msra.mxu0 %v887
  %897 = vmatmul.bf16.gmra.mxu0 %v884
  %v898 = vpop.f32.mrf.mxu0
  %v899 = vadd.f32 %v734, %v898
  %v900 = vpop.f32.mrf.mxu0
  %v901 = vadd.f32 %v735, %v900
  %902 = vdwg.mxu0
  %v905 = vunpack.c.l.b16 %v590
  %v906 = vunpack.c.l.b16 %v591
  %v907 = vpack.c.b16 %v906, %v905
  %v910 = vunpack.c.l.b16 %v606
  %v911 = vunpack.c.l.b16 %v607
  %v912 = vpack.c.b16 %v911, %v910
  %913 = vrot.lane.b32.xlu0 %v912, 96
  %v914 = vpop.permute.xlu0 %913
  %v916 = vsel %vm786, %v907, 0
  %v919 = vsel %vm786, %v914, 0
  %921 = vmatpush.bf16.xpose.msra.mxu0 0
  %922 = vmatpush.bf16.xpose.msra.mxu0 0
  %923 = vmatpush.bf16.xpose.msra.mxu0 0
  %924 = vmatpush.bf16.xpose.msra.mxu0 0
  %925 = vmatpush.bf16.xpose.msra.mxu0 0
  %926 = vmatpush.bf16.xpose.msra.mxu0 0
  %927 = vmatpush.bf16.xpose.msra.mxu0 0
  %928 = vmatpush.bf16.xpose.msra.mxu0 %v919
  %929 = vmatmul.bf16.gmra.mxu0 %v916
  %v930 = vpop.f32.mrf.mxu0
  %v931 = vadd.f32 %v742, %v930
  %v932 = vpop.f32.mrf.mxu0
  %v933 = vadd.f32 %v743, %v932
  %934 = vdwg.mxu0
  %v937 = vunpack.c.l.b16 %v592
  %v938 = vunpack.c.l.b16 %v593
  %v939 = vpack.c.b16 %v938, %v937
  %v942 = vunpack.c.l.b16 %v608
  %v943 = vunpack.c.l.b16 %v609
  %v944 = vpack.c.b16 %v943, %v942
  %945 = vrot.lane.b32.xlu0 %v944, 96
  %v946 = vpop.permute.xlu0 %945
  %v948 = vsel %vm786, %v939, 0
  %v951 = vsel %vm786, %v946, 0
  %953 = vmatpush.bf16.xpose.msra.mxu0 0
  %954 = vmatpush.bf16.xpose.msra.mxu0 0
  %955 = vmatpush.bf16.xpose.msra.mxu0 0
  %956 = vmatpush.bf16.xpose.msra.mxu0 0
  %957 = vmatpush.bf16.xpose.msra.mxu0 0
  %958 = vmatpush.bf16.xpose.msra.mxu0 0
  %959 = vmatpush.bf16.xpose.msra.mxu0 0
  %960 = vmatpush.bf16.xpose.msra.mxu0 %v951
  %961 = vmatmul.bf16.gmra.mxu0 %v948
  %v962 = vpop.f32.mrf.mxu0
  %v963 = vadd.f32 %v750, %v962
  %v964 = vpop.f32.mrf.mxu0
  %v965 = vadd.f32 %v751, %v964
  %966 = vdwg.mxu0
  %v969 = vunpack.c.l.b16 %v594
  %v970 = vunpack.c.l.b16 %v595
  %v971 = vpack.c.b16 %v970, %v969
  %v974 = vunpack.c.l.b16 %v610
  %v975 = vunpack.c.l.b16 %v611
  %v976 = vpack.c.b16 %v975, %v974
  %977 = vrot.lane.b32.xlu0 %v976, 96
  %v978 = vpop.permute.xlu0 %977
  %v980 = vsel %vm786, %v971, 0
  %v983 = vsel %vm786, %v978, 0
  %985 = vmatpush.bf16.xpose.msra.mxu0 0
  %986 = vmatpush.bf16.xpose.msra.mxu0 0
  %987 = vmatpush.bf16.xpose.msra.mxu0 0
  %988 = vmatpush.bf16.xpose.msra.mxu0 0
  %989 = vmatpush.bf16.xpose.msra.mxu0 0
  %990 = vmatpush.bf16.xpose.msra.mxu0 0
  %991 = vmatpush.bf16.xpose.msra.mxu0 0
  %992 = vmatpush.bf16.xpose.msra.mxu0 %v983
  %993 = vmatmul.bf16.gmra.mxu0 %v980
  %v994 = vpop.f32.mrf.mxu0
  %v995 = vadd.f32 %v758, %v994
  %v996 = vpop.f32.mrf.mxu0
  %v997 = vadd.f32 %v759, %v996
  %998 = vdwg.mxu0
  %v1001 = vunpack.c.l.b16 %v596
  %v1002 = vunpack.c.l.b16 %v597
  %v1003 = vpack.c.b16 %v1002, %v1001
  %v1006 = vunpack.c.l.b16 %v612
  %v1007 = vunpack.c.l.b16 %v613
  %v1008 = vpack.c.b16 %v1007, %v1006
  %1009 = vrot.lane.b32.xlu0 %v1008, 96
  %v1010 = vpop.permute.xlu0 %1009
  %v1012 = vsel %vm786, %v1003, 0
  %v1015 = vsel %vm786, %v1010, 0
  %1017 = vmatpush.bf16.xpose.msra.mxu0 0
  %1018 = vmatpush.bf16.xpose.msra.mxu0 0
  %1019 = vmatpush.bf16.xpose.msra.mxu0 0
  %1020 = vmatpush.bf16.xpose.msra.mxu0 0
  %1021 = vmatpush.bf16.xpose.msra.mxu0 0
  %1022 = vmatpush.bf16.xpose.msra.mxu0 0
  %1023 = vmatpush.bf16.xpose.msra.mxu0 0
  %1024 = vmatpush.bf16.xpose.msra.mxu0 %v1015
  %1025 = vmatmul.bf16.gmra.mxu0 %v1012
  %v1026 = vpop.f32.mrf.mxu0
  %v1027 = vadd.f32 %v766, %v1026
  %v1028 = vpop.f32.mrf.mxu0
  %v1029 = vadd.f32 %v767, %v1028
  %1030 = vdwg.mxu0
  %vm1031 = vcmask 130048
  %v1032 = vsel %vm1031, %v803, -inf
  %1033 = vmax.xlane.f32.xlu0 %v1032
  %v1034 = vpop.xlane.xlu0 %1033
  %v1035 = vsel %vm1031, %v805, -inf
  %1036 = vmax.xlane.f32.xlu0 %v1035
  %v1037 = vpop.xlane.xlu0 %1036
  %v1038 = vsel %vm1031, %v835, -inf
  %1039 = vmax.xlane.f32.xlu0 %v1038
  %v1040 = vpop.xlane.xlu0 %1039
  %v1041 = vsel %vm1031, %v837, -inf
  %1042 = vmax.xlane.f32.xlu0 %v1041
  %v1043 = vpop.xlane.xlu0 %1042
  %v1044 = vsel %vm1031, %v867, -inf
  %1045 = vmax.xlane.f32.xlu0 %v1044
  %v1046 = vpop.xlane.xlu0 %1045
  %v1047 = vsel %vm1031, %v869, -inf
  %1048 = vmax.xlane.f32.xlu0 %v1047
  %v1049 = vpop.xlane.xlu0 %1048
  %v1050 = vsel %vm1031, %v899, -inf
  %1051 = vmax.xlane.f32.xlu0 %v1050
  %v1052 = vpop.xlane.xlu0 %1051
  %v1053 = vsel %vm1031, %v901, -inf
  %1054 = vmax.xlane.f32.xlu0 %v1053
  %v1055 = vpop.xlane.xlu0 %1054
  %v1056 = vsel %vm1031, %v931, -inf
  %1057 = vmax.xlane.f32.xlu0 %v1056
  %v1058 = vpop.xlane.xlu0 %1057
  %v1059 = vsel %vm1031, %v933, -inf
  %1060 = vmax.xlane.f32.xlu0 %v1059
  %v1061 = vpop.xlane.xlu0 %1060
  %v1062 = vsel %vm1031, %v963, -inf
  %1063 = vmax.xlane.f32.xlu0 %v1062
  %v1064 = vpop.xlane.xlu0 %1063
  %v1065 = vsel %vm1031, %v965, -inf
  %1066 = vmax.xlane.f32.xlu0 %v1065
  %v1067 = vpop.xlane.xlu0 %1066
  %v1068 = vsel %vm1031, %v995, -inf
  %1069 = vmax.xlane.f32.xlu0 %v1068
  %v1070 = vpop.xlane.xlu0 %1069
  %v1071 = vsel %vm1031, %v997, -inf
  %1072 = vmax.xlane.f32.xlu0 %v1071
  %v1073 = vpop.xlane.xlu0 %1072
  %v1074 = vsel %vm1031, %v1027, -inf
  %1075 = vmax.xlane.f32.xlu0 %v1074
  %v1076 = vpop.xlane.xlu0 %1075
  %v1077 = vsel %vm1031, %v1029, -inf
  %1078 = vmax.xlane.f32.xlu0 %v1077
  %v1079 = vpop.xlane.xlu0 %1078
  %v1080 = vsub.f32 %v803, %v1034
  %v1081 = vsub.f32 %v805, %v1037
  %v1082 = vsub.f32 %v835, %v1040
  %v1083 = vsub.f32 %v837, %v1043
  %v1084 = vsub.f32 %v867, %v1046
  %v1085 = vsub.f32 %v869, %v1049
  %v1086 = vsub.f32 %v899, %v1052
  %v1087 = vsub.f32 %v901, %v1055
  %v1088 = vsub.f32 %v931, %v1058
  %v1089 = vsub.f32 %v933, %v1061
  %v1090 = vsub.f32 %v963, %v1064
  %v1091 = vsub.f32 %v965, %v1067
  %v1092 = vsub.f32 %v995, %v1070
  %v1093 = vsub.f32 %v997, %v1073
  %v1094 = vsub.f32 %v1027, %v1076
  %v1095 = vsub.f32 %v1029, %v1079
  %v1096 = vmul.f32 %v1080, 1.442695
  %v1097 = vpow.pop %v1096
  %v1098 = vmul.f32 %v1081, 1.442695
  %v1099 = vpow.pop %v1098
  %v1100 = vmul.f32 %v1082, 1.442695
  %v1101 = vpow.pop %v1100
  %v1102 = vmul.f32 %v1083, 1.442695
  %v1103 = vpow.pop %v1102
  %v1104 = vmul.f32 %v1084, 1.442695
  %v1105 = vpow.pop %v1104
  %v1106 = vmul.f32 %v1085, 1.442695
  %v1107 = vpow.pop %v1106
  %v1108 = vmul.f32 %v1086, 1.442695
  %v1109 = vpow.pop %v1108
  %v1110 = vmul.f32 %v1087, 1.442695
  %v1111 = vpow.pop %v1110
  %v1112 = vmul.f32 %v1088, 1.442695
  %v1113 = vpow.pop %v1112
  %v1114 = vmul.f32 %v1089, 1.442695
  %v1115 = vpow.pop %v1114
  %v1116 = vmul.f32 %v1090, 1.442695
  %v1117 = vpow.pop %v1116
  %v1118 = vmul.f32 %v1091, 1.442695
  %v1119 = vpow.pop %v1118
  %v1120 = vmul.f32 %v1092, 1.442695
  %v1121 = vpow.pop %v1120
  %v1122 = vmul.f32 %v1093, 1.442695
  %v1123 = vpow.pop %v1122
  %v1124 = vmul.f32 %v1094, 1.442695
  %v1125 = vpow.pop %v1124
  %v1126 = vmul.f32 %v1095, 1.442695
  %v1127 = vpow.pop %v1126
  %v1128 = vsel %vm1031, %v1097, 0.0
  %1129 = vadd.xlane.f32.xlu0 %v1128
  %v1130 = vpop.xlane.xlu0 %1129
  %v1131 = vsel %vm1031, %v1099, 0.0
  %1132 = vadd.xlane.f32.xlu0 %v1131
  %v1133 = vpop.xlane.xlu0 %1132
  %v1134 = vsel %vm1031, %v1101, 0.0
  %1135 = vadd.xlane.f32.xlu0 %v1134
  %v1136 = vpop.xlane.xlu0 %1135
  %v1137 = vsel %vm1031, %v1103, 0.0
  %1138 = vadd.xlane.f32.xlu0 %v1137
  %v1139 = vpop.xlane.xlu0 %1138
  %v1140 = vsel %vm1031, %v1105, 0.0
  %1141 = vadd.xlane.f32.xlu0 %v1140
  %v1142 = vpop.xlane.xlu0 %1141
  %v1143 = vsel %vm1031, %v1107, 0.0
  %1144 = vadd.xlane.f32.xlu0 %v1143
  %v1145 = vpop.xlane.xlu0 %1144
  %v1146 = vsel %vm1031, %v1109, 0.0
  %1147 = vadd.xlane.f32.xlu0 %v1146
  %v1148 = vpop.xlane.xlu0 %1147
  %v1149 = vsel %vm1031, %v1111, 0.0
  %1150 = vadd.xlane.f32.xlu0 %v1149
  %v1151 = vpop.xlane.xlu0 %1150
  %v1152 = vsel %vm1031, %v1113, 0.0
  %1153 = vadd.xlane.f32.xlu0 %v1152
  %v1154 = vpop.xlane.xlu0 %1153
  %v1155 = vsel %vm1031, %v1115, 0.0
  %1156 = vadd.xlane.f32.xlu0 %v1155
  %v1157 = vpop.xlane.xlu0 %1156
  %v1158 = vsel %vm1031, %v1117, 0.0
  %1159 = vadd.xlane.f32.xlu0 %v1158
  %v1160 = vpop.xlane.xlu0 %1159
  %v1161 = vsel %vm1031, %v1119, 0.0
  %1162 = vadd.xlane.f32.xlu0 %v1161
  %v1163 = vpop.xlane.xlu0 %1162
  %v1164 = vsel %vm1031, %v1121, 0.0
  %1165 = vadd.xlane.f32.xlu0 %v1164
  %v1166 = vpop.xlane.xlu0 %1165
  %v1167 = vsel %vm1031, %v1123, 0.0
  %1168 = vadd.xlane.f32.xlu0 %v1167
  %v1169 = vpop.xlane.xlu0 %1168
  %v1170 = vsel %vm1031, %v1125, 0.0
  %1171 = vadd.xlane.f32.xlu0 %v1170
  %v1172 = vpop.xlane.xlu0 %1171
  %v1173 = vsel %vm1031, %v1127, 0.0
  %1174 = vadd.xlane.f32.xlu0 %v1173
  %v1175 = vpop.xlane.xlu0 %1174
  %v1176 = vrcp.pop %v1130
  %v1177 = vrcp.pop %v1133
  %v1178 = vrcp.pop %v1136
  %v1179 = vrcp.pop %v1139
  %v1180 = vrcp.pop %v1142
  %v1181 = vrcp.pop %v1145
  %v1182 = vrcp.pop %v1148
  %v1183 = vrcp.pop %v1151
  %v1184 = vrcp.pop %v1154
  %v1185 = vrcp.pop %v1157
  %v1186 = vrcp.pop %v1160
  %v1187 = vrcp.pop %v1163
  %v1188 = vrcp.pop %v1166
  %v1189 = vrcp.pop %v1169
  %v1190 = vrcp.pop %v1172
  %v1191 = vrcp.pop %v1175
  %v1192 = vmul.f32 %v1097, %v1176
  %v1193 = vmul.f32 %v1099, %v1177
  %v1194 = vmul.f32 %v1101, %v1178
  %v1195 = vmul.f32 %v1103, %v1179
  %v1196 = vmul.f32 %v1105, %v1180
  %v1197 = vmul.f32 %v1107, %v1181
  %v1198 = vmul.f32 %v1109, %v1182
  %v1199 = vmul.f32 %v1111, %v1183
  %v1200 = vmul.f32 %v1113, %v1184
  %v1201 = vmul.f32 %v1115, %v1185
  %v1202 = vmul.f32 %v1117, %v1186
  %v1203 = vmul.f32 %v1119, %v1187
  %v1204 = vmul.f32 %v1121, %v1188
  %v1205 = vmul.f32 %v1123, %v1189
  %v1206 = vmul.f32 %v1125, %v1190
  %v1207 = vmul.f32 %v1127, %v1191
  %v1208 = vpack.c.bf16 %v1192, %v1192
  %v1209 = vpack.c.bf16 %v1193, %v1193
  %v1210 = vpack.c.bf16 %v1194, %v1194
  %v1211 = vpack.c.bf16 %v1195, %v1195
  %v1212 = vpack.c.bf16 %v1196, %v1196
  %v1213 = vpack.c.bf16 %v1197, %v1197
  %v1214 = vpack.c.bf16 %v1198, %v1198
  %v1215 = vpack.c.bf16 %v1199, %v1199
  %v1216 = vpack.c.bf16 %v1200, %v1200
  %v1217 = vpack.c.bf16 %v1201, %v1201
  %v1218 = vpack.c.bf16 %v1202, %v1202
  %v1219 = vpack.c.bf16 %v1203, %v1203
  %v1220 = vpack.c.bf16 %v1204, %v1204
  %v1221 = vpack.c.bf16 %v1205, %v1205
  %v1222 = vpack.c.bf16 %v1206, %v1206
  %v1223 = vpack.c.bf16 %v1207, %v1207
  %v1226 = vunpack.c.l.b16 %v1208
  %v1227 = vunpack.c.l.b16 %v1209
  %v1228 = vpack.c.b16 %v1227, %v1226
  %v1231 = vunpack.c.l.b16 %v694
  %v1232 = vunpack.c.l.b16 %v695
  %v1233 = vpack.c.b16 %v1232, %v1231
  %1234 = vrot.lane.b32.xlu0 %v1233, 64
  %v1235 = vpop.permute.xlu0 %1234
  %v1238 = vsel %vm1031, %v1228, 0
  %1240 = vmatpush.bf16.msra.mxu0 0
  %1241 = vmatpush.bf16.msra.mxu0 0
  %1242 = vmatpush.bf16.msra.mxu0 0
  %1243 = vmatpush.bf16.msra.mxu0 0
  %1244 = vmatpush.bf16.msra.mxu0 0
  %1245 = vmatpush.bf16.msra.mxu0 0
  %1246 = vmatpush.bf16.msra.mxu0 0
  %1247 = vmatpush.bf16.msra.mxu0 %v1235
  %1248 = vmatmul.bf16.gmra.mxu0 %v1238
  %v1249 = vpop.f32.mrf.mxu0
  %v1250 = vadd.f32 0.0, %v1249
  %v1251 = vpop.f32.mrf.mxu0
  %v1252 = vadd.f32 0.0, %v1251
  %1253 = vdwg.mxu0
  %v1256 = vunpack.c.l.b16 %v1210
  %v1257 = vunpack.c.l.b16 %v1211
  %v1258 = vpack.c.b16 %v1257, %v1256
  %v1261 = vunpack.c.l.b16 %v696
  %v1262 = vunpack.c.l.b16 %v697
  %v1263 = vpack.c.b16 %v1262, %v1261
  %1264 = vrot.lane.b32.xlu0 %v1263, 64
  %v1265 = vpop.permute.xlu0 %1264
  %v1268 = vsel %vm1031, %v1258, 0
  %1270 = vmatpush.bf16.msra.mxu0 0
  %1271 = vmatpush.bf16.msra.mxu0 0
  %1272 = vmatpush.bf16.msra.mxu0 0
  %1273 = vmatpush.bf16.msra.mxu0 0
  %1274 = vmatpush.bf16.msra.mxu0 0
  %1275 = vmatpush.bf16.msra.mxu0 0
  %1276 = vmatpush.bf16.msra.mxu0 0
  %1277 = vmatpush.bf16.msra.mxu0 %v1265
  %1278 = vmatmul.bf16.gmra.mxu0 %v1268
  %v1279 = vpop.f32.mrf.mxu0
  %v1280 = vadd.f32 0.0, %v1279
  %v1281 = vpop.f32.mrf.mxu0
  %v1282 = vadd.f32 0.0, %v1281
  %1283 = vdwg.mxu0
  %v1286 = vunpack.c.l.b16 %v1212
  %v1287 = vunpack.c.l.b16 %v1213
  %v1288 = vpack.c.b16 %v1287, %v1286
  %v1291 = vunpack.c.l.b16 %v698
  %v1292 = vunpack.c.l.b16 %v699
  %v1293 = vpack.c.b16 %v1292, %v1291
  %1294 = vrot.lane.b32.xlu0 %v1293, 64
  %v1295 = vpop.permute.xlu0 %1294
  %v1298 = vsel %vm1031, %v1288, 0
  %1300 = vmatpush.bf16.msra.mxu0 0
  %1301 = vmatpush.bf16.msra.mxu0 0
  %1302 = vmatpush.bf16.msra.mxu0 0
  %1303 = vmatpush.bf16.msra.mxu0 0
  %1304 = vmatpush.bf16.msra.mxu0 0
  %1305 = vmatpush.bf16.msra.mxu0 0
  %1306 = vmatpush.bf16.msra.mxu0 0
  %1307 = vmatpush.bf16.msra.mxu0 %v1295
  %1308 = vmatmul.bf16.gmra.mxu0 %v1298
  %v1309 = vpop.f32.mrf.mxu0
  %v1310 = vadd.f32 0.0, %v1309
  %v1311 = vpop.f32.mrf.mxu0
  %v1312 = vadd.f32 0.0, %v1311
  %1313 = vdwg.mxu0
  %v1316 = vunpack.c.l.b16 %v1214
  %v1317 = vunpack.c.l.b16 %v1215
  %v1318 = vpack.c.b16 %v1317, %v1316
  %v1321 = vunpack.c.l.b16 %v700
  %v1322 = vunpack.c.l.b16 %v701
  %v1323 = vpack.c.b16 %v1322, %v1321
  %1324 = vrot.lane.b32.xlu0 %v1323, 64
  %v1325 = vpop.permute.xlu0 %1324
  %v1328 = vsel %vm1031, %v1318, 0
  %1330 = vmatpush.bf16.msra.mxu0 0
  %1331 = vmatpush.bf16.msra.mxu0 0
  %1332 = vmatpush.bf16.msra.mxu0 0
  %1333 = vmatpush.bf16.msra.mxu0 0
  %1334 = vmatpush.bf16.msra.mxu0 0
  %1335 = vmatpush.bf16.msra.mxu0 0
  %1336 = vmatpush.bf16.msra.mxu0 0
  %1337 = vmatpush.bf16.msra.mxu0 %v1325
  %1338 = vmatmul.bf16.gmra.mxu0 %v1328
  %v1339 = vpop.f32.mrf.mxu0
  %v1340 = vadd.f32 0.0, %v1339
  %v1341 = vpop.f32.mrf.mxu0
  %v1342 = vadd.f32 0.0, %v1341
  %1343 = vdwg.mxu0
  %v1346 = vunpack.c.l.b16 %v1216
  %v1347 = vunpack.c.l.b16 %v1217
  %v1348 = vpack.c.b16 %v1347, %v1346
  %v1351 = vunpack.c.l.b16 %v702
  %v1352 = vunpack.c.l.b16 %v703
  %v1353 = vpack.c.b16 %v1352, %v1351
  %1354 = vrot.lane.b32.xlu0 %v1353, 64
  %v1355 = vpop.permute.xlu0 %1354
  %v1358 = vsel %vm1031, %v1348, 0
  %1360 = vmatpush.bf16.msra.mxu0 0
  %1361 = vmatpush.bf16.msra.mxu0 0
  %1362 = vmatpush.bf16.msra.mxu0 0
  %1363 = vmatpush.bf16.msra.mxu0 0
  %1364 = vmatpush.bf16.msra.mxu0 0
  %1365 = vmatpush.bf16.msra.mxu0 0
  %1366 = vmatpush.bf16.msra.mxu0 0
  %1367 = vmatpush.bf16.msra.mxu0 %v1355
  %1368 = vmatmul.bf16.gmra.mxu0 %v1358
  %v1369 = vpop.f32.mrf.mxu0
  %v1370 = vadd.f32 0.0, %v1369
  %v1371 = vpop.f32.mrf.mxu0
  %v1372 = vadd.f32 0.0, %v1371
  %1373 = vdwg.mxu0
  %v1376 = vunpack.c.l.b16 %v1218
  %v1377 = vunpack.c.l.b16 %v1219
  %v1378 = vpack.c.b16 %v1377, %v1376
  %v1381 = vunpack.c.l.b16 %v704
  %v1382 = vunpack.c.l.b16 %v705
  %v1383 = vpack.c.b16 %v1382, %v1381
  %1384 = vrot.lane.b32.xlu0 %v1383, 64
  %v1385 = vpop.permute.xlu0 %1384
  %v1388 = vsel %vm1031, %v1378, 0
  %1390 = vmatpush.bf16.msra.mxu0 0
  %1391 = vmatpush.bf16.msra.mxu0 0
  %1392 = vmatpush.bf16.msra.mxu0 0
  %1393 = vmatpush.bf16.msra.mxu0 0
  %1394 = vmatpush.bf16.msra.mxu0 0
  %1395 = vmatpush.bf16.msra.mxu0 0
  %1396 = vmatpush.bf16.msra.mxu0 0
  %1397 = vmatpush.bf16.msra.mxu0 %v1385
  %1398 = vmatmul.bf16.gmra.mxu0 %v1388
  %v1399 = vpop.f32.mrf.mxu0
  %v1400 = vadd.f32 0.0, %v1399
  %v1401 = vpop.f32.mrf.mxu0
  %v1402 = vadd.f32 0.0, %v1401
  %1403 = vdwg.mxu0
  %v1406 = vunpack.c.l.b16 %v1220
  %v1407 = vunpack.c.l.b16 %v1221
  %v1408 = vpack.c.b16 %v1407, %v1406
  %v1411 = vunpack.c.l.b16 %v706
  %v1412 = vunpack.c.l.b16 %v707
  %v1413 = vpack.c.b16 %v1412, %v1411
  %1414 = vrot.lane.b32.xlu0 %v1413, 64
  %v1415 = vpop.permute.xlu0 %1414
  %v1418 = vsel %vm1031, %v1408, 0
  %1420 = vmatpush.bf16.msra.mxu0 0
  %1421 = vmatpush.bf16.msra.mxu0 0
  %1422 = vmatpush.bf16.msra.mxu0 0
  %1423 = vmatpush.bf16.msra.mxu0 0
  %1424 = vmatpush.bf16.msra.mxu0 0
  %1425 = vmatpush.bf16.msra.mxu0 0
  %1426 = vmatpush.bf16.msra.mxu0 0
  %1427 = vmatpush.bf16.msra.mxu0 %v1415
  %1428 = vmatmul.bf16.gmra.mxu0 %v1418
  %v1429 = vpop.f32.mrf.mxu0
  %v1430 = vadd.f32 0.0, %v1429
  %v1431 = vpop.f32.mrf.mxu0
  %v1432 = vadd.f32 0.0, %v1431
  %1433 = vdwg.mxu0
  %v1436 = vunpack.c.l.b16 %v1222
  %v1437 = vunpack.c.l.b16 %v1223
  %v1438 = vpack.c.b16 %v1437, %v1436
  %v1441 = vunpack.c.l.b16 %v708
  %v1442 = vunpack.c.l.b16 %v709
  %v1443 = vpack.c.b16 %v1442, %v1441
  %1444 = vrot.lane.b32.xlu0 %v1443, 64
  %v1445 = vpop.permute.xlu0 %1444
  %v1448 = vsel %vm1031, %v1438, 0
  %1450 = vmatpush.bf16.msra.mxu0 0
  %1451 = vmatpush.bf16.msra.mxu0 0
  %1452 = vmatpush.bf16.msra.mxu0 0
  %1453 = vmatpush.bf16.msra.mxu0 0
  %1454 = vmatpush.bf16.msra.mxu0 0
  %1455 = vmatpush.bf16.msra.mxu0 0
  %1456 = vmatpush.bf16.msra.mxu0 0
  %1457 = vmatpush.bf16.msra.mxu0 %v1445
  %1458 = vmatmul.bf16.gmra.mxu0 %v1448
  %v1459 = vpop.f32.mrf.mxu0
  %v1460 = vadd.f32 0.0, %v1459
  %v1461 = vpop.f32.mrf.mxu0
  %v1462 = vadd.f32 0.0, %v1461
  %1463 = vdwg.mxu0
  %1464 = vrot.lane.b32.xlu0 %v778, 120
  %v1465 = vpop.permute.xlu0 %1464
  %1466 = vrot.lane.b32.xlu0 %v783, 88
  %v1467 = vpop.permute.xlu0 %1466
  %v1469 = vsel %vm786, %v1465, 0
  %v1472 = vsel %vm786, %v1467, 0
  %1474 = vmatpush.bf16.xpose.msra.mxu0 0
  %1475 = vmatpush.bf16.xpose.msra.mxu0 0
  %1476 = vmatpush.bf16.xpose.msra.mxu0 0
  %1477 = vmatpush.bf16.xpose.msra.mxu0 0
  %1478 = vmatpush.bf16.xpose.msra.mxu0 0
  %1479 = vmatpush.bf16.xpose.msra.mxu0 0
  %1480 = vmatpush.bf16.xpose.msra.mxu0 0
  %1481 = vmatpush.bf16.xpose.msra.mxu0 %v1472
  %1482 = vmatmul.bf16.gmra.mxu0 %v1469
  %v1483 = vpop.f32.mrf.mxu0
  %v1484 = vadd.f32 %v712, %v1483
  %v1485 = vpop.f32.mrf.mxu0
  %v1486 = vadd.f32 %v713, %v1485
  %1487 = vdwg.mxu0
  %1488 = vrot.lane.b32.xlu0 %v811, 120
  %v1489 = vpop.permute.xlu0 %1488
  %1490 = vrot.lane.b32.xlu0 %v816, 88
  %v1491 = vpop.permute.xlu0 %1490
  %v1493 = vsel %vm786, %v1489, 0
  %v1496 = vsel %vm786, %v1491, 0
  %1498 = vmatpush.bf16.xpose.msra.mxu0 0
  %1499 = vmatpush.bf16.xpose.msra.mxu0 0
  %1500 = vmatpush.bf16.xpose.msra.mxu0 0
  %1501 = vmatpush.bf16.xpose.msra.mxu0 0
  %1502 = vmatpush.bf16.xpose.msra.mxu0 0
  %1503 = vmatpush.bf16.xpose.msra.mxu0 0
  %1504 = vmatpush.bf16.xpose.msra.mxu0 0
  %1505 = vmatpush.bf16.xpose.msra.mxu0 %v1496
  %1506 = vmatmul.bf16.gmra.mxu0 %v1493
  %v1507 = vpop.f32.mrf.mxu0
  %v1508 = vadd.f32 %v720, %v1507
  %v1509 = vpop.f32.mrf.mxu0
  %v1510 = vadd.f32 %v721, %v1509
  %1511 = vdwg.mxu0
  %1512 = vrot.lane.b32.xlu0 %v843, 120
  %v1513 = vpop.permute.xlu0 %1512
  %1514 = vrot.lane.b32.xlu0 %v848, 88
  %v1515 = vpop.permute.xlu0 %1514
  %v1517 = vsel %vm786, %v1513, 0
  %v1520 = vsel %vm786, %v1515, 0
  %1522 = vmatpush.bf16.xpose.msra.mxu0 0
  %1523 = vmatpush.bf16.xpose.msra.mxu0 0
  %1524 = vmatpush.bf16.xpose.msra.mxu0 0
  %1525 = vmatpush.bf16.xpose.msra.mxu0 0
  %1526 = vmatpush.bf16.xpose.msra.mxu0 0
  %1527 = vmatpush.bf16.xpose.msra.mxu0 0
  %1528 = vmatpush.bf16.xpose.msra.mxu0 0
  %1529 = vmatpush.bf16.xpose.msra.mxu0 %v1520
  %1530 = vmatmul.bf16.gmra.mxu0 %v1517
  %v1531 = vpop.f32.mrf.mxu0
  %v1532 = vadd.f32 %v728, %v1531
  %v1533 = vpop.f32.mrf.mxu0
  %v1534 = vadd.f32 %v729, %v1533
  %1535 = vdwg.mxu0
  %1536 = vrot.lane.b32.xlu0 %v875, 120
  %v1537 = vpop.permute.xlu0 %1536
  %1538 = vrot.lane.b32.xlu0 %v880, 88
  %v1539 = vpop.permute.xlu0 %1538
  %v1541 = vsel %vm786, %v1537, 0
  %v1544 = vsel %vm786, %v1539, 0
  %1546 = vmatpush.bf16.xpose.msra.mxu0 0
  %1547 = vmatpush.bf16.xpose.msra.mxu0 0
  %1548 = vmatpush.bf16.xpose.msra.mxu0 0
  %1549 = vmatpush.bf16.xpose.msra.mxu0 0
  %1550 = vmatpush.bf16.xpose.msra.mxu0 0
  %1551 = vmatpush.bf16.xpose.msra.mxu0 0
  %1552 = vmatpush.bf16.xpose.msra.mxu0 0
  %1553 = vmatpush.bf16.xpose.msra.mxu0 %v1544
  %1554 = vmatmul.bf16.gmra.mxu0 %v1541
  %v1555 = vpop.f32.mrf.mxu0
  %v1556 = vadd.f32 %v736, %v1555
  %v1557 = vpop.f32.mrf.mxu0
  %v1558 = vadd.f32 %v737, %v1557
  %1559 = vdwg.mxu0
  %1560 = vrot.lane.b32.xlu0 %v907, 120
  %v1561 = vpop.permute.xlu0 %1560
  %1562 = vrot.lane.b32.xlu0 %v912, 88
  %v1563 = vpop.permute.xlu0 %1562
  %v1565 = vsel %vm786, %v1561, 0
  %v1568 = vsel %vm786, %v1563, 0
  %1570 = vmatpush.bf16.xpose.msra.mxu0 0
  %1571 = vmatpush.bf16.xpose.msra.mxu0 0
  %1572 = vmatpush.bf16.xpose.msra.mxu0 0
  %1573 = vmatpush.bf16.xpose.msra.mxu0 0
  %1574 = vmatpush.bf16.xpose.msra.mxu0 0
  %1575 = vmatpush.bf16.xpose.msra.mxu0 0
  %1576 = vmatpush.bf16.xpose.msra.mxu0 0
  %1577 = vmatpush.bf16.xpose.msra.mxu0 %v1568
  %1578 = vmatmul.bf16.gmra.mxu0 %v1565
  %v1579 = vpop.f32.mrf.mxu0
  %v1580 = vadd.f32 %v744, %v1579
  %v1581 = vpop.f32.mrf.mxu0
  %v1582 = vadd.f32 %v745, %v1581
  %1583 = vdwg.mxu0
  %1584 = vrot.lane.b32.xlu0 %v939, 120
  %v1585 = vpop.permute.xlu0 %1584
  %1586 = vrot.lane.b32.xlu0 %v944, 88
  %v1587 = vpop.permute.xlu0 %1586
  %v1589 = vsel %vm786, %v1585, 0
  %v1592 = vsel %vm786, %v1587, 0
  %1594 = vmatpush.bf16.xpose.msra.mxu0 0
  %1595 = vmatpush.bf16.xpose.msra.mxu0 0
  %1596 = vmatpush.bf16.xpose.msra.mxu0 0
  %1597 = vmatpush.bf16.xpose.msra.mxu0 0
  %1598 = vmatpush.bf16.xpose.msra.mxu0 0
  %1599 = vmatpush.bf16.xpose.msra.mxu0 0
  %1600 = vmatpush.bf16.xpose.msra.mxu0 0
  %1601 = vmatpush.bf16.xpose.msra.mxu0 %v1592
  %1602 = vmatmul.bf16.gmra.mxu0 %v1589
  %v1603 = vpop.f32.mrf.mxu0
  %v1604 = vadd.f32 %v752, %v1603
  %v1605 = vpop.f32.mrf.mxu0
  %v1606 = vadd.f32 %v753, %v1605
  %1607 = vdwg.mxu0
  %1608 = vrot.lane.b32.xlu0 %v971, 120
  %v1609 = vpop.permute.xlu0 %1608
  %1610 = vrot.lane.b32.xlu0 %v976, 88
  %v1611 = vpop.permute.xlu0 %1610
  %v1613 = vsel %vm786, %v1609, 0
  %v1616 = vsel %vm786, %v1611, 0
  %1618 = vmatpush.bf16.xpose.msra.mxu0 0
  %1619 = vmatpush.bf16.xpose.msra.mxu0 0
  %1620 = vmatpush.bf16.xpose.msra.mxu0 0
  %1621 = vmatpush.bf16.xpose.msra.mxu0 0
  %1622 = vmatpush.bf16.xpose.msra.mxu0 0
  %1623 = vmatpush.bf16.xpose.msra.mxu0 0
  %1624 = vmatpush.bf16.xpose.msra.mxu0 0
  %1625 = vmatpush.bf16.xpose.msra.mxu0 %v1616
  %1626 = vmatmul.bf16.gmra.mxu0 %v1613
  %v1627 = vpop.f32.mrf.mxu0
  %v1628 = vadd.f32 %v760, %v1627
  %v1629 = vpop.f32.mrf.mxu0
  %v1630 = vadd.f32 %v761, %v1629
  %1631 = vdwg.mxu0
  %1632 = vrot.lane.b32.xlu0 %v1003, 120
  %v1633 = vpop.permute.xlu0 %1632
  %1634 = vrot.lane.b32.xlu0 %v1008, 88
  %v1635 = vpop.permute.xlu0 %1634
  %v1637 = vsel %vm786, %v1633, 0
  %v1640 = vsel %vm786, %v1635, 0
  %1642 = vmatpush.bf16.xpose.msra.mxu0 0
  %1643 = vmatpush.bf16.xpose.msra.mxu0 0
  %1644 = vmatpush.bf16.xpose.msra.mxu0 0
  %1645 = vmatpush.bf16.xpose.msra.mxu0 0
  %1646 = vmatpush.bf16.xpose.msra.mxu0 0
  %1647 = vmatpush.bf16.xpose.msra.mxu0 0
  %1648 = vmatpush.bf16.xpose.msra.mxu0 0
  %1649 = vmatpush.bf16.xpose.msra.mxu0 %v1640
  %1650 = vmatmul.bf16.gmra.mxu0 %v1637
  %v1651 = vpop.f32.mrf.mxu0
  %v1652 = vadd.f32 %v768, %v1651
  %v1653 = vpop.f32.mrf.mxu0
  %v1654 = vadd.f32 %v769, %v1653
  %1655 = vdwg.mxu0
  %v1656 = vsel %vm1031, %v1484, -inf
  %1657 = vmax.xlane.f32.xlu0 %v1656
  %v1658 = vpop.xlane.xlu0 %1657
  %v1659 = vsel %vm1031, %v1486, -inf
  %1660 = vmax.xlane.f32.xlu0 %v1659
  %v1661 = vpop.xlane.xlu0 %1660
  %v1662 = vsel %vm1031, %v1508, -inf
  %1663 = vmax.xlane.f32.xlu0 %v1662
  %v1664 = vpop.xlane.xlu0 %1663
  %v1665 = vsel %vm1031, %v1510, -inf
  %1666 = vmax.xlane.f32.xlu0 %v1665
  %v1667 = vpop.xlane.xlu0 %1666
  %v1668 = vsel %vm1031, %v1532, -inf
  %1669 = vmax.xlane.f32.xlu0 %v1668
  %v1670 = vpop.xlane.xlu0 %1669
  %v1671 = vsel %vm1031, %v1534, -inf
  %1672 = vmax.xlane.f32.xlu0 %v1671
  %v1673 = vpop.xlane.xlu0 %1672
  %v1674 = vsel %vm1031, %v1556, -inf
  %1675 = vmax.xlane.f32.xlu0 %v1674
  %v1676 = vpop.xlane.xlu0 %1675
  %v1677 = vsel %vm1031, %v1558, -inf
  %1678 = vmax.xlane.f32.xlu0 %v1677
  %v1679 = vpop.xlane.xlu0 %1678
  %v1680 = vsel %vm1031, %v1580, -inf
  %1681 = vmax.xlane.f32.xlu0 %v1680
  %v1682 = vpop.xlane.xlu0 %1681
  %v1683 = vsel %vm1031, %v1582, -inf
  %1684 = vmax.xlane.f32.xlu0 %v1683
  %v1685 = vpop.xlane.xlu0 %1684
  %v1686 = vsel %vm1031, %v1604, -inf
  %1687 = vmax.xlane.f32.xlu0 %v1686
  %v1688 = vpop.xlane.xlu0 %1687
  %v1689 = vsel %vm1031, %v1606, -inf
  %1690 = vmax.xlane.f32.xlu0 %v1689
  %v1691 = vpop.xlane.xlu0 %1690
  %v1692 = vsel %vm1031, %v1628, -inf
  %1693 = vmax.xlane.f32.xlu0 %v1692
  %v1694 = vpop.xlane.xlu0 %1693
  %v1695 = vsel %vm1031, %v1630, -inf
  %1696 = vmax.xlane.f32.xlu0 %v1695
  %v1697 = vpop.xlane.xlu0 %1696
  %v1698 = vsel %vm1031, %v1652, -inf
  %1699 = vmax.xlane.f32.xlu0 %v1698
  %v1700 = vpop.xlane.xlu0 %1699
  %v1701 = vsel %vm1031, %v1654, -inf
  %1702 = vmax.xlane.f32.xlu0 %v1701
  %v1703 = vpop.xlane.xlu0 %1702
  %v1704 = vsub.f32 %v1484, %v1658
  %v1705 = vsub.f32 %v1486, %v1661
  %v1706 = vsub.f32 %v1508, %v1664
  %v1707 = vsub.f32 %v1510, %v1667
  %v1708 = vsub.f32 %v1532, %v1670
  %v1709 = vsub.f32 %v1534, %v1673
  %v1710 = vsub.f32 %v1556, %v1676
  %v1711 = vsub.f32 %v1558, %v1679
  %v1712 = vsub.f32 %v1580, %v1682
  %v1713 = vsub.f32 %v1582, %v1685
  %v1714 = vsub.f32 %v1604, %v1688
  %v1715 = vsub.f32 %v1606, %v1691
  %v1716 = vsub.f32 %v1628, %v1694
  %v1717 = vsub.f32 %v1630, %v1697
  %v1718 = vsub.f32 %v1652, %v1700
  %v1719 = vsub.f32 %v1654, %v1703
  %v1720 = vmul.f32 %v1704, 1.442695
  %v1721 = vpow.pop %v1720
  %v1722 = vmul.f32 %v1705, 1.442695
  %v1723 = vpow.pop %v1722
  %v1724 = vmul.f32 %v1706, 1.442695
  %v1725 = vpow.pop %v1724
  %v1726 = vmul.f32 %v1707, 1.442695
  %v1727 = vpow.pop %v1726
  %v1728 = vmul.f32 %v1708, 1.442695
  %v1729 = vpow.pop %v1728
  %v1730 = vmul.f32 %v1709, 1.442695
  %v1731 = vpow.pop %v1730
  %v1732 = vmul.f32 %v1710, 1.442695
  %v1733 = vpow.pop %v1732
  %v1734 = vmul.f32 %v1711, 1.442695
  %v1735 = vpow.pop %v1734
  %v1736 = vmul.f32 %v1712, 1.442695
  %v1737 = vpow.pop %v1736
  %v1738 = vmul.f32 %v1713, 1.442695
  %v1739 = vpow.pop %v1738
  %v1740 = vmul.f32 %v1714, 1.442695
  %v1741 = vpow.pop %v1740
  %v1742 = vmul.f32 %v1715, 1.442695
  %v1743 = vpow.pop %v1742
  %v1744 = vmul.f32 %v1716, 1.442695
  %v1745 = vpow.pop %v1744
  %v1746 = vmul.f32 %v1717, 1.442695
  %v1747 = vpow.pop %v1746
  %v1748 = vmul.f32 %v1718, 1.442695
  %v1749 = vpow.pop %v1748
  %v1750 = vmul.f32 %v1719, 1.442695
  %v1751 = vpow.pop %v1750
  %v1752 = vsel %vm1031, %v1721, 0.0
  %1753 = vadd.xlane.f32.xlu0 %v1752
  %v1754 = vpop.xlane.xlu0 %1753
  %v1755 = vsel %vm1031, %v1723, 0.0
  %1756 = vadd.xlane.f32.xlu0 %v1755
  %v1757 = vpop.xlane.xlu0 %1756
  %v1758 = vsel %vm1031, %v1725, 0.0
  %1759 = vadd.xlane.f32.xlu0 %v1758
  %v1760 = vpop.xlane.xlu0 %1759
  %v1761 = vsel %vm1031, %v1727, 0.0
  %1762 = vadd.xlane.f32.xlu0 %v1761
  %v1763 = vpop.xlane.xlu0 %1762
  %v1764 = vsel %vm1031, %v1729, 0.0
  %1765 = vadd.xlane.f32.xlu0 %v1764
  %v1766 = vpop.xlane.xlu0 %1765
  %v1767 = vsel %vm1031, %v1731, 0.0
  %1768 = vadd.xlane.f32.xlu0 %v1767
  %v1769 = vpop.xlane.xlu0 %1768
  %v1770 = vsel %vm1031, %v1733, 0.0
  %1771 = vadd.xlane.f32.xlu0 %v1770
  %v1772 = vpop.xlane.xlu0 %1771
  %v1773 = vsel %vm1031, %v1735, 0.0
  %1774 = vadd.xlane.f32.xlu0 %v1773
  %v1775 = vpop.xlane.xlu0 %1774
  %v1776 = vsel %vm1031, %v1737, 0.0
  %1777 = vadd.xlane.f32.xlu0 %v1776
  %v1778 = vpop.xlane.xlu0 %1777
  %v1779 = vsel %vm1031, %v1739, 0.0
  %1780 = vadd.xlane.f32.xlu0 %v1779
  %v1781 = vpop.xlane.xlu0 %1780
  %v1782 = vsel %vm1031, %v1741, 0.0
  %1783 = vadd.xlane.f32.xlu0 %v1782
  %v1784 = vpop.xlane.xlu0 %1783
  %v1785 = vsel %vm1031, %v1743, 0.0
  %1786 = vadd.xlane.f32.xlu0 %v1785
  %v1787 = vpop.xlane.xlu0 %1786
  %v1788 = vsel %vm1031, %v1745, 0.0
  %1789 = vadd.xlane.f32.xlu0 %v1788
  %v1790 = vpop.xlane.xlu0 %1789
  %v1791 = vsel %vm1031, %v1747, 0.0
  %1792 = vadd.xlane.f32.xlu0 %v1791
  %v1793 = vpop.xlane.xlu0 %1792
  %v1794 = vsel %vm1031, %v1749, 0.0
  %1795 = vadd.xlane.f32.xlu0 %v1794
  %v1796 = vpop.xlane.xlu0 %1795
  %v1797 = vsel %vm1031, %v1751, 0.0
  %1798 = vadd.xlane.f32.xlu0 %v1797
  %v1799 = vpop.xlane.xlu0 %1798
  %v1800 = vrcp.pop %v1754
  %v1801 = vrcp.pop %v1757
  %v1802 = vrcp.pop %v1760
  %v1803 = vrcp.pop %v1763
  %v1804 = vrcp.pop %v1766
  %v1805 = vrcp.pop %v1769
  %v1806 = vrcp.pop %v1772
  %v1807 = vrcp.pop %v1775
  %v1808 = vrcp.pop %v1778
  %v1809 = vrcp.pop %v1781
  %v1810 = vrcp.pop %v1784
  %v1811 = vrcp.pop %v1787
  %v1812 = vrcp.pop %v1790
  %v1813 = vrcp.pop %v1793
  %v1814 = vrcp.pop %v1796
  %v1815 = vrcp.pop %v1799
  %v1816 = vmul.f32 %v1721, %v1800
  %v1817 = vmul.f32 %v1723, %v1801
  %v1818 = vmul.f32 %v1725, %v1802
  %v1819 = vmul.f32 %v1727, %v1803
  %v1820 = vmul.f32 %v1729, %v1804
  %v1821 = vmul.f32 %v1731, %v1805
  %v1822 = vmul.f32 %v1733, %v1806
  %v1823 = vmul.f32 %v1735, %v1807
  %v1824 = vmul.f32 %v1737, %v1808
  %v1825 = vmul.f32 %v1739, %v1809
  %v1826 = vmul.f32 %v1741, %v1810
  %v1827 = vmul.f32 %v1743, %v1811
  %v1828 = vmul.f32 %v1745, %v1812
  %v1829 = vmul.f32 %v1747, %v1813
  %v1830 = vmul.f32 %v1749, %v1814
  %v1831 = vmul.f32 %v1751, %v1815
  %v1832 = vpack.c.bf16 %v1816, %v1816
  %v1833 = vpack.c.bf16 %v1817, %v1817
  %v1834 = vpack.c.bf16 %v1818, %v1818
  %v1835 = vpack.c.bf16 %v1819, %v1819
  %v1836 = vpack.c.bf16 %v1820, %v1820
  %v1837 = vpack.c.bf16 %v1821, %v1821
  %v1838 = vpack.c.bf16 %v1822, %v1822
  %v1839 = vpack.c.bf16 %v1823, %v1823
  %v1840 = vpack.c.bf16 %v1824, %v1824
  %v1841 = vpack.c.bf16 %v1825, %v1825
  %v1842 = vpack.c.bf16 %v1826, %v1826
  %v1843 = vpack.c.bf16 %v1827, %v1827
  %v1844 = vpack.c.bf16 %v1828, %v1828
  %v1845 = vpack.c.bf16 %v1829, %v1829
  %v1846 = vpack.c.bf16 %v1830, %v1830
  %v1847 = vpack.c.bf16 %v1831, %v1831
  %v1850 = vunpack.c.l.b16 %v1832
  %v1851 = vunpack.c.l.b16 %v1833
  %v1852 = vpack.c.b16 %v1851, %v1850
  %1853 = vrot.lane.b32.xlu0 %v1233, 56
  %v1854 = vpop.permute.xlu0 %1853
  %v1857 = vsel %vm1031, %v1852, 0
  %1859 = vmatpush.bf16.msra.mxu0 0
  %1860 = vmatpush.bf16.msra.mxu0 0
  %1861 = vmatpush.bf16.msra.mxu0 0
  %1862 = vmatpush.bf16.msra.mxu0 0
  %1863 = vmatpush.bf16.msra.mxu0 0
  %1864 = vmatpush.bf16.msra.mxu0 0
  %1865 = vmatpush.bf16.msra.mxu0 0
  %1866 = vmatpush.bf16.msra.mxu0 %v1854
  %1867 = vmatmul.bf16.gmra.mxu0 %v1857
  %v1868 = vpop.f32.mrf.mxu0
  %v1869 = vadd.f32 0.0, %v1868
  %v1870 = vpop.f32.mrf.mxu0
  %v1871 = vadd.f32 0.0, %v1870
  %1872 = vdwg.mxu0
  %v1875 = vunpack.c.l.b16 %v1834
  %v1876 = vunpack.c.l.b16 %v1835
  %v1877 = vpack.c.b16 %v1876, %v1875
  %1878 = vrot.lane.b32.xlu0 %v1263, 56
  %v1879 = vpop.permute.xlu0 %1878
  %v1882 = vsel %vm1031, %v1877, 0
  %1884 = vmatpush.bf16.msra.mxu0 0
  %1885 = vmatpush.bf16.msra.mxu0 0
  %1886 = vmatpush.bf16.msra.mxu0 0
  %1887 = vmatpush.bf16.msra.mxu0 0
  %1888 = vmatpush.bf16.msra.mxu0 0
  %1889 = vmatpush.bf16.msra.mxu0 0
  %1890 = vmatpush.bf16.msra.mxu0 0
  %1891 = vmatpush.bf16.msra.mxu0 %v1879
  %1892 = vmatmul.bf16.gmra.mxu0 %v1882
  %v1893 = vpop.f32.mrf.mxu0
  %v1894 = vadd.f32 0.0, %v1893
  %v1895 = vpop.f32.mrf.mxu0
  %v1896 = vadd.f32 0.0, %v1895
  %1897 = vdwg.mxu0
  %v1900 = vunpack.c.l.b16 %v1836
  %v1901 = vunpack.c.l.b16 %v1837
  %v1902 = vpack.c.b16 %v1901, %v1900
  %1903 = vrot.lane.b32.xlu0 %v1293, 56
  %v1904 = vpop.permute.xlu0 %1903
  %v1907 = vsel %vm1031, %v1902, 0
  %1909 = vmatpush.bf16.msra.mxu0 0
  %1910 = vmatpush.bf16.msra.mxu0 0
  %1911 = vmatpush.bf16.msra.mxu0 0
  %1912 = vmatpush.bf16.msra.mxu0 0
  %1913 = vmatpush.bf16.msra.mxu0 0
  %1914 = vmatpush.bf16.msra.mxu0 0
  %1915 = vmatpush.bf16.msra.mxu0 0
  %1916 = vmatpush.bf16.msra.mxu0 %v1904
  %1917 = vmatmul.bf16.gmra.mxu0 %v1907
  %v1918 = vpop.f32.mrf.mxu0
  %v1919 = vadd.f32 0.0, %v1918
  %v1920 = vpop.f32.mrf.mxu0
  %v1921 = vadd.f32 0.0, %v1920
  %1922 = vdwg.mxu0
  %v1925 = vunpack.c.l.b16 %v1838
  %v1926 = vunpack.c.l.b16 %v1839
  %v1927 = vpack.c.b16 %v1926, %v1925
  %1928 = vrot.lane.b32.xlu0 %v1323, 56
  %v1929 = vpop.permute.xlu0 %1928
  %v1932 = vsel %vm1031, %v1927, 0
  %1934 = vmatpush.bf16.msra.mxu0 0
  %1935 = vmatpush.bf16.msra.mxu0 0
  %1936 = vmatpush.bf16.msra.mxu0 0
  %1937 = vmatpush.bf16.msra.mxu0 0
  %1938 = vmatpush.bf16.msra.mxu0 0
  %1939 = vmatpush.bf16.msra.mxu0 0
  %1940 = vmatpush.bf16.msra.mxu0 0
  %1941 = vmatpush.bf16.msra.mxu0 %v1929
  %1942 = vmatmul.bf16.gmra.mxu0 %v1932
  %v1943 = vpop.f32.mrf.mxu0
  %v1944 = vadd.f32 0.0, %v1943
  %v1945 = vpop.f32.mrf.mxu0
  %v1946 = vadd.f32 0.0, %v1945
  %1947 = vdwg.mxu0
  %v1950 = vunpack.c.l.b16 %v1840
  %v1951 = vunpack.c.l.b16 %v1841
  %v1952 = vpack.c.b16 %v1951, %v1950
  %1953 = vrot.lane.b32.xlu0 %v1353, 56
  %v1954 = vpop.permute.xlu0 %1953
  %v1957 = vsel %vm1031, %v1952, 0
  %1959 = vmatpush.bf16.msra.mxu0 0
  %1960 = vmatpush.bf16.msra.mxu0 0
  %1961 = vmatpush.bf16.msra.mxu0 0
  %1962 = vmatpush.bf16.msra.mxu0 0
  %1963 = vmatpush.bf16.msra.mxu0 0
  %1964 = vmatpush.bf16.msra.mxu0 0
  %1965 = vmatpush.bf16.msra.mxu0 0
  %1966 = vmatpush.bf16.msra.mxu0 %v1954
  %1967 = vmatmul.bf16.gmra.mxu0 %v1957
  %v1968 = vpop.f32.mrf.mxu0
  %v1969 = vadd.f32 0.0, %v1968
  %v1970 = vpop.f32.mrf.mxu0
  %v1971 = vadd.f32 0.0, %v1970
  %1972 = vdwg.mxu0
  %v1975 = vunpack.c.l.b16 %v1842
  %v1976 = vunpack.c.l.b16 %v1843
  %v1977 = vpack.c.b16 %v1976, %v1975
  %1978 = vrot.lane.b32.xlu0 %v1383, 56
  %v1979 = vpop.permute.xlu0 %1978
  %v1982 = vsel %vm1031, %v1977, 0
  %1984 = vmatpush.bf16.msra.mxu0 0
  %1985 = vmatpush.bf16.msra.mxu0 0
  %1986 = vmatpush.bf16.msra.mxu0 0
  %1987 = vmatpush.bf16.msra.mxu0 0
  %1988 = vmatpush.bf16.msra.mxu0 0
  %1989 = vmatpush.bf16.msra.mxu0 0
  %1990 = vmatpush.bf16.msra.mxu0 0
  %1991 = vmatpush.bf16.msra.mxu0 %v1979
  %1992 = vmatmul.bf16.gmra.mxu0 %v1982
  %v1993 = vpop.f32.mrf.mxu0
  %v1994 = vadd.f32 0.0, %v1993
  %v1995 = vpop.f32.mrf.mxu0
  %v1996 = vadd.f32 0.0, %v1995
  %1997 = vdwg.mxu0
  %v2000 = vunpack.c.l.b16 %v1844
  %v2001 = vunpack.c.l.b16 %v1845
  %v2002 = vpack.c.b16 %v2001, %v2000
  %2003 = vrot.lane.b32.xlu0 %v1413, 56
  %v2004 = vpop.permute.xlu0 %2003
  %v2007 = vsel %vm1031, %v2002, 0
  %2009 = vmatpush.bf16.msra.mxu0 0
  %2010 = vmatpush.bf16.msra.mxu0 0
  %2011 = vmatpush.bf16.msra.mxu0 0
  %2012 = vmatpush.bf16.msra.mxu0 0
  %2013 = vmatpush.bf16.msra.mxu0 0
  %2014 = vmatpush.bf16.msra.mxu0 0
  %2015 = vmatpush.bf16.msra.mxu0 0
  %2016 = vmatpush.bf16.msra.mxu0 %v2004
  %2017 = vmatmul.bf16.gmra.mxu0 %v2007
  %v2018 = vpop.f32.mrf.mxu0
  %v2019 = vadd.f32 0.0, %v2018
  %v2020 = vpop.f32.mrf.mxu0
  %v2021 = vadd.f32 0.0, %v2020
  %2022 = vdwg.mxu0
  %v2025 = vunpack.c.l.b16 %v1846
  %v2026 = vunpack.c.l.b16 %v1847
  %v2027 = vpack.c.b16 %v2026, %v2025
  %2028 = vrot.lane.b32.xlu0 %v1443, 56
  %v2029 = vpop.permute.xlu0 %2028
  %v2032 = vsel %vm1031, %v2027, 0
  %2034 = vmatpush.bf16.msra.mxu0 0
  %2035 = vmatpush.bf16.msra.mxu0 0
  %2036 = vmatpush.bf16.msra.mxu0 0
  %2037 = vmatpush.bf16.msra.mxu0 0
  %2038 = vmatpush.bf16.msra.mxu0 0
  %2039 = vmatpush.bf16.msra.mxu0 0
  %2040 = vmatpush.bf16.msra.mxu0 0
  %2041 = vmatpush.bf16.msra.mxu0 %v2029
  %2042 = vmatmul.bf16.gmra.mxu0 %v2032
  %v2043 = vpop.f32.mrf.mxu0
  %v2044 = vadd.f32 0.0, %v2043
  %v2045 = vpop.f32.mrf.mxu0
  %v2046 = vadd.f32 0.0, %v2045
  %2047 = vdwg.mxu0
  %2048 = vrot.lane.b32.xlu0 %v778, 112
  %v2049 = vpop.permute.xlu0 %2048
  %2050 = vrot.lane.b32.xlu0 %v783, 80
  %v2051 = vpop.permute.xlu0 %2050
  %v2053 = vsel %vm786, %v2049, 0
  %v2056 = vsel %vm786, %v2051, 0
  %2058 = vmatpush.bf16.xpose.msra.mxu0 0
  %2059 = vmatpush.bf16.xpose.msra.mxu0 0
  %2060 = vmatpush.bf16.xpose.msra.mxu0 0
  %2061 = vmatpush.bf16.xpose.msra.mxu0 0
  %2062 = vmatpush.bf16.xpose.msra.mxu0 0
  %2063 = vmatpush.bf16.xpose.msra.mxu0 0
  %2064 = vmatpush.bf16.xpose.msra.mxu0 0
  %2065 = vmatpush.bf16.xpose.msra.mxu0 %v2056
  %2066 = vmatmul.bf16.gmra.mxu0 %v2053
  %v2067 = vpop.f32.mrf.mxu0
  %v2068 = vadd.f32 %v714, %v2067
  %v2069 = vpop.f32.mrf.mxu0
  %v2070 = vadd.f32 %v715, %v2069
  %2071 = vdwg.mxu0
  %2072 = vrot.lane.b32.xlu0 %v811, 112
  %v2073 = vpop.permute.xlu0 %2072
  %2074 = vrot.lane.b32.xlu0 %v816, 80
  %v2075 = vpop.permute.xlu0 %2074
  %v2077 = vsel %vm786, %v2073, 0
  %v2080 = vsel %vm786, %v2075, 0
  %2082 = vmatpush.bf16.xpose.msra.mxu0 0
  %2083 = vmatpush.bf16.xpose.msra.mxu0 0
  %2084 = vmatpush.bf16.xpose.msra.mxu0 0
  %2085 = vmatpush.bf16.xpose.msra.mxu0 0
  %2086 = vmatpush.bf16.xpose.msra.mxu0 0
  %2087 = vmatpush.bf16.xpose.msra.mxu0 0
  %2088 = vmatpush.bf16.xpose.msra.mxu0 0
  %2089 = vmatpush.bf16.xpose.msra.mxu0 %v2080
  %2090 = vmatmul.bf16.gmra.mxu0 %v2077
  %v2091 = vpop.f32.mrf.mxu0
  %v2092 = vadd.f32 %v722, %v2091
  %v2093 = vpop.f32.mrf.mxu0
  %v2094 = vadd.f32 %v723, %v2093
  %2095 = vdwg.mxu0
  %2096 = vrot.lane.b32.xlu0 %v843, 112
  %v2097 = vpop.permute.xlu0 %2096
  %2098 = vrot.lane.b32.xlu0 %v848, 80
  %v2099 = vpop.permute.xlu0 %2098
  %v2101 = vsel %vm786, %v2097, 0
  %v2104 = vsel %vm786, %v2099, 0
  %2106 = vmatpush.bf16.xpose.msra.mxu0 0
  %2107 = vmatpush.bf16.xpose.msra.mxu0 0
  %2108 = vmatpush.bf16.xpose.msra.mxu0 0
  %2109 = vmatpush.bf16.xpose.msra.mxu0 0
  %2110 = vmatpush.bf16.xpose.msra.mxu0 0
  %2111 = vmatpush.bf16.xpose.msra.mxu0 0
  %2112 = vmatpush.bf16.xpose.msra.mxu0 0
  %2113 = vmatpush.bf16.xpose.msra.mxu0 %v2104
  %2114 = vmatmul.bf16.gmra.mxu0 %v2101
  %v2115 = vpop.f32.mrf.mxu0
  %v2116 = vadd.f32 %v730, %v2115
  %v2117 = vpop.f32.mrf.mxu0
  %v2118 = vadd.f32 %v731, %v2117
  %2119 = vdwg.mxu0
  %2120 = vrot.lane.b32.xlu0 %v875, 112
  %v2121 = vpop.permute.xlu0 %2120
  %2122 = vrot.lane.b32.xlu0 %v880, 80
  %v2123 = vpop.permute.xlu0 %2122
  %v2125 = vsel %vm786, %v2121, 0
  %v2128 = vsel %vm786, %v2123, 0
  %2130 = vmatpush.bf16.xpose.msra.mxu0 0
  %2131 = vmatpush.bf16.xpose.msra.mxu0 0
  %2132 = vmatpush.bf16.xpose.msra.mxu0 0
  %2133 = vmatpush.bf16.xpose.msra.mxu0 0
  %2134 = vmatpush.bf16.xpose.msra.mxu0 0
  %2135 = vmatpush.bf16.xpose.msra.mxu0 0
  %2136 = vmatpush.bf16.xpose.msra.mxu0 0
  %2137 = vmatpush.bf16.xpose.msra.mxu0 %v2128
  %2138 = vmatmul.bf16.gmra.mxu0 %v2125
  %v2139 = vpop.f32.mrf.mxu0
  %v2140 = vadd.f32 %v738, %v2139
  %v2141 = vpop.f32.mrf.mxu0
  %v2142 = vadd.f32 %v739, %v2141
  %2143 = vdwg.mxu0
  %2144 = vrot.lane.b32.xlu0 %v907, 112
  %v2145 = vpop.permute.xlu0 %2144
  %2146 = vrot.lane.b32.xlu0 %v912, 80
  %v2147 = vpop.permute.xlu0 %2146
  %v2149 = vsel %vm786, %v2145, 0
  %v2152 = vsel %vm786, %v2147, 0
  %2154 = vmatpush.bf16.xpose.msra.mxu0 0
  %2155 = vmatpush.bf16.xpose.msra.mxu0 0
  %2156 = vmatpush.bf16.xpose.msra.mxu0 0
  %2157 = vmatpush.bf16.xpose.msra.mxu0 0
  %2158 = vmatpush.bf16.xpose.msra.mxu0 0
  %2159 = vmatpush.bf16.xpose.msra.mxu0 0
  %2160 = vmatpush.bf16.xpose.msra.mxu0 0
  %2161 = vmatpush.bf16.xpose.msra.mxu0 %v2152
  %2162 = vmatmul.bf16.gmra.mxu0 %v2149
  %v2163 = vpop.f32.mrf.mxu0
  %v2164 = vadd.f32 %v746, %v2163
  %v2165 = vpop.f32.mrf.mxu0
  %v2166 = vadd.f32 %v747, %v2165
  %2167 = vdwg.mxu0
  %2168 = vrot.lane.b32.xlu0 %v939, 112
  %v2169 = vpop.permute.xlu0 %2168
  %2170 = vrot.lane.b32.xlu0 %v944, 80
  %v2171 = vpop.permute.xlu0 %2170
  %v2173 = vsel %vm786, %v2169, 0
  %v2176 = vsel %vm786, %v2171, 0
  %2178 = vmatpush.bf16.xpose.msra.mxu0 0
  %2179 = vmatpush.bf16.xpose.msra.mxu0 0
  %2180 = vmatpush.bf16.xpose.msra.mxu0 0
  %2181 = vmatpush.bf16.xpose.msra.mxu0 0
  %2182 = vmatpush.bf16.xpose.msra.mxu0 0
  %2183 = vmatpush.bf16.xpose.msra.mxu0 0
  %2184 = vmatpush.bf16.xpose.msra.mxu0 0
  %2185 = vmatpush.bf16.xpose.msra.mxu0 %v2176
  %2186 = vmatmul.bf16.gmra.mxu0 %v2173
  %v2187 = vpop.f32.mrf.mxu0
  %v2188 = vadd.f32 %v754, %v2187
  %v2189 = vpop.f32.mrf.mxu0
  %v2190 = vadd.f32 %v755, %v2189
  %2191 = vdwg.mxu0
  %2192 = vrot.lane.b32.xlu0 %v971, 112
  %v2193 = vpop.permute.xlu0 %2192
  %2194 = vrot.lane.b32.xlu0 %v976, 80
  %v2195 = vpop.permute.xlu0 %2194
  %v2197 = vsel %vm786, %v2193, 0
  %v2200 = vsel %vm786, %v2195, 0
  %2202 = vmatpush.bf16.xpose.msra.mxu0 0
  %2203 = vmatpush.bf16.xpose.msra.mxu0 0
  %2204 = vmatpush.bf16.xpose.msra.mxu0 0
  %2205 = vmatpush.bf16.xpose.msra.mxu0 0
  %2206 = vmatpush.bf16.xpose.msra.mxu0 0
  %2207 = vmatpush.bf16.xpose.msra.mxu0 0
  %2208 = vmatpush.bf16.xpose.msra.mxu0 0
  %2209 = vmatpush.bf16.xpose.msra.mxu0 %v2200
  %2210 = vmatmul.bf16.gmra.mxu0 %v2197
  %v2211 = vpop.f32.mrf.mxu0
  %v2212 = vadd.f32 %v762, %v2211
  %v2213 = vpop.f32.mrf.mxu0
  %v2214 = vadd.f32 %v763, %v2213
  %2215 = vdwg.mxu0
  %2216 = vrot.lane.b32.xlu0 %v1003, 112
  %v2217 = vpop.permute.xlu0 %2216
  %2218 = vrot.lane.b32.xlu0 %v1008, 80
  %v2219 = vpop.permute.xlu0 %2218
  %v2221 = vsel %vm786, %v2217, 0
  %v2224 = vsel %vm786, %v2219, 0
  %2226 = vmatpush.bf16.xpose.msra.mxu0 0
  %2227 = vmatpush.bf16.xpose.msra.mxu0 0
  %2228 = vmatpush.bf16.xpose.msra.mxu0 0
  %2229 = vmatpush.bf16.xpose.msra.mxu0 0
  %2230 = vmatpush.bf16.xpose.msra.mxu0 0
  %2231 = vmatpush.bf16.xpose.msra.mxu0 0
  %2232 = vmatpush.bf16.xpose.msra.mxu0 0
  %2233 = vmatpush.bf16.xpose.msra.mxu0 %v2224
  %2234 = vmatmul.bf16.gmra.mxu0 %v2221
  %v2235 = vpop.f32.mrf.mxu0
  %v2236 = vadd.f32 %v770, %v2235
  %v2237 = vpop.f32.mrf.mxu0
  %v2238 = vadd.f32 %v771, %v2237
  %2239 = vdwg.mxu0
  %v2240 = vsel %vm1031, %v2068, -inf
  %2241 = vmax.xlane.f32.xlu0 %v2240
  %v2242 = vpop.xlane.xlu0 %2241
  %v2243 = vsel %vm1031, %v2070, -inf
  %2244 = vmax.xlane.f32.xlu0 %v2243
  %v2245 = vpop.xlane.xlu0 %2244
  %v2246 = vsel %vm1031, %v2092, -inf
  %2247 = vmax.xlane.f32.xlu0 %v2246
  %v2248 = vpop.xlane.xlu0 %2247
  %v2249 = vsel %vm1031, %v2094, -inf
  %2250 = vmax.xlane.f32.xlu0 %v2249
  %v2251 = vpop.xlane.xlu0 %2250
  %v2252 = vsel %vm1031, %v2116, -inf
  %2253 = vmax.xlane.f32.xlu0 %v2252
  %v2254 = vpop.xlane.xlu0 %2253
  %v2255 = vsel %vm1031, %v2118, -inf
  %2256 = vmax.xlane.f32.xlu0 %v2255
  %v2257 = vpop.xlane.xlu0 %2256
  %v2258 = vsel %vm1031, %v2140, -inf
  %2259 = vmax.xlane.f32.xlu0 %v2258
  %v2260 = vpop.xlane.xlu0 %2259
  %v2261 = vsel %vm1031, %v2142, -inf
  %2262 = vmax.xlane.f32.xlu0 %v2261
  %v2263 = vpop.xlane.xlu0 %2262
  %v2264 = vsel %vm1031, %v2164, -inf
  %2265 = vmax.xlane.f32.xlu0 %v2264
  %v2266 = vpop.xlane.xlu0 %2265
  %v2267 = vsel %vm1031, %v2166, -inf
  %2268 = vmax.xlane.f32.xlu0 %v2267
  %v2269 = vpop.xlane.xlu0 %2268
  %v2270 = vsel %vm1031, %v2188, -inf
  %2271 = vmax.xlane.f32.xlu0 %v2270
  %v2272 = vpop.xlane.xlu0 %2271
  %v2273 = vsel %vm1031, %v2190, -inf
  %2274 = vmax.xlane.f32.xlu0 %v2273
  %v2275 = vpop.xlane.xlu0 %2274
  %v2276 = vsel %vm1031, %v2212, -inf
  %2277 = vmax.xlane.f32.xlu0 %v2276
  %v2278 = vpop.xlane.xlu0 %2277
  %v2279 = vsel %vm1031, %v2214, -inf
  %2280 = vmax.xlane.f32.xlu0 %v2279
  %v2281 = vpop.xlane.xlu0 %2280
  %v2282 = vsel %vm1031, %v2236, -inf
  %2283 = vmax.xlane.f32.xlu0 %v2282
  %v2284 = vpop.xlane.xlu0 %2283
  %v2285 = vsel %vm1031, %v2238, -inf
  %2286 = vmax.xlane.f32.xlu0 %v2285
  %v2287 = vpop.xlane.xlu0 %2286
  %v2288 = vsub.f32 %v2068, %v2242
  %v2289 = vsub.f32 %v2070, %v2245
  %v2290 = vsub.f32 %v2092, %v2248
  %v2291 = vsub.f32 %v2094, %v2251
  %v2292 = vsub.f32 %v2116, %v2254
  %v2293 = vsub.f32 %v2118, %v2257
  %v2294 = vsub.f32 %v2140, %v2260
  %v2295 = vsub.f32 %v2142, %v2263
  %v2296 = vsub.f32 %v2164, %v2266
  %v2297 = vsub.f32 %v2166, %v2269
  %v2298 = vsub.f32 %v2188, %v2272
  %v2299 = vsub.f32 %v2190, %v2275
  %v2300 = vsub.f32 %v2212, %v2278
  %v2301 = vsub.f32 %v2214, %v2281
  %v2302 = vsub.f32 %v2236, %v2284
  %v2303 = vsub.f32 %v2238, %v2287
  %v2304 = vmul.f32 %v2288, 1.442695
  %v2305 = vpow.pop %v2304
  %v2306 = vmul.f32 %v2289, 1.442695
  %v2307 = vpow.pop %v2306
  %v2308 = vmul.f32 %v2290, 1.442695
  %v2309 = vpow.pop %v2308
  %v2310 = vmul.f32 %v2291, 1.442695
  %v2311 = vpow.pop %v2310
  %v2312 = vmul.f32 %v2292, 1.442695
  %v2313 = vpow.pop %v2312
  %v2314 = vmul.f32 %v2293, 1.442695
  %v2315 = vpow.pop %v2314
  %v2316 = vmul.f32 %v2294, 1.442695
  %v2317 = vpow.pop %v2316
  %v2318 = vmul.f32 %v2295, 1.442695
  %v2319 = vpow.pop %v2318
  %v2320 = vmul.f32 %v2296, 1.442695
  %v2321 = vpow.pop %v2320
  %v2322 = vmul.f32 %v2297, 1.442695
  %v2323 = vpow.pop %v2322
  %v2324 = vmul.f32 %v2298, 1.442695
  %v2325 = vpow.pop %v2324
  %v2326 = vmul.f32 %v2299, 1.442695
  %v2327 = vpow.pop %v2326
  %v2328 = vmul.f32 %v2300, 1.442695
  %v2329 = vpow.pop %v2328
  %v2330 = vmul.f32 %v2301, 1.442695
  %v2331 = vpow.pop %v2330
  %v2332 = vmul.f32 %v2302, 1.442695
  %v2333 = vpow.pop %v2332
  %v2334 = vmul.f32 %v2303, 1.442695
  %v2335 = vpow.pop %v2334
  %v2336 = vsel %vm1031, %v2305, 0.0
  %2337 = vadd.xlane.f32.xlu0 %v2336
  %v2338 = vpop.xlane.xlu0 %2337
  %v2339 = vsel %vm1031, %v2307, 0.0
  %2340 = vadd.xlane.f32.xlu0 %v2339
  %v2341 = vpop.xlane.xlu0 %2340
  %v2342 = vsel %vm1031, %v2309, 0.0
  %2343 = vadd.xlane.f32.xlu0 %v2342
  %v2344 = vpop.xlane.xlu0 %2343
  %v2345 = vsel %vm1031, %v2311, 0.0
  %2346 = vadd.xlane.f32.xlu0 %v2345
  %v2347 = vpop.xlane.xlu0 %2346
  %v2348 = vsel %vm1031, %v2313, 0.0
  %2349 = vadd.xlane.f32.xlu0 %v2348
  %v2350 = vpop.xlane.xlu0 %2349
  %v2351 = vsel %vm1031, %v2315, 0.0
  %2352 = vadd.xlane.f32.xlu0 %v2351
  %v2353 = vpop.xlane.xlu0 %2352
  %v2354 = vsel %vm1031, %v2317, 0.0
  %2355 = vadd.xlane.f32.xlu0 %v2354
  %v2356 = vpop.xlane.xlu0 %2355
  %v2357 = vsel %vm1031, %v2319, 0.0
  %2358 = vadd.xlane.f32.xlu0 %v2357
  %v2359 = vpop.xlane.xlu0 %2358
  %v2360 = vsel %vm1031, %v2321, 0.0
  %2361 = vadd.xlane.f32.xlu0 %v2360
  %v2362 = vpop.xlane.xlu0 %2361
  %v2363 = vsel %vm1031, %v2323, 0.0
  %2364 = vadd.xlane.f32.xlu0 %v2363
  %v2365 = vpop.xlane.xlu0 %2364
  %v2366 = vsel %vm1031, %v2325, 0.0
  %2367 = vadd.xlane.f32.xlu0 %v2366
  %v2368 = vpop.xlane.xlu0 %2367
  %v2369 = vsel %vm1031, %v2327, 0.0
  %2370 = vadd.xlane.f32.xlu0 %v2369
  %v2371 = vpop.xlane.xlu0 %2370
  %v2372 = vsel %vm1031, %v2329, 0.0
  %2373 = vadd.xlane.f32.xlu0 %v2372
  %v2374 = vpop.xlane.xlu0 %2373
  %v2375 = vsel %vm1031, %v2331, 0.0
  %2376 = vadd.xlane.f32.xlu0 %v2375
  %v2377 = vpop.xlane.xlu0 %2376
  %v2378 = vsel %vm1031, %v2333, 0.0
  %2379 = vadd.xlane.f32.xlu0 %v2378
  %v2380 = vpop.xlane.xlu0 %2379
  %v2381 = vsel %vm1031, %v2335, 0.0
  %2382 = vadd.xlane.f32.xlu0 %v2381
  %v2383 = vpop.xlane.xlu0 %2382
  %v2384 = vrcp.pop %v2338
  %v2385 = vrcp.pop %v2341
  %v2386 = vrcp.pop %v2344
  %v2387 = vrcp.pop %v2347
  %v2388 = vrcp.pop %v2350
  %v2389 = vrcp.pop %v2353
  %v2390 = vrcp.pop %v2356
  %v2391 = vrcp.pop %v2359
  %v2392 = vrcp.pop %v2362
  %v2393 = vrcp.pop %v2365
  %v2394 = vrcp.pop %v2368
  %v2395 = vrcp.pop %v2371
  %v2396 = vrcp.pop %v2374
  %v2397 = vrcp.pop %v2377
  %v2398 = vrcp.pop %v2380
  %v2399 = vrcp.pop %v2383
  %v2400 = vmul.f32 %v2305, %v2384
  %v2401 = vmul.f32 %v2307, %v2385
  %v2402 = vmul.f32 %v2309, %v2386
  %v2403 = vmul.f32 %v2311, %v2387
  %v2404 = vmul.f32 %v2313, %v2388
  %v2405 = vmul.f32 %v2315, %v2389
  %v2406 = vmul.f32 %v2317, %v2390
  %v2407 = vmul.f32 %v2319, %v2391
  %v2408 = vmul.f32 %v2321, %v2392
  %v2409 = vmul.f32 %v2323, %v2393
  %v2410 = vmul.f32 %v2325, %v2394
  %v2411 = vmul.f32 %v2327, %v2395
  %v2412 = vmul.f32 %v2329, %v2396
  %v2413 = vmul.f32 %v2331, %v2397
  %v2414 = vmul.f32 %v2333, %v2398
  %v2415 = vmul.f32 %v2335, %v2399
  %v2416 = vpack.c.bf16 %v2400, %v2400
  %v2417 = vpack.c.bf16 %v2401, %v2401
  %v2418 = vpack.c.bf16 %v2402, %v2402
  %v2419 = vpack.c.bf16 %v2403, %v2403
  %v2420 = vpack.c.bf16 %v2404, %v2404
  %v2421 = vpack.c.bf16 %v2405, %v2405
  %v2422 = vpack.c.bf16 %v2406, %v2406
  %v2423 = vpack.c.bf16 %v2407, %v2407
  %v2424 = vpack.c.bf16 %v2408, %v2408
  %v2425 = vpack.c.bf16 %v2409, %v2409
  %v2426 = vpack.c.bf16 %v2410, %v2410
  %v2427 = vpack.c.bf16 %v2411, %v2411
  %v2428 = vpack.c.bf16 %v2412, %v2412
  %v2429 = vpack.c.bf16 %v2413, %v2413
  %v2430 = vpack.c.bf16 %v2414, %v2414
  %v2431 = vpack.c.bf16 %v2415, %v2415
  %v2434 = vunpack.c.l.b16 %v2416
  %v2435 = vunpack.c.l.b16 %v2417
  %v2436 = vpack.c.b16 %v2435, %v2434
  %2437 = vrot.lane.b32.xlu0 %v1233, 48
  %v2438 = vpop.permute.xlu0 %2437
  %v2441 = vsel %vm1031, %v2436, 0
  %2443 = vmatpush.bf16.msra.mxu0 0
  %2444 = vmatpush.bf16.msra.mxu0 0
  %2445 = vmatpush.bf16.msra.mxu0 0
  %2446 = vmatpush.bf16.msra.mxu0 0
  %2447 = vmatpush.bf16.msra.mxu0 0
  %2448 = vmatpush.bf16.msra.mxu0 0
  %2449 = vmatpush.bf16.msra.mxu0 0
  %2450 = vmatpush.bf16.msra.mxu0 %v2438
  %2451 = vmatmul.bf16.gmra.mxu0 %v2441
  %v2452 = vpop.f32.mrf.mxu0
  %v2453 = vadd.f32 0.0, %v2452
  %v2454 = vpop.f32.mrf.mxu0
  %v2455 = vadd.f32 0.0, %v2454
  %2456 = vdwg.mxu0
  %v2459 = vunpack.c.l.b16 %v2418
  %v2460 = vunpack.c.l.b16 %v2419
  %v2461 = vpack.c.b16 %v2460, %v2459
  %2462 = vrot.lane.b32.xlu0 %v1263, 48
  %v2463 = vpop.permute.xlu0 %2462
  %v2466 = vsel %vm1031, %v2461, 0
  %2468 = vmatpush.bf16.msra.mxu0 0
  %2469 = vmatpush.bf16.msra.mxu0 0
  %2470 = vmatpush.bf16.msra.mxu0 0
  %2471 = vmatpush.bf16.msra.mxu0 0
  %2472 = vmatpush.bf16.msra.mxu0 0
  %2473 = vmatpush.bf16.msra.mxu0 0
  %2474 = vmatpush.bf16.msra.mxu0 0
  %2475 = vmatpush.bf16.msra.mxu0 %v2463
  %2476 = vmatmul.bf16.gmra.mxu0 %v2466
  %v2477 = vpop.f32.mrf.mxu0
  %v2478 = vadd.f32 0.0, %v2477
  %v2479 = vpop.f32.mrf.mxu0
  %v2480 = vadd.f32 0.0, %v2479
  %2481 = vdwg.mxu0
  %v2484 = vunpack.c.l.b16 %v2420
  %v2485 = vunpack.c.l.b16 %v2421
  %v2486 = vpack.c.b16 %v2485, %v2484
  %2487 = vrot.lane.b32.xlu0 %v1293, 48
  %v2488 = vpop.permute.xlu0 %2487
  %v2491 = vsel %vm1031, %v2486, 0
  %2493 = vmatpush.bf16.msra.mxu0 0
  %2494 = vmatpush.bf16.msra.mxu0 0
  %2495 = vmatpush.bf16.msra.mxu0 0
  %2496 = vmatpush.bf16.msra.mxu0 0
  %2497 = vmatpush.bf16.msra.mxu0 0
  %2498 = vmatpush.bf16.msra.mxu0 0
  %2499 = vmatpush.bf16.msra.mxu0 0
  %2500 = vmatpush.bf16.msra.mxu0 %v2488
  %2501 = vmatmul.bf16.gmra.mxu0 %v2491
  %v2502 = vpop.f32.mrf.mxu0
  %v2503 = vadd.f32 0.0, %v2502
  %v2504 = vpop.f32.mrf.mxu0
  %v2505 = vadd.f32 0.0, %v2504
  %2506 = vdwg.mxu0
  %v2509 = vunpack.c.l.b16 %v2422
  %v2510 = vunpack.c.l.b16 %v2423
  %v2511 = vpack.c.b16 %v2510, %v2509
  %2512 = vrot.lane.b32.xlu0 %v1323, 48
  %v2513 = vpop.permute.xlu0 %2512
  %v2516 = vsel %vm1031, %v2511, 0
  %2518 = vmatpush.bf16.msra.mxu0 0
  %2519 = vmatpush.bf16.msra.mxu0 0
  %2520 = vmatpush.bf16.msra.mxu0 0
  %2521 = vmatpush.bf16.msra.mxu0 0
  %2522 = vmatpush.bf16.msra.mxu0 0
  %2523 = vmatpush.bf16.msra.mxu0 0
  %2524 = vmatpush.bf16.msra.mxu0 0
  %2525 = vmatpush.bf16.msra.mxu0 %v2513
  %2526 = vmatmul.bf16.gmra.mxu0 %v2516
  %v2527 = vpop.f32.mrf.mxu0
  %v2528 = vadd.f32 0.0, %v2527
  %v2529 = vpop.f32.mrf.mxu0
  %v2530 = vadd.f32 0.0, %v2529
  %2531 = vdwg.mxu0
  %v2534 = vunpack.c.l.b16 %v2424
  %v2535 = vunpack.c.l.b16 %v2425
  %v2536 = vpack.c.b16 %v2535, %v2534
  %2537 = vrot.lane.b32.xlu0 %v1353, 48
  %v2538 = vpop.permute.xlu0 %2537
  %v2541 = vsel %vm1031, %v2536, 0
  %2543 = vmatpush.bf16.msra.mxu0 0
  %2544 = vmatpush.bf16.msra.mxu0 0
  %2545 = vmatpush.bf16.msra.mxu0 0
  %2546 = vmatpush.bf16.msra.mxu0 0
  %2547 = vmatpush.bf16.msra.mxu0 0
  %2548 = vmatpush.bf16.msra.mxu0 0
  %2549 = vmatpush.bf16.msra.mxu0 0
  %2550 = vmatpush.bf16.msra.mxu0 %v2538
  %2551 = vmatmul.bf16.gmra.mxu0 %v2541
  %v2552 = vpop.f32.mrf.mxu0
  %v2553 = vadd.f32 0.0, %v2552
  %v2554 = vpop.f32.mrf.mxu0
  %v2555 = vadd.f32 0.0, %v2554
  %2556 = vdwg.mxu0
  %v2559 = vunpack.c.l.b16 %v2426
  %v2560 = vunpack.c.l.b16 %v2427
  %v2561 = vpack.c.b16 %v2560, %v2559
  %2562 = vrot.lane.b32.xlu0 %v1383, 48
  %v2563 = vpop.permute.xlu0 %2562
  %v2566 = vsel %vm1031, %v2561, 0
  %2568 = vmatpush.bf16.msra.mxu0 0
  %2569 = vmatpush.bf16.msra.mxu0 0
  %2570 = vmatpush.bf16.msra.mxu0 0
  %2571 = vmatpush.bf16.msra.mxu0 0
  %2572 = vmatpush.bf16.msra.mxu0 0
  %2573 = vmatpush.bf16.msra.mxu0 0
  %2574 = vmatpush.bf16.msra.mxu0 0
  %2575 = vmatpush.bf16.msra.mxu0 %v2563
  %2576 = vmatmul.bf16.gmra.mxu0 %v2566
  %v2577 = vpop.f32.mrf.mxu0
  %v2578 = vadd.f32 0.0, %v2577
  %v2579 = vpop.f32.mrf.mxu0
  %v2580 = vadd.f32 0.0, %v2579
  %2581 = vdwg.mxu0
  %v2584 = vunpack.c.l.b16 %v2428
  %v2585 = vunpack.c.l.b16 %v2429
  %v2586 = vpack.c.b16 %v2585, %v2584
  %2587 = vrot.lane.b32.xlu0 %v1413, 48
  %v2588 = vpop.permute.xlu0 %2587
  %v2591 = vsel %vm1031, %v2586, 0
  %2593 = vmatpush.bf16.msra.mxu0 0
  %2594 = vmatpush.bf16.msra.mxu0 0
  %2595 = vmatpush.bf16.msra.mxu0 0
  %2596 = vmatpush.bf16.msra.mxu0 0
  %2597 = vmatpush.bf16.msra.mxu0 0
  %2598 = vmatpush.bf16.msra.mxu0 0
  %2599 = vmatpush.bf16.msra.mxu0 0
  %2600 = vmatpush.bf16.msra.mxu0 %v2588
  %2601 = vmatmul.bf16.gmra.mxu0 %v2591
  %v2602 = vpop.f32.mrf.mxu0
  %v2603 = vadd.f32 0.0, %v2602
  %v2604 = vpop.f32.mrf.mxu0
  %v2605 = vadd.f32 0.0, %v2604
  %2606 = vdwg.mxu0
  %v2609 = vunpack.c.l.b16 %v2430
  %v2610 = vunpack.c.l.b16 %v2431
  %v2611 = vpack.c.b16 %v2610, %v2609
  %2612 = vrot.lane.b32.xlu0 %v1443, 48
  %v2613 = vpop.permute.xlu0 %2612
  %v2616 = vsel %vm1031, %v2611, 0
  %2618 = vmatpush.bf16.msra.mxu0 0
  %2619 = vmatpush.bf16.msra.mxu0 0
  %2620 = vmatpush.bf16.msra.mxu0 0
  %2621 = vmatpush.bf16.msra.mxu0 0
  %2622 = vmatpush.bf16.msra.mxu0 0
  %2623 = vmatpush.bf16.msra.mxu0 0
  %2624 = vmatpush.bf16.msra.mxu0 0
  %2625 = vmatpush.bf16.msra.mxu0 %v2613
  %2626 = vmatmul.bf16.gmra.mxu0 %v2616
  %v2627 = vpop.f32.mrf.mxu0
  %v2628 = vadd.f32 0.0, %v2627
  %v2629 = vpop.f32.mrf.mxu0
  %v2630 = vadd.f32 0.0, %v2629
  %2631 = vdwg.mxu0
  %2632 = vrot.lane.b32.xlu0 %v778, 104
  %v2633 = vpop.permute.xlu0 %2632
  %2634 = vrot.lane.b32.xlu0 %v783, 72
  %v2635 = vpop.permute.xlu0 %2634
  %v2637 = vsel %vm786, %v2633, 0
  %v2640 = vsel %vm786, %v2635, 0
  %2642 = vmatpush.bf16.xpose.msra.mxu0 0
  %2643 = vmatpush.bf16.xpose.msra.mxu0 0
  %2644 = vmatpush.bf16.xpose.msra.mxu0 0
  %2645 = vmatpush.bf16.xpose.msra.mxu0 0
  %2646 = vmatpush.bf16.xpose.msra.mxu0 0
  %2647 = vmatpush.bf16.xpose.msra.mxu0 0
  %2648 = vmatpush.bf16.xpose.msra.mxu0 0
  %2649 = vmatpush.bf16.xpose.msra.mxu0 %v2640
  %2650 = vmatmul.bf16.gmra.mxu0 %v2637
  %v2651 = vpop.f32.mrf.mxu0
  %v2652 = vadd.f32 %v716, %v2651
  %v2653 = vpop.f32.mrf.mxu0
  %v2654 = vadd.f32 %v717, %v2653
  %2655 = vdwg.mxu0
  %2656 = vrot.lane.b32.xlu0 %v811, 104
  %v2657 = vpop.permute.xlu0 %2656
  %2658 = vrot.lane.b32.xlu0 %v816, 72
  %v2659 = vpop.permute.xlu0 %2658
  %v2661 = vsel %vm786, %v2657, 0
  %v2664 = vsel %vm786, %v2659, 0
  %2666 = vmatpush.bf16.xpose.msra.mxu0 0
  %2667 = vmatpush.bf16.xpose.msra.mxu0 0
  %2668 = vmatpush.bf16.xpose.msra.mxu0 0
  %2669 = vmatpush.bf16.xpose.msra.mxu0 0
  %2670 = vmatpush.bf16.xpose.msra.mxu0 0
  %2671 = vmatpush.bf16.xpose.msra.mxu0 0
  %2672 = vmatpush.bf16.xpose.msra.mxu0 0
  %2673 = vmatpush.bf16.xpose.msra.mxu0 %v2664
  %2674 = vmatmul.bf16.gmra.mxu0 %v2661
  %v2675 = vpop.f32.mrf.mxu0
  %v2676 = vadd.f32 %v724, %v2675
  %v2677 = vpop.f32.mrf.mxu0
  %v2678 = vadd.f32 %v725, %v2677
  %2679 = vdwg.mxu0
  %2680 = vrot.lane.b32.xlu0 %v843, 104
  %v2681 = vpop.permute.xlu0 %2680
  %2682 = vrot.lane.b32.xlu0 %v848, 72
  %v2683 = vpop.permute.xlu0 %2682
  %v2685 = vsel %vm786, %v2681, 0
  %v2688 = vsel %vm786, %v2683, 0
  %2690 = vmatpush.bf16.xpose.msra.mxu0 0
  %2691 = vmatpush.bf16.xpose.msra.mxu0 0
  %2692 = vmatpush.bf16.xpose.msra.mxu0 0
  %2693 = vmatpush.bf16.xpose.msra.mxu0 0
  %2694 = vmatpush.bf16.xpose.msra.mxu0 0
  %2695 = vmatpush.bf16.xpose.msra.mxu0 0
  %2696 = vmatpush.bf16.xpose.msra.mxu0 0
  %2697 = vmatpush.bf16.xpose.msra.mxu0 %v2688
  %2698 = vmatmul.bf16.gmra.mxu0 %v2685
  %v2699 = vpop.f32.mrf.mxu0
  %v2700 = vadd.f32 %v732, %v2699
  %v2701 = vpop.f32.mrf.mxu0
  %v2702 = vadd.f32 %v733, %v2701
  %2703 = vdwg.mxu0
  %2704 = vrot.lane.b32.xlu0 %v875, 104
  %v2705 = vpop.permute.xlu0 %2704
  %2706 = vrot.lane.b32.xlu0 %v880, 72
  %v2707 = vpop.permute.xlu0 %2706
  %v2709 = vsel %vm786, %v2705, 0
  %v2712 = vsel %vm786, %v2707, 0
  %2714 = vmatpush.bf16.xpose.msra.mxu0 0
  %2715 = vmatpush.bf16.xpose.msra.mxu0 0
  %2716 = vmatpush.bf16.xpose.msra.mxu0 0
  %2717 = vmatpush.bf16.xpose.msra.mxu0 0
  %2718 = vmatpush.bf16.xpose.msra.mxu0 0
  %2719 = vmatpush.bf16.xpose.msra.mxu0 0
  %2720 = vmatpush.bf16.xpose.msra.mxu0 0
  %2721 = vmatpush.bf16.xpose.msra.mxu0 %v2712
  %2722 = vmatmul.bf16.gmra.mxu0 %v2709
  %v2723 = vpop.f32.mrf.mxu0
  %v2724 = vadd.f32 %v740, %v2723
  %v2725 = vpop.f32.mrf.mxu0
  %v2726 = vadd.f32 %v741, %v2725
  %2727 = vdwg.mxu0
  %2728 = vrot.lane.b32.xlu0 %v907, 104
  %v2729 = vpop.permute.xlu0 %2728
  %2730 = vrot.lane.b32.xlu0 %v912, 72
  %v2731 = vpop.permute.xlu0 %2730
  %v2733 = vsel %vm786, %v2729, 0
  %v2736 = vsel %vm786, %v2731, 0
  %2738 = vmatpush.bf16.xpose.msra.mxu0 0
  %2739 = vmatpush.bf16.xpose.msra.mxu0 0
  %2740 = vmatpush.bf16.xpose.msra.mxu0 0
  %2741 = vmatpush.bf16.xpose.msra.mxu0 0
  %2742 = vmatpush.bf16.xpose.msra.mxu0 0
  %2743 = vmatpush.bf16.xpose.msra.mxu0 0
  %2744 = vmatpush.bf16.xpose.msra.mxu0 0
  %2745 = vmatpush.bf16.xpose.msra.mxu0 %v2736
  %2746 = vmatmul.bf16.gmra.mxu0 %v2733
  %v2747 = vpop.f32.mrf.mxu0
  %v2748 = vadd.f32 %v748, %v2747
  %v2749 = vpop.f32.mrf.mxu0
  %v2750 = vadd.f32 %v749, %v2749
  %2751 = vdwg.mxu0
  %2752 = vrot.lane.b32.xlu0 %v939, 104
  %v2753 = vpop.permute.xlu0 %2752
  %2754 = vrot.lane.b32.xlu0 %v944, 72
  %v2755 = vpop.permute.xlu0 %2754
  %v2757 = vsel %vm786, %v2753, 0
  %v2760 = vsel %vm786, %v2755, 0
  %2762 = vmatpush.bf16.xpose.msra.mxu0 0
  %2763 = vmatpush.bf16.xpose.msra.mxu0 0
  %2764 = vmatpush.bf16.xpose.msra.mxu0 0
  %2765 = vmatpush.bf16.xpose.msra.mxu0 0
  %2766 = vmatpush.bf16.xpose.msra.mxu0 0
  %2767 = vmatpush.bf16.xpose.msra.mxu0 0
  %2768 = vmatpush.bf16.xpose.msra.mxu0 0
  %2769 = vmatpush.bf16.xpose.msra.mxu0 %v2760
  %2770 = vmatmul.bf16.gmra.mxu0 %v2757
  %v2771 = vpop.f32.mrf.mxu0
  %v2772 = vadd.f32 %v756, %v2771
  %v2773 = vpop.f32.mrf.mxu0
  %v2774 = vadd.f32 %v757, %v2773
  %2775 = vdwg.mxu0
  %2776 = vrot.lane.b32.xlu0 %v971, 104
  %v2777 = vpop.permute.xlu0 %2776
  %2778 = vrot.lane.b32.xlu0 %v976, 72
  %v2779 = vpop.permute.xlu0 %2778
  %v2781 = vsel %vm786, %v2777, 0
  %v2784 = vsel %vm786, %v2779, 0
  %2786 = vmatpush.bf16.xpose.msra.mxu0 0
  %2787 = vmatpush.bf16.xpose.msra.mxu0 0
  %2788 = vmatpush.bf16.xpose.msra.mxu0 0
  %2789 = vmatpush.bf16.xpose.msra.mxu0 0
  %2790 = vmatpush.bf16.xpose.msra.mxu0 0
  %2791 = vmatpush.bf16.xpose.msra.mxu0 0
  %2792 = vmatpush.bf16.xpose.msra.mxu0 0
  %2793 = vmatpush.bf16.xpose.msra.mxu0 %v2784
  %2794 = vmatmul.bf16.gmra.mxu0 %v2781
  %v2795 = vpop.f32.mrf.mxu0
  %v2796 = vadd.f32 %v764, %v2795
  %v2797 = vpop.f32.mrf.mxu0
  %v2798 = vadd.f32 %v765, %v2797
  %2799 = vdwg.mxu0
  %2800 = vrot.lane.b32.xlu0 %v1003, 104
  %v2801 = vpop.permute.xlu0 %2800
  %2802 = vrot.lane.b32.xlu0 %v1008, 72
  %v2803 = vpop.permute.xlu0 %2802
  %v2805 = vsel %vm786, %v2801, 0
  %v2808 = vsel %vm786, %v2803, 0
  %2810 = vmatpush.bf16.xpose.msra.mxu0 0
  %2811 = vmatpush.bf16.xpose.msra.mxu0 0
  %2812 = vmatpush.bf16.xpose.msra.mxu0 0
  %2813 = vmatpush.bf16.xpose.msra.mxu0 0
  %2814 = vmatpush.bf16.xpose.msra.mxu0 0
  %2815 = vmatpush.bf16.xpose.msra.mxu0 0
  %2816 = vmatpush.bf16.xpose.msra.mxu0 0
  %2817 = vmatpush.bf16.xpose.msra.mxu0 %v2808
  %2818 = vmatmul.bf16.gmra.mxu0 %v2805
  %v2819 = vpop.f32.mrf.mxu0
  %v2820 = vadd.f32 %v772, %v2819
  %v2821 = vpop.f32.mrf.mxu0
  %v2822 = vadd.f32 %v773, %v2821
  %2823 = vdwg.mxu0
  %v2824 = vsel %vm1031, %v2652, -inf
  %2825 = vmax.xlane.f32.xlu0 %v2824
  %v2826 = vpop.xlane.xlu0 %2825
  %v2827 = vsel %vm1031, %v2654, -inf
  %2828 = vmax.xlane.f32.xlu0 %v2827
  %v2829 = vpop.xlane.xlu0 %2828
  %v2830 = vsel %vm1031, %v2676, -inf
  %2831 = vmax.xlane.f32.xlu0 %v2830
  %v2832 = vpop.xlane.xlu0 %2831
  %v2833 = vsel %vm1031, %v2678, -inf
  %2834 = vmax.xlane.f32.xlu0 %v2833
  %v2835 = vpop.xlane.xlu0 %2834
  %v2836 = vsel %vm1031, %v2700, -inf
  %2837 = vmax.xlane.f32.xlu0 %v2836
  %v2838 = vpop.xlane.xlu0 %2837
  %v2839 = vsel %vm1031, %v2702, -inf
  %2840 = vmax.xlane.f32.xlu0 %v2839
  %v2841 = vpop.xlane.xlu0 %2840
  %v2842 = vsel %vm1031, %v2724, -inf
  %2843 = vmax.xlane.f32.xlu0 %v2842
  %v2844 = vpop.xlane.xlu0 %2843
  %v2845 = vsel %vm1031, %v2726, -inf
  %2846 = vmax.xlane.f32.xlu0 %v2845
  %v2847 = vpop.xlane.xlu0 %2846
  %v2848 = vsel %vm1031, %v2748, -inf
  %2849 = vmax.xlane.f32.xlu0 %v2848
  %v2850 = vpop.xlane.xlu0 %2849
  %v2851 = vsel %vm1031, %v2750, -inf
  %2852 = vmax.xlane.f32.xlu0 %v2851
  %v2853 = vpop.xlane.xlu0 %2852
  %v2854 = vsel %vm1031, %v2772, -inf
  %2855 = vmax.xlane.f32.xlu0 %v2854
  %v2856 = vpop.xlane.xlu0 %2855
  %v2857 = vsel %vm1031, %v2774, -inf
  %2858 = vmax.xlane.f32.xlu0 %v2857
  %v2859 = vpop.xlane.xlu0 %2858
  %v2860 = vsel %vm1031, %v2796, -inf
  %2861 = vmax.xlane.f32.xlu0 %v2860
  %v2862 = vpop.xlane.xlu0 %2861
  %v2863 = vsel %vm1031, %v2798, -inf
  %2864 = vmax.xlane.f32.xlu0 %v2863
  %v2865 = vpop.xlane.xlu0 %2864
  %v2866 = vsel %vm1031, %v2820, -inf
  %2867 = vmax.xlane.f32.xlu0 %v2866
  %v2868 = vpop.xlane.xlu0 %2867
  %v2869 = vsel %vm1031, %v2822, -inf
  %2870 = vmax.xlane.f32.xlu0 %v2869
  %v2871 = vpop.xlane.xlu0 %2870
  %v2872 = vsub.f32 %v2652, %v2826
  %v2873 = vsub.f32 %v2654, %v2829
  %v2874 = vsub.f32 %v2676, %v2832
  %v2875 = vsub.f32 %v2678, %v2835
  %v2876 = vsub.f32 %v2700, %v2838
  %v2877 = vsub.f32 %v2702, %v2841
  %v2878 = vsub.f32 %v2724, %v2844
  %v2879 = vsub.f32 %v2726, %v2847
  %v2880 = vsub.f32 %v2748, %v2850
  %v2881 = vsub.f32 %v2750, %v2853
  %v2882 = vsub.f32 %v2772, %v2856
  %v2883 = vsub.f32 %v2774, %v2859
  %v2884 = vsub.f32 %v2796, %v2862
  %v2885 = vsub.f32 %v2798, %v2865
  %v2886 = vsub.f32 %v2820, %v2868
  %v2887 = vsub.f32 %v2822, %v2871
  %v2888 = vmul.f32 %v2872, 1.442695
  %v2889 = vpow.pop %v2888
  %v2890 = vmul.f32 %v2873, 1.442695
  %v2891 = vpow.pop %v2890
  %v2892 = vmul.f32 %v2874, 1.442695
  %v2893 = vpow.pop %v2892
  %v2894 = vmul.f32 %v2875, 1.442695
  %v2895 = vpow.pop %v2894
  %v2896 = vmul.f32 %v2876, 1.442695
  %v2897 = vpow.pop %v2896
  %v2898 = vmul.f32 %v2877, 1.442695
  %v2899 = vpow.pop %v2898
  %v2900 = vmul.f32 %v2878, 1.442695
  %v2901 = vpow.pop %v2900
  %v2902 = vmul.f32 %v2879, 1.442695
  %v2903 = vpow.pop %v2902
  %v2904 = vmul.f32 %v2880, 1.442695
  %v2905 = vpow.pop %v2904
  %v2906 = vmul.f32 %v2881, 1.442695
  %v2907 = vpow.pop %v2906
  %v2908 = vmul.f32 %v2882, 1.442695
  %v2909 = vpow.pop %v2908
  %v2910 = vmul.f32 %v2883, 1.442695
  %v2911 = vpow.pop %v2910
  %v2912 = vmul.f32 %v2884, 1.442695
  %v2913 = vpow.pop %v2912
  %v2914 = vmul.f32 %v2885, 1.442695
  %v2915 = vpow.pop %v2914
  %v2916 = vmul.f32 %v2886, 1.442695
  %v2917 = vpow.pop %v2916
  %v2918 = vmul.f32 %v2887, 1.442695
  %v2919 = vpow.pop %v2918
  %v2920 = vsel %vm1031, %v2889, 0.0
  %2921 = vadd.xlane.f32.xlu0 %v2920
  %v2922 = vpop.xlane.xlu0 %2921
  %v2923 = vsel %vm1031, %v2891, 0.0
  %2924 = vadd.xlane.f32.xlu0 %v2923
  %v2925 = vpop.xlane.xlu0 %2924
  %v2926 = vsel %vm1031, %v2893, 0.0
  %2927 = vadd.xlane.f32.xlu0 %v2926
  %v2928 = vpop.xlane.xlu0 %2927
  %v2929 = vsel %vm1031, %v2895, 0.0
  %2930 = vadd.xlane.f32.xlu0 %v2929
  %v2931 = vpop.xlane.xlu0 %2930
  %v2932 = vsel %vm1031, %v2897, 0.0
  %2933 = vadd.xlane.f32.xlu0 %v2932
  %v2934 = vpop.xlane.xlu0 %2933
  %v2935 = vsel %vm1031, %v2899, 0.0
  %2936 = vadd.xlane.f32.xlu0 %v2935
  %v2937 = vpop.xlane.xlu0 %2936
  %v2938 = vsel %vm1031, %v2901, 0.0
  %2939 = vadd.xlane.f32.xlu0 %v2938
  %v2940 = vpop.xlane.xlu0 %2939
  %v2941 = vsel %vm1031, %v2903, 0.0
  %2942 = vadd.xlane.f32.xlu0 %v2941
  %v2943 = vpop.xlane.xlu0 %2942
  %v2944 = vsel %vm1031, %v2905, 0.0
  %2945 = vadd.xlane.f32.xlu0 %v2944
  %v2946 = vpop.xlane.xlu0 %2945
  %v2947 = vsel %vm1031, %v2907, 0.0
  %2948 = vadd.xlane.f32.xlu0 %v2947
  %v2949 = vpop.xlane.xlu0 %2948
  %v2950 = vsel %vm1031, %v2909, 0.0
  %2951 = vadd.xlane.f32.xlu0 %v2950
  %v2952 = vpop.xlane.xlu0 %2951
  %v2953 = vsel %vm1031, %v2911, 0.0
  %2954 = vadd.xlane.f32.xlu0 %v2953
  %v2955 = vpop.xlane.xlu0 %2954
  %v2956 = vsel %vm1031, %v2913, 0.0
  %2957 = vadd.xlane.f32.xlu0 %v2956
  %v2958 = vpop.xlane.xlu0 %2957
  %v2959 = vsel %vm1031, %v2915, 0.0
  %2960 = vadd.xlane.f32.xlu0 %v2959
  %v2961 = vpop.xlane.xlu0 %2960
  %v2962 = vsel %vm1031, %v2917, 0.0
  %2963 = vadd.xlane.f32.xlu0 %v2962
  %v2964 = vpop.xlane.xlu0 %2963
  %v2965 = vsel %vm1031, %v2919, 0.0
  %2966 = vadd.xlane.f32.xlu0 %v2965
  %v2967 = vpop.xlane.xlu0 %2966
  %v2968 = vrcp.pop %v2922
  %v2969 = vrcp.pop %v2925
  %v2970 = vrcp.pop %v2928
  %v2971 = vrcp.pop %v2931
  %v2972 = vrcp.pop %v2934
  %v2973 = vrcp.pop %v2937
  %v2974 = vrcp.pop %v2940
  %v2975 = vrcp.pop %v2943
  %v2976 = vrcp.pop %v2946
  %v2977 = vrcp.pop %v2949
  %v2978 = vrcp.pop %v2952
  %v2979 = vrcp.pop %v2955
  %v2980 = vrcp.pop %v2958
  %v2981 = vrcp.pop %v2961
  %v2982 = vrcp.pop %v2964
  %v2983 = vrcp.pop %v2967
  %v2984 = vmul.f32 %v2889, %v2968
  %v2985 = vmul.f32 %v2891, %v2969
  %v2986 = vmul.f32 %v2893, %v2970
  %v2987 = vmul.f32 %v2895, %v2971
  %v2988 = vmul.f32 %v2897, %v2972
  %v2989 = vmul.f32 %v2899, %v2973
  %v2990 = vmul.f32 %v2901, %v2974
  %v2991 = vmul.f32 %v2903, %v2975
  %v2992 = vmul.f32 %v2905, %v2976
  %v2993 = vmul.f32 %v2907, %v2977
  %v2994 = vmul.f32 %v2909, %v2978
  %v2995 = vmul.f32 %v2911, %v2979
  %v2996 = vmul.f32 %v2913, %v2980
  %v2997 = vmul.f32 %v2915, %v2981
  %v2998 = vmul.f32 %v2917, %v2982
  %v2999 = vmul.f32 %v2919, %v2983
  %v3000 = vpack.c.bf16 %v2984, %v2984
  %v3001 = vpack.c.bf16 %v2985, %v2985
  %v3002 = vpack.c.bf16 %v2986, %v2986
  %v3003 = vpack.c.bf16 %v2987, %v2987
  %v3004 = vpack.c.bf16 %v2988, %v2988
  %v3005 = vpack.c.bf16 %v2989, %v2989
  %v3006 = vpack.c.bf16 %v2990, %v2990
  %v3007 = vpack.c.bf16 %v2991, %v2991
  %v3008 = vpack.c.bf16 %v2992, %v2992
  %v3009 = vpack.c.bf16 %v2993, %v2993
  %v3010 = vpack.c.bf16 %v2994, %v2994
  %v3011 = vpack.c.bf16 %v2995, %v2995
  %v3012 = vpack.c.bf16 %v2996, %v2996
  %v3013 = vpack.c.bf16 %v2997, %v2997
  %v3014 = vpack.c.bf16 %v2998, %v2998
  %v3015 = vpack.c.bf16 %v2999, %v2999
  %v3018 = vunpack.c.l.b16 %v3000
  %v3019 = vunpack.c.l.b16 %v3001
  %v3020 = vpack.c.b16 %v3019, %v3018
  %3021 = vrot.lane.b32.xlu0 %v1233, 40
  %v3022 = vpop.permute.xlu0 %3021
  %v3025 = vsel %vm1031, %v3020, 0
  %3027 = vmatpush.bf16.msra.mxu0 0
  %3028 = vmatpush.bf16.msra.mxu0 0
  %3029 = vmatpush.bf16.msra.mxu0 0
  %3030 = vmatpush.bf16.msra.mxu0 0
  %3031 = vmatpush.bf16.msra.mxu0 0
  %3032 = vmatpush.bf16.msra.mxu0 0
  %3033 = vmatpush.bf16.msra.mxu0 0
  %3034 = vmatpush.bf16.msra.mxu0 %v3022
  %3035 = vmatmul.bf16.gmra.mxu0 %v3025
  %v3036 = vpop.f32.mrf.mxu0
  %v3037 = vadd.f32 0.0, %v3036
  %v3038 = vpop.f32.mrf.mxu0
  %v3039 = vadd.f32 0.0, %v3038
  %3040 = vdwg.mxu0
  %v3043 = vunpack.c.l.b16 %v3002
  %v3044 = vunpack.c.l.b16 %v3003
  %v3045 = vpack.c.b16 %v3044, %v3043
  %3046 = vrot.lane.b32.xlu0 %v1263, 40
  %v3047 = vpop.permute.xlu0 %3046
  %v3050 = vsel %vm1031, %v3045, 0
  %3052 = vmatpush.bf16.msra.mxu0 0
  %3053 = vmatpush.bf16.msra.mxu0 0
  %3054 = vmatpush.bf16.msra.mxu0 0
  %3055 = vmatpush.bf16.msra.mxu0 0
  %3056 = vmatpush.bf16.msra.mxu0 0
  %3057 = vmatpush.bf16.msra.mxu0 0
  %3058 = vmatpush.bf16.msra.mxu0 0
  %3059 = vmatpush.bf16.msra.mxu0 %v3047
  %3060 = vmatmul.bf16.gmra.mxu0 %v3050
  %v3061 = vpop.f32.mrf.mxu0
  %v3062 = vadd.f32 0.0, %v3061
  %v3063 = vpop.f32.mrf.mxu0
  %v3064 = vadd.f32 0.0, %v3063
  %3065 = vdwg.mxu0
  %v3068 = vunpack.c.l.b16 %v3004
  %v3069 = vunpack.c.l.b16 %v3005
  %v3070 = vpack.c.b16 %v3069, %v3068
  %3071 = vrot.lane.b32.xlu0 %v1293, 40
  %v3072 = vpop.permute.xlu0 %3071
  %v3075 = vsel %vm1031, %v3070, 0
  %3077 = vmatpush.bf16.msra.mxu0 0
  %3078 = vmatpush.bf16.msra.mxu0 0
  %3079 = vmatpush.bf16.msra.mxu0 0
  %3080 = vmatpush.bf16.msra.mxu0 0
  %3081 = vmatpush.bf16.msra.mxu0 0
  %3082 = vmatpush.bf16.msra.mxu0 0
  %3083 = vmatpush.bf16.msra.mxu0 0
  %3084 = vmatpush.bf16.msra.mxu0 %v3072
  %3085 = vmatmul.bf16.gmra.mxu0 %v3075
  %v3086 = vpop.f32.mrf.mxu0
  %v3087 = vadd.f32 0.0, %v3086
  %v3088 = vpop.f32.mrf.mxu0
  %v3089 = vadd.f32 0.0, %v3088
  %3090 = vdwg.mxu0
  %v3093 = vunpack.c.l.b16 %v3006
  %v3094 = vunpack.c.l.b16 %v3007
  %v3095 = vpack.c.b16 %v3094, %v3093
  %3096 = vrot.lane.b32.xlu0 %v1323, 40
  %v3097 = vpop.permute.xlu0 %3096
  %v3100 = vsel %vm1031, %v3095, 0
  %3102 = vmatpush.bf16.msra.mxu0 0
  %3103 = vmatpush.bf16.msra.mxu0 0
  %3104 = vmatpush.bf16.msra.mxu0 0
  %3105 = vmatpush.bf16.msra.mxu0 0
  %3106 = vmatpush.bf16.msra.mxu0 0
  %3107 = vmatpush.bf16.msra.mxu0 0
  %3108 = vmatpush.bf16.msra.mxu0 0
  %3109 = vmatpush.bf16.msra.mxu0 %v3097
  %3110 = vmatmul.bf16.gmra.mxu0 %v3100
  %v3111 = vpop.f32.mrf.mxu0
  %v3112 = vadd.f32 0.0, %v3111
  %v3113 = vpop.f32.mrf.mxu0
  %v3114 = vadd.f32 0.0, %v3113
  %3115 = vdwg.mxu0
  %v3118 = vunpack.c.l.b16 %v3008
  %v3119 = vunpack.c.l.b16 %v3009
  %v3120 = vpack.c.b16 %v3119, %v3118
  %3121 = vrot.lane.b32.xlu0 %v1353, 40
  %v3122 = vpop.permute.xlu0 %3121
  %v3125 = vsel %vm1031, %v3120, 0
  %3127 = vmatpush.bf16.msra.mxu0 0
  %3128 = vmatpush.bf16.msra.mxu0 0
  %3129 = vmatpush.bf16.msra.mxu0 0
  %3130 = vmatpush.bf16.msra.mxu0 0
  %3131 = vmatpush.bf16.msra.mxu0 0
  %3132 = vmatpush.bf16.msra.mxu0 0
  %3133 = vmatpush.bf16.msra.mxu0 0
  %3134 = vmatpush.bf16.msra.mxu0 %v3122
  %3135 = vmatmul.bf16.gmra.mxu0 %v3125
  %v3136 = vpop.f32.mrf.mxu0
  %v3137 = vadd.f32 0.0, %v3136
  %v3138 = vpop.f32.mrf.mxu0
  %v3139 = vadd.f32 0.0, %v3138
  %3140 = vdwg.mxu0
  %v3143 = vunpack.c.l.b16 %v3010
  %v3144 = vunpack.c.l.b16 %v3011
  %v3145 = vpack.c.b16 %v3144, %v3143
  %3146 = vrot.lane.b32.xlu0 %v1383, 40
  %v3147 = vpop.permute.xlu0 %3146
  %v3150 = vsel %vm1031, %v3145, 0
  %3152 = vmatpush.bf16.msra.mxu0 0
  %3153 = vmatpush.bf16.msra.mxu0 0
  %3154 = vmatpush.bf16.msra.mxu0 0
  %3155 = vmatpush.bf16.msra.mxu0 0
  %3156 = vmatpush.bf16.msra.mxu0 0
  %3157 = vmatpush.bf16.msra.mxu0 0
  %3158 = vmatpush.bf16.msra.mxu0 0
  %3159 = vmatpush.bf16.msra.mxu0 %v3147
  %3160 = vmatmul.bf16.gmra.mxu0 %v3150
  %v3161 = vpop.f32.mrf.mxu0
  %v3162 = vadd.f32 0.0, %v3161
  %v3163 = vpop.f32.mrf.mxu0
  %v3164 = vadd.f32 0.0, %v3163
  %3165 = vdwg.mxu0
  %v3168 = vunpack.c.l.b16 %v3012
  %v3169 = vunpack.c.l.b16 %v3013
  %v3170 = vpack.c.b16 %v3169, %v3168
  %3171 = vrot.lane.b32.xlu0 %v1413, 40
  %v3172 = vpop.permute.xlu0 %3171
  %v3175 = vsel %vm1031, %v3170, 0
  %3177 = vmatpush.bf16.msra.mxu0 0
  %3178 = vmatpush.bf16.msra.mxu0 0
  %3179 = vmatpush.bf16.msra.mxu0 0
  %3180 = vmatpush.bf16.msra.mxu0 0
  %3181 = vmatpush.bf16.msra.mxu0 0
  %3182 = vmatpush.bf16.msra.mxu0 0
  %3183 = vmatpush.bf16.msra.mxu0 0
  %3184 = vmatpush.bf16.msra.mxu0 %v3172
  %3185 = vmatmul.bf16.gmra.mxu0 %v3175
  %v3186 = vpop.f32.mrf.mxu0
  %v3187 = vadd.f32 0.0, %v3186
  %v3188 = vpop.f32.mrf.mxu0
  %v3189 = vadd.f32 0.0, %v3188
  %3190 = vdwg.mxu0
  %v3193 = vunpack.c.l.b16 %v3014
  %v3194 = vunpack.c.l.b16 %v3015
  %v3195 = vpack.c.b16 %v3194, %v3193
  %3196 = vrot.lane.b32.xlu0 %v1443, 40
  %v3197 = vpop.permute.xlu0 %3196
  %v3200 = vsel %vm1031, %v3195, 0
  %3202 = vmatpush.bf16.msra.mxu0 0
  %3203 = vmatpush.bf16.msra.mxu0 0
  %3204 = vmatpush.bf16.msra.mxu0 0
  %3205 = vmatpush.bf16.msra.mxu0 0
  %3206 = vmatpush.bf16.msra.mxu0 0
  %3207 = vmatpush.bf16.msra.mxu0 0
  %3208 = vmatpush.bf16.msra.mxu0 0
  %3209 = vmatpush.bf16.msra.mxu0 %v3197
  %3210 = vmatmul.bf16.gmra.mxu0 %v3200
  %v3211 = vpop.f32.mrf.mxu0
  %v3212 = vadd.f32 0.0, %v3211
  %v3213 = vpop.f32.mrf.mxu0
  %v3214 = vadd.f32 0.0, %v3213
  %3215 = vdwg.mxu0
  %3232 = vrot.lane.b32.xlu0 %v1869, 8
  %v3233 = vpop.permute.xlu0 %3232
  %3234 = vrot.lane.b32.xlu0 %v1871, 8
  %v3235 = vpop.permute.xlu0 %3234
  %3236 = vrot.lane.b32.xlu0 %v1894, 8
  %v3237 = vpop.permute.xlu0 %3236
  %3238 = vrot.lane.b32.xlu0 %v1896, 8
  %v3239 = vpop.permute.xlu0 %3238
  %3240 = vrot.lane.b32.xlu0 %v1919, 8
  %v3241 = vpop.permute.xlu0 %3240
  %3242 = vrot.lane.b32.xlu0 %v1921, 8
  %v3243 = vpop.permute.xlu0 %3242
  %3244 = vrot.lane.b32.xlu0 %v1944, 8
  %v3245 = vpop.permute.xlu0 %3244
  %3246 = vrot.lane.b32.xlu0 %v1946, 8
  %v3247 = vpop.permute.xlu0 %3246
  %3248 = vrot.lane.b32.xlu0 %v1969, 8
  %v3249 = vpop.permute.xlu0 %3248
  %3250 = vrot.lane.b32.xlu0 %v1971, 8
  %v3251 = vpop.permute.xlu0 %3250
  %3252 = vrot.lane.b32.xlu0 %v1994, 8
  %v3253 = vpop.permute.xlu0 %3252
  %3254 = vrot.lane.b32.xlu0 %v1996, 8
  %v3255 = vpop.permute.xlu0 %3254
  %3256 = vrot.lane.b32.xlu0 %v2019, 8
  %v3257 = vpop.permute.xlu0 %3256
  %3258 = vrot.lane.b32.xlu0 %v2021, 8
  %v3259 = vpop.permute.xlu0 %3258
  %3260 = vrot.lane.b32.xlu0 %v2044, 8
  %v3261 = vpop.permute.xlu0 %3260
  %3262 = vrot.lane.b32.xlu0 %v2046, 8
  %v3263 = vpop.permute.xlu0 %3262
  %3296 = vrot.lane.b32.xlu0 %v2453, 16
  %v3297 = vpop.permute.xlu0 %3296
  %3298 = vrot.lane.b32.xlu0 %v2455, 16
  %v3299 = vpop.permute.xlu0 %3298
  %3300 = vrot.lane.b32.xlu0 %v2478, 16
  %v3301 = vpop.permute.xlu0 %3300
  %3302 = vrot.lane.b32.xlu0 %v2480, 16
  %v3303 = vpop.permute.xlu0 %3302
  %3304 = vrot.lane.b32.xlu0 %v2503, 16
  %v3305 = vpop.permute.xlu0 %3304
  %3306 = vrot.lane.b32.xlu0 %v2505, 16
  %v3307 = vpop.permute.xlu0 %3306
  %3308 = vrot.lane.b32.xlu0 %v2528, 16
  %v3309 = vpop.permute.xlu0 %3308
  %3310 = vrot.lane.b32.xlu0 %v2530, 16
  %v3311 = vpop.permute.xlu0 %3310
  %3312 = vrot.lane.b32.xlu0 %v2553, 16
  %v3313 = vpop.permute.xlu0 %3312
  %3314 = vrot.lane.b32.xlu0 %v2555, 16
  %v3315 = vpop.permute.xlu0 %3314
  %3316 = vrot.lane.b32.xlu0 %v2578, 16
  %v3317 = vpop.permute.xlu0 %3316
  %3318 = vrot.lane.b32.xlu0 %v2580, 16
  %v3319 = vpop.permute.xlu0 %3318
  %3320 = vrot.lane.b32.xlu0 %v2603, 16
  %v3321 = vpop.permute.xlu0 %3320
  %3322 = vrot.lane.b32.xlu0 %v2605, 16
  %v3323 = vpop.permute.xlu0 %3322
  %3324 = vrot.lane.b32.xlu0 %v2628, 16
  %v3325 = vpop.permute.xlu0 %3324
  %3326 = vrot.lane.b32.xlu0 %v2630, 16
  %v3327 = vpop.permute.xlu0 %3326
  %3360 = vrot.lane.b32.xlu0 %v3037, 24
  %v3361 = vpop.permute.xlu0 %3360
  %3362 = vrot.lane.b32.xlu0 %v3039, 24
  %v3363 = vpop.permute.xlu0 %3362
  %3364 = vrot.lane.b32.xlu0 %v3062, 24
  %v3365 = vpop.permute.xlu0 %3364
  %3366 = vrot.lane.b32.xlu0 %v3064, 24
  %v3367 = vpop.permute.xlu0 %3366
  %3368 = vrot.lane.b32.xlu0 %v3087, 24
  %v3369 = vpop.permute.xlu0 %3368
  %3370 = vrot.lane.b32.xlu0 %v3089, 24
  %v3371 = vpop.permute.xlu0 %3370
  %3372 = vrot.lane.b32.xlu0 %v3112, 24
  %v3373 = vpop.permute.xlu0 %3372
  %3374 = vrot.lane.b32.xlu0 %v3114, 24
  %v3375 = vpop.permute.xlu0 %3374
  %3376 = vrot.lane.b32.xlu0 %v3137, 24
  %v3377 = vpop.permute.xlu0 %3376
  %3378 = vrot.lane.b32.xlu0 %v3139, 24
  %v3379 = vpop.permute.xlu0 %3378
  %3380 = vrot.lane.b32.xlu0 %v3162, 24
  %v3381 = vpop.permute.xlu0 %3380
  %3382 = vrot.lane.b32.xlu0 %v3164, 24
  %v3383 = vpop.permute.xlu0 %3382
  %3384 = vrot.lane.b32.xlu0 %v3187, 24
  %v3385 = vpop.permute.xlu0 %3384
  %3386 = vrot.lane.b32.xlu0 %v3189, 24
  %v3387 = vpop.permute.xlu0 %3386
  %3388 = vrot.lane.b32.xlu0 %v3212, 24
  %v3389 = vpop.permute.xlu0 %3388
  %3390 = vrot.lane.b32.xlu0 %v3214, 24
  %v3391 = vpop.permute.xlu0 %3390
  %v3408 = vsel %vm786, %v1250, %v3233
  %v3409 = vsel %vm786, %v1252, %v3235
  %v3410 = vsel %vm786, %v1280, %v3237
  %v3411 = vsel %vm786, %v1282, %v3239
  %v3412 = vsel %vm786, %v1310, %v3241
  %v3413 = vsel %vm786, %v1312, %v3243
  %v3414 = vsel %vm786, %v1340, %v3245
  %v3415 = vsel %vm786, %v1342, %v3247
  %v3416 = vsel %vm786, %v1370, %v3249
  %v3417 = vsel %vm786, %v1372, %v3251
  %v3418 = vsel %vm786, %v1400, %v3253
  %v3419 = vsel %vm786, %v1402, %v3255
  %v3420 = vsel %vm786, %v1430, %v3257
  %v3421 = vsel %vm786, %v1432, %v3259
  %v3422 = vsel %vm786, %v1460, %v3261
  %v3423 = vsel %vm786, %v1462, %v3263
  %v3424 = vsel %vm1031, %v3408, %v3297
  %v3425 = vsel %vm1031, %v3409, %v3299
  %v3426 = vsel %vm1031, %v3410, %v3301
  %v3427 = vsel %vm1031, %v3411, %v3303
  %v3428 = vsel %vm1031, %v3412, %v3305
  %v3429 = vsel %vm1031, %v3413, %v3307
  %v3430 = vsel %vm1031, %v3414, %v3309
  %v3431 = vsel %vm1031, %v3415, %v3311
  %v3432 = vsel %vm1031, %v3416, %v3313
  %v3433 = vsel %vm1031, %v3417, %v3315
  %v3434 = vsel %vm1031, %v3418, %v3317
  %v3435 = vsel %vm1031, %v3419, %v3319
  %v3436 = vsel %vm1031, %v3420, %v3321
  %v3437 = vsel %vm1031, %v3421, %v3323
  %v3438 = vsel %vm1031, %v3422, %v3325
  %v3439 = vsel %vm1031, %v3423, %v3327
  %vm3440 = vcmask 195584
  %v3441 = vsel %vm3440, %v3424, %v3361
  %v3442 = vsel %vm3440, %v3425, %v3363
  %v3443 = vsel %vm3440, %v3426, %v3365
  %v3444 = vsel %vm3440, %v3427, %v3367
  %v3445 = vsel %vm3440, %v3428, %v3369
  %v3446 = vsel %vm3440, %v3429, %v3371
  %v3447 = vsel %vm3440, %v3430, %v3373
  %v3448 = vsel %vm3440, %v3431, %v3375
  %v3449 = vsel %vm3440, %v3432, %v3377
  %v3450 = vsel %vm3440, %v3433, %v3379
  %v3451 = vsel %vm3440, %v3434, %v3381
  %v3452 = vsel %vm3440, %v3435, %v3383
  %v3453 = vsel %vm3440, %v3436, %v3385
  %v3454 = vsel %vm3440, %v3437, %v3387
  %v3455 = vsel %vm3440, %v3438, %v3389
  %v3456 = vsel %vm3440, %v3439, %v3391
  %v3457 = vpack.c.bf16 %v3442, %v3441
  %v3458 = vpack.c.bf16 %v3444, %v3443
  %v3459 = vpack.c.bf16 %v3446, %v3445
  %v3460 = vpack.c.bf16 %v3448, %v3447
  %v3461 = vpack.c.bf16 %v3450, %v3449
  %v3462 = vpack.c.bf16 %v3452, %v3451
  %v3463 = vpack.c.bf16 %v3454, %v3453
  %v3464 = vpack.c.bf16 %v3456, %v3455
  %v3465 = vld [vmem:[%s7] sm:$0xf]
  %v3466 = vld [vmem:[%s7 + $0x4] sm:$0xf]
  %v3467 = vld [vmem:[%s7 + $0x8] sm:$0xf]
  %v3468 = vld [vmem:[%s7 + $0xc] sm:$0xf]
  %v3469 = vld [vmem:[%s8] sm:$0x1]
  %v3471 = vperm.slane %v3469, 0
  %v3477 = vunpack.c.l.b16 %v3465
  %v3478 = vunpack.c.l.b16 %v3466
  %v3479 = vunpack.c.l.b16 %v3467
  %v3480 = vunpack.c.l.b16 %v3468
  %v3481 = vpack.c.b16 %v3478, %v3477
  %v3482 = vpack.c.b16 %v3480, %v3479
  %v3486 = vsel %vm49, %v3457, 0
  %v3489 = vsel %vm49, %v3458, 0
  %v3492 = vsel %vm49, %v3459, 0
  %v3495 = vsel %vm49, %v3460, 0
  %v3498 = vsel %vm49, %v3461, 0
  %v3501 = vsel %vm49, %v3462, 0
  %v3504 = vsel %vm49, %v3463, 0
  %v3507 = vsel %vm49, %v3464, 0
  %3509 = vmatpush.bf16.msra.mxu0 0
  %3510 = vmatpush.bf16.msra.mxu0 0
  %3511 = vmatpush.bf16.msra.mxu0 0
  %3512 = vmatpush.bf16.msra.mxu0 0
  %3513 = vmatpush.bf16.msra.mxu0 0
  %3514 = vmatpush.bf16.msra.mxu0 0
  %3515 = vmatpush.bf16.msra.mxu0 %v3482
  %3516 = vmatpush.bf16.msra.mxu0 %v3481
  %3517 = vmatmul.bf16.gmra.mxu0 %v3486
  %v3518 = vpop.f32.mrf.mxu0
  %v3519 = vadd.f32 %v3471, %v3518
  %v3520 = vpop.f32.mrf.mxu0
  %v3521 = vadd.f32 %v3471, %v3520
  %3522 = vmatmul.bf16.gmra.mxu0 %v3489
  %v3523 = vpop.f32.mrf.mxu0
  %v3524 = vadd.f32 %v3471, %v3523
  %v3525 = vpop.f32.mrf.mxu0
  %v3526 = vadd.f32 %v3471, %v3525
  %3527 = vmatmul.bf16.gmra.mxu0 %v3492
  %v3528 = vpop.f32.mrf.mxu0
  %v3529 = vadd.f32 %v3471, %v3528
  %v3530 = vpop.f32.mrf.mxu0
  %v3531 = vadd.f32 %v3471, %v3530
  %3532 = vmatmul.bf16.gmra.mxu0 %v3495
  %v3533 = vpop.f32.mrf.mxu0
  %v3534 = vadd.f32 %v3471, %v3533
  %v3535 = vpop.f32.mrf.mxu0
  %v3536 = vadd.f32 %v3471, %v3535
  %3537 = vmatmul.bf16.gmra.mxu0 %v3498
  %v3538 = vpop.f32.mrf.mxu0
  %v3539 = vadd.f32 %v3471, %v3538
  %v3540 = vpop.f32.mrf.mxu0
  %v3541 = vadd.f32 %v3471, %v3540
  %3542 = vmatmul.bf16.gmra.mxu0 %v3501
  %v3543 = vpop.f32.mrf.mxu0
  %v3544 = vadd.f32 %v3471, %v3543
  %v3545 = vpop.f32.mrf.mxu0
  %v3546 = vadd.f32 %v3471, %v3545
  %3547 = vmatmul.bf16.gmra.mxu0 %v3504
  %v3548 = vpop.f32.mrf.mxu0
  %v3549 = vadd.f32 %v3471, %v3548
  %v3550 = vpop.f32.mrf.mxu0
  %v3551 = vadd.f32 %v3471, %v3550
  %3552 = vmatmul.bf16.gmra.mxu0 %v3507
  %v3553 = vpop.f32.mrf.mxu0
  %v3554 = vadd.f32 %v3471, %v3553
  %v3555 = vpop.f32.mrf.mxu0
  %v3556 = vadd.f32 %v3471, %v3555
  %3557 = vdwg.mxu0
  %3558 = vst.msk [vmem:[%s9] sm:$0xff] %vm49, %v3519
  %3559 = vst.msk [vmem:[%s9 + $0x8] sm:$0xff] %vm49, %v3521
  %3560 = vst.msk [vmem:[%s9 + $0x10] sm:$0xff] %vm49, %v3524
  %3561 = vst.msk [vmem:[%s9 + $0x18] sm:$0xff] %vm49, %v3526
  %3562 = vst.msk [vmem:[%s9 + $0x20] sm:$0xff] %vm49, %v3529
  %3563 = vst.msk [vmem:[%s9 + $0x28] sm:$0xff] %vm49, %v3531
  %3564 = vst.msk [vmem:[%s9 + $0x30] sm:$0xff] %vm49, %v3534
  %3565 = vst.msk [vmem:[%s9 + $0x38] sm:$0xff] %vm49, %v3536
  %3566 = vst.msk [vmem:[%s9 + $0x40] sm:$0xff] %vm49, %v3539
  %3567 = vst.msk [vmem:[%s9 + $0x48] sm:$0xff] %vm49, %v3541
  %3568 = vst.msk [vmem:[%s9 + $0x50] sm:$0xff] %vm49, %v3544
  %3569 = vst.msk [vmem:[%s9 + $0x58] sm:$0xff] %vm49, %v3546
  %3570 = vst.msk [vmem:[%s9 + $0x60] sm:$0xff] %vm49, %v3549
  %3571 = vst.msk [vmem:[%s9 + $0x68] sm:$0xff] %vm49, %v3551
  %3572 = vst.msk [vmem:[%s9 + $0x70] sm:$0xff] %vm49, %v3554
  %3573 = vst.msk [vmem:[%s9 + $0x78] sm:$0xff] %vm49, %v3556
  // Predicated region
  $region38: #{swin_transformer_forward.6} parent=0 // pred_check
    _
  $region39: #{swin_transformer_forward.6} parent=0 // pred_check_branch
    %3575 = sbr.rel (0) target = $region41
  $region40: #{swin_transformer_forward.6} parent=0 // pred_region
    _
  $region41: #{swin_transformer_forward.6} parent=0 // pred_fallthru
    _
  // Predicated region
  $region42: #{swin_transformer_forward.6} parent=0 // pred_check
    _
  $region43: #{swin_transformer_forward.6} parent=0 // pred_check_branch
    %3577 = sbr.rel (0) target = $region45
  $region44: #{swin_transformer_forward.6} parent=0 // pred_region
    _
  $region45: #{swin_transformer_forward.6} parent=0 // pred_fallthru
    _

</llo_original>
